<compile_context>
chip_gen: v7x
topology: tpu7x:2x2x1
jax: 0.10.0
libtpu: 0.0.40
codegen_flags: <defaults>
</compile_context>

<pallas_src>
import numpy as np
import jax
import jax.numpy as jnp
from jax import lax
from jax.experimental import pallas as pl
from jax.experimental.pallas import tpu as pltpu

EPS = 1e-5
CH = 64                       # hidden channel count hard-coded in the PyTorch module
MATMUL_DTYPE = jnp.bfloat16   # MXU operand dtype (accumulation stays f32)


# --------------------------------------------------------------------------------------
# shape bookkeeping shared by the weight prep, the kernel factory and the wrapper
# --------------------------------------------------------------------------------------
def _derive_dims(H, W):
    Ho1, Wo1 = H - 2, W - 2            # layer1 conv (valid)
    Hp1, Wp1 = Ho1 // 2, Wo1 // 2      # layer1 maxpool (floor)
    Ho2, Wo2 = Hp1 - 2, Wp1 - 2        # layer2 conv (valid)
    Hp2, Wp2 = Ho2 // 2, Wo2 // 2      # layer2 maxpool (floor)
    return dict(Ho1=Ho1, Wo1=Wo1, Hp1=Hp1, Wp1=Wp1,
                Ho2=Ho2, Wo2=Wo2, Hp2=Hp2, Wp2=Wp2, Hf=Hp2, Wf=Wp2)


# --------------------------------------------------------------------------------------
# host-side (numpy) construction of the fused banded conv weights
# --------------------------------------------------------------------------------------
def _banded_weights(w_hwio, *, v_in, cin, sw, w_in, w_out, pad):
    """HWIO kernel [3,3,cin,CH] -> fused banded weight [3*v_in*cin, w_out*CH].

    Input lanes: v_in blocks of cin (lane = v*cin + ci).  Physical block v carries
    logical input column w = v // sw iff v % sw == 0 and v // sw < w_in; other blocks
    are dead (zero weight rows) — this folds the W-maxpool stride-2 selection.
    Output lanes: w_out blocks of CH.  `pad` folds the conv W zero padding into the
    band.  The three dy taps are stacked along K so the kernel does ONE matmul.
    """
    w_hwio = np.asarray(w_hwio, np.float32)                 # [3, 3, cin, CH]
    out = np.zeros((3, v_in * cin, w_out * CH), np.float32)
    for dy in range(3):
        for v in range(v_in):
            if v % sw:
                continue
            wl = v // sw
            if wl >= w_in:
                continue
            for wo in range(w_out):
                dx = wl + pad - wo
                if 0 <= dx < 3:
                    out[dy, v * cin:(v + 1) * cin, wo * CH:(wo + 1) * CH] = w_hwio[dy, dx]
    return out.reshape(3 * v_in * cin, w_out * CH)


def prepare_emb_cnn_params(conv_ws_hwio, gammas, betas, input_reshape):
    """conv_ws_hwio: four conv kernels in HWIO layout [3, 3, Cin, 64].
    Conv biases are intentionally not taken: training-mode BatchNorm mean
    subtraction cancels them exactly."""
    Cin, H, W = input_reshape
    d = _derive_dims(H, W)
    cfgs = [
        dict(v_in=W,            cin=Cin, sw=1, w_in=W,         w_out=d['Wo1'], pad=0),
        dict(v_in=d['Wo1'] - 1, cin=CH,  sw=2, w_in=d['Wp1'],  w_out=d['Wo2'], pad=0),
        dict(v_in=d['Wo2'] - 1, cin=CH,  sw=2, w_in=d['Wp2'],  w_out=d['Wf'],  pad=1),
        dict(v_in=d['Wf'],      cin=CH,  sw=1, w_in=d['Wf'],   w_out=d['Wf'],  pad=1),
    ]
    w = tuple(jnp.asarray(_banded_weights(np.asarray(wk, np.float32), **c),
                          dtype=MATMUL_DTYPE)
              for wk, c in zip(conv_ws_hwio, cfgs))
    gamma = jnp.stack([jnp.asarray(g, jnp.float32).reshape(CH) for g in gammas])
    beta = jnp.stack([jnp.asarray(b, jnp.float32).reshape(CH) for b in betas])
    return dict(w=w, gamma=gamma, beta=beta)


# --------------------------------------------------------------------------------------
# the fused kernel
# --------------------------------------------------------------------------------------
def make_fused_kernel(B, Cin, H, W):
    d = _derive_dims(H, W)
    Ho1, Wo1, Hp1 = d['Ho1'], d['Wo1'], d['Hp1']
    Ho2, Wo2, Hp2 = d['Ho2'], d['Wo2'], d['Hp2']
    Hf, Wf = d['Hf'], d['Wf']
    P = H                         # fixed per-image row pitch for every layer
    R = B * H                     # slab row count (rows = b*P + physical row)

    def shift_rows(a, k):
        # out[r] = a[r + k], vacated rows zero-filled.  One slice + one concat on the
        # whole slab — op count independent of B (replaces the per-image slice chains).
        if k == 0:
            return a
        z = jnp.zeros((abs(k), a.shape[1]), a.dtype)
        if k > 0:
            return jnp.concatenate([a[k:, :], z], axis=0)
        return jnp.concatenate([z, a[:k, :]], axis=0)

    def lane_tile(v, reps):
        # [rows, CH] -> [rows, reps*CH] via log-depth repeated doubling (review item 5).
        built = {1: v}
        p = 1
        while 2 * p <= reps:
            built[2 * p] = jnp.concatenate([built[p], built[p]], axis=1)
            p *= 2
        pieces, rem = [], reps
        while rem:
            q = 1 << (rem.bit_length() - 1)
            pieces.append(built[q])
            rem -= q
        return pieces[0] if len(pieces) == 1 else jnp.concatenate(pieces, axis=1)

    def conv(a, w_ref, *, s, h_in, h_out, pad, rim):
        # a: [R, K] bf16, valid rows at physical stride s; w_ref: [3K, N] bf16.
        # ONE fused [R, 3K] x [3K, N] matmul per layer (review item 2).
        pieces = []
        for dy in range(3):
            o = dy - pad                              # logical row offset of this tap
            p = shift_rows(a, o * s)
            # zero taps that would read outside the image's valid input rows
            # (implements "padding=1" in H without materializing pad rows).
            if not (o >= 0 and (h_out - 1) + o < h_in):
                src = rim + o * s
                keep = jnp.logical_and(src >= 0, src < s * h_in)
                p = jnp.where(keep, p, jnp.zeros((), a.dtype))
            pieces.append(p)
        lhs = jnp.concatenate(pieces, axis=1)         # [R, 3K]
        return jnp.dot(lhs, w_ref[...], preferred_element_type=jnp.float32)

    def bn_relu(c, *, w_out, s, h_out, gamma, beta, rim):
        # Training-mode BatchNorm (biased stats over the valid N,H,W elements) +
        # affine + ReLU, applied as one per-channel FMA.  Garbage rows of the dilated
        # slab are masked out of the statistics only.
        n = float(B * h_out * w_out)
        valid = rim < s * h_out
        if s > 1:
            valid = jnp.logical_and(valid, rim % s == 0)
        cm = jnp.where(valid, c, 0.0)
        st = jnp.concatenate([jnp.sum(cm, axis=0, keepdims=True),
                              jnp.sum(cm * cm, axis=0, keepdims=True)], axis=0)
        # log2-depth fold of the w_out lane blocks -> per-channel [2, CH]
        width = w_out
        p2 = 1 << (width - 1).bit_length()
        if p2 != width:
            st = jnp.concatenate(
                [st, jnp.zeros((2, (p2 - width) * CH), st.dtype)], axis=1)
            width = p2
        while width > 1:
            half = width // 2
            st = st[:, :half * CH] + st[:, half * CH:]
            width = half
        mean = st[0:1, :] * (1.0 / n)
        var = jnp.maximum(st[1:2, :] * (1.0 / n) - mean * mean, 0.0)   # clamp (review)
        scale = gamma * lax.rsqrt(var + EPS)                           # rsqrt -> EUP
        shift = beta - mean * scale
        ss = lane_tile(jnp.concatenate([scale, shift], axis=0), w_out)  # [2, w_out*CH]
        return jnp.maximum(c * ss[0:1, :] + ss[1:2, :], 0.0)

    def pool_w(y, w_out):
        # adjacent w-block max; the stride-2 column *selection* is folded into the
        # next layer's banded weights (dead lane blocks -> zero rows).
        return jnp.maximum(y[:, :(w_out - 1) * CH], y[:, CH:])

    def pool_h(y, s):
        # adjacent valid-row max (valid rows are s apart); the stride-2 row selection
        # is folded into the doubled row stride used by the next layer's taps.
        return jnp.maximum(y, shift_rows(y, s))

    def kernel(x_ref, w1_ref, w2_ref, w3_ref, w4_ref, g_ref, bt_ref, o_ref):
        g = g_ref[...]                                    # [4, CH]
        bt = bt_ref[...]                                  # [4, CH]
        rim = lax.broadcasted_iota(jnp.int32, (R, 1), 0) % P   # row index within image

        a0 = x_ref[...]                                   # [R, W*Cin] bf16 (wrapper-built)

        # layer 1: conv3x3(valid) -> BN -> ReLU -> maxpool2        (row stride 1 -> 2)
        c1 = conv(a0, w1_ref, s=1, h_in=H, h_out=Ho1, pad=0, rim=rim)
        y1 = bn_relu(c1, w_out=Wo1, s=1, h_out=Ho1, gamma=g[0:1], beta=bt[0:1], rim=rim)
        a1 = pool_h(pool_w(y1, Wo1), 1).astype(MATMUL_DTYPE)

        # layer 2: conv3x3(valid) -> BN -> ReLU -> maxpool2        (row stride 2 -> 4)
        c2 = conv(a1, w2_ref, s=2, h_in=Hp1, h_out=Ho2, pad=0, rim=rim)
        y2 = bn_relu(c2, w_out=Wo2, s=2, h_out=Ho2, gamma=g[1:2], beta=bt[1:2], rim=rim)
        a2 = pool_h(pool_w(y2, Wo2), 2).astype(MATMUL_DTYPE)

        # layer 3: conv3x3(pad=1) -> BN -> ReLU                    (row stride 4)
        c3 = conv(a2, w3_ref, s=4, h_in=Hp2, h_out=Hf, pad=1, rim=rim)
        y3 = bn_relu(c3, w_out=Wf, s=4, h_out=Hf, gamma=g[2:3], beta=bt[2:3], rim=rim)

        # layer 4: conv3x3(pad=1) -> BN -> ReLU                    (row stride 4)
        c4 = conv(y3.astype(MATMUL_DTYPE), w4_ref, s=4, h_in=Hf, h_out=Hf, pad=1, rim=rim)
        y4 = bn_relu(c4, w_out=Wf, s=4, h_out=Hf, gamma=g[3:4], beta=bt[3:4], rim=rim)

        o_ref[...] = y4                                   # [R, Wf*CH], lane dense (128)

    return kernel


def emb_cnn_forward(x, prep, input_reshape):
    # matches: x_reshape = x.contiguous().view((-1,) + self.input_reshape)   (NCHW)
    Cin, H, W = input_reshape
    x = x.reshape((-1, Cin, H, W))
    B = x.shape[0]
    d = _derive_dims(H, W)
    Hf, Wf = d['Hf'], d['Wf']

    # input layout transform + bf16 cast done in XLA (review item 1):
    # NCHW -> [B*H, W*Cin] slab, row = b*H + h, lane = w*Cin + c.
    a0 = jnp.transpose(x, (0, 2, 3, 1)).reshape(B * H, W * Cin).astype(MATMUL_DTYPE)

    out = pl.pallas_call(
        make_fused_kernel(B, Cin, H, W),
        out_shape=jax.ShapeDtypeStruct((B * H, Wf * CH), jnp.float32),
        in_specs=[pl.BlockSpec(memory_space=pltpu.MemorySpace.VMEM)] * 7,
        out_specs=pl.BlockSpec(memory_space=pltpu.MemorySpace.VMEM),
    )(a0, prep['w'][0], prep['w'][1], prep['w'][2], prep['w'][3],
      prep['gamma'], prep['beta'])

    # extract the valid (row-stride-4) rows and convert to NCHW; tiny XLA glue.
    y = out.reshape(B, H, Wf, CH)[:, 0:4 * Hf:4]          # [B, Hf, Wf, CH]
    return jnp.transpose(y, (0, 3, 1, 2))                 # [B, CH, Hf, Wf]


# --------------------------------------------------------------------------------------
# pure-JAX f32 reference (keeps the conv bias that the kernel drops; BN cancels it)
# --------------------------------------------------------------------------------------
def _ref_layer(x, w_hwio, bias, gamma, beta, *, pool, pad):
    if pad:
        x = jnp.pad(x, ((0, 0), (1, 1), (1, 1), (0, 0)))
    y = lax.conv_general_dilated(
        x, w_hwio, window_strides=(1, 1), padding='VALID',
        dimension_numbers=('NHWC', 'HWIO', 'NHWC')) + bias.reshape(1, 1, 1, -1)
    mean = jnp.mean(y, axis=(0, 1, 2), keepdims=True)
    var = jnp.mean((y - mean) ** 2, axis=(0, 1, 2), keepdims=True)
    y = (y - mean) * lax.rsqrt(var + EPS) * gamma.reshape(1, 1, 1, -1) \
        + beta.reshape(1, 1, 1, -1)
    y = jnp.maximum(y, 0.0)
    if pool:
        y = lax.reduce_window(y, -jnp.inf, lax.max, (1, 2, 2, 1), (1, 2, 2, 1), 'VALID')
    return y


if __name__ == "__main__":
    B, C, H, W = 2, 4, 16, 16
    input_reshape = (C, H, W)            # dim_concat=None, TimeDistributed=False

    key = jax.random.PRNGKey(0)
    kx, kp = jax.random.split(key)
    x = jax.random.normal(kx, (B, C, H, W), jnp.float32)

    conv_ws, conv_bs, gammas, betas = [], [], [], []
    cin = C
    for _ in range(4):
        kp, kw, kb, kg, kbe = jax.random.split(kp, 5)
        bound = 1.0 / np.sqrt(cin * 9)
        w = jax.random.uniform(kw, (3, 3, cin, CH), jnp.float32, -bound, bound)
        w = w.astype(jnp.bfloat16).astype(jnp.float32)   # kernel uses bf16 MXU operands
        conv_ws.append(w)
        conv_bs.append(jax.random.uniform(kb, (CH,), jnp.float32, -bound, bound))
        gammas.append(jax.random.uniform(kg, (CH,), jnp.float32, 0.5, 1.5))
        betas.append(0.1 * jax.random.normal(kbe, (CH,), jnp.float32))
        cin = CH

    prep = prepare_emb_cnn_params(conv_ws, gammas, betas, input_reshape)

    fwd = jax.jit(emb_cnn_forward, static_argnums=2)
    y = jax.block_until_ready(fwd(x, prep, input_reshape))
    assert y.shape == (B, CH, 2, 2), y.shape

    # reference: identical math in f32 (incl. the conv bias that BN cancels).
    xr = x.astype(jnp.bfloat16).astype(jnp.float32)      # kernel rounds the input to bf16
    r = jnp.transpose(xr.reshape((-1,) + input_reshape), (0, 2, 3, 1))
    r = _ref_layer(r, conv_ws[0], conv_bs[0], gammas[0], betas[0], pool=True, pad=False)
    r = _ref_layer(r, conv_ws[1], conv_bs[1], gammas[1], betas[1], pool=True, pad=False)
    r = _ref_layer(r, conv_ws[2], conv_bs[2], gammas[2], betas[2], pool=False, pad=True)
    r = _ref_layer(r, conv_ws[3], conv_bs[3], gammas[3], betas[3], pool=False, pad=True)
    r = jnp.transpose(r, (0, 3, 1, 2))

    # tolerance covers bf16 matmul operands / activations vs. the f32 reference.
    np.testing.assert_allclose(np.asarray(y), np.asarray(r), rtol=2.5e-2, atol=3e-2)
    print("KERNEL_OK")
</pallas_src>

<mosaic_0001>
module attributes {stable_mosaic.version = 11 : i64} {
  func.func @kernel(%arg0: memref<32x64xbf16, #tpu.memory_space<vmem>>, %arg1: memref<192x896xbf16, #tpu.memory_space<vmem>>, %arg2: memref<2496x320xbf16, #tpu.memory_space<vmem>>, %arg3: memref<768x128xbf16, #tpu.memory_space<vmem>>, %arg4: memref<384x128xbf16, #tpu.memory_space<vmem>>, %arg5: memref<4x64xf32, #tpu.memory_space<vmem>>, %arg6: memref<4x64xf32, #tpu.memory_space<vmem>>, %arg7: memref<32x128xf32, #tpu.memory_space<vmem>>) attributes {dimension_semantics = [], scalar_prefetch = 0 : i64, scratch_operands = 0 : i64, tpu.core_type = #tpu.core_type<tc>} {
    %c0 = arith.constant 0 : index
    %c0_0 = arith.constant 0 : index
    %0 = vector.load %arg5[%c0, %c0_0] : memref<4x64xf32, #tpu.memory_space<vmem>>, vector<4x64xf32>
    %c0_1 = arith.constant 0 : index
    %c0_2 = arith.constant 0 : index
    %1 = vector.load %arg6[%c0_1, %c0_2] : memref<4x64xf32, #tpu.memory_space<vmem>>, vector<4x64xf32>
    %2 = tpu.iota {dimensions = array<i32: 0>} : vector<32x1xi32>
    %c16_i32 = arith.constant 16 : i32
    %c0_i32 = arith.constant 0 : i32
    %3 = arith.cmpi eq, %c16_i32, %c0_i32 : i32
    %c1_i32 = arith.constant 1 : i32
    %4 = arith.select %3, %c1_i32, %c16_i32 : i32
    %5 = vector.broadcast %4 : i32 to vector<32x1xi32>
    %6 = arith.remsi %2, %5 : vector<32x1xi32>
    %c0_i32_3 = arith.constant 0 : i32
    %7 = vector.broadcast %c0_i32_3 : i32 to vector<32x1xi32>
    %8 = arith.cmpi ne, %6, %7 : vector<32x1xi32>
    %c0_i32_4 = arith.constant 0 : i32
    %9 = vector.broadcast %c0_i32_4 : i32 to vector<32x1xi32>
    %10 = arith.cmpi slt, %6, %9 : vector<32x1xi32>
    %c0_i32_5 = arith.constant 0 : i32
    %11 = arith.cmpi slt, %4, %c0_i32_5 : i32
    %12 = vector.broadcast %11 : i1 to vector<32x1xi1>
    %13 = vector.broadcast %12 : vector<32x1xi1> to vector<32x1xi1>
    %14 = arith.xori %10, %13 : vector<32x1xi1>
    %15 = arith.andi %14, %8 : vector<32x1xi1>
    %16 = vector.broadcast %4 : i32 to vector<32x1xi32>
    %17 = arith.addi %6, %16 : vector<32x1xi32>
    %18 = arith.select %15, %17, %6 : vector<32x1xi1>, vector<32x1xi32>
    %c0_6 = arith.constant 0 : index
    %c0_7 = arith.constant 0 : index
    %19 = vector.load %arg0[%c0_6, %c0_7] : memref<32x64xbf16, #tpu.memory_space<vmem>>, vector<32x64xbf16>
    %cst = arith.constant 0.000000e+00 : bf16
    %20 = vector.broadcast %cst : bf16 to vector<1x64xbf16>
    %21 = vector.extract_strided_slice %19 {offsets = [1, 0], sizes = [31, 64], strides = [1, 1]} : vector<32x64xbf16> to vector<31x64xbf16>
    %22 = tpu.concatenate %21, %20 in 0 : vector<31x64xbf16>, vector<1x64xbf16> -> vector<32x64xbf16>
    %cst_8 = arith.constant 0.000000e+00 : bf16
    %23 = vector.broadcast %cst_8 : bf16 to vector<2x64xbf16>
    %24 = vector.extract_strided_slice %19 {offsets = [2, 0], sizes = [30, 64], strides = [1, 1]} : vector<32x64xbf16> to vector<30x64xbf16>
    %25 = tpu.concatenate %24, %23 in 0 : vector<30x64xbf16>, vector<2x64xbf16> -> vector<32x64xbf16>
    %26 = tpu.concatenate %19, %22, %25 in 1 : vector<32x64xbf16>, vector<32x64xbf16>, vector<32x64xbf16> -> vector<32x192xbf16>
    %c0_9 = arith.constant 0 : index
    %c0_10 = arith.constant 0 : index
    %27 = vector.load %arg1[%c0_9, %c0_10] : memref<192x896xbf16, #tpu.memory_space<vmem>>, vector<192x896xbf16>
    %cst_11 = arith.constant dense<0.000000e+00> : vector<32x896xf32>
    %28 = tpu.matmul %26, %27, %cst_11 {dimension_numbers = #tpu.dot_dimension_numbers<[1], [0], [0], [1], [0, 0, 1, 1], [], []>} : vector<32x192xbf16>, vector<192x896xbf16>, vector<32x896xf32> -> vector<32x896xf32>
    %29 = vector.extract_strided_slice %0 {offsets = [0, 0], sizes = [1, 64], strides = [1, 1]} : vector<4x64xf32> to vector<1x64xf32>
    %30 = vector.extract_strided_slice %1 {offsets = [0, 0], sizes = [1, 64], strides = [1, 1]} : vector<4x64xf32> to vector<1x64xf32>
    %c14_i32 = arith.constant 14 : i32
    %31 = vector.broadcast %c14_i32 : i32 to vector<32x1xi32>
    %32 = arith.cmpi slt, %18, %31 : vector<32x1xi32>
    %cst_12 = arith.constant 0.000000e+00 : f32
    %33 = vector.shape_cast %32 : vector<32x1xi1> to vector<32x1xi1>
    %34 = vector.broadcast %33 : vector<32x1xi1> to vector<32x896xi1>
    %35 = vector.broadcast %cst_12 : f32 to vector<32x896xf32>
    %36 = arith.select %34, %28, %35 : vector<32x896xi1>, vector<32x896xf32>
    %cst_13 = arith.constant dense<0.000000e+00> : vector<896xf32>
    %37 = vector.multi_reduction <add>, %36, %cst_13 [0] : vector<32x896xf32> to vector<896xf32>
    %38 = vector.shape_cast %37 : vector<896xf32> to vector<1x896xf32>
    %39 = arith.mulf %36, %36 : vector<32x896xf32>
    %cst_14 = arith.constant dense<0.000000e+00> : vector<896xf32>
    %40 = vector.multi_reduction <add>, %39, %cst_14 [0] : vector<32x896xf32> to vector<896xf32>
    %41 = vector.shape_cast %40 : vector<896xf32> to vector<1x896xf32>
    %42 = tpu.concatenate %38, %41 in 0 : vector<1x896xf32>, vector<1x896xf32> -> vector<2x896xf32>
    %cst_15 = arith.constant 0.000000e+00 : f32
    %43 = vector.broadcast %cst_15 : f32 to vector<2x128xf32>
    %44 = tpu.concatenate %42, %43 in 1 : vector<2x896xf32>, vector<2x128xf32> -> vector<2x1024xf32>
    %45 = vector.extract_strided_slice %44 {offsets = [0, 0], sizes = [2, 512], strides = [1, 1]} : vector<2x1024xf32> to vector<2x512xf32>
    %46 = vector.extract_strided_slice %44 {offsets = [0, 512], sizes = [2, 512], strides = [1, 1]} : vector<2x1024xf32> to vector<2x512xf32>
    %47 = arith.addf %45, %46 : vector<2x512xf32>
    %48 = vector.extract_strided_slice %47 {offsets = [0, 0], sizes = [2, 256], strides = [1, 1]} : vector<2x512xf32> to vector<2x256xf32>
    %49 = vector.extract_strided_slice %47 {offsets = [0, 256], sizes = [2, 256], strides = [1, 1]} : vector<2x512xf32> to vector<2x256xf32>
    %50 = arith.addf %48, %49 : vector<2x256xf32>
    %51 = vector.extract_strided_slice %50 {offsets = [0, 0], sizes = [2, 128], strides = [1, 1]} : vector<2x256xf32> to vector<2x128xf32>
    %52 = vector.extract_strided_slice %50 {offsets = [0, 128], sizes = [2, 128], strides = [1, 1]} : vector<2x256xf32> to vector<2x128xf32>
    %53 = arith.addf %51, %52 : vector<2x128xf32>
    %54 = vector.extract_strided_slice %53 {offsets = [0, 0], sizes = [2, 64], strides = [1, 1]} : vector<2x128xf32> to vector<2x64xf32>
    %55 = vector.extract_strided_slice %53 {offsets = [0, 64], sizes = [2, 64], strides = [1, 1]} : vector<2x128xf32> to vector<2x64xf32>
    %56 = arith.addf %54, %55 : vector<2x64xf32>
    %57 = vector.extract_strided_slice %56 {offsets = [0, 0], sizes = [1, 64], strides = [1, 1]} : vector<2x64xf32> to vector<1x64xf32>
    %cst_16 = arith.constant 0.00255102036 : f32
    %58 = vector.broadcast %cst_16 : f32 to vector<1x64xf32>
    %59 = arith.mulf %57, %58 : vector<1x64xf32>
    %60 = vector.extract_strided_slice %56 {offsets = [1, 0], sizes = [1, 64], strides = [1, 1]} : vector<2x64xf32> to vector<1x64xf32>
    %cst_17 = arith.constant 0.00255102036 : f32
    %61 = vector.broadcast %cst_17 : f32 to vector<1x64xf32>
    %62 = arith.mulf %60, %61 : vector<1x64xf32>
    %63 = arith.mulf %59, %59 : vector<1x64xf32>
    %64 = arith.subf %62, %63 : vector<1x64xf32>
    %cst_18 = arith.constant 0.000000e+00 : f32
    %65 = vector.broadcast %cst_18 : f32 to vector<1x64xf32>
    %66 = arith.maximumf %64, %65 : vector<1x64xf32>
    %cst_19 = arith.constant 9.99999974E-6 : f32
    %67 = vector.broadcast %cst_19 : f32 to vector<1x64xf32>
    %68 = arith.addf %66, %67 : vector<1x64xf32>
    %69 = math.rsqrt %68 : vector<1x64xf32>
    %70 = arith.mulf %29, %69 : vector<1x64xf32>
    %71 = arith.mulf %59, %70 : vector<1x64xf32>
    %72 = arith.subf %30, %71 : vector<1x64xf32>
    %73 = tpu.concatenate %70, %72 in 0 : vector<1x64xf32>, vector<1x64xf32> -> vector<2x64xf32>
    %74 = tpu.concatenate %73, %73 in 1 : vector<2x64xf32>, vector<2x64xf32> -> vector<2x128xf32>
    %75 = tpu.concatenate %74, %74 in 1 : vector<2x128xf32>, vector<2x128xf32> -> vector<2x256xf32>
    %76 = tpu.concatenate %75, %75 in 1 : vector<2x256xf32>, vector<2x256xf32> -> vector<2x512xf32>
    %77 = tpu.concatenate %76, %75, %74 in 1 : vector<2x512xf32>, vector<2x256xf32>, vector<2x128xf32> -> vector<2x896xf32>
    %78 = vector.extract_strided_slice %77 {offsets = [0, 0], sizes = [1, 896], strides = [1, 1]} : vector<2x896xf32> to vector<1x896xf32>
    %79 = vector.broadcast %78 : vector<1x896xf32> to vector<32x896xf32>
    %80 = arith.mulf %28, %79 : vector<32x896xf32>
    %81 = vector.extract_strided_slice %77 {offsets = [1, 0], sizes = [1, 896], strides = [1, 1]} : vector<2x896xf32> to vector<1x896xf32>
    %82 = vector.broadcast %81 : vector<1x896xf32> to vector<32x896xf32>
    %83 = arith.addf %80, %82 : vector<32x896xf32>
    %cst_20 = arith.constant 0.000000e+00 : f32
    %84 = vector.broadcast %cst_20 : f32 to vector<32x896xf32>
    %85 = arith.maximumf %83, %84 : vector<32x896xf32>
    %86 = vector.extract_strided_slice %85 {offsets = [0, 0], sizes = [32, 832], strides = [1, 1]} : vector<32x896xf32> to vector<32x832xf32>
    %87 = vector.extract_strided_slice %85 {offsets = [0, 64], sizes = [32, 832], strides = [1, 1]} : vector<32x896xf32> to vector<32x832xf32>
    %88 = arith.maximumf %86, %87 : vector<32x832xf32>
    %cst_21 = arith.constant 0.000000e+00 : f32
    %89 = vector.broadcast %cst_21 : f32 to vector<1x832xf32>
    %90 = vector.extract_strided_slice %88 {offsets = [1, 0], sizes = [31, 832], strides = [1, 1]} : vector<32x832xf32> to vector<31x832xf32>
    %91 = tpu.concatenate %90, %89 in 0 : vector<31x832xf32>, vector<1x832xf32> -> vector<32x832xf32>
    %92 = arith.maximumf %88, %91 : vector<32x832xf32>
    %93 = arith.truncf %92 : vector<32x832xf32> to vector<32x832xbf16>
    %cst_22 = arith.constant 0.000000e+00 : bf16
    %94 = vector.broadcast %cst_22 : bf16 to vector<2x832xbf16>
    %95 = vector.extract_strided_slice %93 {offsets = [2, 0], sizes = [30, 832], strides = [1, 1]} : vector<32x832xbf16> to vector<30x832xbf16>
    %96 = tpu.concatenate %95, %94 in 0 : vector<30x832xbf16>, vector<2x832xbf16> -> vector<32x832xbf16>
    %cst_23 = arith.constant 0.000000e+00 : bf16
    %97 = vector.broadcast %cst_23 : bf16 to vector<4x832xbf16>
    %98 = vector.extract_strided_slice %93 {offsets = [4, 0], sizes = [28, 832], strides = [1, 1]} : vector<32x832xbf16> to vector<28x832xbf16>
    %99 = tpu.concatenate %98, %97 in 0 : vector<28x832xbf16>, vector<4x832xbf16> -> vector<32x832xbf16>
    %100 = tpu.concatenate %93, %96, %99 in 1 : vector<32x832xbf16>, vector<32x832xbf16>, vector<32x832xbf16> -> vector<32x2496xbf16>
    %c0_24 = arith.constant 0 : index
    %c0_25 = arith.constant 0 : index
    %101 = vector.load %arg2[%c0_24, %c0_25] : memref<2496x320xbf16, #tpu.memory_space<vmem>>, vector<2496x320xbf16>
    %cst_26 = arith.constant dense<0.000000e+00> : vector<32x320xf32>
    %102 = tpu.matmul %100, %101, %cst_26 {dimension_numbers = #tpu.dot_dimension_numbers<[1], [0], [0], [1], [0, 0, 1, 1], [], []>} : vector<32x2496xbf16>, vector<2496x320xbf16>, vector<32x320xf32> -> vector<32x320xf32>
    %103 = vector.extract_strided_slice %0 {offsets = [1, 0], sizes = [1, 64], strides = [1, 1]} : vector<4x64xf32> to vector<1x64xf32>
    %104 = vector.extract_strided_slice %1 {offsets = [1, 0], sizes = [1, 64], strides = [1, 1]} : vector<4x64xf32> to vector<1x64xf32>
    %c10_i32 = arith.constant 10 : i32
    %105 = vector.broadcast %c10_i32 : i32 to vector<32x1xi32>
    %106 = arith.cmpi slt, %18, %105 : vector<32x1xi32>
    %c2_i32 = arith.constant 2 : i32
    %c0_i32_27 = arith.constant 0 : i32
    %107 = arith.cmpi eq, %c2_i32, %c0_i32_27 : i32
    %c1_i32_28 = arith.constant 1 : i32
    %108 = arith.select %107, %c1_i32_28, %c2_i32 : i32
    %109 = vector.broadcast %108 : i32 to vector<32x1xi32>
    %110 = arith.remsi %18, %109 : vector<32x1xi32>
    %c0_i32_29 = arith.constant 0 : i32
    %111 = vector.broadcast %c0_i32_29 : i32 to vector<32x1xi32>
    %112 = arith.cmpi ne, %110, %111 : vector<32x1xi32>
    %c0_i32_30 = arith.constant 0 : i32
    %113 = vector.broadcast %c0_i32_30 : i32 to vector<32x1xi32>
    %114 = arith.cmpi slt, %110, %113 : vector<32x1xi32>
    %c0_i32_31 = arith.constant 0 : i32
    %115 = arith.cmpi slt, %108, %c0_i32_31 : i32
    %116 = vector.broadcast %115 : i1 to vector<32x1xi1>
    %117 = vector.broadcast %116 : vector<32x1xi1> to vector<32x1xi1>
    %118 = arith.xori %114, %117 : vector<32x1xi1>
    %119 = arith.andi %118, %112 : vector<32x1xi1>
    %120 = vector.broadcast %108 : i32 to vector<32x1xi32>
    %121 = arith.addi %110, %120 : vector<32x1xi32>
    %122 = arith.select %119, %121, %110 : vector<32x1xi1>, vector<32x1xi32>
    %c0_i32_32 = arith.constant 0 : i32
    %123 = vector.broadcast %c0_i32_32 : i32 to vector<32x1xi32>
    %124 = arith.cmpi eq, %122, %123 : vector<32x1xi32>
    %125 = arith.andi %106, %124 : vector<32x1xi1>
    %cst_33 = arith.constant 0.000000e+00 : f32
    %126 = vector.shape_cast %125 : vector<32x1xi1> to vector<32x1xi1>
    %127 = vector.broadcast %126 : vector<32x1xi1> to vector<32x320xi1>
    %128 = vector.broadcast %cst_33 : f32 to vector<32x320xf32>
    %129 = arith.select %127, %102, %128 : vector<32x320xi1>, vector<32x320xf32>
    %cst_34 = arith.constant dense<0.000000e+00> : vector<320xf32>
    %130 = vector.multi_reduction <add>, %129, %cst_34 [0] : vector<32x320xf32> to vector<320xf32>
    %131 = vector.shape_cast %130 : vector<320xf32> to vector<1x320xf32>
    %132 = arith.mulf %129, %129 : vector<32x320xf32>
    %cst_35 = arith.constant dense<0.000000e+00> : vector<320xf32>
    %133 = vector.multi_reduction <add>, %132, %cst_35 [0] : vector<32x320xf32> to vector<320xf32>
    %134 = vector.shape_cast %133 : vector<320xf32> to vector<1x320xf32>
    %135 = tpu.concatenate %131, %134 in 0 : vector<1x320xf32>, vector<1x320xf32> -> vector<2x320xf32>
    %cst_36 = arith.constant 0.000000e+00 : f32
    %136 = vector.broadcast %cst_36 : f32 to vector<2x192xf32>
    %137 = tpu.concatenate %135, %136 in 1 : vector<2x320xf32>, vector<2x192xf32> -> vector<2x512xf32>
    %138 = vector.extract_strided_slice %137 {offsets = [0, 0], sizes = [2, 256], strides = [1, 1]} : vector<2x512xf32> to vector<2x256xf32>
    %139 = vector.extract_strided_slice %137 {offsets = [0, 256], sizes = [2, 256], strides = [1, 1]} : vector<2x512xf32> to vector<2x256xf32>
    %140 = arith.addf %138, %139 : vector<2x256xf32>
    %141 = vector.extract_strided_slice %140 {offsets = [0, 0], sizes = [2, 128], strides = [1, 1]} : vector<2x256xf32> to vector<2x128xf32>
    %142 = vector.extract_strided_slice %140 {offsets = [0, 128], sizes = [2, 128], strides = [1, 1]} : vector<2x256xf32> to vector<2x128xf32>
    %143 = arith.addf %141, %142 : vector<2x128xf32>
    %144 = vector.extract_strided_slice %143 {offsets = [0, 0], sizes = [2, 64], strides = [1, 1]} : vector<2x128xf32> to vector<2x64xf32>
    %145 = vector.extract_strided_slice %143 {offsets = [0, 64], sizes = [2, 64], strides = [1, 1]} : vector<2x128xf32> to vector<2x64xf32>
    %146 = arith.addf %144, %145 : vector<2x64xf32>
    %147 = vector.extract_strided_slice %146 {offsets = [0, 0], sizes = [1, 64], strides = [1, 1]} : vector<2x64xf32> to vector<1x64xf32>
    %cst_37 = arith.constant 2.000000e-02 : f32
    %148 = vector.broadcast %cst_37 : f32 to vector<1x64xf32>
    %149 = arith.mulf %147, %148 : vector<1x64xf32>
    %150 = vector.extract_strided_slice %146 {offsets = [1, 0], sizes = [1, 64], strides = [1, 1]} : vector<2x64xf32> to vector<1x64xf32>
    %cst_38 = arith.constant 2.000000e-02 : f32
    %151 = vector.broadcast %cst_38 : f32 to vector<1x64xf32>
    %152 = arith.mulf %150, %151 : vector<1x64xf32>
    %153 = arith.mulf %149, %149 : vector<1x64xf32>
    %154 = arith.subf %152, %153 : vector<1x64xf32>
    %cst_39 = arith.constant 0.000000e+00 : f32
    %155 = vector.broadcast %cst_39 : f32 to vector<1x64xf32>
    %156 = arith.maximumf %154, %155 : vector<1x64xf32>
    %cst_40 = arith.constant 9.99999974E-6 : f32
    %157 = vector.broadcast %cst_40 : f32 to vector<1x64xf32>
    %158 = arith.addf %156, %157 : vector<1x64xf32>
    %159 = math.rsqrt %158 : vector<1x64xf32>
    %160 = arith.mulf %103, %159 : vector<1x64xf32>
    %161 = arith.mulf %149, %160 : vector<1x64xf32>
    %162 = arith.subf %104, %161 : vector<1x64xf32>
    %163 = tpu.concatenate %160, %162 in 0 : vector<1x64xf32>, vector<1x64xf32> -> vector<2x64xf32>
    %164 = tpu.concatenate %163, %163 in 1 : vector<2x64xf32>, vector<2x64xf32> -> vector<2x128xf32>
    %165 = tpu.concatenate %164, %164 in 1 : vector<2x128xf32>, vector<2x128xf32> -> vector<2x256xf32>
    %166 = tpu.concatenate %165, %163 in 1 : vector<2x256xf32>, vector<2x64xf32> -> vector<2x320xf32>
    %167 = vector.extract_strided_slice %166 {offsets = [0, 0], sizes = [1, 320], strides = [1, 1]} : vector<2x320xf32> to vector<1x320xf32>
    %168 = vector.broadcast %167 : vector<1x320xf32> to vector<32x320xf32>
    %169 = arith.mulf %102, %168 : vector<32x320xf32>
    %170 = vector.extract_strided_slice %166 {offsets = [1, 0], sizes = [1, 320], strides = [1, 1]} : vector<2x320xf32> to vector<1x320xf32>
    %171 = vector.broadcast %170 : vector<1x320xf32> to vector<32x320xf32>
    %172 = arith.addf %169, %171 : vector<32x320xf32>
    %cst_41 = arith.constant 0.000000e+00 : f32
    %173 = vector.broadcast %cst_41 : f32 to vector<32x320xf32>
    %174 = arith.maximumf %172, %173 : vector<32x320xf32>
    %175 = vector.extract_strided_slice %174 {offsets = [0, 0], sizes = [32, 256], strides = [1, 1]} : vector<32x320xf32> to vector<32x256xf32>
    %176 = vector.extract_strided_slice %174 {offsets = [0, 64], sizes = [32, 256], strides = [1, 1]} : vector<32x320xf32> to vector<32x256xf32>
    %177 = arith.maximumf %175, %176 : vector<32x256xf32>
    %cst_42 = arith.constant 0.000000e+00 : f32
    %178 = vector.broadcast %cst_42 : f32 to vector<2x256xf32>
    %179 = vector.extract_strided_slice %177 {offsets = [2, 0], sizes = [30, 256], strides = [1, 1]} : vector<32x256xf32> to vector<30x256xf32>
    %180 = tpu.concatenate %179, %178 in 0 : vector<30x256xf32>, vector<2x256xf32> -> vector<32x256xf32>
    %181 = arith.maximumf %177, %180 : vector<32x256xf32>
    %182 = arith.truncf %181 : vector<32x256xf32> to vector<32x256xbf16>
    %cst_43 = arith.constant 0.000000e+00 : bf16
    %183 = vector.broadcast %cst_43 : bf16 to vector<4x256xbf16>
    %184 = vector.extract_strided_slice %182 {offsets = [0, 0], sizes = [28, 256], strides = [1, 1]} : vector<32x256xbf16> to vector<28x256xbf16>
    %185 = tpu.concatenate %183, %184 in 0 : vector<4x256xbf16>, vector<28x256xbf16> -> vector<32x256xbf16>
    %c-4_i32 = arith.constant -4 : i32
    %186 = vector.broadcast %c-4_i32 : i32 to vector<32x1xi32>
    %187 = arith.addi %18, %186 : vector<32x1xi32>
    %c0_i32_44 = arith.constant 0 : i32
    %188 = vector.broadcast %c0_i32_44 : i32 to vector<32x1xi32>
    %189 = arith.cmpi sge, %187, %188 : vector<32x1xi32>
    %c8_i32 = arith.constant 8 : i32
    %190 = vector.broadcast %c8_i32 : i32 to vector<32x1xi32>
    %191 = arith.cmpi slt, %187, %190 : vector<32x1xi32>
    %192 = arith.andi %189, %191 : vector<32x1xi1>
    %cst_45 = arith.constant 0.000000e+00 : bf16
    %193 = vector.shape_cast %192 : vector<32x1xi1> to vector<32x1xi1>
    %194 = vector.broadcast %193 : vector<32x1xi1> to vector<32x256xi1>
    %195 = vector.broadcast %cst_45 : bf16 to vector<32x256xbf16>
    %196 = arith.select %194, %185, %195 : vector<32x256xi1>, vector<32x256xbf16>
    %cst_46 = arith.constant 0.000000e+00 : bf16
    %197 = vector.broadcast %cst_46 : bf16 to vector<4x256xbf16>
    %198 = vector.extract_strided_slice %182 {offsets = [4, 0], sizes = [28, 256], strides = [1, 1]} : vector<32x256xbf16> to vector<28x256xbf16>
    %199 = tpu.concatenate %198, %197 in 0 : vector<28x256xbf16>, vector<4x256xbf16> -> vector<32x256xbf16>
    %c4_i32 = arith.constant 4 : i32
    %200 = vector.broadcast %c4_i32 : i32 to vector<32x1xi32>
    %201 = arith.addi %18, %200 : vector<32x1xi32>
    %c0_i32_47 = arith.constant 0 : i32
    %202 = vector.broadcast %c0_i32_47 : i32 to vector<32x1xi32>
    %203 = arith.cmpi sge, %201, %202 : vector<32x1xi32>
    %c8_i32_48 = arith.constant 8 : i32
    %204 = vector.broadcast %c8_i32_48 : i32 to vector<32x1xi32>
    %205 = arith.cmpi slt, %201, %204 : vector<32x1xi32>
    %206 = arith.andi %203, %205 : vector<32x1xi1>
    %cst_49 = arith.constant 0.000000e+00 : bf16
    %207 = vector.shape_cast %206 : vector<32x1xi1> to vector<32x1xi1>
    %208 = vector.broadcast %207 : vector<32x1xi1> to vector<32x256xi1>
    %209 = vector.broadcast %cst_49 : bf16 to vector<32x256xbf16>
    %210 = arith.select %208, %199, %209 : vector<32x256xi1>, vector<32x256xbf16>
    %211 = tpu.concatenate %196, %182, %210 in 1 : vector<32x256xbf16>, vector<32x256xbf16>, vector<32x256xbf16> -> vector<32x768xbf16>
    %c0_50 = arith.constant 0 : index
    %c0_51 = arith.constant 0 : index
    %212 = vector.load %arg3[%c0_50, %c0_51] : memref<768x128xbf16, #tpu.memory_space<vmem>>, vector<768x128xbf16>
    %cst_52 = arith.constant dense<0.000000e+00> : vector<32x128xf32>
    %213 = tpu.matmul %211, %212, %cst_52 {dimension_numbers = #tpu.dot_dimension_numbers<[1], [0], [0], [1], [0, 0, 1, 1], [], []>} : vector<32x768xbf16>, vector<768x128xbf16>, vector<32x128xf32> -> vector<32x128xf32>
    %214 = vector.extract_strided_slice %0 {offsets = [2, 0], sizes = [1, 64], strides = [1, 1]} : vector<4x64xf32> to vector<1x64xf32>
    %215 = vector.extract_strided_slice %1 {offsets = [2, 0], sizes = [1, 64], strides = [1, 1]} : vector<4x64xf32> to vector<1x64xf32>
    %c8_i32_53 = arith.constant 8 : i32
    %216 = vector.broadcast %c8_i32_53 : i32 to vector<32x1xi32>
    %217 = arith.cmpi slt, %18, %216 : vector<32x1xi32>
    %c4_i32_54 = arith.constant 4 : i32
    %c0_i32_55 = arith.constant 0 : i32
    %218 = arith.cmpi eq, %c4_i32_54, %c0_i32_55 : i32
    %c1_i32_56 = arith.constant 1 : i32
    %219 = arith.select %218, %c1_i32_56, %c4_i32_54 : i32
    %220 = vector.broadcast %219 : i32 to vector<32x1xi32>
    %221 = arith.remsi %18, %220 : vector<32x1xi32>
    %c0_i32_57 = arith.constant 0 : i32
    %222 = vector.broadcast %c0_i32_57 : i32 to vector<32x1xi32>
    %223 = arith.cmpi ne, %221, %222 : vector<32x1xi32>
    %c0_i32_58 = arith.constant 0 : i32
    %224 = vector.broadcast %c0_i32_58 : i32 to vector<32x1xi32>
    %225 = arith.cmpi slt, %221, %224 : vector<32x1xi32>
    %c0_i32_59 = arith.constant 0 : i32
    %226 = arith.cmpi slt, %219, %c0_i32_59 : i32
    %227 = vector.broadcast %226 : i1 to vector<32x1xi1>
    %228 = vector.broadcast %227 : vector<32x1xi1> to vector<32x1xi1>
    %229 = arith.xori %225, %228 : vector<32x1xi1>
    %230 = arith.andi %229, %223 : vector<32x1xi1>
    %231 = vector.broadcast %219 : i32 to vector<32x1xi32>
    %232 = arith.addi %221, %231 : vector<32x1xi32>
    %233 = arith.select %230, %232, %221 : vector<32x1xi1>, vector<32x1xi32>
    %c0_i32_60 = arith.constant 0 : i32
    %234 = vector.broadcast %c0_i32_60 : i32 to vector<32x1xi32>
    %235 = arith.cmpi eq, %233, %234 : vector<32x1xi32>
    %236 = arith.andi %217, %235 : vector<32x1xi1>
    %cst_61 = arith.constant 0.000000e+00 : f32
    %237 = vector.shape_cast %236 : vector<32x1xi1> to vector<32x1xi1>
    %238 = vector.broadcast %237 : vector<32x1xi1> to vector<32x128xi1>
    %239 = vector.broadcast %cst_61 : f32 to vector<32x128xf32>
    %240 = arith.select %238, %213, %239 : vector<32x128xi1>, vector<32x128xf32>
    %cst_62 = arith.constant dense<0.000000e+00> : vector<128xf32>
    %241 = vector.multi_reduction <add>, %240, %cst_62 [0] : vector<32x128xf32> to vector<128xf32>
    %242 = vector.shape_cast %241 : vector<128xf32> to vector<1x128xf32>
    %243 = arith.mulf %240, %240 : vector<32x128xf32>
    %cst_63 = arith.constant dense<0.000000e+00> : vector<128xf32>
    %244 = vector.multi_reduction <add>, %243, %cst_63 [0] : vector<32x128xf32> to vector<128xf32>
    %245 = vector.shape_cast %244 : vector<128xf32> to vector<1x128xf32>
    %246 = tpu.concatenate %242, %245 in 0 : vector<1x128xf32>, vector<1x128xf32> -> vector<2x128xf32>
    %247 = vector.extract_strided_slice %246 {offsets = [0, 0], sizes = [2, 64], strides = [1, 1]} : vector<2x128xf32> to vector<2x64xf32>
    %248 = vector.extract_strided_slice %246 {offsets = [0, 64], sizes = [2, 64], strides = [1, 1]} : vector<2x128xf32> to vector<2x64xf32>
    %249 = arith.addf %247, %248 : vector<2x64xf32>
    %250 = vector.extract_strided_slice %249 {offsets = [0, 0], sizes = [1, 64], strides = [1, 1]} : vector<2x64xf32> to vector<1x64xf32>
    %cst_64 = arith.constant 1.250000e-01 : f32
    %251 = vector.broadcast %cst_64 : f32 to vector<1x64xf32>
    %252 = arith.mulf %250, %251 : vector<1x64xf32>
    %253 = vector.extract_strided_slice %249 {offsets = [1, 0], sizes = [1, 64], strides = [1, 1]} : vector<2x64xf32> to vector<1x64xf32>
    %cst_65 = arith.constant 1.250000e-01 : f32
    %254 = vector.broadcast %cst_65 : f32 to vector<1x64xf32>
    %255 = arith.mulf %253, %254 : vector<1x64xf32>
    %256 = arith.mulf %252, %252 : vector<1x64xf32>
    %257 = arith.subf %255, %256 : vector<1x64xf32>
    %cst_66 = arith.constant 0.000000e+00 : f32
    %258 = vector.broadcast %cst_66 : f32 to vector<1x64xf32>
    %259 = arith.maximumf %257, %258 : vector<1x64xf32>
    %cst_67 = arith.constant 9.99999974E-6 : f32
    %260 = vector.broadcast %cst_67 : f32 to vector<1x64xf32>
    %261 = arith.addf %259, %260 : vector<1x64xf32>
    %262 = math.rsqrt %261 : vector<1x64xf32>
    %263 = arith.mulf %214, %262 : vector<1x64xf32>
    %264 = arith.mulf %252, %263 : vector<1x64xf32>
    %265 = arith.subf %215, %264 : vector<1x64xf32>
    %266 = tpu.concatenate %263, %265 in 0 : vector<1x64xf32>, vector<1x64xf32> -> vector<2x64xf32>
    %267 = tpu.concatenate %266, %266 in 1 : vector<2x64xf32>, vector<2x64xf32> -> vector<2x128xf32>
    %268 = vector.extract_strided_slice %267 {offsets = [0, 0], sizes = [1, 128], strides = [1, 1]} : vector<2x128xf32> to vector<1x128xf32>
    %269 = vector.broadcast %268 : vector<1x128xf32> to vector<32x128xf32>
    %270 = arith.mulf %213, %269 : vector<32x128xf32>
    %271 = vector.extract_strided_slice %267 {offsets = [1, 0], sizes = [1, 128], strides = [1, 1]} : vector<2x128xf32> to vector<1x128xf32>
    %272 = vector.broadcast %271 : vector<1x128xf32> to vector<32x128xf32>
    %273 = arith.addf %270, %272 : vector<32x128xf32>
    %cst_68 = arith.constant 0.000000e+00 : f32
    %274 = vector.broadcast %cst_68 : f32 to vector<32x128xf32>
    %275 = arith.maximumf %273, %274 : vector<32x128xf32>
    %276 = arith.truncf %275 : vector<32x128xf32> to vector<32x128xbf16>
    %cst_69 = arith.constant 0.000000e+00 : bf16
    %277 = vector.broadcast %cst_69 : bf16 to vector<4x128xbf16>
    %278 = vector.extract_strided_slice %276 {offsets = [0, 0], sizes = [28, 128], strides = [1, 1]} : vector<32x128xbf16> to vector<28x128xbf16>
    %279 = tpu.concatenate %277, %278 in 0 : vector<4x128xbf16>, vector<28x128xbf16> -> vector<32x128xbf16>
    %c-4_i32_70 = arith.constant -4 : i32
    %280 = vector.broadcast %c-4_i32_70 : i32 to vector<32x1xi32>
    %281 = arith.addi %18, %280 : vector<32x1xi32>
    %c0_i32_71 = arith.constant 0 : i32
    %282 = vector.broadcast %c0_i32_71 : i32 to vector<32x1xi32>
    %283 = arith.cmpi sge, %281, %282 : vector<32x1xi32>
    %c8_i32_72 = arith.constant 8 : i32
    %284 = vector.broadcast %c8_i32_72 : i32 to vector<32x1xi32>
    %285 = arith.cmpi slt, %281, %284 : vector<32x1xi32>
    %286 = arith.andi %283, %285 : vector<32x1xi1>
    %cst_73 = arith.constant 0.000000e+00 : bf16
    %287 = vector.shape_cast %286 : vector<32x1xi1> to vector<32x1xi1>
    %288 = vector.broadcast %287 : vector<32x1xi1> to vector<32x128xi1>
    %289 = vector.broadcast %cst_73 : bf16 to vector<32x128xbf16>
    %290 = arith.select %288, %279, %289 : vector<32x128xi1>, vector<32x128xbf16>
    %cst_74 = arith.constant 0.000000e+00 : bf16
    %291 = vector.broadcast %cst_74 : bf16 to vector<4x128xbf16>
    %292 = vector.extract_strided_slice %276 {offsets = [4, 0], sizes = [28, 128], strides = [1, 1]} : vector<32x128xbf16> to vector<28x128xbf16>
    %293 = tpu.concatenate %292, %291 in 0 : vector<28x128xbf16>, vector<4x128xbf16> -> vector<32x128xbf16>
    %c4_i32_75 = arith.constant 4 : i32
    %294 = vector.broadcast %c4_i32_75 : i32 to vector<32x1xi32>
    %295 = arith.addi %18, %294 : vector<32x1xi32>
    %c0_i32_76 = arith.constant 0 : i32
    %296 = vector.broadcast %c0_i32_76 : i32 to vector<32x1xi32>
    %297 = arith.cmpi sge, %295, %296 : vector<32x1xi32>
    %c8_i32_77 = arith.constant 8 : i32
    %298 = vector.broadcast %c8_i32_77 : i32 to vector<32x1xi32>
    %299 = arith.cmpi slt, %295, %298 : vector<32x1xi32>
    %300 = arith.andi %297, %299 : vector<32x1xi1>
    %cst_78 = arith.constant 0.000000e+00 : bf16
    %301 = vector.shape_cast %300 : vector<32x1xi1> to vector<32x1xi1>
    %302 = vector.broadcast %301 : vector<32x1xi1> to vector<32x128xi1>
    %303 = vector.broadcast %cst_78 : bf16 to vector<32x128xbf16>
    %304 = arith.select %302, %293, %303 : vector<32x128xi1>, vector<32x128xbf16>
    %305 = tpu.concatenate %290, %276, %304 in 1 : vector<32x128xbf16>, vector<32x128xbf16>, vector<32x128xbf16> -> vector<32x384xbf16>
    %c0_79 = arith.constant 0 : index
    %c0_80 = arith.constant 0 : index
    %306 = vector.load %arg4[%c0_79, %c0_80] : memref<384x128xbf16, #tpu.memory_space<vmem>>, vector<384x128xbf16>
    %cst_81 = arith.constant dense<0.000000e+00> : vector<32x128xf32>
    %307 = tpu.matmul %305, %306, %cst_81 {dimension_numbers = #tpu.dot_dimension_numbers<[1], [0], [0], [1], [0, 0, 1, 1], [], []>} : vector<32x384xbf16>, vector<384x128xbf16>, vector<32x128xf32> -> vector<32x128xf32>
    %308 = vector.extract_strided_slice %0 {offsets = [3, 0], sizes = [1, 64], strides = [1, 1]} : vector<4x64xf32> to vector<1x64xf32>
    %309 = vector.extract_strided_slice %1 {offsets = [3, 0], sizes = [1, 64], strides = [1, 1]} : vector<4x64xf32> to vector<1x64xf32>
    %c8_i32_82 = arith.constant 8 : i32
    %310 = vector.broadcast %c8_i32_82 : i32 to vector<32x1xi32>
    %311 = arith.cmpi slt, %18, %310 : vector<32x1xi32>
    %c4_i32_83 = arith.constant 4 : i32
    %c0_i32_84 = arith.constant 0 : i32
    %312 = arith.cmpi eq, %c4_i32_83, %c0_i32_84 : i32
    %c1_i32_85 = arith.constant 1 : i32
    %313 = arith.select %312, %c1_i32_85, %c4_i32_83 : i32
    %314 = vector.broadcast %313 : i32 to vector<32x1xi32>
    %315 = arith.remsi %18, %314 : vector<32x1xi32>
    %c0_i32_86 = arith.constant 0 : i32
    %316 = vector.broadcast %c0_i32_86 : i32 to vector<32x1xi32>
    %317 = arith.cmpi ne, %315, %316 : vector<32x1xi32>
    %c0_i32_87 = arith.constant 0 : i32
    %318 = vector.broadcast %c0_i32_87 : i32 to vector<32x1xi32>
    %319 = arith.cmpi slt, %315, %318 : vector<32x1xi32>
    %c0_i32_88 = arith.constant 0 : i32
    %320 = arith.cmpi slt, %313, %c0_i32_88 : i32
    %321 = vector.broadcast %320 : i1 to vector<32x1xi1>
    %322 = vector.broadcast %321 : vector<32x1xi1> to vector<32x1xi1>
    %323 = arith.xori %319, %322 : vector<32x1xi1>
    %324 = arith.andi %323, %317 : vector<32x1xi1>
    %325 = vector.broadcast %313 : i32 to vector<32x1xi32>
    %326 = arith.addi %315, %325 : vector<32x1xi32>
    %327 = arith.select %324, %326, %315 : vector<32x1xi1>, vector<32x1xi32>
    %c0_i32_89 = arith.constant 0 : i32
    %328 = vector.broadcast %c0_i32_89 : i32 to vector<32x1xi32>
    %329 = arith.cmpi eq, %327, %328 : vector<32x1xi32>
    %330 = arith.andi %311, %329 : vector<32x1xi1>
    %cst_90 = arith.constant 0.000000e+00 : f32
    %331 = vector.shape_cast %330 : vector<32x1xi1> to vector<32x1xi1>
    %332 = vector.broadcast %331 : vector<32x1xi1> to vector<32x128xi1>
    %333 = vector.broadcast %cst_90 : f32 to vector<32x128xf32>
    %334 = arith.select %332, %307, %333 : vector<32x128xi1>, vector<32x128xf32>
    %cst_91 = arith.constant dense<0.000000e+00> : vector<128xf32>
    %335 = vector.multi_reduction <add>, %334, %cst_91 [0] : vector<32x128xf32> to vector<128xf32>
    %336 = vector.shape_cast %335 : vector<128xf32> to vector<1x128xf32>
    %337 = arith.mulf %334, %334 : vector<32x128xf32>
    %cst_92 = arith.constant dense<0.000000e+00> : vector<128xf32>
    %338 = vector.multi_reduction <add>, %337, %cst_92 [0] : vector<32x128xf32> to vector<128xf32>
    %339 = vector.shape_cast %338 : vector<128xf32> to vector<1x128xf32>
    %340 = tpu.concatenate %336, %339 in 0 : vector<1x128xf32>, vector<1x128xf32> -> vector<2x128xf32>
    %341 = vector.extract_strided_slice %340 {offsets = [0, 0], sizes = [2, 64], strides = [1, 1]} : vector<2x128xf32> to vector<2x64xf32>
    %342 = vector.extract_strided_slice %340 {offsets = [0, 64], sizes = [2, 64], strides = [1, 1]} : vector<2x128xf32> to vector<2x64xf32>
    %343 = arith.addf %341, %342 : vector<2x64xf32>
    %344 = vector.extract_strided_slice %343 {offsets = [0, 0], sizes = [1, 64], strides = [1, 1]} : vector<2x64xf32> to vector<1x64xf32>
    %cst_93 = arith.constant 1.250000e-01 : f32
    %345 = vector.broadcast %cst_93 : f32 to vector<1x64xf32>
    %346 = arith.mulf %344, %345 : vector<1x64xf32>
    %347 = vector.extract_strided_slice %343 {offsets = [1, 0], sizes = [1, 64], strides = [1, 1]} : vector<2x64xf32> to vector<1x64xf32>
    %cst_94 = arith.constant 1.250000e-01 : f32
    %348 = vector.broadcast %cst_94 : f32 to vector<1x64xf32>
    %349 = arith.mulf %347, %348 : vector<1x64xf32>
    %350 = arith.mulf %346, %346 : vector<1x64xf32>
    %351 = arith.subf %349, %350 : vector<1x64xf32>
    %cst_95 = arith.constant 0.000000e+00 : f32
    %352 = vector.broadcast %cst_95 : f32 to vector<1x64xf32>
    %353 = arith.maximumf %351, %352 : vector<1x64xf32>
    %cst_96 = arith.constant 9.99999974E-6 : f32
    %354 = vector.broadcast %cst_96 : f32 to vector<1x64xf32>
    %355 = arith.addf %353, %354 : vector<1x64xf32>
    %356 = math.rsqrt %355 : vector<1x64xf32>
    %357 = arith.mulf %308, %356 : vector<1x64xf32>
    %358 = arith.mulf %346, %357 : vector<1x64xf32>
    %359 = arith.subf %309, %358 : vector<1x64xf32>
    %360 = tpu.concatenate %357, %359 in 0 : vector<1x64xf32>, vector<1x64xf32> -> vector<2x64xf32>
    %361 = tpu.concatenate %360, %360 in 1 : vector<2x64xf32>, vector<2x64xf32> -> vector<2x128xf32>
    %362 = vector.extract_strided_slice %361 {offsets = [0, 0], sizes = [1, 128], strides = [1, 1]} : vector<2x128xf32> to vector<1x128xf32>
    %363 = vector.broadcast %362 : vector<1x128xf32> to vector<32x128xf32>
    %364 = arith.mulf %307, %363 : vector<32x128xf32>
    %365 = vector.extract_strided_slice %361 {offsets = [1, 0], sizes = [1, 128], strides = [1, 1]} : vector<2x128xf32> to vector<1x128xf32>
    %366 = vector.broadcast %365 : vector<1x128xf32> to vector<32x128xf32>
    %367 = arith.addf %364, %366 : vector<32x128xf32>
    %cst_97 = arith.constant 0.000000e+00 : f32
    %368 = vector.broadcast %cst_97 : f32 to vector<32x128xf32>
    %369 = arith.maximumf %367, %368 : vector<32x128xf32>
    %c0_98 = arith.constant 0 : index
    %c0_99 = arith.constant 0 : index
    %370 = vector.load %arg7[%c0_98, %c0_99] : memref<32x128xf32, #tpu.memory_space<vmem>>, vector<32x128xf32>
    tpu.vector_store %arg7[%c0_98, %c0_99], %369 {strides = array<i32>} : memref<32x128xf32, #tpu.memory_space<vmem>>, vector<32x128xf32>,
    return
  }
}

</mosaic_0001>

<llo_original>
// kernel: emb_cnn_forward.1
$region0: #{emb_cnn_forward.1}
  #allocation0 [shape = 'u32[]', space=smem, size = 0x4, offset = 0x4, fixed_abs, tag = 'smem constant byte address 0x4 - core index']
  #allocation1 [shape = 'u32[144,128]{1,0:T(1,128)}', space=vmem, size = 0x12000, scoped, tag = 'internal scratch']
  %s0 = inlined_call_operand.vmem [shape: bf16[32,64], index: 0, kind: input, shape index: {}]
  %s1 = inlined_call_operand.vmem [shape: bf16[192,896], index: 1, kind: input, shape index: {}]
  %s2 = inlined_call_operand.vmem [shape: bf16[2496,320], index: 2, kind: input, shape index: {}]
  %s3 = inlined_call_operand.vmem [shape: bf16[768,128], index: 3, kind: input, shape index: {}]
  %s4 = inlined_call_operand.vmem [shape: bf16[384,128], index: 4, kind: input, shape index: {}]
  %s5 = inlined_call_operand.vmem [shape: f32[4,64], index: 5, kind: input, shape index: {}]
  %s6 = inlined_call_operand.vmem [shape: f32[4,64], index: 6, kind: input, shape index: {}]
  %s7 = inlined_call_operand.vmem [shape: f32[32,128], index: 7, kind: output, shape index: {}]
  %s8 = sld [smem:[#allocation0]]
  $region38: #{emb_cnn_forward.1} parent=0
    _
  %s10 = ssub.s32 1, %s8
  %s11 = scalar_select 0, %s10, %s8
  // Predicated region
  $region2: #{emb_cnn_forward.1} parent=0 // pred_check
    _
  $region3: #{emb_cnn_forward.1} parent=0 // pred_check_branch
    %13 = sbr.rel (0) target = $region5
  $region4: #{emb_cnn_forward.1} parent=0 // pred_region
    _
  $region5: #{emb_cnn_forward.1} parent=0 // pred_fallthru
    _
  // Predicated region
  $region6: #{emb_cnn_forward.1} parent=0 // pred_check
    _
  $region7: #{emb_cnn_forward.1} parent=0 // pred_check_branch
    %15 = sbr.rel (0) target = $region9
  $region8: #{emb_cnn_forward.1} parent=0 // pred_region
    _
  $region9: #{emb_cnn_forward.1} parent=0 // pred_fallthru
    _
  // Predicated region
  $region10: #{emb_cnn_forward.1} parent=0 // pred_check
    _
  $region11: #{emb_cnn_forward.1} parent=0 // pred_check_branch
    %17 = sbr.rel (0) target = $region13
  $region12: #{emb_cnn_forward.1} parent=0 // pred_region
    _
  $region13: #{emb_cnn_forward.1} parent=0 // pred_fallthru
    _
  // Predicated region
  $region14: #{emb_cnn_forward.1} parent=0 // pred_check
    _
  $region15: #{emb_cnn_forward.1} parent=0 // pred_check_branch
    %19 = sbr.rel (0) target = $region17
  $region16: #{emb_cnn_forward.1} parent=0 // pred_region
    _
  $region17: #{emb_cnn_forward.1} parent=0 // pred_fallthru
    _
  // Predicated region
  $region18: #{emb_cnn_forward.1} parent=0 // pred_check
    _
  $region19: #{emb_cnn_forward.1} parent=0 // pred_check_branch
    %21 = sbr.rel (0) target = $region21
  $region20: #{emb_cnn_forward.1} parent=0 // pred_region
    _
  $region21: #{emb_cnn_forward.1} parent=0 // pred_fallthru
    _
  // Predicated region
  $region22: #{emb_cnn_forward.1} parent=0 // pred_check
    _
  $region23: #{emb_cnn_forward.1} parent=0 // pred_check_branch
    %23 = sbr.rel (0) target = $region25
  $region24: #{emb_cnn_forward.1} parent=0 // pred_region
    _
  $region25: #{emb_cnn_forward.1} parent=0 // pred_fallthru
    _
  // Predicated region
  $region26: #{emb_cnn_forward.1} parent=0 // pred_check
    _
  $region27: #{emb_cnn_forward.1} parent=0 // pred_check_branch
    %25 = sbr.rel (0) target = $region29
  $region28: #{emb_cnn_forward.1} parent=0 // pred_region
    _
  $region29: #{emb_cnn_forward.1} parent=0 // pred_fallthru
    _
  %v29 = vld [vmem:[%s5] sm:$0xf]
  %v30 = vld [vmem:[%s6] sm:$0xf]
  %v31 = vlaneseq
  %v32 = vshrl.u32 %v31, 7
  %v33 = vadd.s32 %v32, 8
  %v34 = vadd.s32 %v32, 16
  %v35 = vadd.s32 %v32, 24
  %vm36 = vcmp.lt.s32.totalorder %v32, 0
  %v37 = vsub.s32 0, %v32
  %v38 = vsel %vm36, %v37, %v32
  %v39 = vshrl.u32 %v38, 4
  %v40 = vand.u32 %v38, 15
  %v41 = vsub.s32 0, %v40
  %v42 = vsel %vm36, %v41, %v40
  %vm43 = vcmp.lt.s32.totalorder %v33, 0
  %v44 = vsub.s32 0, %v33
  %v45 = vsel %vm43, %v44, %v33
  %v46 = vshrl.u32 %v45, 4
  %v47 = vand.u32 %v45, 15
  %v48 = vsub.s32 0, %v47
  %v49 = vsel %vm43, %v48, %v47
  %vm50 = vcmp.lt.s32.totalorder %v34, 0
  %v51 = vsub.s32 0, %v34
  %v52 = vsel %vm50, %v51, %v34
  %v53 = vshrl.u32 %v52, 4
  %v54 = vand.u32 %v52, 15
  %v55 = vsub.s32 0, %v54
  %v56 = vsel %vm50, %v55, %v54
  %vm57 = vcmp.lt.s32.totalorder %v35, 0
  %v58 = vsub.s32 0, %v35
  %v59 = vsel %vm57, %v58, %v35
  %v60 = vshrl.u32 %v59, 4
  %v61 = vand.u32 %v59, 15
  %v62 = vsub.s32 0, %v61
  %v63 = vsel %vm57, %v62, %v61
  %vm64 = vcmp.ne.s32.totalorder %v42, 0
  %vm65 = vcmp.ne.s32.totalorder %v49, 0
  %vm66 = vcmp.ne.s32.totalorder %v56, 0
  %vm67 = vcmp.ne.s32.totalorder %v63, 0
  %vm68 = vcmp.lt.s32.totalorder %v42, 0
  %vm69 = vcmp.lt.s32.totalorder %v49, 0
  %vm70 = vcmp.lt.s32.totalorder %v56, 0
  %vm71 = vcmp.lt.s32.totalorder %v63, 0
  %vm72 = vmand %vm68, %vm64
  %vm73 = vmand %vm69, %vm65
  %vm74 = vmand %vm70, %vm66
  %vm75 = vmand %vm71, %vm67
  %v76 = vadd.s32 %v42, 16
  %v77 = vadd.s32 %v49, 16
  %v78 = vadd.s32 %v56, 16
  %v79 = vadd.s32 %v63, 16
  %v80 = vsel %vm72, %v76, %v42
  %v81 = vsel %vm73, %v77, %v49
  %v82 = vsel %vm74, %v78, %v56
  %v83 = vsel %vm75, %v79, %v63
  %v84 = vld [vmem:[%s0] sm:$0xf]
  %v85 = vld [vmem:[%s0 + $0x4] sm:$0xf]
  %v86 = vld [vmem:[%s0 + $0x8] sm:$0xf]
  %v87 = vld [vmem:[%s0 + $0xc] sm:$0xf]
  %v92 = vunpack.c.l.b16 %v84
  %v93 = vunpack.c.l.b16 %v85
  %v94 = vunpack.c.l.b16 %v86
  %v95 = vunpack.c.l.b16 %v87
  %v96 = vpack.c.b16 %v93, %v92
  %v97 = vpack.c.b16 %v95, %v94
  %vm98 = vsmask.f32 7424
  %v100 = vshrl.u32 %v96, 16
  %v102 = vshll.u32 %v96, 16
  %v104 = vrot.slane %v102, 1
  %v105 = vor.u32 %v100, %v104
  %v107 = vshll.u32 %v97, 16
  %v109 = vrot.slane %v107, 1
  %v110 = vsel %vm98, %v105, %v109
  %v111 = vshrl.u32 %v97, 16
  %v113 = vor.u32 %v111, %v109
  %vm115 = vcmask 1047552
  %vm116 = vmand %vm115, %vm98
  %v117 = vsel %vm116, %v113, 0
  %vm118 = vcmask 1046528
  %v119 = vrot.slane %v96, 1
  %v120 = vrot.slane %v97, 1
  %v121 = vsel %vm118, %v119, %v120
  %vm122 = vcmask 1046528
  %v125 = vsel %vm122, %v120, 0
  %127 = vrot.lane.b32.xlu0 %v110, 64
  %v128 = vpop.permute.xlu0 %127
  %129 = vrot.lane.b32.xlu0 %v117, 64
  %v130 = vpop.permute.xlu0 %129
  %vm131 = vcmask 523264
  %v133 = vsel %vm131, %v96, %v128
  %v136 = vsel %vm131, %v97, %v130
  %v138 = vld [vmem:[%s1] sm:$0xff]
  %v139 = vld [vmem:[%s1 + $0x8] sm:$0xff]
  %v140 = vld [vmem:[%s1 + $0x10] sm:$0xff]
  %v141 = vld [vmem:[%s1 + $0x18] sm:$0xf]
  %v142 = vld [vmem:[%s1 + $0x1c] sm:$0xff]
  %v143 = vld [vmem:[%s1 + $0x24] sm:$0xff]
  %v144 = vld [vmem:[%s1 + $0x2c] sm:$0xff]
  %v145 = vld [vmem:[%s1 + $0x34] sm:$0xf]
  %v146 = vld [vmem:[%s1 + $0x38] sm:$0xff]
  %v147 = vld [vmem:[%s1 + $0x40] sm:$0xff]
  %v148 = vld [vmem:[%s1 + $0x48] sm:$0xff]
  %v149 = vld [vmem:[%s1 + $0x50] sm:$0xf]
  %v150 = vld [vmem:[%s1 + $0x54] sm:$0xff]
  %v151 = vld [vmem:[%s1 + $0x5c] sm:$0xff]
  %v152 = vld [vmem:[%s1 + $0x64] sm:$0xff]
  %v153 = vld [vmem:[%s1 + $0x6c] sm:$0xf]
  %v154 = vld [vmem:[%s1 + $0x70] sm:$0xff]
  %v155 = vld [vmem:[%s1 + $0x78] sm:$0xff]
  %v156 = vld [vmem:[%s1 + $0x80] sm:$0xff]
  %v157 = vld [vmem:[%s1 + $0x88] sm:$0xf]
  %v158 = vld [vmem:[%s1 + $0x8c] sm:$0xff]
  %v159 = vld [vmem:[%s1 + $0x94] sm:$0xff]
  %v160 = vld [vmem:[%s1 + $0x9c] sm:$0xff]
  %v161 = vld [vmem:[%s1 + $0xa4] sm:$0xf]
  %v162 = vld [vmem:[%s1 + $0xa8] sm:$0xff]
  %v163 = vld [vmem:[%s1 + $0xb0] sm:$0xff]
  %v164 = vld [vmem:[%s1 + $0xb8] sm:$0xff]
  %v165 = vld [vmem:[%s1 + $0xc0] sm:$0xf]
  %v166 = vld [vmem:[%s1 + $0xc4] sm:$0xff]
  %v167 = vld [vmem:[%s1 + $0xcc] sm:$0xff]
  %v168 = vld [vmem:[%s1 + $0xd4] sm:$0xff]
  %v169 = vld [vmem:[%s1 + $0xdc] sm:$0xf]
  %v170 = vld [vmem:[%s1 + $0xe0] sm:$0xff]
  %v171 = vld [vmem:[%s1 + $0xe8] sm:$0xff]
  %v172 = vld [vmem:[%s1 + $0xf0] sm:$0xff]
  %v173 = vld [vmem:[%s1 + $0xf8] sm:$0xf]
  %v174 = vld [vmem:[%s1 + $0xfc] sm:$0xff]
  %v175 = vld [vmem:[%s1 + $0x104] sm:$0xff]
  %v176 = vld [vmem:[%s1 + $0x10c] sm:$0xff]
  %v177 = vld [vmem:[%s1 + $0x114] sm:$0xf]
  %v178 = vld [vmem:[%s1 + $0x118] sm:$0xff]
  %v179 = vld [vmem:[%s1 + $0x120] sm:$0xff]
  %v180 = vld [vmem:[%s1 + $0x128] sm:$0xff]
  %v181 = vld [vmem:[%s1 + $0x130] sm:$0xf]
  %v182 = vld [vmem:[%s1 + $0x134] sm:$0xff]
  %v183 = vld [vmem:[%s1 + $0x13c] sm:$0xff]
  %v184 = vld [vmem:[%s1 + $0x144] sm:$0xff]
  %v185 = vld [vmem:[%s1 + $0x14c] sm:$0xf]
  %v186 = vld [vmem:[%s1 + $0x150] sm:$0xff]
  %v187 = vld [vmem:[%s1 + $0x158] sm:$0xff]
  %v188 = vld [vmem:[%s1 + $0x160] sm:$0xff]
  %v189 = vld [vmem:[%s1 + $0x168] sm:$0xf]
  %v190 = vld [vmem:[%s1 + $0x16c] sm:$0xff]
  %v191 = vld [vmem:[%s1 + $0x174] sm:$0xff]
  %v192 = vld [vmem:[%s1 + $0x17c] sm:$0xff]
  %v193 = vld [vmem:[%s1 + $0x184] sm:$0xf]
  %v194 = vld [vmem:[%s1 + $0x188] sm:$0xff]
  %v195 = vld [vmem:[%s1 + $0x190] sm:$0xff]
  %v196 = vld [vmem:[%s1 + $0x198] sm:$0xff]
  %v197 = vld [vmem:[%s1 + $0x1a0] sm:$0xf]
  %v198 = vld [vmem:[%s1 + $0x1a4] sm:$0xff]
  %v199 = vld [vmem:[%s1 + $0x1ac] sm:$0xff]
  %v200 = vld [vmem:[%s1 + $0x1b4] sm:$0xff]
  %v201 = vld [vmem:[%s1 + $0x1bc] sm:$0xf]
  %v202 = vld [vmem:[%s1 + $0x1c0] sm:$0xff]
  %v203 = vld [vmem:[%s1 + $0x1c8] sm:$0xff]
  %v204 = vld [vmem:[%s1 + $0x1d0] sm:$0xff]
  %v205 = vld [vmem:[%s1 + $0x1d8] sm:$0xf]
  %v206 = vld [vmem:[%s1 + $0x1dc] sm:$0xff]
  %v207 = vld [vmem:[%s1 + $0x1e4] sm:$0xff]
  %v208 = vld [vmem:[%s1 + $0x1ec] sm:$0xff]
  %v209 = vld [vmem:[%s1 + $0x1f4] sm:$0xf]
  %v210 = vld [vmem:[%s1 + $0x1f8] sm:$0xff]
  %v211 = vld [vmem:[%s1 + $0x200] sm:$0xff]
  %v212 = vld [vmem:[%s1 + $0x208] sm:$0xff]
  %v213 = vld [vmem:[%s1 + $0x210] sm:$0xf]
  %v214 = vld [vmem:[%s1 + $0x214] sm:$0xff]
  %v215 = vld [vmem:[%s1 + $0x21c] sm:$0xff]
  %v216 = vld [vmem:[%s1 + $0x224] sm:$0xff]
  %v217 = vld [vmem:[%s1 + $0x22c] sm:$0xf]
  %v218 = vld [vmem:[%s1 + $0x230] sm:$0xff]
  %v219 = vld [vmem:[%s1 + $0x238] sm:$0xff]
  %v220 = vld [vmem:[%s1 + $0x240] sm:$0xff]
  %v221 = vld [vmem:[%s1 + $0x248] sm:$0xf]
  %v222 = vld [vmem:[%s1 + $0x24c] sm:$0xff]
  %v223 = vld [vmem:[%s1 + $0x254] sm:$0xff]
  %v224 = vld [vmem:[%s1 + $0x25c] sm:$0xff]
  %v225 = vld [vmem:[%s1 + $0x264] sm:$0xf]
  %v226 = vld [vmem:[%s1 + $0x268] sm:$0xff]
  %v227 = vld [vmem:[%s1 + $0x270] sm:$0xff]
  %v228 = vld [vmem:[%s1 + $0x278] sm:$0xff]
  %v229 = vld [vmem:[%s1 + $0x280] sm:$0xf]
  %v230 = vld [vmem:[%s1 + $0x284] sm:$0xff]
  %v231 = vld [vmem:[%s1 + $0x28c] sm:$0xff]
  %v232 = vld [vmem:[%s1 + $0x294] sm:$0xff]
  %v233 = vld [vmem:[%s1 + $0x29c] sm:$0xf]
  %v330 = vunpack.c.l.b16 %v138
  %v331 = vunpack.c.h.b16 %v138
  %v332 = vunpack.c.l.b16 %v139
  %v333 = vunpack.c.h.b16 %v139
  %v334 = vunpack.c.l.b16 %v140
  %v335 = vunpack.c.h.b16 %v140
  %v336 = vunpack.c.l.b16 %v141
  %v337 = vunpack.c.l.b16 %v142
  %v338 = vunpack.c.h.b16 %v142
  %v339 = vunpack.c.l.b16 %v143
  %v340 = vunpack.c.h.b16 %v143
  %v341 = vunpack.c.l.b16 %v144
  %v342 = vunpack.c.h.b16 %v144
  %v343 = vunpack.c.l.b16 %v145
  %v344 = vunpack.c.l.b16 %v146
  %v345 = vunpack.c.h.b16 %v146
  %v346 = vunpack.c.l.b16 %v147
  %v347 = vunpack.c.h.b16 %v147
  %v348 = vunpack.c.l.b16 %v148
  %v349 = vunpack.c.h.b16 %v148
  %v350 = vunpack.c.l.b16 %v149
  %v351 = vunpack.c.l.b16 %v150
  %v352 = vunpack.c.h.b16 %v150
  %v353 = vunpack.c.l.b16 %v151
  %v354 = vunpack.c.h.b16 %v151
  %v355 = vunpack.c.l.b16 %v152
  %v356 = vunpack.c.h.b16 %v152
  %v357 = vunpack.c.l.b16 %v153
  %v358 = vunpack.c.l.b16 %v154
  %v359 = vunpack.c.h.b16 %v154
  %v360 = vunpack.c.l.b16 %v155
  %v361 = vunpack.c.h.b16 %v155
  %v362 = vunpack.c.l.b16 %v156
  %v363 = vunpack.c.h.b16 %v156
  %v364 = vunpack.c.l.b16 %v157
  %v365 = vunpack.c.l.b16 %v158
  %v366 = vunpack.c.h.b16 %v158
  %v367 = vunpack.c.l.b16 %v159
  %v368 = vunpack.c.h.b16 %v159
  %v369 = vunpack.c.l.b16 %v160
  %v370 = vunpack.c.h.b16 %v160
  %v371 = vunpack.c.l.b16 %v161
  %v372 = vunpack.c.l.b16 %v162
  %v373 = vunpack.c.h.b16 %v162
  %v374 = vunpack.c.l.b16 %v163
  %v375 = vunpack.c.h.b16 %v163
  %v376 = vunpack.c.l.b16 %v164
  %v377 = vunpack.c.h.b16 %v164
  %v378 = vunpack.c.l.b16 %v165
  %v379 = vunpack.c.l.b16 %v166
  %v380 = vunpack.c.h.b16 %v166
  %v381 = vunpack.c.l.b16 %v167
  %v382 = vunpack.c.h.b16 %v167
  %v383 = vunpack.c.l.b16 %v168
  %v384 = vunpack.c.h.b16 %v168
  %v385 = vunpack.c.l.b16 %v169
  %v386 = vunpack.c.l.b16 %v170
  %v387 = vunpack.c.h.b16 %v170
  %v388 = vunpack.c.l.b16 %v171
  %v389 = vunpack.c.h.b16 %v171
  %v390 = vunpack.c.l.b16 %v172
  %v391 = vunpack.c.h.b16 %v172
  %v392 = vunpack.c.l.b16 %v173
  %v393 = vunpack.c.l.b16 %v174
  %v394 = vunpack.c.h.b16 %v174
  %v395 = vunpack.c.l.b16 %v175
  %v396 = vunpack.c.h.b16 %v175
  %v397 = vunpack.c.l.b16 %v176
  %v398 = vunpack.c.h.b16 %v176
  %v399 = vunpack.c.l.b16 %v177
  %v400 = vunpack.c.l.b16 %v178
  %v401 = vunpack.c.h.b16 %v178
  %v402 = vunpack.c.l.b16 %v179
  %v403 = vunpack.c.h.b16 %v179
  %v404 = vunpack.c.l.b16 %v180
  %v405 = vunpack.c.h.b16 %v180
  %v406 = vunpack.c.l.b16 %v181
  %v407 = vunpack.c.l.b16 %v182
  %v408 = vunpack.c.h.b16 %v182
  %v409 = vunpack.c.l.b16 %v183
  %v410 = vunpack.c.h.b16 %v183
  %v411 = vunpack.c.l.b16 %v184
  %v412 = vunpack.c.h.b16 %v184
  %v413 = vunpack.c.l.b16 %v185
  %v414 = vunpack.c.l.b16 %v186
  %v415 = vunpack.c.h.b16 %v186
  %v416 = vunpack.c.l.b16 %v187
  %v417 = vunpack.c.h.b16 %v187
  %v418 = vunpack.c.l.b16 %v188
  %v419 = vunpack.c.h.b16 %v188
  %v420 = vunpack.c.l.b16 %v189
  %v421 = vunpack.c.l.b16 %v190
  %v422 = vunpack.c.h.b16 %v190
  %v423 = vunpack.c.l.b16 %v191
  %v424 = vunpack.c.h.b16 %v191
  %v425 = vunpack.c.l.b16 %v192
  %v426 = vunpack.c.h.b16 %v192
  %v427 = vunpack.c.l.b16 %v193
  %v428 = vunpack.c.l.b16 %v194
  %v429 = vunpack.c.h.b16 %v194
  %v430 = vunpack.c.l.b16 %v195
  %v431 = vunpack.c.h.b16 %v195
  %v432 = vunpack.c.l.b16 %v196
  %v433 = vunpack.c.h.b16 %v196
  %v434 = vunpack.c.l.b16 %v197
  %v435 = vunpack.c.l.b16 %v198
  %v436 = vunpack.c.h.b16 %v198
  %v437 = vunpack.c.l.b16 %v199
  %v438 = vunpack.c.h.b16 %v199
  %v439 = vunpack.c.l.b16 %v200
  %v440 = vunpack.c.h.b16 %v200
  %v441 = vunpack.c.l.b16 %v201
  %v442 = vunpack.c.l.b16 %v202
  %v443 = vunpack.c.h.b16 %v202
  %v444 = vunpack.c.l.b16 %v203
  %v445 = vunpack.c.h.b16 %v203
  %v446 = vunpack.c.l.b16 %v204
  %v447 = vunpack.c.h.b16 %v204
  %v448 = vunpack.c.l.b16 %v205
  %v449 = vunpack.c.l.b16 %v206
  %v450 = vunpack.c.h.b16 %v206
  %v451 = vunpack.c.l.b16 %v207
  %v452 = vunpack.c.h.b16 %v207
  %v453 = vunpack.c.l.b16 %v208
  %v454 = vunpack.c.h.b16 %v208
  %v455 = vunpack.c.l.b16 %v209
  %v456 = vunpack.c.l.b16 %v210
  %v457 = vunpack.c.h.b16 %v210
  %v458 = vunpack.c.l.b16 %v211
  %v459 = vunpack.c.h.b16 %v211
  %v460 = vunpack.c.l.b16 %v212
  %v461 = vunpack.c.h.b16 %v212
  %v462 = vunpack.c.l.b16 %v213
  %v463 = vunpack.c.l.b16 %v214
  %v464 = vunpack.c.h.b16 %v214
  %v465 = vunpack.c.l.b16 %v215
  %v466 = vunpack.c.h.b16 %v215
  %v467 = vunpack.c.l.b16 %v216
  %v468 = vunpack.c.h.b16 %v216
  %v469 = vunpack.c.l.b16 %v217
  %v470 = vunpack.c.l.b16 %v218
  %v471 = vunpack.c.h.b16 %v218
  %v472 = vunpack.c.l.b16 %v219
  %v473 = vunpack.c.h.b16 %v219
  %v474 = vunpack.c.l.b16 %v220
  %v475 = vunpack.c.h.b16 %v220
  %v476 = vunpack.c.l.b16 %v221
  %v477 = vunpack.c.l.b16 %v222
  %v478 = vunpack.c.h.b16 %v222
  %v479 = vunpack.c.l.b16 %v223
  %v480 = vunpack.c.h.b16 %v223
  %v481 = vunpack.c.l.b16 %v224
  %v482 = vunpack.c.h.b16 %v224
  %v483 = vunpack.c.l.b16 %v225
  %v484 = vunpack.c.l.b16 %v226
  %v485 = vunpack.c.h.b16 %v226
  %v486 = vunpack.c.l.b16 %v227
  %v487 = vunpack.c.h.b16 %v227
  %v488 = vunpack.c.l.b16 %v228
  %v489 = vunpack.c.h.b16 %v228
  %v490 = vunpack.c.l.b16 %v229
  %v491 = vunpack.c.l.b16 %v230
  %v492 = vunpack.c.h.b16 %v230
  %v493 = vunpack.c.l.b16 %v231
  %v494 = vunpack.c.h.b16 %v231
  %v495 = vunpack.c.l.b16 %v232
  %v496 = vunpack.c.h.b16 %v232
  %v497 = vunpack.c.l.b16 %v233
  %v498 = vpack.c.b16 %v337, %v330
  %v499 = vpack.c.b16 %v338, %v331
  %v500 = vpack.c.b16 %v339, %v332
  %v501 = vpack.c.b16 %v340, %v333
  %v502 = vpack.c.b16 %v341, %v334
  %v503 = vpack.c.b16 %v342, %v335
  %v504 = vpack.c.b16 %v343, %v336
  %v505 = vpack.c.b16 %v351, %v344
  %v506 = vpack.c.b16 %v352, %v345
  %v507 = vpack.c.b16 %v353, %v346
  %v508 = vpack.c.b16 %v354, %v347
  %v509 = vpack.c.b16 %v355, %v348
  %v510 = vpack.c.b16 %v356, %v349
  %v511 = vpack.c.b16 %v357, %v350
  %v512 = vpack.c.b16 %v365, %v358
  %v513 = vpack.c.b16 %v366, %v359
  %v514 = vpack.c.b16 %v367, %v360
  %v515 = vpack.c.b16 %v368, %v361
  %v516 = vpack.c.b16 %v369, %v362
  %v517 = vpack.c.b16 %v370, %v363
  %v518 = vpack.c.b16 %v371, %v364
  %v519 = vpack.c.b16 %v379, %v372
  %v520 = vpack.c.b16 %v380, %v373
  %v521 = vpack.c.b16 %v381, %v374
  %v522 = vpack.c.b16 %v382, %v375
  %v523 = vpack.c.b16 %v383, %v376
  %v524 = vpack.c.b16 %v384, %v377
  %v525 = vpack.c.b16 %v385, %v378
  %v526 = vpack.c.b16 %v393, %v386
  %v527 = vpack.c.b16 %v394, %v387
  %v528 = vpack.c.b16 %v395, %v388
  %v529 = vpack.c.b16 %v396, %v389
  %v530 = vpack.c.b16 %v397, %v390
  %v531 = vpack.c.b16 %v398, %v391
  %v532 = vpack.c.b16 %v399, %v392
  %v533 = vpack.c.b16 %v407, %v400
  %v534 = vpack.c.b16 %v408, %v401
  %v535 = vpack.c.b16 %v409, %v402
  %v536 = vpack.c.b16 %v410, %v403
  %v537 = vpack.c.b16 %v411, %v404
  %v538 = vpack.c.b16 %v412, %v405
  %v539 = vpack.c.b16 %v413, %v406
  %v540 = vpack.c.b16 %v421, %v414
  %v541 = vpack.c.b16 %v422, %v415
  %v542 = vpack.c.b16 %v423, %v416
  %v543 = vpack.c.b16 %v424, %v417
  %v544 = vpack.c.b16 %v425, %v418
  %v545 = vpack.c.b16 %v426, %v419
  %v546 = vpack.c.b16 %v427, %v420
  %v547 = vpack.c.b16 %v435, %v428
  %v548 = vpack.c.b16 %v436, %v429
  %v549 = vpack.c.b16 %v437, %v430
  %v550 = vpack.c.b16 %v438, %v431
  %v551 = vpack.c.b16 %v439, %v432
  %v552 = vpack.c.b16 %v440, %v433
  %v553 = vpack.c.b16 %v441, %v434
  %v554 = vpack.c.b16 %v449, %v442
  %v555 = vpack.c.b16 %v450, %v443
  %v556 = vpack.c.b16 %v451, %v444
  %v557 = vpack.c.b16 %v452, %v445
  %v558 = vpack.c.b16 %v453, %v446
  %v559 = vpack.c.b16 %v454, %v447
  %v560 = vpack.c.b16 %v455, %v448
  %v561 = vpack.c.b16 %v463, %v456
  %v562 = vpack.c.b16 %v464, %v457
  %v563 = vpack.c.b16 %v465, %v458
  %v564 = vpack.c.b16 %v466, %v459
  %v565 = vpack.c.b16 %v467, %v460
  %v566 = vpack.c.b16 %v468, %v461
  %v567 = vpack.c.b16 %v469, %v462
  %v568 = vpack.c.b16 %v477, %v470
  %v569 = vpack.c.b16 %v478, %v471
  %v570 = vpack.c.b16 %v479, %v472
  %v571 = vpack.c.b16 %v480, %v473
  %v572 = vpack.c.b16 %v481, %v474
  %v573 = vpack.c.b16 %v482, %v475
  %v574 = vpack.c.b16 %v483, %v476
  %v575 = vpack.c.b16 %v491, %v484
  %v576 = vpack.c.b16 %v492, %v485
  %v577 = vpack.c.b16 %v493, %v486
  %v578 = vpack.c.b16 %v494, %v487
  %v579 = vpack.c.b16 %v495, %v488
  %v580 = vpack.c.b16 %v496, %v489
  %v581 = vpack.c.b16 %v497, %v490
  %v667 = vsel %vm131, %v121, 0
  %v669 = vsel %vm131, %v125, 0
  %671 = vmatprep.subr.bf16.mxu0 %v499
  %672 = vmatpush1.bf16.msra.mxu0 %v498
  %673 = vmatprep.subr.bf16.mxu0 %v506
  %674 = vmatpush1.bf16.msra.mxu0 %v505
  %675 = vmatprep.subr.bf16.mxu0 %v513
  %676 = vmatpush1.bf16.msra.mxu0 %v512
  %677 = vmatprep.subr.bf16.mxu0 %v520
  %678 = vmatpush1.bf16.msra.mxu0 %v519
  %679 = vmatprep.subr.bf16.mxu0 %v527
  %680 = vmatpush1.bf16.msra.mxu0 %v526
  %681 = vmatprep.subr.bf16.mxu0 %v534
  %682 = vmatpush1.bf16.msra.mxu0 %v533
  %683 = vmatprep.subr.bf16.mxu0 %v541
  %684 = vmatpush1.bf16.msra.mxu0 %v540
  %685 = vmatprep.subr.bf16.mxu0 %v548
  %686 = vmatpush1.bf16.msra.mxu0 %v547
  %687 = vmatprep.subr.bf16.mxu0 %v555
  %688 = vmatpush1.bf16.msra.mxu0 %v554
  %689 = vmatprep.subr.bf16.mxu0 %v562
  %690 = vmatpush1.bf16.msra.mxu0 %v561
  %691 = vmatprep.subr.bf16.mxu0 %v569
  %692 = vmatpush1.bf16.msra.mxu0 %v568
  %693 = vmatprep.subr.bf16.mxu0 %v576
  %694 = vmatpush1.bf16.msra.mxu0 %v575
  %695 = vmatprep.subr.bf16.mxu0 0
  %696 = vmatpush1.bf16.msra.mxu0 0
  %697 = vmatprep.subr.bf16.mxu0 0
  %698 = vmatpush1.bf16.msra.mxu0 0
  %699 = vmatprep.subr.bf16.mxu0 0
  %700 = vmatpush1.bf16.msra.mxu0 0
  %701 = vmatprep.subr.bf16.mxu0 0
  %702 = vmatpush1.bf16.msra.mxu0 0
  %703 = vmatprep.mubr.bf16.mxu0 %v667
  %704 = vmatmul.mubr.bf16.gmra.mrb[0].mxu0 %v133
  %v705 = vpop.f32.mrb[0].mxu0
  %v706 = vadd.f32 0.0, %v705
  %v707 = vpop.f32.mrb[0].mxu0
  %v708 = vadd.f32 0.0, %v707
  %v709 = vpop.f32.mrb[0].mxu0
  %v710 = vadd.f32 0.0, %v709
  %v711 = vpop.f32.mrb[0].mxu0
  %v712 = vadd.f32 0.0, %v711
  %713 = vmatprep.mubr.bf16.mxu0 %v669
  %714 = vmatmul.mubr.bf16.gmra.mrb[0].mxu0 %v136
  %v715 = vpop.f32.mrb[0].mxu0
  %v716 = vadd.f32 0.0, %v715
  %v717 = vpop.f32.mrb[0].mxu0
  %v718 = vadd.f32 0.0, %v717
  %v719 = vpop.f32.mrb[0].mxu0
  %v720 = vadd.f32 0.0, %v719
  %v721 = vpop.f32.mrb[0].mxu0
  %v722 = vadd.f32 0.0, %v721
  %723 = vdwg.mxu0
  %724 = vmatprep.subr.bf16.mxu0 %v501
  %725 = vmatpush1.bf16.msra.mxu0 %v500
  %726 = vmatprep.subr.bf16.mxu0 %v508
  %727 = vmatpush1.bf16.msra.mxu0 %v507
  %728 = vmatprep.subr.bf16.mxu0 %v515
  %729 = vmatpush1.bf16.msra.mxu0 %v514
  %730 = vmatprep.subr.bf16.mxu0 %v522
  %731 = vmatpush1.bf16.msra.mxu0 %v521
  %732 = vmatprep.subr.bf16.mxu0 %v529
  %733 = vmatpush1.bf16.msra.mxu0 %v528
  %734 = vmatprep.subr.bf16.mxu0 %v536
  %735 = vmatpush1.bf16.msra.mxu0 %v535
  %736 = vmatprep.subr.bf16.mxu0 %v543
  %737 = vmatpush1.bf16.msra.mxu0 %v542
  %738 = vmatprep.subr.bf16.mxu0 %v550
  %739 = vmatpush1.bf16.msra.mxu0 %v549
  %740 = vmatprep.subr.bf16.mxu0 %v557
  %741 = vmatpush1.bf16.msra.mxu0 %v556
  %742 = vmatprep.subr.bf16.mxu0 %v564
  %743 = vmatpush1.bf16.msra.mxu0 %v563
  %744 = vmatprep.subr.bf16.mxu0 %v571
  %745 = vmatpush1.bf16.msra.mxu0 %v570
  %746 = vmatprep.subr.bf16.mxu0 %v578
  %747 = vmatpush1.bf16.msra.mxu0 %v577
  %748 = vmatprep.subr.bf16.mxu0 0
  %749 = vmatpush1.bf16.msra.mxu0 0
  %750 = vmatprep.subr.bf16.mxu0 0
  %751 = vmatpush1.bf16.msra.mxu0 0
  %752 = vmatprep.subr.bf16.mxu0 0
  %753 = vmatpush1.bf16.msra.mxu0 0
  %754 = vmatprep.subr.bf16.mxu0 0
  %755 = vmatpush1.bf16.msra.mxu0 0
  %756 = vmatprep.mubr.bf16.mxu0 %v667
  %757 = vmatmul.mubr.bf16.gmra.mrb[0].mxu0 %v133
  %v758 = vpop.f32.mrb[0].mxu0
  %v759 = vadd.f32 0.0, %v758
  %v760 = vpop.f32.mrb[0].mxu0
  %v761 = vadd.f32 0.0, %v760
  %v762 = vpop.f32.mrb[0].mxu0
  %v763 = vadd.f32 0.0, %v762
  %v764 = vpop.f32.mrb[0].mxu0
  %v765 = vadd.f32 0.0, %v764
  %766 = vmatprep.mubr.bf16.mxu0 %v669
  %767 = vmatmul.mubr.bf16.gmra.mrb[0].mxu0 %v136
  %v768 = vpop.f32.mrb[0].mxu0
  %v769 = vadd.f32 0.0, %v768
  %v770 = vpop.f32.mrb[0].mxu0
  %v771 = vadd.f32 0.0, %v770
  %v772 = vpop.f32.mrb[0].mxu0
  %v773 = vadd.f32 0.0, %v772
  %v774 = vpop.f32.mrb[0].mxu0
  %v775 = vadd.f32 0.0, %v774
  %776 = vdwg.mxu0
  %777 = vmatprep.subr.bf16.mxu0 %v503
  %778 = vmatpush1.bf16.msra.mxu0 %v502
  %779 = vmatprep.subr.bf16.mxu0 %v510
  %780 = vmatpush1.bf16.msra.mxu0 %v509
  %781 = vmatprep.subr.bf16.mxu0 %v517
  %782 = vmatpush1.bf16.msra.mxu0 %v516
  %783 = vmatprep.subr.bf16.mxu0 %v524
  %784 = vmatpush1.bf16.msra.mxu0 %v523
  %785 = vmatprep.subr.bf16.mxu0 %v531
  %786 = vmatpush1.bf16.msra.mxu0 %v530
  %787 = vmatprep.subr.bf16.mxu0 %v538
  %788 = vmatpush1.bf16.msra.mxu0 %v537
  %789 = vmatprep.subr.bf16.mxu0 %v545
  %790 = vmatpush1.bf16.msra.mxu0 %v544
  %791 = vmatprep.subr.bf16.mxu0 %v552
  %792 = vmatpush1.bf16.msra.mxu0 %v551
  %793 = vmatprep.subr.bf16.mxu0 %v559
  %794 = vmatpush1.bf16.msra.mxu0 %v558
  %795 = vmatprep.subr.bf16.mxu0 %v566
  %796 = vmatpush1.bf16.msra.mxu0 %v565
  %797 = vmatprep.subr.bf16.mxu0 %v573
  %798 = vmatpush1.bf16.msra.mxu0 %v572
  %799 = vmatprep.subr.bf16.mxu0 %v580
  %800 = vmatpush1.bf16.msra.mxu0 %v579
  %801 = vmatprep.subr.bf16.mxu0 0
  %802 = vmatpush1.bf16.msra.mxu0 0
  %803 = vmatprep.subr.bf16.mxu0 0
  %804 = vmatpush1.bf16.msra.mxu0 0
  %805 = vmatprep.subr.bf16.mxu0 0
  %806 = vmatpush1.bf16.msra.mxu0 0
  %807 = vmatprep.subr.bf16.mxu0 0
  %808 = vmatpush1.bf16.msra.mxu0 0
  %809 = vmatprep.mubr.bf16.mxu0 %v667
  %810 = vmatmul.mubr.bf16.gmra.mrb[0].mxu0 %v133
  %v811 = vpop.f32.mrb[0].mxu0
  %v812 = vadd.f32 0.0, %v811
  %v813 = vpop.f32.mrb[0].mxu0
  %v814 = vadd.f32 0.0, %v813
  %v815 = vpop.f32.mrb[0].mxu0
  %v816 = vadd.f32 0.0, %v815
  %v817 = vpop.f32.mrb[0].mxu0
  %v818 = vadd.f32 0.0, %v817
  %819 = vmatprep.mubr.bf16.mxu0 %v669
  %820 = vmatmul.mubr.bf16.gmra.mrb[0].mxu0 %v136
  %v821 = vpop.f32.mrb[0].mxu0
  %v822 = vadd.f32 0.0, %v821
  %v823 = vpop.f32.mrb[0].mxu0
  %v824 = vadd.f32 0.0, %v823
  %v825 = vpop.f32.mrb[0].mxu0
  %v826 = vadd.f32 0.0, %v825
  %v827 = vpop.f32.mrb[0].mxu0
  %v828 = vadd.f32 0.0, %v827
  %829 = vdwg.mxu0
  %830 = vmatprep.subr.bf16.mxu0 0
  %831 = vmatpush1.bf16.msra.mxu0 %v504
  %832 = vmatprep.subr.bf16.mxu0 0
  %833 = vmatpush1.bf16.msra.mxu0 %v511
  %834 = vmatprep.subr.bf16.mxu0 0
  %835 = vmatpush1.bf16.msra.mxu0 %v518
  %836 = vmatprep.subr.bf16.mxu0 0
  %837 = vmatpush1.bf16.msra.mxu0 %v525
  %838 = vmatprep.subr.bf16.mxu0 0
  %839 = vmatpush1.bf16.msra.mxu0 %v532
  %840 = vmatprep.subr.bf16.mxu0 0
  %841 = vmatpush1.bf16.msra.mxu0 %v539
  %842 = vmatprep.subr.bf16.mxu0 0
  %843 = vmatpush1.bf16.msra.mxu0 %v546
  %844 = vmatprep.subr.bf16.mxu0 0
  %845 = vmatpush1.bf16.msra.mxu0 %v553
  %846 = vmatprep.subr.bf16.mxu0 0
  %847 = vmatpush1.bf16.msra.mxu0 %v560
  %848 = vmatprep.subr.bf16.mxu0 0
  %849 = vmatpush1.bf16.msra.mxu0 %v567
  %850 = vmatprep.subr.bf16.mxu0 0
  %851 = vmatpush1.bf16.msra.mxu0 %v574
  %852 = vmatprep.subr.bf16.mxu0 0
  %853 = vmatpush1.bf16.msra.mxu0 %v581
  %854 = vmatprep.subr.bf16.mxu0 0
  %855 = vmatpush1.bf16.msra.mxu0 0
  %856 = vmatprep.subr.bf16.mxu0 0
  %857 = vmatpush1.bf16.msra.mxu0 0
  %858 = vmatprep.subr.bf16.mxu0 0
  %859 = vmatpush1.bf16.msra.mxu0 0
  %860 = vmatprep.subr.bf16.mxu0 0
  %861 = vmatpush1.bf16.msra.mxu0 0
  %862 = vmatprep.mubr.bf16.mxu0 %v667
  %863 = vmatmul.mubr.bf16.gmra.mrb[0].mxu0 %v133
  %v864 = vpop.f32.mrb[0].mxu0
  %v865 = vadd.f32 0.0, %v864
  %v866 = vpop.f32.mrb[0].mxu0
  %v867 = vpop.f32.mrb[0].mxu0
  %v868 = vadd.f32 0.0, %v867
  %v869 = vpop.f32.mrb[0].mxu0
  %870 = vmatprep.mubr.bf16.mxu0 %v669
  %871 = vmatmul.mubr.bf16.gmra.mrb[0].mxu0 %v136
  %v872 = vpop.f32.mrb[0].mxu0
  %v873 = vadd.f32 0.0, %v872
  %v874 = vpop.f32.mrb[0].mxu0
  %v875 = vpop.f32.mrb[0].mxu0
  %v876 = vadd.f32 0.0, %v875
  %v877 = vpop.f32.mrb[0].mxu0
  %878 = vdwg.mxu0
  %vm879 = vcmp.lt.s32.totalorder %v80, 14
  %vm880 = vcmp.lt.s32.totalorder %v81, 14
  %vm881 = vcmp.lt.s32.totalorder %v82, 14
  %vm882 = vcmp.lt.s32.totalorder %v83, 14
  %v883 = vsel %vm879, 1, 0
  %v884 = vsel %vm880, 1, 0
  %v885 = vsel %vm881, 1, 0
  %v886 = vsel %vm882, 1, 0
  %vm887 = vcmp.eq.s32.totalorder %v883, 1
  %vm888 = vcmp.eq.s32.totalorder %v884, 1
  %vm889 = vcmp.eq.s32.totalorder %v885, 1
  %vm890 = vcmp.eq.s32.totalorder %v886, 1
  %v891 = vsel %vm887, %v706, 0.0
  %v892 = vsel %vm887, %v708, 0.0
  %v893 = vsel %vm887, %v759, 0.0
  %v894 = vsel %vm887, %v761, 0.0
  %v895 = vsel %vm887, %v812, 0.0
  %v896 = vsel %vm887, %v814, 0.0
  %v897 = vsel %vm887, %v865, 0.0
  %v898 = vsel %vm888, %v710, 0.0
  %v899 = vsel %vm888, %v712, 0.0
  %v900 = vsel %vm888, %v763, 0.0
  %v901 = vsel %vm888, %v765, 0.0
  %v902 = vsel %vm888, %v816, 0.0
  %v903 = vsel %vm888, %v818, 0.0
  %v904 = vsel %vm888, %v868, 0.0
  %v905 = vsel %vm889, %v716, 0.0
  %v906 = vsel %vm889, %v718, 0.0
  %v907 = vsel %vm889, %v769, 0.0
  %v908 = vsel %vm889, %v771, 0.0
  %v909 = vsel %vm889, %v822, 0.0
  %v910 = vsel %vm889, %v824, 0.0
  %v911 = vsel %vm889, %v873, 0.0
  %v912 = vsel %vm890, %v720, 0.0
  %v913 = vsel %vm890, %v722, 0.0
  %v914 = vsel %vm890, %v773, 0.0
  %v915 = vsel %vm890, %v775, 0.0
  %v916 = vsel %vm890, %v826, 0.0
  %v917 = vsel %vm890, %v828, 0.0
  %v918 = vsel %vm890, %v876, 0.0
  %v919 = vadd.f32 %v891, %v898
  %v920 = vadd.f32 %v919, %v905
  %v921 = vadd.f32 %v920, %v912
  %v922 = vrot.slane %v921, 4
  %v923 = vadd.f32 %v921, %v922
  %v924 = vrot.slane %v923, 2
  %v925 = vadd.f32 %v923, %v924
  %v926 = vrot.slane %v925, 1
  %v927 = vadd.f32 %v925, %v926
  %v928 = vadd.f32 %v892, %v899
  %v929 = vadd.f32 %v928, %v906
  %v930 = vadd.f32 %v929, %v913
  %v931 = vrot.slane %v930, 4
  %v932 = vadd.f32 %v930, %v931
  %v933 = vrot.slane %v932, 2
  %v934 = vadd.f32 %v932, %v933
  %v935 = vrot.slane %v934, 1
  %v936 = vadd.f32 %v934, %v935
  %v937 = vadd.f32 %v893, %v900
  %v938 = vadd.f32 %v937, %v907
  %v939 = vadd.f32 %v938, %v914
  %v940 = vrot.slane %v939, 4
  %v941 = vadd.f32 %v939, %v940
  %v942 = vrot.slane %v941, 2
  %v943 = vadd.f32 %v941, %v942
  %v944 = vrot.slane %v943, 1
  %v945 = vadd.f32 %v943, %v944
  %v946 = vadd.f32 %v894, %v901
  %v947 = vadd.f32 %v946, %v908
  %v948 = vadd.f32 %v947, %v915
  %v949 = vrot.slane %v948, 4
  %v950 = vadd.f32 %v948, %v949
  %v951 = vrot.slane %v950, 2
  %v952 = vadd.f32 %v950, %v951
  %v953 = vrot.slane %v952, 1
  %v954 = vadd.f32 %v952, %v953
  %v955 = vadd.f32 %v895, %v902
  %v956 = vadd.f32 %v955, %v909
  %v957 = vadd.f32 %v956, %v916
  %v958 = vrot.slane %v957, 4
  %v959 = vadd.f32 %v957, %v958
  %v960 = vrot.slane %v959, 2
  %v961 = vadd.f32 %v959, %v960
  %v962 = vrot.slane %v961, 1
  %v963 = vadd.f32 %v961, %v962
  %v964 = vadd.f32 %v896, %v903
  %v965 = vadd.f32 %v964, %v910
  %v966 = vadd.f32 %v965, %v917
  %v967 = vrot.slane %v966, 4
  %v968 = vadd.f32 %v966, %v967
  %v969 = vrot.slane %v968, 2
  %v970 = vadd.f32 %v968, %v969
  %v971 = vrot.slane %v970, 1
  %v972 = vadd.f32 %v970, %v971
  %v973 = vadd.f32 %v897, %v904
  %v974 = vadd.f32 %v973, %v911
  %v975 = vadd.f32 %v974, %v918
  %v976 = vrot.slane %v975, 4
  %v977 = vadd.f32 %v975, %v976
  %v978 = vrot.slane %v977, 2
  %v979 = vadd.f32 %v977, %v978
  %v980 = vrot.slane %v979, 1
  %v981 = vadd.f32 %v979, %v980
  %v982 = vmul.f32 %v891, %v891
  %v983 = vmul.f32 %v892, %v892
  %v984 = vmul.f32 %v893, %v893
  %v985 = vmul.f32 %v894, %v894
  %v986 = vmul.f32 %v895, %v895
  %v987 = vmul.f32 %v896, %v896
  %v988 = vmul.f32 %v897, %v897
  %v989 = vmul.f32 %v898, %v898
  %v990 = vmul.f32 %v899, %v899
  %v991 = vmul.f32 %v900, %v900
  %v992 = vmul.f32 %v901, %v901
  %v993 = vmul.f32 %v902, %v902
  %v994 = vmul.f32 %v903, %v903
  %v995 = vmul.f32 %v904, %v904
  %v996 = vmul.f32 %v905, %v905
  %v997 = vmul.f32 %v906, %v906
  %v998 = vmul.f32 %v907, %v907
  %v999 = vmul.f32 %v908, %v908
  %v1000 = vmul.f32 %v909, %v909
  %v1001 = vmul.f32 %v910, %v910
  %v1002 = vmul.f32 %v911, %v911
  %v1003 = vmul.f32 %v912, %v912
  %v1004 = vmul.f32 %v913, %v913
  %v1005 = vmul.f32 %v914, %v914
  %v1006 = vmul.f32 %v915, %v915
  %v1007 = vmul.f32 %v916, %v916
  %v1008 = vmul.f32 %v917, %v917
  %v1009 = vmul.f32 %v918, %v918
  %v1010 = vadd.f32 %v982, %v989
  %v1011 = vadd.f32 %v1010, %v996
  %v1012 = vadd.f32 %v1011, %v1003
  %v1013 = vrot.slane %v1012, 4
  %v1014 = vadd.f32 %v1012, %v1013
  %v1015 = vrot.slane %v1014, 2
  %v1016 = vadd.f32 %v1014, %v1015
  %v1017 = vrot.slane %v1016, 1
  %v1018 = vadd.f32 %v1016, %v1017
  %v1019 = vadd.f32 %v983, %v990
  %v1020 = vadd.f32 %v1019, %v997
  %v1021 = vadd.f32 %v1020, %v1004
  %v1022 = vrot.slane %v1021, 4
  %v1023 = vadd.f32 %v1021, %v1022
  %v1024 = vrot.slane %v1023, 2
  %v1025 = vadd.f32 %v1023, %v1024
  %v1026 = vrot.slane %v1025, 1
  %v1027 = vadd.f32 %v1025, %v1026
  %v1028 = vadd.f32 %v984, %v991
  %v1029 = vadd.f32 %v1028, %v998
  %v1030 = vadd.f32 %v1029, %v1005
  %v1031 = vrot.slane %v1030, 4
  %v1032 = vadd.f32 %v1030, %v1031
  %v1033 = vrot.slane %v1032, 2
  %v1034 = vadd.f32 %v1032, %v1033
  %v1035 = vrot.slane %v1034, 1
  %v1036 = vadd.f32 %v1034, %v1035
  %v1037 = vadd.f32 %v985, %v992
  %v1038 = vadd.f32 %v1037, %v999
  %v1039 = vadd.f32 %v1038, %v1006
  %v1040 = vrot.slane %v1039, 4
  %v1041 = vadd.f32 %v1039, %v1040
  %v1042 = vrot.slane %v1041, 2
  %v1043 = vadd.f32 %v1041, %v1042
  %v1044 = vrot.slane %v1043, 1
  %v1045 = vadd.f32 %v1043, %v1044
  %v1046 = vadd.f32 %v986, %v993
  %v1047 = vadd.f32 %v1046, %v1000
  %v1048 = vadd.f32 %v1047, %v1007
  %v1049 = vrot.slane %v1048, 4
  %v1050 = vadd.f32 %v1048, %v1049
  %v1051 = vrot.slane %v1050, 2
  %v1052 = vadd.f32 %v1050, %v1051
  %v1053 = vrot.slane %v1052, 1
  %v1054 = vadd.f32 %v1052, %v1053
  %v1055 = vadd.f32 %v987, %v994
  %v1056 = vadd.f32 %v1055, %v1001
  %v1057 = vadd.f32 %v1056, %v1008
  %v1058 = vrot.slane %v1057, 4
  %v1059 = vadd.f32 %v1057, %v1058
  %v1060 = vrot.slane %v1059, 2
  %v1061 = vadd.f32 %v1059, %v1060
  %v1062 = vrot.slane %v1061, 1
  %v1063 = vadd.f32 %v1061, %v1062
  %v1064 = vadd.f32 %v988, %v995
  %v1065 = vadd.f32 %v1064, %v1002
  %v1066 = vadd.f32 %v1065, %v1009
  %v1067 = vrot.slane %v1066, 4
  %v1068 = vadd.f32 %v1066, %v1067
  %v1069 = vrot.slane %v1068, 2
  %v1070 = vadd.f32 %v1068, %v1069
  %v1071 = vrot.slane %v1070, 1
  %v1072 = vadd.f32 %v1070, %v1071
  %vm1073 = vcmask 1040384
  %v1074 = vsel %vm1073, %v927, %v1018
  %v1075 = vsel %vm1073, %v936, %v1027
  %v1076 = vsel %vm1073, %v945, %v1036
  %v1077 = vsel %vm1073, %v954, %v1045
  %v1078 = vsel %vm1073, %v963, %v1054
  %v1079 = vsel %vm1073, %v972, %v1063
  %v1080 = vsel %vm1073, %v981, %v1072
  %v1081 = vadd.f32 %v1074, %v1078
  %v1082 = vadd.f32 %v1075, %v1079
  %v1083 = vadd.f32 %v1076, %v1080
  %v1084 = vadd.f32 %v1077, 0.0
  %v1085 = vadd.f32 %v1081, %v1083
  %v1086 = vadd.f32 %v1082, %v1084
  %v1087 = vadd.f32 %v1085, %v1086
  %1089 = vrot.lane.b32.xlu0 %v1087, 64
  %v1090 = vpop.permute.xlu0 %1089
  %v1092 = vadd.f32 %v1087, %v1090
  %v1093 = vmul.f32 %v1092, 0.0025510204
  %v1094 = vmul.f32 %v1093, %v1093
  %v1096 = vrot.slane %v1094, 7
  %v1098 = vsub.f32 %v1093, %v1096
  %v1099 = vmax.f32 %v1098, 0.0
  %v1100 = vadd.f32 %v1099, 1e-05
  %v1101 = vrsqrt.pop %v1100
  %v1103 = vrot.slane %v1101, 1
  %v1105 = vmul.f32 %v29, %v1103
  %v1106 = vmul.f32 %v1093, %v1105
  %v1107 = vsub.f32 %v30, %v1106
  %v1109 = vrot.slane %v1107, 7
  %v1111 = vsel %vm1073, %v1105, %v1109
  %1113 = vrot.lane.b32.xlu0 %v1111, 64
  %v1114 = vpop.permute.xlu0 %1113
  %v1116 = vsel %vm131, %v1111, %v1114
  %v1117 = vlaneseq
  %v1118 = vshrl.u32 %v1117, 7
  %v1119 = vsub.s32 0, %v1118
  %v1120 = vrot.slane %v1116, %v1119
  %v1121 = vmul.f32 %v706, %v1120
  %v1122 = vmul.f32 %v708, %v1120
  %v1123 = vmul.f32 %v759, %v1120
  %v1124 = vmul.f32 %v761, %v1120
  %v1125 = vmul.f32 %v812, %v1120
  %v1126 = vmul.f32 %v814, %v1120
  %v1127 = vmul.f32 %v865, %v1120
  %v1128 = vmul.f32 %v710, %v1120
  %v1129 = vmul.f32 %v712, %v1120
  %v1130 = vmul.f32 %v763, %v1120
  %v1131 = vmul.f32 %v765, %v1120
  %v1132 = vmul.f32 %v816, %v1120
  %v1133 = vmul.f32 %v818, %v1120
  %v1134 = vmul.f32 %v868, %v1120
  %v1135 = vmul.f32 %v716, %v1120
  %v1136 = vmul.f32 %v718, %v1120
  %v1137 = vmul.f32 %v769, %v1120
  %v1138 = vmul.f32 %v771, %v1120
  %v1139 = vmul.f32 %v822, %v1120
  %v1140 = vmul.f32 %v824, %v1120
  %v1141 = vmul.f32 %v873, %v1120
  %v1142 = vmul.f32 %v720, %v1120
  %v1143 = vmul.f32 %v722, %v1120
  %v1144 = vmul.f32 %v773, %v1120
  %v1145 = vmul.f32 %v775, %v1120
  %v1146 = vmul.f32 %v826, %v1120
  %v1147 = vmul.f32 %v828, %v1120
  %v1148 = vmul.f32 %v876, %v1120
  %v1149 = vlaneseq
  %v1150 = vshrl.u32 %v1149, 7
  %v1151 = vsub.s32 1, %v1150
  %v1152 = vrot.slane %v1116, %v1151
  %v1153 = vadd.f32 %v1121, %v1152
  %v1154 = vadd.f32 %v1122, %v1152
  %v1155 = vadd.f32 %v1123, %v1152
  %v1156 = vadd.f32 %v1124, %v1152
  %v1157 = vadd.f32 %v1125, %v1152
  %v1158 = vadd.f32 %v1126, %v1152
  %v1159 = vadd.f32 %v1127, %v1152
  %v1160 = vadd.f32 %v1128, %v1152
  %v1161 = vadd.f32 %v1129, %v1152
  %v1162 = vadd.f32 %v1130, %v1152
  %v1163 = vadd.f32 %v1131, %v1152
  %v1164 = vadd.f32 %v1132, %v1152
  %v1165 = vadd.f32 %v1133, %v1152
  %v1166 = vadd.f32 %v1134, %v1152
  %v1167 = vadd.f32 %v1135, %v1152
  %v1168 = vadd.f32 %v1136, %v1152
  %v1169 = vadd.f32 %v1137, %v1152
  %v1170 = vadd.f32 %v1138, %v1152
  %v1171 = vadd.f32 %v1139, %v1152
  %v1172 = vadd.f32 %v1140, %v1152
  %v1173 = vadd.f32 %v1141, %v1152
  %v1174 = vadd.f32 %v1142, %v1152
  %v1175 = vadd.f32 %v1143, %v1152
  %v1176 = vadd.f32 %v1144, %v1152
  %v1177 = vadd.f32 %v1145, %v1152
  %v1178 = vadd.f32 %v1146, %v1152
  %v1179 = vadd.f32 %v1147, %v1152
  %v1180 = vadd.f32 %v1148, %v1152
  %v1181 = vmax.f32 %v1153, 0.0
  %v1182 = vmax.f32 %v1154, 0.0
  %v1183 = vmax.f32 %v1155, 0.0
  %v1184 = vmax.f32 %v1156, 0.0
  %v1185 = vmax.f32 %v1157, 0.0
  %v1186 = vmax.f32 %v1158, 0.0
  %v1187 = vmax.f32 %v1159, 0.0
  %v1188 = vmax.f32 %v1160, 0.0
  %v1189 = vmax.f32 %v1161, 0.0
  %v1190 = vmax.f32 %v1162, 0.0
  %v1191 = vmax.f32 %v1163, 0.0
  %v1192 = vmax.f32 %v1164, 0.0
  %v1193 = vmax.f32 %v1165, 0.0
  %v1194 = vmax.f32 %v1166, 0.0
  %v1195 = vmax.f32 %v1167, 0.0
  %v1196 = vmax.f32 %v1168, 0.0
  %v1197 = vmax.f32 %v1169, 0.0
  %v1198 = vmax.f32 %v1170, 0.0
  %v1199 = vmax.f32 %v1171, 0.0
  %v1200 = vmax.f32 %v1172, 0.0
  %v1201 = vmax.f32 %v1173, 0.0
  %v1202 = vmax.f32 %v1174, 0.0
  %v1203 = vmax.f32 %v1175, 0.0
  %v1204 = vmax.f32 %v1176, 0.0
  %v1205 = vmax.f32 %v1177, 0.0
  %v1206 = vmax.f32 %v1178, 0.0
  %v1207 = vmax.f32 %v1179, 0.0
  %v1208 = vmax.f32 %v1180, 0.0
  %1237 = vrot.lane.b32.xlu0 %v1181, 64
  %v1238 = vpop.permute.xlu0 %1237
  %1239 = vrot.lane.b32.xlu0 %v1182, 64
  %v1240 = vpop.permute.xlu0 %1239
  %1241 = vrot.lane.b32.xlu0 %v1183, 64
  %v1242 = vpop.permute.xlu0 %1241
  %1243 = vrot.lane.b32.xlu0 %v1184, 64
  %v1244 = vpop.permute.xlu0 %1243
  %1245 = vrot.lane.b32.xlu0 %v1185, 64
  %v1246 = vpop.permute.xlu0 %1245
  %1247 = vrot.lane.b32.xlu0 %v1186, 64
  %v1248 = vpop.permute.xlu0 %1247
  %1249 = vrot.lane.b32.xlu0 %v1187, 64
  %v1250 = vpop.permute.xlu0 %1249
  %1251 = vrot.lane.b32.xlu0 %v1188, 64
  %v1252 = vpop.permute.xlu0 %1251
  %1253 = vrot.lane.b32.xlu0 %v1189, 64
  %v1254 = vpop.permute.xlu0 %1253
  %1255 = vrot.lane.b32.xlu0 %v1190, 64
  %v1256 = vpop.permute.xlu0 %1255
  %1257 = vrot.lane.b32.xlu0 %v1191, 64
  %v1258 = vpop.permute.xlu0 %1257
  %1259 = vrot.lane.b32.xlu0 %v1192, 64
  %v1260 = vpop.permute.xlu0 %1259
  %1261 = vrot.lane.b32.xlu0 %v1193, 64
  %v1262 = vpop.permute.xlu0 %1261
  %1263 = vrot.lane.b32.xlu0 %v1194, 64
  %v1264 = vpop.permute.xlu0 %1263
  %1265 = vrot.lane.b32.xlu0 %v1195, 64
  %v1266 = vpop.permute.xlu0 %1265
  %1267 = vrot.lane.b32.xlu0 %v1196, 64
  %v1268 = vpop.permute.xlu0 %1267
  %1269 = vrot.lane.b32.xlu0 %v1197, 64
  %v1270 = vpop.permute.xlu0 %1269
  %1271 = vrot.lane.b32.xlu0 %v1198, 64
  %v1272 = vpop.permute.xlu0 %1271
  %1273 = vrot.lane.b32.xlu0 %v1199, 64
  %v1274 = vpop.permute.xlu0 %1273
  %1275 = vrot.lane.b32.xlu0 %v1200, 64
  %v1276 = vpop.permute.xlu0 %1275
  %1277 = vrot.lane.b32.xlu0 %v1201, 64
  %v1278 = vpop.permute.xlu0 %1277
  %1279 = vrot.lane.b32.xlu0 %v1202, 64
  %v1280 = vpop.permute.xlu0 %1279
  %1281 = vrot.lane.b32.xlu0 %v1203, 64
  %v1282 = vpop.permute.xlu0 %1281
  %1283 = vrot.lane.b32.xlu0 %v1204, 64
  %v1284 = vpop.permute.xlu0 %1283
  %1285 = vrot.lane.b32.xlu0 %v1205, 64
  %v1286 = vpop.permute.xlu0 %1285
  %1287 = vrot.lane.b32.xlu0 %v1206, 64
  %v1288 = vpop.permute.xlu0 %1287
  %1289 = vrot.lane.b32.xlu0 %v1207, 64
  %v1290 = vpop.permute.xlu0 %1289
  %1291 = vrot.lane.b32.xlu0 %v1208, 64
  %v1292 = vpop.permute.xlu0 %1291
  %v1293 = vsel %vm131, %v1238, %v1240
  %v1294 = vsel %vm131, %v1240, %v1242
  %v1295 = vsel %vm131, %v1242, %v1244
  %v1296 = vsel %vm131, %v1244, %v1246
  %v1297 = vsel %vm131, %v1246, %v1248
  %v1298 = vsel %vm131, %v1248, %v1250
  %v1299 = vsel %vm131, %v1252, %v1254
  %v1300 = vsel %vm131, %v1254, %v1256
  %v1301 = vsel %vm131, %v1256, %v1258
  %v1302 = vsel %vm131, %v1258, %v1260
  %v1303 = vsel %vm131, %v1260, %v1262
  %v1304 = vsel %vm131, %v1262, %v1264
  %v1305 = vsel %vm131, %v1266, %v1268
  %v1306 = vsel %vm131, %v1268, %v1270
  %v1307 = vsel %vm131, %v1270, %v1272
  %v1308 = vsel %vm131, %v1272, %v1274
  %v1309 = vsel %vm131, %v1274, %v1276
  %v1310 = vsel %vm131, %v1276, %v1278
  %v1311 = vsel %vm131, %v1280, %v1282
  %v1312 = vsel %vm131, %v1282, %v1284
  %v1313 = vsel %vm131, %v1284, %v1286
  %v1314 = vsel %vm131, %v1286, %v1288
  %v1315 = vsel %vm131, %v1288, %v1290
  %v1316 = vsel %vm131, %v1290, %v1292
  %v1345 = vmax.f32 %v1181, %v1293
  %v1346 = vmax.f32 %v1182, %v1294
  %v1347 = vmax.f32 %v1183, %v1295
  %v1348 = vmax.f32 %v1184, %v1296
  %v1349 = vmax.f32 %v1185, %v1297
  %v1350 = vmax.f32 %v1186, %v1298
  %v1351 = vmax.f32 %v1187, %v1250
  %v1352 = vmax.f32 %v1188, %v1299
  %v1353 = vmax.f32 %v1189, %v1300
  %v1354 = vmax.f32 %v1190, %v1301
  %v1355 = vmax.f32 %v1191, %v1302
  %v1356 = vmax.f32 %v1192, %v1303
  %v1357 = vmax.f32 %v1193, %v1304
  %v1358 = vmax.f32 %v1194, %v1264
  %v1359 = vmax.f32 %v1195, %v1305
  %v1360 = vmax.f32 %v1196, %v1306
  %v1361 = vmax.f32 %v1197, %v1307
  %v1362 = vmax.f32 %v1198, %v1308
  %v1363 = vmax.f32 %v1199, %v1309
  %v1364 = vmax.f32 %v1200, %v1310
  %v1365 = vmax.f32 %v1201, %v1278
  %v1366 = vmax.f32 %v1202, %v1311
  %v1367 = vmax.f32 %v1203, %v1312
  %v1368 = vmax.f32 %v1204, %v1313
  %v1369 = vmax.f32 %v1205, %v1314
  %v1370 = vmax.f32 %v1206, %v1315
  %v1371 = vmax.f32 %v1207, %v1316
  %v1372 = vmax.f32 %v1208, %v1292
  %v1401 = vrot.slane %v1345, 1
  %v1402 = vrot.slane %v1352, 1
  %v1403 = vsel %vm122, %v1401, %v1402
  %v1404 = vrot.slane %v1346, 1
  %v1405 = vrot.slane %v1353, 1
  %v1406 = vsel %vm122, %v1404, %v1405
  %v1407 = vrot.slane %v1347, 1
  %v1408 = vrot.slane %v1354, 1
  %v1409 = vsel %vm122, %v1407, %v1408
  %v1410 = vrot.slane %v1348, 1
  %v1411 = vrot.slane %v1355, 1
  %v1412 = vsel %vm122, %v1410, %v1411
  %v1413 = vrot.slane %v1349, 1
  %v1414 = vrot.slane %v1356, 1
  %v1415 = vsel %vm122, %v1413, %v1414
  %v1416 = vrot.slane %v1350, 1
  %v1417 = vrot.slane %v1357, 1
  %v1418 = vsel %vm122, %v1416, %v1417
  %v1419 = vrot.slane %v1351, 1
  %v1420 = vrot.slane %v1358, 1
  %v1421 = vsel %vm122, %v1419, %v1420
  %v1422 = vrot.slane %v1359, 1
  %v1423 = vsel %vm122, %v1402, %v1422
  %v1424 = vrot.slane %v1360, 1
  %v1425 = vsel %vm122, %v1405, %v1424
  %v1426 = vrot.slane %v1361, 1
  %v1427 = vsel %vm122, %v1408, %v1426
  %v1428 = vrot.slane %v1362, 1
  %v1429 = vsel %vm122, %v1411, %v1428
  %v1430 = vrot.slane %v1363, 1
  %v1431 = vsel %vm122, %v1414, %v1430
  %v1432 = vrot.slane %v1364, 1
  %v1433 = vsel %vm122, %v1417, %v1432
  %v1434 = vrot.slane %v1365, 1
  %v1435 = vsel %vm122, %v1420, %v1434
  %v1436 = vrot.slane %v1366, 1
  %v1437 = vsel %vm122, %v1422, %v1436
  %v1438 = vrot.slane %v1367, 1
  %v1439 = vsel %vm122, %v1424, %v1438
  %v1440 = vrot.slane %v1368, 1
  %v1441 = vsel %vm122, %v1426, %v1440
  %v1442 = vrot.slane %v1369, 1
  %v1443 = vsel %vm122, %v1428, %v1442
  %v1444 = vrot.slane %v1370, 1
  %v1445 = vsel %vm122, %v1430, %v1444
  %v1446 = vrot.slane %v1371, 1
  %v1447 = vsel %vm122, %v1432, %v1446
  %v1448 = vrot.slane %v1372, 1
  %v1449 = vsel %vm122, %v1434, %v1448
  %v1478 = vsel %vm122, %v1436, 0.0
  %v1479 = vsel %vm122, %v1438, 0.0
  %v1480 = vsel %vm122, %v1440, 0.0
  %v1481 = vsel %vm122, %v1442, 0.0
  %v1482 = vsel %vm122, %v1444, 0.0
  %v1483 = vsel %vm122, %v1446, 0.0
  %v1484 = vsel %vm122, %v1448, 0.0
  %v1485 = vmax.f32 %v1345, %v1403
  %v1486 = vmax.f32 %v1346, %v1406
  %v1487 = vmax.f32 %v1347, %v1409
  %v1488 = vmax.f32 %v1348, %v1412
  %v1489 = vmax.f32 %v1349, %v1415
  %v1490 = vmax.f32 %v1350, %v1418
  %v1491 = vmax.f32 %v1351, %v1421
  %v1492 = vmax.f32 %v1352, %v1423
  %v1493 = vmax.f32 %v1353, %v1425
  %v1494 = vmax.f32 %v1354, %v1427
  %v1495 = vmax.f32 %v1355, %v1429
  %v1496 = vmax.f32 %v1356, %v1431
  %v1497 = vmax.f32 %v1357, %v1433
  %v1498 = vmax.f32 %v1358, %v1435
  %v1499 = vmax.f32 %v1359, %v1437
  %v1500 = vmax.f32 %v1360, %v1439
  %v1501 = vmax.f32 %v1361, %v1441
  %v1502 = vmax.f32 %v1362, %v1443
  %v1503 = vmax.f32 %v1363, %v1445
  %v1504 = vmax.f32 %v1364, %v1447
  %v1505 = vmax.f32 %v1365, %v1449
  %v1506 = vmax.f32 %v1366, %v1478
  %v1507 = vmax.f32 %v1367, %v1479
  %v1508 = vmax.f32 %v1368, %v1480
  %v1509 = vmax.f32 %v1369, %v1481
  %v1510 = vmax.f32 %v1370, %v1482
  %v1511 = vmax.f32 %v1371, %v1483
  %v1512 = vmax.f32 %v1372, %v1484
  %v1513 = vpack.c.bf16 %v1492, %v1485
  %v1514 = vpack.c.bf16 %v1493, %v1486
  %v1515 = vpack.c.bf16 %v1494, %v1487
  %v1516 = vpack.c.bf16 %v1495, %v1488
  %v1517 = vpack.c.bf16 %v1496, %v1489
  %v1518 = vpack.c.bf16 %v1497, %v1490
  %v1519 = vpack.c.bf16 %v1498, %v1491
  %v1520 = vpack.c.bf16 %v1506, %v1499
  %v1521 = vpack.c.bf16 %v1507, %v1500
  %v1522 = vpack.c.bf16 %v1508, %v1501
  %v1523 = vpack.c.bf16 %v1509, %v1502
  %v1524 = vpack.c.bf16 %v1510, %v1503
  %v1525 = vpack.c.bf16 %v1511, %v1504
  %v1526 = vpack.c.bf16 %v1512, %v1505
  %v1541 = vrot.slane %v1513, 1
  %v1542 = vrot.slane %v1520, 1
  %v1543 = vsel %vm118, %v1541, %v1542
  %v1544 = vrot.slane %v1514, 1
  %v1545 = vrot.slane %v1521, 1
  %v1546 = vsel %vm118, %v1544, %v1545
  %v1547 = vrot.slane %v1515, 1
  %v1548 = vrot.slane %v1522, 1
  %v1549 = vsel %vm118, %v1547, %v1548
  %v1550 = vrot.slane %v1516, 1
  %v1551 = vrot.slane %v1523, 1
  %v1552 = vsel %vm118, %v1550, %v1551
  %v1553 = vrot.slane %v1517, 1
  %v1554 = vrot.slane %v1524, 1
  %v1555 = vsel %vm118, %v1553, %v1554
  %v1556 = vrot.slane %v1518, 1
  %v1557 = vrot.slane %v1525, 1
  %v1558 = vsel %vm118, %v1556, %v1557
  %v1559 = vrot.slane %v1519, 1
  %v1560 = vrot.slane %v1526, 1
  %v1561 = vsel %vm118, %v1559, %v1560
  %v1563 = vsel %vm122, %v1542, 0
  %v1565 = vsel %vm122, %v1545, 0
  %v1567 = vsel %vm122, %v1548, 0
  %v1569 = vsel %vm122, %v1551, 0
  %v1571 = vsel %vm122, %v1554, 0
  %v1573 = vsel %vm122, %v1557, 0
  %v1575 = vsel %vm122, %v1560, 0
  %vm1576 = vcmask 1045504
  %v1577 = vrot.slane %v1513, 2
  %v1578 = vrot.slane %v1520, 2
  %v1579 = vsel %vm1576, %v1577, %v1578
  %v1580 = vrot.slane %v1514, 2
  %v1581 = vrot.slane %v1521, 2
  %v1582 = vsel %vm1576, %v1580, %v1581
  %v1583 = vrot.slane %v1515, 2
  %v1584 = vrot.slane %v1522, 2
  %v1585 = vsel %vm1576, %v1583, %v1584
  %v1586 = vrot.slane %v1516, 2
  %v1587 = vrot.slane %v1523, 2
  %v1588 = vsel %vm1576, %v1586, %v1587
  %v1589 = vrot.slane %v1517, 2
  %v1590 = vrot.slane %v1524, 2
  %v1591 = vsel %vm1576, %v1589, %v1590
  %v1592 = vrot.slane %v1518, 2
  %v1593 = vrot.slane %v1525, 2
  %v1594 = vsel %vm1576, %v1592, %v1593
  %v1595 = vrot.slane %v1519, 2
  %v1596 = vrot.slane %v1526, 2
  %v1597 = vsel %vm1576, %v1595, %v1596
  %vm1604 = vcmask 1045504
  %v1606 = vsel %vm1604, %v1578, 0
  %v1609 = vsel %vm1604, %v1581, 0
  %v1612 = vsel %vm1604, %v1584, 0
  %v1615 = vsel %vm1604, %v1587, 0
  %v1618 = vsel %vm1604, %v1590, 0
  %v1621 = vsel %vm1604, %v1593, 0
  %v1624 = vsel %vm1604, %v1596, 0
  %1632 = vrot.lane.b32.xlu0 %v1543, 64
  %v1633 = vpop.permute.xlu0 %1632
  %1634 = vrot.lane.b32.xlu0 %v1546, 64
  %v1635 = vpop.permute.xlu0 %1634
  %1636 = vrot.lane.b32.xlu0 %v1549, 64
  %v1637 = vpop.permute.xlu0 %1636
  %1638 = vrot.lane.b32.xlu0 %v1552, 64
  %v1639 = vpop.permute.xlu0 %1638
  %1640 = vrot.lane.b32.xlu0 %v1555, 64
  %v1641 = vpop.permute.xlu0 %1640
  %1642 = vrot.lane.b32.xlu0 %v1558, 64
  %v1643 = vpop.permute.xlu0 %1642
  %1644 = vrot.lane.b32.xlu0 %v1561, 64
  %v1645 = vpop.permute.xlu0 %1644
  %1646 = vrot.lane.b32.xlu0 %v1563, 64
  %v1647 = vpop.permute.xlu0 %1646
  %1648 = vrot.lane.b32.xlu0 %v1565, 64
  %v1649 = vpop.permute.xlu0 %1648
  %1650 = vrot.lane.b32.xlu0 %v1567, 64
  %v1651 = vpop.permute.xlu0 %1650
  %1652 = vrot.lane.b32.xlu0 %v1569, 64
  %v1653 = vpop.permute.xlu0 %1652
  %1654 = vrot.lane.b32.xlu0 %v1571, 64
  %v1655 = vpop.permute.xlu0 %1654
  %1656 = vrot.lane.b32.xlu0 %v1573, 64
  %v1657 = vpop.permute.xlu0 %1656
  %1658 = vrot.lane.b32.xlu0 %v1575, 64
  %v1659 = vpop.permute.xlu0 %1658
  %vm1660 = vcmask 523264
  %v1661 = vsel %vm1660, %v1633, %v1635
  %v1662 = vsel %vm1660, %v1635, %v1637
  %v1663 = vsel %vm1660, %v1637, %v1639
  %v1664 = vsel %vm1660, %v1639, %v1641
  %v1665 = vsel %vm1660, %v1641, %v1643
  %v1666 = vsel %vm1660, %v1643, %v1645
  %v1667 = vsel %vm1660, %v1647, %v1649
  %v1668 = vsel %vm1660, %v1649, %v1651
  %v1669 = vsel %vm1660, %v1651, %v1653
  %v1670 = vsel %vm1660, %v1653, %v1655
  %v1671 = vsel %vm1660, %v1655, %v1657
  %v1672 = vsel %vm1660, %v1657, %v1659
  %v1687 = vsel %vm131, %v1519, %v1633
  %v1691 = vsel %vm131, %v1526, %v1647
  %v1693 = vld [vmem:[%s2] sm:$0xff]
  %v1694 = vld [vmem:[%s2 + $0x8] sm:$0xf]
  %v1695 = vld [vmem:[%s2 + $0xc] sm:$0xff]
  %v1696 = vld [vmem:[%s2 + $0x14] sm:$0xf]
  %v1697 = vld [vmem:[%s2 + $0x18] sm:$0xff]
  %v1698 = vld [vmem:[%s2 + $0x20] sm:$0xf]
  %v1699 = vld [vmem:[%s2 + $0x24] sm:$0xff]
  %v1700 = vld [vmem:[%s2 + $0x2c] sm:$0xf]
  %v1701 = vld [vmem:[%s2 + $0x30] sm:$0xff]
  %v1702 = vld [vmem:[%s2 + $0x38] sm:$0xf]
  %v1703 = vld [vmem:[%s2 + $0x3c] sm:$0xff]
  %v1704 = vld [vmem:[%s2 + $0x44] sm:$0xf]
  %v1705 = vld [vmem:[%s2 + $0x48] sm:$0xff]
  %v1706 = vld [vmem:[%s2 + $0x50] sm:$0xf]
  %v1707 = vld [vmem:[%s2 + $0x54] sm:$0xff]
  %v1708 = vld [vmem:[%s2 + $0x5c] sm:$0xf]
  %v1709 = vld [vmem:[%s2 + $0x60] sm:$0xff]
  %v1710 = vld [vmem:[%s2 + $0x68] sm:$0xf]
  %v1711 = vld [vmem:[%s2 + $0x6c] sm:$0xff]
  %v1712 = vld [vmem:[%s2 + $0x74] sm:$0xf]
  %v1713 = vld [vmem:[%s2 + $0x78] sm:$0xff]
  %v1714 = vld [vmem:[%s2 + $0x80] sm:$0xf]
  %v1715 = vld [vmem:[%s2 + $0x84] sm:$0xff]
  %v1716 = vld [vmem:[%s2 + $0x8c] sm:$0xf]
  %v1717 = vld [vmem:[%s2 + $0x90] sm:$0xff]
  %v1718 = vld [vmem:[%s2 + $0x98] sm:$0xf]
  %v1719 = vld [vmem:[%s2 + $0x9c] sm:$0xff]
  %v1720 = vld [vmem:[%s2 + $0xa4] sm:$0xf]
  %v1721 = vld [vmem:[%s2 + $0xa8] sm:$0xff]
  %v1722 = vld [vmem:[%s2 + $0xb0] sm:$0xf]
  %v1723 = vld [vmem:[%s2 + $0xb4] sm:$0xff]
  %v1724 = vld [vmem:[%s2 + $0xbc] sm:$0xf]
  %v1725 = vld [vmem:[%s2 + $0xc0] sm:$0xff]
  %v1726 = vld [vmem:[%s2 + $0xc8] sm:$0xf]
  %v1727 = vld [vmem:[%s2 + $0xcc] sm:$0xff]
  %v1728 = vld [vmem:[%s2 + $0xd4] sm:$0xf]
  %v1729 = vld [vmem:[%s2 + $0xd8] sm:$0xff]
  %v1730 = vld [vmem:[%s2 + $0xe0] sm:$0xf]
  %v1731 = vld [vmem:[%s2 + $0xe4] sm:$0xff]
  %v1732 = vld [vmem:[%s2 + $0xec] sm:$0xf]
  %v1733 = vld [vmem:[%s2 + $0xf0] sm:$0xff]
  %v1734 = vld [vmem:[%s2 + $0xf8] sm:$0xf]
  %v1735 = vld [vmem:[%s2 + $0xfc] sm:$0xff]
  %v1736 = vld [vmem:[%s2 + $0x104] sm:$0xf]
  %v1737 = vld [vmem:[%s2 + $0x108] sm:$0xff]
  %v1738 = vld [vmem:[%s2 + $0x110] sm:$0xf]
  %v1739 = vld [vmem:[%s2 + $0x114] sm:$0xff]
  %v1740 = vld [vmem:[%s2 + $0x11c] sm:$0xf]
  %v1741 = vld [vmem:[%s2 + $0x120] sm:$0xff]
  %v1742 = vld [vmem:[%s2 + $0x128] sm:$0xf]
  %v1743 = vld [vmem:[%s2 + $0x12c] sm:$0xff]
  %v1744 = vld [vmem:[%s2 + $0x134] sm:$0xf]
  %v1745 = vld [vmem:[%s2 + $0x138] sm:$0xff]
  %v1746 = vld [vmem:[%s2 + $0x140] sm:$0xf]
  %v1747 = vld [vmem:[%s2 + $0x144] sm:$0xff]
  %v1748 = vld [vmem:[%s2 + $0x14c] sm:$0xf]
  %v1749 = vld [vmem:[%s2 + $0x150] sm:$0xff]
  %v1750 = vld [vmem:[%s2 + $0x158] sm:$0xf]
  %v1751 = vld [vmem:[%s2 + $0x15c] sm:$0xff]
  %v1752 = vld [vmem:[%s2 + $0x164] sm:$0xf]
  %v1753 = vld [vmem:[%s2 + $0x168] sm:$0xff]
  %v1754 = vld [vmem:[%s2 + $0x170] sm:$0xf]
  %v1755 = vld [vmem:[%s2 + $0x174] sm:$0xff]
  %v1756 = vld [vmem:[%s2 + $0x17c] sm:$0xf]
  %v1757 = vld [vmem:[%s2 + $0x180] sm:$0xff]
  %v1758 = vld [vmem:[%s2 + $0x188] sm:$0xf]
  %v1759 = vld [vmem:[%s2 + $0x18c] sm:$0xff]
  %v1760 = vld [vmem:[%s2 + $0x194] sm:$0xf]
  %v1761 = vld [vmem:[%s2 + $0x198] sm:$0xff]
  %v1762 = vld [vmem:[%s2 + $0x1a0] sm:$0xf]
  %v1763 = vld [vmem:[%s2 + $0x1a4] sm:$0xff]
  %v1764 = vld [vmem:[%s2 + $0x1ac] sm:$0xf]
  %v1765 = vld [vmem:[%s2 + $0x1b0] sm:$0xff]
  %v1766 = vld [vmem:[%s2 + $0x1b8] sm:$0xf]
  %v1767 = vld [vmem:[%s2 + $0x1bc] sm:$0xff]
  %v1768 = vld [vmem:[%s2 + $0x1c4] sm:$0xf]
  %v1769 = vld [vmem:[%s2 + $0x1c8] sm:$0xff]
  %v1770 = vld [vmem:[%s2 + $0x1d0] sm:$0xf]
  %v1771 = vld [vmem:[%s2 + $0x1d4] sm:$0xff]
  %v1772 = vld [vmem:[%s2 + $0x1dc] sm:$0xf]
  %v1773 = vld [vmem:[%s2 + $0x1e0] sm:$0xff]
  %v1774 = vld [vmem:[%s2 + $0x1e8] sm:$0xf]
  %v1775 = vld [vmem:[%s2 + $0x1ec] sm:$0xff]
  %v1776 = vld [vmem:[%s2 + $0x1f4] sm:$0xf]
  %v1777 = vld [vmem:[%s2 + $0x1f8] sm:$0xff]
  %v1778 = vld [vmem:[%s2 + $0x200] sm:$0xf]
  %v1779 = vld [vmem:[%s2 + $0x204] sm:$0xff]
  %v1780 = vld [vmem:[%s2 + $0x20c] sm:$0xf]
  %v1781 = vld [vmem:[%s2 + $0x210] sm:$0xff]
  %v1782 = vld [vmem:[%s2 + $0x218] sm:$0xf]
  %v1783 = vld [vmem:[%s2 + $0x21c] sm:$0xff]
  %v1784 = vld [vmem:[%s2 + $0x224] sm:$0xf]
  %v1785 = vld [vmem:[%s2 + $0x228] sm:$0xff]
  %v1786 = vld [vmem:[%s2 + $0x230] sm:$0xf]
  %v1787 = vld [vmem:[%s2 + $0x234] sm:$0xff]
  %v1788 = vld [vmem:[%s2 + $0x23c] sm:$0xf]
  %v1789 = vld [vmem:[%s2 + $0x240] sm:$0xff]
  %v1790 = vld [vmem:[%s2 + $0x248] sm:$0xf]
  %v1791 = vld [vmem:[%s2 + $0x24c] sm:$0xff]
  %v1792 = vld [vmem:[%s2 + $0x254] sm:$0xf]
  %v1793 = vld [vmem:[%s2 + $0x258] sm:$0xff]
  %v1794 = vld [vmem:[%s2 + $0x260] sm:$0xf]
  %v1795 = vld [vmem:[%s2 + $0x264] sm:$0xff]
  %v1796 = vld [vmem:[%s2 + $0x26c] sm:$0xf]
  %v1797 = vld [vmem:[%s2 + $0x270] sm:$0xff]
  %v1798 = vld [vmem:[%s2 + $0x278] sm:$0xf]
  %v1799 = vld [vmem:[%s2 + $0x27c] sm:$0xff]
  %v1800 = vld [vmem:[%s2 + $0x284] sm:$0xf]
  %v1801 = vld [vmem:[%s2 + $0x288] sm:$0xff]
  %v1802 = vld [vmem:[%s2 + $0x290] sm:$0xf]
  %v1803 = vld [vmem:[%s2 + $0x294] sm:$0xff]
  %v1804 = vld [vmem:[%s2 + $0x29c] sm:$0xf]
  %v1805 = vld [vmem:[%s2 + $0x2a0] sm:$0xff]
  %v1806 = vld [vmem:[%s2 + $0x2a8] sm:$0xf]
  %v1807 = vld [vmem:[%s2 + $0x2ac] sm:$0xff]
  %v1808 = vld [vmem:[%s2 + $0x2b4] sm:$0xf]
  %v1809 = vld [vmem:[%s2 + $0x2b8] sm:$0xff]
  %v1810 = vld [vmem:[%s2 + $0x2c0] sm:$0xf]
  %v1811 = vld [vmem:[%s2 + $0x2c4] sm:$0xff]
  %v1812 = vld [vmem:[%s2 + $0x2cc] sm:$0xf]
  %v1813 = vld [vmem:[%s2 + $0x2d0] sm:$0xff]
  %v1814 = vld [vmem:[%s2 + $0x2d8] sm:$0xf]
  %v1815 = vld [vmem:[%s2 + $0x2dc] sm:$0xff]
  %v1816 = vld [vmem:[%s2 + $0x2e4] sm:$0xf]
  %v1817 = vld [vmem:[%s2 + $0x2e8] sm:$0xff]
  %v1818 = vld [vmem:[%s2 + $0x2f0] sm:$0xf]
  %v1819 = vld [vmem:[%s2 + $0x2f4] sm:$0xff]
  %v1820 = vld [vmem:[%s2 + $0x2fc] sm:$0xf]
  %v1821 = vld [vmem:[%s2 + $0x300] sm:$0xff]
  %v1822 = vld [vmem:[%s2 + $0x308] sm:$0xf]
  %v1823 = vld [vmem:[%s2 + $0x30c] sm:$0xff]
  %v1824 = vld [vmem:[%s2 + $0x314] sm:$0xf]
  %v1825 = vld [vmem:[%s2 + $0x318] sm:$0xff]
  %v1826 = vld [vmem:[%s2 + $0x320] sm:$0xf]
  %v1827 = vld [vmem:[%s2 + $0x324] sm:$0xff]
  %v1828 = vld [vmem:[%s2 + $0x32c] sm:$0xf]
  %v1829 = vld [vmem:[%s2 + $0x330] sm:$0xff]
  %v1830 = vld [vmem:[%s2 + $0x338] sm:$0xf]
  %v1831 = vld [vmem:[%s2 + $0x33c] sm:$0xff]
  %v1832 = vld [vmem:[%s2 + $0x344] sm:$0xf]
  %v1833 = vld [vmem:[%s2 + $0x348] sm:$0xff]
  %v1834 = vld [vmem:[%s2 + $0x350] sm:$0xf]
  %v1835 = vld [vmem:[%s2 + $0x354] sm:$0xff]
  %v1836 = vld [vmem:[%s2 + $0x35c] sm:$0xf]
  %v1837 = vld [vmem:[%s2 + $0x360] sm:$0xff]
  %v1838 = vld [vmem:[%s2 + $0x368] sm:$0xf]
  %v1839 = vld [vmem:[%s2 + $0x36c] sm:$0xff]
  %v1840 = vld [vmem:[%s2 + $0x374] sm:$0xf]
  %v1841 = vld [vmem:[%s2 + $0x378] sm:$0xff]
  %v1842 = vld [vmem:[%s2 + $0x380] sm:$0xf]
  %v1843 = vld [vmem:[%s2 + $0x384] sm:$0xff]
  %v1844 = vld [vmem:[%s2 + $0x38c] sm:$0xf]
  %v1845 = vld [vmem:[%s2 + $0x390] sm:$0xff]
  %v1846 = vld [vmem:[%s2 + $0x398] sm:$0xf]
  %v1847 = vld [vmem:[%s2 + $0x39c] sm:$0xff]
  %v1848 = vld [vmem:[%s2 + $0x3a4] sm:$0xf]
  %v1849 = vld [vmem:[%s2 + $0x3a8] sm:$0xff]
  %v1850 = vld [vmem:[%s2 + $0x3b0] sm:$0xf]
  %v1851 = vld [vmem:[%s2 + $0x3b4] sm:$0xff]
  %v1852 = vld [vmem:[%s2 + $0x3bc] sm:$0xf]
  %v1853 = vld [vmem:[%s2 + $0x3c0] sm:$0xff]
  %v1854 = vld [vmem:[%s2 + $0x3c8] sm:$0xf]
  %v1855 = vld [vmem:[%s2 + $0x3cc] sm:$0xff]
  %v1856 = vld [vmem:[%s2 + $0x3d4] sm:$0xf]
  %v1857 = vld [vmem:[%s2 + $0x3d8] sm:$0xff]
  %v1858 = vld [vmem:[%s2 + $0x3e0] sm:$0xf]
  %v1859 = vld [vmem:[%s2 + $0x3e4] sm:$0xff]
  %v1860 = vld [vmem:[%s2 + $0x3ec] sm:$0xf]
  %v1861 = vld [vmem:[%s2 + $0x3f0] sm:$0xff]
  %v1862 = vld [vmem:[%s2 + $0x3f8] sm:$0xf]
  %v1863 = vld [vmem:[%s2 + $0x3fc] sm:$0xff]
  %v1864 = vld [vmem:[%s2 + $0x404] sm:$0xf]
  %v1865 = vld [vmem:[%s2 + $0x408] sm:$0xff]
  %v1866 = vld [vmem:[%s2 + $0x410] sm:$0xf]
  %v1867 = vld [vmem:[%s2 + $0x414] sm:$0xff]
  %v1868 = vld [vmem:[%s2 + $0x41c] sm:$0xf]
  %v1869 = vld [vmem:[%s2 + $0x420] sm:$0xff]
  %v1870 = vld [vmem:[%s2 + $0x428] sm:$0xf]
  %v1871 = vld [vmem:[%s2 + $0x42c] sm:$0xff]
  %v1872 = vld [vmem:[%s2 + $0x434] sm:$0xf]
  %v1873 = vld [vmem:[%s2 + $0x438] sm:$0xff]
  %v1874 = vld [vmem:[%s2 + $0x440] sm:$0xf]
  %v1875 = vld [vmem:[%s2 + $0x444] sm:$0xff]
  %v1876 = vld [vmem:[%s2 + $0x44c] sm:$0xf]
  %v1877 = vld [vmem:[%s2 + $0x450] sm:$0xff]
  %v1878 = vld [vmem:[%s2 + $0x458] sm:$0xf]
  %v1879 = vld [vmem:[%s2 + $0x45c] sm:$0xff]
  %v1880 = vld [vmem:[%s2 + $0x464] sm:$0xf]
  %v1881 = vld [vmem:[%s2 + $0x468] sm:$0xff]
  %v1882 = vld [vmem:[%s2 + $0x470] sm:$0xf]
  %v1883 = vld [vmem:[%s2 + $0x474] sm:$0xff]
  %v1884 = vld [vmem:[%s2 + $0x47c] sm:$0xf]
  %v1885 = vld [vmem:[%s2 + $0x480] sm:$0xff]
  %v1886 = vld [vmem:[%s2 + $0x488] sm:$0xf]
  %v1887 = vld [vmem:[%s2 + $0x48c] sm:$0xff]
  %v1888 = vld [vmem:[%s2 + $0x494] sm:$0xf]
  %v1889 = vld [vmem:[%s2 + $0x498] sm:$0xff]
  %v1890 = vld [vmem:[%s2 + $0x4a0] sm:$0xf]
  %v1891 = vld [vmem:[%s2 + $0x4a4] sm:$0xff]
  %v1892 = vld [vmem:[%s2 + $0x4ac] sm:$0xf]
  %v1893 = vld [vmem:[%s2 + $0x4b0] sm:$0xff]
  %v1894 = vld [vmem:[%s2 + $0x4b8] sm:$0xf]
  %v1895 = vld [vmem:[%s2 + $0x4bc] sm:$0xff]
  %v1896 = vld [vmem:[%s2 + $0x4c4] sm:$0xf]
  %v1897 = vld [vmem:[%s2 + $0x4c8] sm:$0xff]
  %v1898 = vld [vmem:[%s2 + $0x4d0] sm:$0xf]
  %v1899 = vld [vmem:[%s2 + $0x4d4] sm:$0xff]
  %v1900 = vld [vmem:[%s2 + $0x4dc] sm:$0xf]
  %v1901 = vld [vmem:[%s2 + $0x4e0] sm:$0xff]
  %v1902 = vld [vmem:[%s2 + $0x4e8] sm:$0xf]
  %v1903 = vld [vmem:[%s2 + $0x4ec] sm:$0xff]
  %v1904 = vld [vmem:[%s2 + $0x4f4] sm:$0xf]
  %v1905 = vld [vmem:[%s2 + $0x4f8] sm:$0xff]
  %v1906 = vld [vmem:[%s2 + $0x500] sm:$0xf]
  %v1907 = vld [vmem:[%s2 + $0x504] sm:$0xff]
  %v1908 = vld [vmem:[%s2 + $0x50c] sm:$0xf]
  %v1909 = vld [vmem:[%s2 + $0x510] sm:$0xff]
  %v1910 = vld [vmem:[%s2 + $0x518] sm:$0xf]
  %v1911 = vld [vmem:[%s2 + $0x51c] sm:$0xff]
  %v1912 = vld [vmem:[%s2 + $0x524] sm:$0xf]
  %v1913 = vld [vmem:[%s2 + $0x528] sm:$0xff]
  %v1914 = vld [vmem:[%s2 + $0x530] sm:$0xf]
  %v1915 = vld [vmem:[%s2 + $0x534] sm:$0xff]
  %v1916 = vld [vmem:[%s2 + $0x53c] sm:$0xf]
  %v1917 = vld [vmem:[%s2 + $0x540] sm:$0xff]
  %v1918 = vld [vmem:[%s2 + $0x548] sm:$0xf]
  %v1919 = vld [vmem:[%s2 + $0x54c] sm:$0xff]
  %v1920 = vld [vmem:[%s2 + $0x554] sm:$0xf]
  %v1921 = vld [vmem:[%s2 + $0x558] sm:$0xff]
  %v1922 = vld [vmem:[%s2 + $0x560] sm:$0xf]
  %v1923 = vld [vmem:[%s2 + $0x564] sm:$0xff]
  %v1924 = vld [vmem:[%s2 + $0x56c] sm:$0xf]
  %v1925 = vld [vmem:[%s2 + $0x570] sm:$0xff]
  %v1926 = vld [vmem:[%s2 + $0x578] sm:$0xf]
  %v1927 = vld [vmem:[%s2 + $0x57c] sm:$0xff]
  %v1928 = vld [vmem:[%s2 + $0x584] sm:$0xf]
  %v1929 = vld [vmem:[%s2 + $0x588] sm:$0xff]
  %v1930 = vld [vmem:[%s2 + $0x590] sm:$0xf]
  %v1931 = vld [vmem:[%s2 + $0x594] sm:$0xff]
  %v1932 = vld [vmem:[%s2 + $0x59c] sm:$0xf]
  %v1933 = vld [vmem:[%s2 + $0x5a0] sm:$0xff]
  %v1934 = vld [vmem:[%s2 + $0x5a8] sm:$0xf]
  %v1935 = vld [vmem:[%s2 + $0x5ac] sm:$0xff]
  %v1936 = vld [vmem:[%s2 + $0x5b4] sm:$0xf]
  %v1937 = vld [vmem:[%s2 + $0x5b8] sm:$0xff]
  %v1938 = vld [vmem:[%s2 + $0x5c0] sm:$0xf]
  %v1939 = vld [vmem:[%s2 + $0x5c4] sm:$0xff]
  %v1940 = vld [vmem:[%s2 + $0x5cc] sm:$0xf]
  %v1941 = vld [vmem:[%s2 + $0x5d0] sm:$0xff]
  %v1942 = vld [vmem:[%s2 + $0x5d8] sm:$0xf]
  %v1943 = vld [vmem:[%s2 + $0x5dc] sm:$0xff]
  %v1944 = vld [vmem:[%s2 + $0x5e4] sm:$0xf]
  %v1945 = vld [vmem:[%s2 + $0x5e8] sm:$0xff]
  %v1946 = vld [vmem:[%s2 + $0x5f0] sm:$0xf]
  %v1947 = vld [vmem:[%s2 + $0x5f4] sm:$0xff]
  %v1948 = vld [vmem:[%s2 + $0x5fc] sm:$0xf]
  %v1949 = vld [vmem:[%s2 + $0x600] sm:$0xff]
  %v1950 = vld [vmem:[%s2 + $0x608] sm:$0xf]
  %v1951 = vld [vmem:[%s2 + $0x60c] sm:$0xff]
  %v1952 = vld [vmem:[%s2 + $0x614] sm:$0xf]
  %v1953 = vld [vmem:[%s2 + $0x618] sm:$0xff]
  %v1954 = vld [vmem:[%s2 + $0x620] sm:$0xf]
  %v1955 = vld [vmem:[%s2 + $0x624] sm:$0xff]
  %v1956 = vld [vmem:[%s2 + $0x62c] sm:$0xf]
  %v1957 = vld [vmem:[%s2 + $0x630] sm:$0xff]
  %v1958 = vld [vmem:[%s2 + $0x638] sm:$0xf]
  %v1959 = vld [vmem:[%s2 + $0x63c] sm:$0xff]
  %v1960 = vld [vmem:[%s2 + $0x644] sm:$0xf]
  %v1961 = vld [vmem:[%s2 + $0x648] sm:$0xff]
  %v1962 = vld [vmem:[%s2 + $0x650] sm:$0xf]
  %v1963 = vld [vmem:[%s2 + $0x654] sm:$0xff]
  %v1964 = vld [vmem:[%s2 + $0x65c] sm:$0xf]
  %v1965 = vld [vmem:[%s2 + $0x660] sm:$0xff]
  %v1966 = vld [vmem:[%s2 + $0x668] sm:$0xf]
  %v1967 = vld [vmem:[%s2 + $0x66c] sm:$0xff]
  %v1968 = vld [vmem:[%s2 + $0x674] sm:$0xf]
  %v1969 = vld [vmem:[%s2 + $0x678] sm:$0xff]
  %v1970 = vld [vmem:[%s2 + $0x680] sm:$0xf]
  %v1971 = vld [vmem:[%s2 + $0x684] sm:$0xff]
  %v1972 = vld [vmem:[%s2 + $0x68c] sm:$0xf]
  %v1973 = vld [vmem:[%s2 + $0x690] sm:$0xff]
  %v1974 = vld [vmem:[%s2 + $0x698] sm:$0xf]
  %v1975 = vld [vmem:[%s2 + $0x69c] sm:$0xff]
  %v1976 = vld [vmem:[%s2 + $0x6a4] sm:$0xf]
  %v1977 = vld [vmem:[%s2 + $0x6a8] sm:$0xff]
  %v1978 = vld [vmem:[%s2 + $0x6b0] sm:$0xf]
  %v1979 = vld [vmem:[%s2 + $0x6b4] sm:$0xff]
  %v1980 = vld [vmem:[%s2 + $0x6bc] sm:$0xf]
  %v1981 = vld [vmem:[%s2 + $0x6c0] sm:$0xff]
  %v1982 = vld [vmem:[%s2 + $0x6c8] sm:$0xf]
  %v1983 = vld [vmem:[%s2 + $0x6cc] sm:$0xff]
  %v1984 = vld [vmem:[%s2 + $0x6d4] sm:$0xf]
  %v1985 = vld [vmem:[%s2 + $0x6d8] sm:$0xff]
  %v1986 = vld [vmem:[%s2 + $0x6e0] sm:$0xf]
  %v1987 = vld [vmem:[%s2 + $0x6e4] sm:$0xff]
  %v1988 = vld [vmem:[%s2 + $0x6ec] sm:$0xf]
  %v1989 = vld [vmem:[%s2 + $0x6f0] sm:$0xff]
  %v1990 = vld [vmem:[%s2 + $0x6f8] sm:$0xf]
  %v1991 = vld [vmem:[%s2 + $0x6fc] sm:$0xff]
  %v1992 = vld [vmem:[%s2 + $0x704] sm:$0xf]
  %v1993 = vld [vmem:[%s2 + $0x708] sm:$0xff]
  %v1994 = vld [vmem:[%s2 + $0x710] sm:$0xf]
  %v1995 = vld [vmem:[%s2 + $0x714] sm:$0xff]
  %v1996 = vld [vmem:[%s2 + $0x71c] sm:$0xf]
  %v1997 = vld [vmem:[%s2 + $0x720] sm:$0xff]
  %v1998 = vld [vmem:[%s2 + $0x728] sm:$0xf]
  %v1999 = vld [vmem:[%s2 + $0x72c] sm:$0xff]
  %v2000 = vld [vmem:[%s2 + $0x734] sm:$0xf]
  %v2001 = vld [vmem:[%s2 + $0x738] sm:$0xff]
  %v2002 = vld [vmem:[%s2 + $0x740] sm:$0xf]
  %v2003 = vld [vmem:[%s2 + $0x744] sm:$0xff]
  %v2004 = vld [vmem:[%s2 + $0x74c] sm:$0xf]
  %v2005 = vld [vmem:[%s2 + $0x750] sm:$0xff]
  %v2006 = vld [vmem:[%s2 + $0x758] sm:$0xf]
  %v2007 = vld [vmem:[%s2 + $0x75c] sm:$0xff]
  %v2008 = vld [vmem:[%s2 + $0x764] sm:$0xf]
  %v2009 = vld [vmem:[%s2 + $0x768] sm:$0xff]
  %v2010 = vld [vmem:[%s2 + $0x770] sm:$0xf]
  %v2011 = vld [vmem:[%s2 + $0x774] sm:$0xff]
  %v2012 = vld [vmem:[%s2 + $0x77c] sm:$0xf]
  %v2013 = vld [vmem:[%s2 + $0x780] sm:$0xff]
  %v2014 = vld [vmem:[%s2 + $0x788] sm:$0xf]
  %v2015 = vld [vmem:[%s2 + $0x78c] sm:$0xff]
  %v2016 = vld [vmem:[%s2 + $0x794] sm:$0xf]
  %v2017 = vld [vmem:[%s2 + $0x798] sm:$0xff]
  %v2018 = vld [vmem:[%s2 + $0x7a0] sm:$0xf]
  %v2019 = vld [vmem:[%s2 + $0x7a4] sm:$0xff]
  %v2020 = vld [vmem:[%s2 + $0x7ac] sm:$0xf]
  %v2021 = vld [vmem:[%s2 + $0x7b0] sm:$0xff]
  %v2022 = vld [vmem:[%s2 + $0x7b8] sm:$0xf]
  %v2023 = vld [vmem:[%s2 + $0x7bc] sm:$0xff]
  %v2024 = vld [vmem:[%s2 + $0x7c4] sm:$0xf]
  %v2025 = vld [vmem:[%s2 + $0x7c8] sm:$0xff]
  %v2026 = vld [vmem:[%s2 + $0x7d0] sm:$0xf]
  %v2027 = vld [vmem:[%s2 + $0x7d4] sm:$0xff]
  %v2028 = vld [vmem:[%s2 + $0x7dc] sm:$0xf]
  %v2029 = vld [vmem:[%s2 + $0x7e0] sm:$0xff]
  %v2030 = vld [vmem:[%s2 + $0x7e8] sm:$0xf]
  %v2031 = vld [vmem:[%s2 + $0x7ec] sm:$0xff]
  %v2032 = vld [vmem:[%s2 + $0x7f4] sm:$0xf]
  %v2033 = vld [vmem:[%s2 + $0x7f8] sm:$0xff]
  %v2034 = vld [vmem:[%s2 + $0x800] sm:$0xf]
  %v2035 = vld [vmem:[%s2 + $0x804] sm:$0xff]
  %v2036 = vld [vmem:[%s2 + $0x80c] sm:$0xf]
  %v2037 = vld [vmem:[%s2 + $0x810] sm:$0xff]
  %v2038 = vld [vmem:[%s2 + $0x818] sm:$0xf]
  %v2039 = vld [vmem:[%s2 + $0x81c] sm:$0xff]
  %v2040 = vld [vmem:[%s2 + $0x824] sm:$0xf]
  %v2041 = vld [vmem:[%s2 + $0x828] sm:$0xff]
  %v2042 = vld [vmem:[%s2 + $0x830] sm:$0xf]
  %v2043 = vld [vmem:[%s2 + $0x834] sm:$0xff]
  %v2044 = vld [vmem:[%s2 + $0x83c] sm:$0xf]
  %v2045 = vld [vmem:[%s2 + $0x840] sm:$0xff]
  %v2046 = vld [vmem:[%s2 + $0x848] sm:$0xf]
  %v2047 = vld [vmem:[%s2 + $0x84c] sm:$0xff]
  %v2048 = vld [vmem:[%s2 + $0x854] sm:$0xf]
  %v2049 = vld [vmem:[%s2 + $0x858] sm:$0xff]
  %v2050 = vld [vmem:[%s2 + $0x860] sm:$0xf]
  %v2051 = vld [vmem:[%s2 + $0x864] sm:$0xff]
  %v2052 = vld [vmem:[%s2 + $0x86c] sm:$0xf]
  %v2053 = vld [vmem:[%s2 + $0x870] sm:$0xff]
  %v2054 = vld [vmem:[%s2 + $0x878] sm:$0xf]
  %v2055 = vld [vmem:[%s2 + $0x87c] sm:$0xff]
  %v2056 = vld [vmem:[%s2 + $0x884] sm:$0xf]
  %v2057 = vld [vmem:[%s2 + $0x888] sm:$0xff]
  %v2058 = vld [vmem:[%s2 + $0x890] sm:$0xf]
  %v2059 = vld [vmem:[%s2 + $0x894] sm:$0xff]
  %v2060 = vld [vmem:[%s2 + $0x89c] sm:$0xf]
  %v2061 = vld [vmem:[%s2 + $0x8a0] sm:$0xff]
  %v2062 = vld [vmem:[%s2 + $0x8a8] sm:$0xf]
  %v2063 = vld [vmem:[%s2 + $0x8ac] sm:$0xff]
  %v2064 = vld [vmem:[%s2 + $0x8b4] sm:$0xf]
  %v2065 = vld [vmem:[%s2 + $0x8b8] sm:$0xff]
  %v2066 = vld [vmem:[%s2 + $0x8c0] sm:$0xf]
  %v2067 = vld [vmem:[%s2 + $0x8c4] sm:$0xff]
  %v2068 = vld [vmem:[%s2 + $0x8cc] sm:$0xf]
  %v2069 = vld [vmem:[%s2 + $0x8d0] sm:$0xff]
  %v2070 = vld [vmem:[%s2 + $0x8d8] sm:$0xf]
  %v2071 = vld [vmem:[%s2 + $0x8dc] sm:$0xff]
  %v2072 = vld [vmem:[%s2 + $0x8e4] sm:$0xf]
  %v2073 = vld [vmem:[%s2 + $0x8e8] sm:$0xff]
  %v2074 = vld [vmem:[%s2 + $0x8f0] sm:$0xf]
  %v2075 = vld [vmem:[%s2 + $0x8f4] sm:$0xff]
  %v2076 = vld [vmem:[%s2 + $0x8fc] sm:$0xf]
  %v2077 = vld [vmem:[%s2 + $0x900] sm:$0xff]
  %v2078 = vld [vmem:[%s2 + $0x908] sm:$0xf]
  %v2079 = vld [vmem:[%s2 + $0x90c] sm:$0xff]
  %v2080 = vld [vmem:[%s2 + $0x914] sm:$0xf]
  %v2081 = vld [vmem:[%s2 + $0x918] sm:$0xff]
  %v2082 = vld [vmem:[%s2 + $0x920] sm:$0xf]
  %v2083 = vld [vmem:[%s2 + $0x924] sm:$0xff]
  %v2084 = vld [vmem:[%s2 + $0x92c] sm:$0xf]
  %v2085 = vld [vmem:[%s2 + $0x930] sm:$0xff]
  %v2086 = vld [vmem:[%s2 + $0x938] sm:$0xf]
  %v2087 = vld [vmem:[%s2 + $0x93c] sm:$0xff]
  %v2088 = vld [vmem:[%s2 + $0x944] sm:$0xf]
  %v2089 = vld [vmem:[%s2 + $0x948] sm:$0xff]
  %v2090 = vld [vmem:[%s2 + $0x950] sm:$0xf]
  %v2091 = vld [vmem:[%s2 + $0x954] sm:$0xff]
  %v2092 = vld [vmem:[%s2 + $0x95c] sm:$0xf]
  %v2093 = vld [vmem:[%s2 + $0x960] sm:$0xff]
  %v2094 = vld [vmem:[%s2 + $0x968] sm:$0xf]
  %v2095 = vld [vmem:[%s2 + $0x96c] sm:$0xff]
  %v2096 = vld [vmem:[%s2 + $0x974] sm:$0xf]
  %v2097 = vld [vmem:[%s2 + $0x978] sm:$0xff]
  %v2098 = vld [vmem:[%s2 + $0x980] sm:$0xf]
  %v2099 = vld [vmem:[%s2 + $0x984] sm:$0xff]
  %v2100 = vld [vmem:[%s2 + $0x98c] sm:$0xf]
  %v2101 = vld [vmem:[%s2 + $0x990] sm:$0xff]
  %v2102 = vld [vmem:[%s2 + $0x998] sm:$0xf]
  %v2103 = vld [vmem:[%s2 + $0x99c] sm:$0xff]
  %v2104 = vld [vmem:[%s2 + $0x9a4] sm:$0xf]
  %v2105 = vld [vmem:[%s2 + $0x9a8] sm:$0xff]
  %v2106 = vld [vmem:[%s2 + $0x9b0] sm:$0xf]
  %v2107 = vld [vmem:[%s2 + $0x9b4] sm:$0xff]
  %v2108 = vld [vmem:[%s2 + $0x9bc] sm:$0xf]
  %v2109 = vld [vmem:[%s2 + $0x9c0] sm:$0xff]
  %v2110 = vld [vmem:[%s2 + $0x9c8] sm:$0xf]
  %v2111 = vld [vmem:[%s2 + $0x9cc] sm:$0xff]
  %v2112 = vld [vmem:[%s2 + $0x9d4] sm:$0xf]
  %v2113 = vld [vmem:[%s2 + $0x9d8] sm:$0xff]
  %v2114 = vld [vmem:[%s2 + $0x9e0] sm:$0xf]
  %v2115 = vld [vmem:[%s2 + $0x9e4] sm:$0xff]
  %v2116 = vld [vmem:[%s2 + $0x9ec] sm:$0xf]
  %v2117 = vld [vmem:[%s2 + $0x9f0] sm:$0xff]
  %v2118 = vld [vmem:[%s2 + $0x9f8] sm:$0xf]
  %v2119 = vld [vmem:[%s2 + $0x9fc] sm:$0xff]
  %v2120 = vld [vmem:[%s2 + $0xa04] sm:$0xf]
  %v2121 = vld [vmem:[%s2 + $0xa08] sm:$0xff]
  %v2122 = vld [vmem:[%s2 + $0xa10] sm:$0xf]
  %v2123 = vld [vmem:[%s2 + $0xa14] sm:$0xff]
  %v2124 = vld [vmem:[%s2 + $0xa1c] sm:$0xf]
  %v2125 = vld [vmem:[%s2 + $0xa20] sm:$0xff]
  %v2126 = vld [vmem:[%s2 + $0xa28] sm:$0xf]
  %v2127 = vld [vmem:[%s2 + $0xa2c] sm:$0xff]
  %v2128 = vld [vmem:[%s2 + $0xa34] sm:$0xf]
  %v2129 = vld [vmem:[%s2 + $0xa38] sm:$0xff]
  %v2130 = vld [vmem:[%s2 + $0xa40] sm:$0xf]
  %v2131 = vld [vmem:[%s2 + $0xa44] sm:$0xff]
  %v2132 = vld [vmem:[%s2 + $0xa4c] sm:$0xf]
  %v2133 = vld [vmem:[%s2 + $0xa50] sm:$0xff]
  %v2134 = vld [vmem:[%s2 + $0xa58] sm:$0xf]
  %v2135 = vld [vmem:[%s2 + $0xa5c] sm:$0xff]
  %v2136 = vld [vmem:[%s2 + $0xa64] sm:$0xf]
  %v2137 = vld [vmem:[%s2 + $0xa68] sm:$0xff]
  %v2138 = vld [vmem:[%s2 + $0xa70] sm:$0xf]
  %v2139 = vld [vmem:[%s2 + $0xa74] sm:$0xff]
  %v2140 = vld [vmem:[%s2 + $0xa7c] sm:$0xf]
  %v2141 = vld [vmem:[%s2 + $0xa80] sm:$0xff]
  %v2142 = vld [vmem:[%s2 + $0xa88] sm:$0xf]
  %v2143 = vld [vmem:[%s2 + $0xa8c] sm:$0xff]
  %v2144 = vld [vmem:[%s2 + $0xa94] sm:$0xf]
  %v2145 = vld [vmem:[%s2 + $0xa98] sm:$0xff]
  %v2146 = vld [vmem:[%s2 + $0xaa0] sm:$0xf]
  %v2147 = vld [vmem:[%s2 + $0xaa4] sm:$0xff]
  %v2148 = vld [vmem:[%s2 + $0xaac] sm:$0xf]
  %v2149 = vld [vmem:[%s2 + $0xab0] sm:$0xff]
  %v2150 = vld [vmem:[%s2 + $0xab8] sm:$0xf]
  %v2151 = vld [vmem:[%s2 + $0xabc] sm:$0xff]
  %v2152 = vld [vmem:[%s2 + $0xac4] sm:$0xf]
  %v2153 = vld [vmem:[%s2 + $0xac8] sm:$0xff]
  %v2154 = vld [vmem:[%s2 + $0xad0] sm:$0xf]
  %v2155 = vld [vmem:[%s2 + $0xad4] sm:$0xff]
  %v2156 = vld [vmem:[%s2 + $0xadc] sm:$0xf]
  %v2157 = vld [vmem:[%s2 + $0xae0] sm:$0xff]
  %v2158 = vld [vmem:[%s2 + $0xae8] sm:$0xf]
  %v2159 = vld [vmem:[%s2 + $0xaec] sm:$0xff]
  %v2160 = vld [vmem:[%s2 + $0xaf4] sm:$0xf]
  %v2161 = vld [vmem:[%s2 + $0xaf8] sm:$0xff]
  %v2162 = vld [vmem:[%s2 + $0xb00] sm:$0xf]
  %v2163 = vld [vmem:[%s2 + $0xb04] sm:$0xff]
  %v2164 = vld [vmem:[%s2 + $0xb0c] sm:$0xf]
  %v2165 = vld [vmem:[%s2 + $0xb10] sm:$0xff]
  %v2166 = vld [vmem:[%s2 + $0xb18] sm:$0xf]
  %v2167 = vld [vmem:[%s2 + $0xb1c] sm:$0xff]
  %v2168 = vld [vmem:[%s2 + $0xb24] sm:$0xf]
  %v2169 = vld [vmem:[%s2 + $0xb28] sm:$0xff]
  %v2170 = vld [vmem:[%s2 + $0xb30] sm:$0xf]
  %v2171 = vld [vmem:[%s2 + $0xb34] sm:$0xff]
  %v2172 = vld [vmem:[%s2 + $0xb3c] sm:$0xf]
  %v2173 = vld [vmem:[%s2 + $0xb40] sm:$0xff]
  %v2174 = vld [vmem:[%s2 + $0xb48] sm:$0xf]
  %v2175 = vld [vmem:[%s2 + $0xb4c] sm:$0xff]
  %v2176 = vld [vmem:[%s2 + $0xb54] sm:$0xf]
  %v2177 = vld [vmem:[%s2 + $0xb58] sm:$0xff]
  %v2178 = vld [vmem:[%s2 + $0xb60] sm:$0xf]
  %v2179 = vld [vmem:[%s2 + $0xb64] sm:$0xff]
  %v2180 = vld [vmem:[%s2 + $0xb6c] sm:$0xf]
  %v2181 = vld [vmem:[%s2 + $0xb70] sm:$0xff]
  %v2182 = vld [vmem:[%s2 + $0xb78] sm:$0xf]
  %v2183 = vld [vmem:[%s2 + $0xb7c] sm:$0xff]
  %v2184 = vld [vmem:[%s2 + $0xb84] sm:$0xf]
  %v2185 = vld [vmem:[%s2 + $0xb88] sm:$0xff]
  %v2186 = vld [vmem:[%s2 + $0xb90] sm:$0xf]
  %v2187 = vld [vmem:[%s2 + $0xb94] sm:$0xff]
  %v2188 = vld [vmem:[%s2 + $0xb9c] sm:$0xf]
  %v2189 = vld [vmem:[%s2 + $0xba0] sm:$0xff]
  %v2190 = vld [vmem:[%s2 + $0xba8] sm:$0xf]
  %v2191 = vld [vmem:[%s2 + $0xbac] sm:$0xff]
  %v2192 = vld [vmem:[%s2 + $0xbb4] sm:$0xf]
  %v2193 = vld [vmem:[%s2 + $0xbb8] sm:$0xff]
  %v2194 = vld [vmem:[%s2 + $0xbc0] sm:$0xf]
  %v2195 = vld [vmem:[%s2 + $0xbc4] sm:$0xff]
  %v2196 = vld [vmem:[%s2 + $0xbcc] sm:$0xf]
  %v2197 = vld [vmem:[%s2 + $0xbd0] sm:$0xff]
  %v2198 = vld [vmem:[%s2 + $0xbd8] sm:$0xf]
  %v2199 = vld [vmem:[%s2 + $0xbdc] sm:$0xff]
  %v2200 = vld [vmem:[%s2 + $0xbe4] sm:$0xf]
  %v2201 = vld [vmem:[%s2 + $0xbe8] sm:$0xff]
  %v2202 = vld [vmem:[%s2 + $0xbf0] sm:$0xf]
  %v2203 = vld [vmem:[%s2 + $0xbf4] sm:$0xff]
  %v2204 = vld [vmem:[%s2 + $0xbfc] sm:$0xf]
  %v2205 = vld [vmem:[%s2 + $0xc00] sm:$0xff]
  %v2206 = vld [vmem:[%s2 + $0xc08] sm:$0xf]
  %v2207 = vld [vmem:[%s2 + $0xc0c] sm:$0xff]
  %v2208 = vld [vmem:[%s2 + $0xc14] sm:$0xf]
  %v2209 = vld [vmem:[%s2 + $0xc18] sm:$0xff]
  %v2210 = vld [vmem:[%s2 + $0xc20] sm:$0xf]
  %v2211 = vld [vmem:[%s2 + $0xc24] sm:$0xff]
  %v2212 = vld [vmem:[%s2 + $0xc2c] sm:$0xf]
  %v2213 = vld [vmem:[%s2 + $0xc30] sm:$0xff]
  %v2214 = vld [vmem:[%s2 + $0xc38] sm:$0xf]
  %v2215 = vld [vmem:[%s2 + $0xc3c] sm:$0xff]
  %v2216 = vld [vmem:[%s2 + $0xc44] sm:$0xf]
  %v2217 = vld [vmem:[%s2 + $0xc48] sm:$0xff]
  %v2218 = vld [vmem:[%s2 + $0xc50] sm:$0xf]
  %v2219 = vld [vmem:[%s2 + $0xc54] sm:$0xff]
  %v2220 = vld [vmem:[%s2 + $0xc5c] sm:$0xf]
  %v2221 = vld [vmem:[%s2 + $0xc60] sm:$0xff]
  %v2222 = vld [vmem:[%s2 + $0xc68] sm:$0xf]
  %v2223 = vld [vmem:[%s2 + $0xc6c] sm:$0xff]
  %v2224 = vld [vmem:[%s2 + $0xc74] sm:$0xf]
  %v2225 = vld [vmem:[%s2 + $0xc78] sm:$0xff]
  %v2226 = vld [vmem:[%s2 + $0xc80] sm:$0xf]
  %v2227 = vld [vmem:[%s2 + $0xc84] sm:$0xff]
  %v2228 = vld [vmem:[%s2 + $0xc8c] sm:$0xf]
  %v2229 = vld [vmem:[%s2 + $0xc90] sm:$0xff]
  %v2230 = vld [vmem:[%s2 + $0xc98] sm:$0xf]
  %v2231 = vld [vmem:[%s2 + $0xc9c] sm:$0xff]
  %v2232 = vld [vmem:[%s2 + $0xca4] sm:$0xf]
  %v2233 = vld [vmem:[%s2 + $0xca8] sm:$0xff]
  %v2234 = vld [vmem:[%s2 + $0xcb0] sm:$0xf]
  %v2235 = vld [vmem:[%s2 + $0xcb4] sm:$0xff]
  %v2236 = vld [vmem:[%s2 + $0xcbc] sm:$0xf]
  %v2237 = vld [vmem:[%s2 + $0xcc0] sm:$0xff]
  %v2238 = vld [vmem:[%s2 + $0xcc8] sm:$0xf]
  %v2239 = vld [vmem:[%s2 + $0xccc] sm:$0xff]
  %v2240 = vld [vmem:[%s2 + $0xcd4] sm:$0xf]
  %v2241 = vld [vmem:[%s2 + $0xcd8] sm:$0xff]
  %v2242 = vld [vmem:[%s2 + $0xce0] sm:$0xf]
  %v2243 = vld [vmem:[%s2 + $0xce4] sm:$0xff]
  %v2244 = vld [vmem:[%s2 + $0xcec] sm:$0xf]
  %v2245 = vld [vmem:[%s2 + $0xcf0] sm:$0xff]
  %v2246 = vld [vmem:[%s2 + $0xcf8] sm:$0xf]
  %v2247 = vld [vmem:[%s2 + $0xcfc] sm:$0xff]
  %v2248 = vld [vmem:[%s2 + $0xd04] sm:$0xf]
  %v2249 = vld [vmem:[%s2 + $0xd08] sm:$0xff]
  %v2250 = vld [vmem:[%s2 + $0xd10] sm:$0xf]
  %v2251 = vld [vmem:[%s2 + $0xd14] sm:$0xff]
  %v2252 = vld [vmem:[%s2 + $0xd1c] sm:$0xf]
  %v2253 = vld [vmem:[%s2 + $0xd20] sm:$0xff]
  %v2254 = vld [vmem:[%s2 + $0xd28] sm:$0xf]
  %v2255 = vld [vmem:[%s2 + $0xd2c] sm:$0xff]
  %v2256 = vld [vmem:[%s2 + $0xd34] sm:$0xf]
  %v2257 = vld [vmem:[%s2 + $0xd38] sm:$0xff]
  %v2258 = vld [vmem:[%s2 + $0xd40] sm:$0xf]
  %v2259 = vld [vmem:[%s2 + $0xd44] sm:$0xff]
  %v2260 = vld [vmem:[%s2 + $0xd4c] sm:$0xf]
  %v2261 = vld [vmem:[%s2 + $0xd50] sm:$0xff]
  %v2262 = vld [vmem:[%s2 + $0xd58] sm:$0xf]
  %v2263 = vld [vmem:[%s2 + $0xd5c] sm:$0xff]
  %v2264 = vld [vmem:[%s2 + $0xd64] sm:$0xf]
  %v2265 = vld [vmem:[%s2 + $0xd68] sm:$0xff]
  %v2266 = vld [vmem:[%s2 + $0xd70] sm:$0xf]
  %v2267 = vld [vmem:[%s2 + $0xd74] sm:$0xff]
  %v2268 = vld [vmem:[%s2 + $0xd7c] sm:$0xf]
  %v2269 = vld [vmem:[%s2 + $0xd80] sm:$0xff]
  %v2270 = vld [vmem:[%s2 + $0xd88] sm:$0xf]
  %v2271 = vld [vmem:[%s2 + $0xd8c] sm:$0xff]
  %v2272 = vld [vmem:[%s2 + $0xd94] sm:$0xf]
  %v2273 = vld [vmem:[%s2 + $0xd98] sm:$0xff]
  %v2274 = vld [vmem:[%s2 + $0xda0] sm:$0xf]
  %v2275 = vld [vmem:[%s2 + $0xda4] sm:$0xff]
  %v2276 = vld [vmem:[%s2 + $0xdac] sm:$0xf]
  %v2277 = vld [vmem:[%s2 + $0xdb0] sm:$0xff]
  %v2278 = vld [vmem:[%s2 + $0xdb8] sm:$0xf]
  %v2279 = vld [vmem:[%s2 + $0xdbc] sm:$0xff]
  %v2280 = vld [vmem:[%s2 + $0xdc4] sm:$0xf]
  %v2281 = vld [vmem:[%s2 + $0xdc8] sm:$0xff]
  %v2282 = vld [vmem:[%s2 + $0xdd0] sm:$0xf]
  %v2283 = vld [vmem:[%s2 + $0xdd4] sm:$0xff]
  %v2284 = vld [vmem:[%s2 + $0xddc] sm:$0xf]
  %v2285 = vld [vmem:[%s2 + $0xde0] sm:$0xff]
  %v2286 = vld [vmem:[%s2 + $0xde8] sm:$0xf]
  %v2287 = vld [vmem:[%s2 + $0xdec] sm:$0xff]
  %v2288 = vld [vmem:[%s2 + $0xdf4] sm:$0xf]
  %v2289 = vld [vmem:[%s2 + $0xdf8] sm:$0xff]
  %v2290 = vld [vmem:[%s2 + $0xe00] sm:$0xf]
  %v2291 = vld [vmem:[%s2 + $0xe04] sm:$0xff]
  %v2292 = vld [vmem:[%s2 + $0xe0c] sm:$0xf]
  %v2293 = vld [vmem:[%s2 + $0xe10] sm:$0xff]
  %v2294 = vld [vmem:[%s2 + $0xe18] sm:$0xf]
  %v2295 = vld [vmem:[%s2 + $0xe1c] sm:$0xff]
  %v2296 = vld [vmem:[%s2 + $0xe24] sm:$0xf]
  %v2297 = vld [vmem:[%s2 + $0xe28] sm:$0xff]
  %v2298 = vld [vmem:[%s2 + $0xe30] sm:$0xf]
  %v2299 = vld [vmem:[%s2 + $0xe34] sm:$0xff]
  %v2300 = vld [vmem:[%s2 + $0xe3c] sm:$0xf]
  %v2301 = vld [vmem:[%s2 + $0xe40] sm:$0xff]
  %v2302 = vld [vmem:[%s2 + $0xe48] sm:$0xf]
  %v2303 = vld [vmem:[%s2 + $0xe4c] sm:$0xff]
  %v2304 = vld [vmem:[%s2 + $0xe54] sm:$0xf]
  %v2305 = vld [vmem:[%s2 + $0xe58] sm:$0xff]
  %v2306 = vld [vmem:[%s2 + $0xe60] sm:$0xf]
  %v2307 = vld [vmem:[%s2 + $0xe64] sm:$0xff]
  %v2308 = vld [vmem:[%s2 + $0xe6c] sm:$0xf]
  %v2309 = vld [vmem:[%s2 + $0xe70] sm:$0xff]
  %v2310 = vld [vmem:[%s2 + $0xe78] sm:$0xf]
  %v2311 = vld [vmem:[%s2 + $0xe7c] sm:$0xff]
  %v2312 = vld [vmem:[%s2 + $0xe84] sm:$0xf]
  %v2313 = vld [vmem:[%s2 + $0xe88] sm:$0xff]
  %v2314 = vld [vmem:[%s2 + $0xe90] sm:$0xf]
  %v2315 = vld [vmem:[%s2 + $0xe94] sm:$0xff]
  %v2316 = vld [vmem:[%s2 + $0xe9c] sm:$0xf]
  %v2941 = vunpack.c.l.b16 %v1693
  %v2942 = vunpack.c.h.b16 %v1693
  %v2943 = vunpack.c.l.b16 %v1694
  %v2944 = vunpack.c.l.b16 %v1695
  %v2945 = vunpack.c.h.b16 %v1695
  %v2946 = vunpack.c.l.b16 %v1696
  %v2947 = vunpack.c.l.b16 %v1697
  %v2948 = vunpack.c.h.b16 %v1697
  %v2949 = vunpack.c.l.b16 %v1698
  %v2950 = vunpack.c.l.b16 %v1699
  %v2951 = vunpack.c.h.b16 %v1699
  %v2952 = vunpack.c.l.b16 %v1700
  %v2953 = vunpack.c.l.b16 %v1701
  %v2954 = vunpack.c.h.b16 %v1701
  %v2955 = vunpack.c.l.b16 %v1702
  %v2956 = vunpack.c.l.b16 %v1703
  %v2957 = vunpack.c.h.b16 %v1703
  %v2958 = vunpack.c.l.b16 %v1704
  %v2959 = vunpack.c.l.b16 %v1705
  %v2960 = vunpack.c.h.b16 %v1705
  %v2961 = vunpack.c.l.b16 %v1706
  %v2962 = vunpack.c.l.b16 %v1707
  %v2963 = vunpack.c.h.b16 %v1707
  %v2964 = vunpack.c.l.b16 %v1708
  %v2965 = vunpack.c.l.b16 %v1709
  %v2966 = vunpack.c.h.b16 %v1709
  %v2967 = vunpack.c.l.b16 %v1710
  %v2968 = vunpack.c.l.b16 %v1711
  %v2969 = vunpack.c.h.b16 %v1711
  %v2970 = vunpack.c.l.b16 %v1712
  %v2971 = vunpack.c.l.b16 %v1713
  %v2972 = vunpack.c.h.b16 %v1713
  %v2973 = vunpack.c.l.b16 %v1714
  %v2974 = vunpack.c.l.b16 %v1715
  %v2975 = vunpack.c.h.b16 %v1715
  %v2976 = vunpack.c.l.b16 %v1716
  %v2977 = vunpack.c.l.b16 %v1717
  %v2978 = vunpack.c.h.b16 %v1717
  %v2979 = vunpack.c.l.b16 %v1718
  %v2980 = vunpack.c.l.b16 %v1719
  %v2981 = vunpack.c.h.b16 %v1719
  %v2982 = vunpack.c.l.b16 %v1720
  %v2983 = vunpack.c.l.b16 %v1721
  %v2984 = vunpack.c.h.b16 %v1721
  %v2985 = vunpack.c.l.b16 %v1722
  %v2986 = vunpack.c.l.b16 %v1723
  %v2987 = vunpack.c.h.b16 %v1723
  %v2988 = vunpack.c.l.b16 %v1724
  %v2989 = vunpack.c.l.b16 %v1725
  %v2990 = vunpack.c.h.b16 %v1725
  %v2991 = vunpack.c.l.b16 %v1726
  %v2992 = vunpack.c.l.b16 %v1727
  %v2993 = vunpack.c.h.b16 %v1727
  %v2994 = vunpack.c.l.b16 %v1728
  %v2995 = vunpack.c.l.b16 %v1729
  %v2996 = vunpack.c.h.b16 %v1729
  %v2997 = vunpack.c.l.b16 %v1730
  %v2998 = vunpack.c.l.b16 %v1731
  %v2999 = vunpack.c.h.b16 %v1731
  %v3000 = vunpack.c.l.b16 %v1732
  %v3001 = vunpack.c.l.b16 %v1733
  %v3002 = vunpack.c.h.b16 %v1733
  %v3003 = vunpack.c.l.b16 %v1734
  %v3004 = vunpack.c.l.b16 %v1735
  %v3005 = vunpack.c.h.b16 %v1735
  %v3006 = vunpack.c.l.b16 %v1736
  %v3007 = vunpack.c.l.b16 %v1737
  %v3008 = vunpack.c.h.b16 %v1737
  %v3009 = vunpack.c.l.b16 %v1738
  %v3010 = vunpack.c.l.b16 %v1739
  %v3011 = vunpack.c.h.b16 %v1739
  %v3012 = vunpack.c.l.b16 %v1740
  %v3013 = vunpack.c.l.b16 %v1741
  %v3014 = vunpack.c.h.b16 %v1741
  %v3015 = vunpack.c.l.b16 %v1742
  %v3016 = vunpack.c.l.b16 %v1743
  %v3017 = vunpack.c.h.b16 %v1743
  %v3018 = vunpack.c.l.b16 %v1744
  %v3019 = vunpack.c.l.b16 %v1745
  %v3020 = vunpack.c.h.b16 %v1745
  %v3021 = vunpack.c.l.b16 %v1746
  %v3022 = vunpack.c.l.b16 %v1747
  %v3023 = vunpack.c.h.b16 %v1747
  %v3024 = vunpack.c.l.b16 %v1748
  %v3025 = vunpack.c.l.b16 %v1749
  %v3026 = vunpack.c.h.b16 %v1749
  %v3027 = vunpack.c.l.b16 %v1750
  %v3028 = vunpack.c.l.b16 %v1751
  %v3029 = vunpack.c.h.b16 %v1751
  %v3030 = vunpack.c.l.b16 %v1752
  %v3031 = vunpack.c.l.b16 %v1753
  %v3032 = vunpack.c.h.b16 %v1753
  %v3033 = vunpack.c.l.b16 %v1754
  %v3034 = vunpack.c.l.b16 %v1755
  %v3035 = vunpack.c.h.b16 %v1755
  %v3036 = vunpack.c.l.b16 %v1756
  %v3037 = vunpack.c.l.b16 %v1757
  %v3038 = vunpack.c.h.b16 %v1757
  %v3039 = vunpack.c.l.b16 %v1758
  %v3040 = vunpack.c.l.b16 %v1759
  %v3041 = vunpack.c.h.b16 %v1759
  %v3042 = vunpack.c.l.b16 %v1760
  %v3043 = vunpack.c.l.b16 %v1761
  %v3044 = vunpack.c.h.b16 %v1761
  %v3045 = vunpack.c.l.b16 %v1762
  %v3046 = vunpack.c.l.b16 %v1763
  %v3047 = vunpack.c.h.b16 %v1763
  %v3048 = vunpack.c.l.b16 %v1764
  %v3049 = vunpack.c.l.b16 %v1765
  %v3050 = vunpack.c.h.b16 %v1765
  %v3051 = vunpack.c.l.b16 %v1766
  %v3052 = vunpack.c.l.b16 %v1767
  %v3053 = vunpack.c.h.b16 %v1767
  %v3054 = vunpack.c.l.b16 %v1768
  %v3055 = vunpack.c.l.b16 %v1769
  %v3056 = vunpack.c.h.b16 %v1769
  %v3057 = vunpack.c.l.b16 %v1770
  %v3058 = vunpack.c.l.b16 %v1771
  %v3059 = vunpack.c.h.b16 %v1771
  %v3060 = vunpack.c.l.b16 %v1772
  %v3061 = vunpack.c.l.b16 %v1773
  %v3062 = vunpack.c.h.b16 %v1773
  %v3063 = vunpack.c.l.b16 %v1774
  %v3064 = vunpack.c.l.b16 %v1775
  %v3065 = vunpack.c.h.b16 %v1775
  %v3066 = vunpack.c.l.b16 %v1776
  %v3067 = vunpack.c.l.b16 %v1777
  %v3068 = vunpack.c.h.b16 %v1777
  %v3069 = vunpack.c.l.b16 %v1778
  %v3070 = vunpack.c.l.b16 %v1779
  %v3071 = vunpack.c.h.b16 %v1779
  %v3072 = vunpack.c.l.b16 %v1780
  %v3073 = vunpack.c.l.b16 %v1781
  %v3074 = vunpack.c.h.b16 %v1781
  %v3075 = vunpack.c.l.b16 %v1782
  %v3076 = vunpack.c.l.b16 %v1783
  %v3077 = vunpack.c.h.b16 %v1783
  %v3078 = vunpack.c.l.b16 %v1784
  %v3079 = vunpack.c.l.b16 %v1785
  %v3080 = vunpack.c.h.b16 %v1785
  %v3081 = vunpack.c.l.b16 %v1786
  %v3082 = vunpack.c.l.b16 %v1787
  %v3083 = vunpack.c.h.b16 %v1787
  %v3084 = vunpack.c.l.b16 %v1788
  %v3085 = vunpack.c.l.b16 %v1789
  %v3086 = vunpack.c.h.b16 %v1789
  %v3087 = vunpack.c.l.b16 %v1790
  %v3088 = vunpack.c.l.b16 %v1791
  %v3089 = vunpack.c.h.b16 %v1791
  %v3090 = vunpack.c.l.b16 %v1792
  %v3091 = vunpack.c.l.b16 %v1793
  %v3092 = vunpack.c.h.b16 %v1793
  %v3093 = vunpack.c.l.b16 %v1794
  %v3094 = vunpack.c.l.b16 %v1795
  %v3095 = vunpack.c.h.b16 %v1795
  %v3096 = vunpack.c.l.b16 %v1796
  %v3097 = vunpack.c.l.b16 %v1797
  %v3098 = vunpack.c.h.b16 %v1797
  %v3099 = vunpack.c.l.b16 %v1798
  %v3100 = vunpack.c.l.b16 %v1799
  %v3101 = vunpack.c.h.b16 %v1799
  %v3102 = vunpack.c.l.b16 %v1800
  %v3103 = vunpack.c.l.b16 %v1801
  %v3104 = vunpack.c.h.b16 %v1801
  %v3105 = vunpack.c.l.b16 %v1802
  %v3106 = vunpack.c.l.b16 %v1803
  %v3107 = vunpack.c.h.b16 %v1803
  %v3108 = vunpack.c.l.b16 %v1804
  %v3109 = vunpack.c.l.b16 %v1805
  %v3110 = vunpack.c.h.b16 %v1805
  %v3111 = vunpack.c.l.b16 %v1806
  %v3112 = vunpack.c.l.b16 %v1807
  %v3113 = vunpack.c.h.b16 %v1807
  %v3114 = vunpack.c.l.b16 %v1808
  %v3115 = vunpack.c.l.b16 %v1809
  %v3116 = vunpack.c.h.b16 %v1809
  %v3117 = vunpack.c.l.b16 %v1810
  %v3118 = vunpack.c.l.b16 %v1811
  %v3119 = vunpack.c.h.b16 %v1811
  %v3120 = vunpack.c.l.b16 %v1812
  %v3121 = vunpack.c.l.b16 %v1813
  %v3122 = vunpack.c.h.b16 %v1813
  %v3123 = vunpack.c.l.b16 %v1814
  %v3124 = vunpack.c.l.b16 %v1815
  %v3125 = vunpack.c.h.b16 %v1815
  %v3126 = vunpack.c.l.b16 %v1816
  %v3127 = vunpack.c.l.b16 %v1817
  %v3128 = vunpack.c.h.b16 %v1817
  %v3129 = vunpack.c.l.b16 %v1818
  %v3130 = vunpack.c.l.b16 %v1819
  %v3131 = vunpack.c.h.b16 %v1819
  %v3132 = vunpack.c.l.b16 %v1820
  %v3133 = vunpack.c.l.b16 %v1821
  %v3134 = vunpack.c.h.b16 %v1821
  %v3135 = vunpack.c.l.b16 %v1822
  %v3136 = vunpack.c.l.b16 %v1823
  %v3137 = vunpack.c.h.b16 %v1823
  %v3138 = vunpack.c.l.b16 %v1824
  %v3139 = vunpack.c.l.b16 %v1825
  %v3140 = vunpack.c.h.b16 %v1825
  %v3141 = vunpack.c.l.b16 %v1826
  %v3142 = vunpack.c.l.b16 %v1827
  %v3143 = vunpack.c.h.b16 %v1827
  %v3144 = vunpack.c.l.b16 %v1828
  %v3145 = vunpack.c.l.b16 %v1829
  %v3146 = vunpack.c.h.b16 %v1829
  %v3147 = vunpack.c.l.b16 %v1830
  %v3148 = vunpack.c.l.b16 %v1831
  %v3149 = vunpack.c.h.b16 %v1831
  %v3150 = vunpack.c.l.b16 %v1832
  %v3151 = vunpack.c.l.b16 %v1833
  %v3152 = vunpack.c.h.b16 %v1833
  %v3153 = vunpack.c.l.b16 %v1834
  %v3154 = vunpack.c.l.b16 %v1835
  %v3155 = vunpack.c.h.b16 %v1835
  %v3156 = vunpack.c.l.b16 %v1836
  %v3157 = vunpack.c.l.b16 %v1837
  %v3158 = vunpack.c.h.b16 %v1837
  %v3159 = vunpack.c.l.b16 %v1838
  %v3160 = vunpack.c.l.b16 %v1839
  %v3161 = vunpack.c.h.b16 %v1839
  %v3162 = vunpack.c.l.b16 %v1840
  %v3163 = vunpack.c.l.b16 %v1841
  %v3164 = vunpack.c.h.b16 %v1841
  %v3165 = vunpack.c.l.b16 %v1842
  %v3166 = vunpack.c.l.b16 %v1843
  %v3167 = vunpack.c.h.b16 %v1843
  %v3168 = vunpack.c.l.b16 %v1844
  %v3169 = vunpack.c.l.b16 %v1845
  %v3170 = vunpack.c.h.b16 %v1845
  %v3171 = vunpack.c.l.b16 %v1846
  %v3172 = vunpack.c.l.b16 %v1847
  %v3173 = vunpack.c.h.b16 %v1847
  %v3174 = vunpack.c.l.b16 %v1848
  %v3175 = vunpack.c.l.b16 %v1849
  %v3176 = vunpack.c.h.b16 %v1849
  %v3177 = vunpack.c.l.b16 %v1850
  %v3178 = vunpack.c.l.b16 %v1851
  %v3179 = vunpack.c.h.b16 %v1851
  %v3180 = vunpack.c.l.b16 %v1852
  %v3181 = vunpack.c.l.b16 %v1853
  %v3182 = vunpack.c.h.b16 %v1853
  %v3183 = vunpack.c.l.b16 %v1854
  %v3184 = vunpack.c.l.b16 %v1855
  %v3185 = vunpack.c.h.b16 %v1855
  %v3186 = vunpack.c.l.b16 %v1856
  %v3187 = vunpack.c.l.b16 %v1857
  %v3188 = vunpack.c.h.b16 %v1857
  %v3189 = vunpack.c.l.b16 %v1858
  %v3190 = vunpack.c.l.b16 %v1859
  %v3191 = vunpack.c.h.b16 %v1859
  %v3192 = vunpack.c.l.b16 %v1860
  %v3193 = vunpack.c.l.b16 %v1861
  %v3194 = vunpack.c.h.b16 %v1861
  %v3195 = vunpack.c.l.b16 %v1862
  %v3196 = vunpack.c.l.b16 %v1863
  %v3197 = vunpack.c.h.b16 %v1863
  %v3198 = vunpack.c.l.b16 %v1864
  %v3199 = vunpack.c.l.b16 %v1865
  %v3200 = vunpack.c.h.b16 %v1865
  %v3201 = vunpack.c.l.b16 %v1866
  %v3202 = vunpack.c.l.b16 %v1867
  %v3203 = vunpack.c.h.b16 %v1867
  %v3204 = vunpack.c.l.b16 %v1868
  %v3205 = vunpack.c.l.b16 %v1869
  %v3206 = vunpack.c.h.b16 %v1869
  %v3207 = vunpack.c.l.b16 %v1870
  %v3208 = vunpack.c.l.b16 %v1871
  %v3209 = vunpack.c.h.b16 %v1871
  %v3210 = vunpack.c.l.b16 %v1872
  %v3211 = vunpack.c.l.b16 %v1873
  %v3212 = vunpack.c.h.b16 %v1873
  %v3213 = vunpack.c.l.b16 %v1874
  %v3214 = vunpack.c.l.b16 %v1875
  %v3215 = vunpack.c.h.b16 %v1875
  %v3216 = vunpack.c.l.b16 %v1876
  %v3217 = vunpack.c.l.b16 %v1877
  %v3218 = vunpack.c.h.b16 %v1877
  %v3219 = vunpack.c.l.b16 %v1878
  %v3220 = vunpack.c.l.b16 %v1879
  %v3221 = vunpack.c.h.b16 %v1879
  %v3222 = vunpack.c.l.b16 %v1880
  %v3223 = vunpack.c.l.b16 %v1881
  %v3224 = vunpack.c.h.b16 %v1881
  %v3225 = vunpack.c.l.b16 %v1882
  %v3226 = vunpack.c.l.b16 %v1883
  %v3227 = vunpack.c.h.b16 %v1883
  %v3228 = vunpack.c.l.b16 %v1884
  %v3229 = vunpack.c.l.b16 %v1885
  %v3230 = vunpack.c.h.b16 %v1885
  %v3231 = vunpack.c.l.b16 %v1886
  %v3232 = vunpack.c.l.b16 %v1887
  %v3233 = vunpack.c.h.b16 %v1887
  %v3234 = vunpack.c.l.b16 %v1888
  %v3235 = vunpack.c.l.b16 %v1889
  %v3236 = vunpack.c.h.b16 %v1889
  %v3237 = vunpack.c.l.b16 %v1890
  %v3238 = vunpack.c.l.b16 %v1891
  %v3239 = vunpack.c.h.b16 %v1891
  %v3240 = vunpack.c.l.b16 %v1892
  %v3241 = vunpack.c.l.b16 %v1893
  %v3242 = vunpack.c.h.b16 %v1893
  %v3243 = vunpack.c.l.b16 %v1894
  %v3244 = vunpack.c.l.b16 %v1895
  %v3245 = vunpack.c.h.b16 %v1895
  %v3246 = vunpack.c.l.b16 %v1896
  %v3247 = vunpack.c.l.b16 %v1897
  %v3248 = vunpack.c.h.b16 %v1897
  %v3249 = vunpack.c.l.b16 %v1898
  %v3250 = vunpack.c.l.b16 %v1899
  %v3251 = vunpack.c.h.b16 %v1899
  %v3252 = vunpack.c.l.b16 %v1900
  %v3253 = vunpack.c.l.b16 %v1901
  %v3254 = vunpack.c.h.b16 %v1901
  %v3255 = vunpack.c.l.b16 %v1902
  %v3256 = vunpack.c.l.b16 %v1903
  %v3257 = vunpack.c.h.b16 %v1903
  %v3258 = vunpack.c.l.b16 %v1904
  %v3259 = vunpack.c.l.b16 %v1905
  %v3260 = vunpack.c.h.b16 %v1905
  %v3261 = vunpack.c.l.b16 %v1906
  %v3262 = vunpack.c.l.b16 %v1907
  %v3263 = vunpack.c.h.b16 %v1907
  %v3264 = vunpack.c.l.b16 %v1908
  %v3265 = vunpack.c.l.b16 %v1909
  %v3266 = vunpack.c.h.b16 %v1909
  %v3267 = vunpack.c.l.b16 %v1910
  %v3268 = vunpack.c.l.b16 %v1911
  %v3269 = vunpack.c.h.b16 %v1911
  %v3270 = vunpack.c.l.b16 %v1912
  %v3271 = vunpack.c.l.b16 %v1913
  %v3272 = vunpack.c.h.b16 %v1913
  %v3273 = vunpack.c.l.b16 %v1914
  %v3274 = vunpack.c.l.b16 %v1915
  %v3275 = vunpack.c.h.b16 %v1915
  %v3276 = vunpack.c.l.b16 %v1916
  %v3277 = vunpack.c.l.b16 %v1917
  %v3278 = vunpack.c.h.b16 %v1917
  %v3279 = vunpack.c.l.b16 %v1918
  %v3280 = vunpack.c.l.b16 %v1919
  %v3281 = vunpack.c.h.b16 %v1919
  %v3282 = vunpack.c.l.b16 %v1920
  %v3283 = vunpack.c.l.b16 %v1921
  %v3284 = vunpack.c.h.b16 %v1921
  %v3285 = vunpack.c.l.b16 %v1922
  %v3286 = vunpack.c.l.b16 %v1923
  %v3287 = vunpack.c.h.b16 %v1923
  %v3288 = vunpack.c.l.b16 %v1924
  %v3289 = vunpack.c.l.b16 %v1925
  %v3290 = vunpack.c.h.b16 %v1925
  %v3291 = vunpack.c.l.b16 %v1926
  %v3292 = vunpack.c.l.b16 %v1927
  %v3293 = vunpack.c.h.b16 %v1927
  %v3294 = vunpack.c.l.b16 %v1928
  %v3295 = vunpack.c.l.b16 %v1929
  %v3296 = vunpack.c.h.b16 %v1929
  %v3297 = vunpack.c.l.b16 %v1930
  %v3298 = vunpack.c.l.b16 %v1931
  %v3299 = vunpack.c.h.b16 %v1931
  %v3300 = vunpack.c.l.b16 %v1932
  %v3301 = vunpack.c.l.b16 %v1933
  %v3302 = vunpack.c.h.b16 %v1933
  %v3303 = vunpack.c.l.b16 %v1934
  %v3304 = vunpack.c.l.b16 %v1935
  %v3305 = vunpack.c.h.b16 %v1935
  %v3306 = vunpack.c.l.b16 %v1936
  %v3307 = vunpack.c.l.b16 %v1937
  %v3308 = vunpack.c.h.b16 %v1937
  %v3309 = vunpack.c.l.b16 %v1938
  %v3310 = vunpack.c.l.b16 %v1939
  %v3311 = vunpack.c.h.b16 %v1939
  %v3312 = vunpack.c.l.b16 %v1940
  %v3313 = vunpack.c.l.b16 %v1941
  %v3314 = vunpack.c.h.b16 %v1941
  %v3315 = vunpack.c.l.b16 %v1942
  %v3316 = vunpack.c.l.b16 %v1943
  %v3317 = vunpack.c.h.b16 %v1943
  %v3318 = vunpack.c.l.b16 %v1944
  %v3319 = vunpack.c.l.b16 %v1945
  %v3320 = vunpack.c.h.b16 %v1945
  %v3321 = vunpack.c.l.b16 %v1946
  %v3322 = vunpack.c.l.b16 %v1947
  %v3323 = vunpack.c.h.b16 %v1947
  %v3324 = vunpack.c.l.b16 %v1948
  %v3325 = vunpack.c.l.b16 %v1949
  %v3326 = vunpack.c.h.b16 %v1949
  %v3327 = vunpack.c.l.b16 %v1950
  %v3328 = vunpack.c.l.b16 %v1951
  %v3329 = vunpack.c.h.b16 %v1951
  %v3330 = vunpack.c.l.b16 %v1952
  %v3331 = vunpack.c.l.b16 %v1953
  %v3332 = vunpack.c.h.b16 %v1953
  %v3333 = vunpack.c.l.b16 %v1954
  %v3334 = vunpack.c.l.b16 %v1955
  %v3335 = vunpack.c.h.b16 %v1955
  %v3336 = vunpack.c.l.b16 %v1956
  %v3337 = vunpack.c.l.b16 %v1957
  %v3338 = vunpack.c.h.b16 %v1957
  %v3339 = vunpack.c.l.b16 %v1958
  %v3340 = vunpack.c.l.b16 %v1959
  %v3341 = vunpack.c.h.b16 %v1959
  %v3342 = vunpack.c.l.b16 %v1960
  %v3343 = vunpack.c.l.b16 %v1961
  %v3344 = vunpack.c.h.b16 %v1961
  %v3345 = vunpack.c.l.b16 %v1962
  %v3346 = vunpack.c.l.b16 %v1963
  %v3347 = vunpack.c.h.b16 %v1963
  %v3348 = vunpack.c.l.b16 %v1964
  %v3349 = vunpack.c.l.b16 %v1965
  %v3350 = vunpack.c.h.b16 %v1965
  %v3351 = vunpack.c.l.b16 %v1966
  %v3352 = vunpack.c.l.b16 %v1967
  %v3353 = vunpack.c.h.b16 %v1967
  %v3354 = vunpack.c.l.b16 %v1968
  %v3355 = vunpack.c.l.b16 %v1969
  %v3356 = vunpack.c.h.b16 %v1969
  %v3357 = vunpack.c.l.b16 %v1970
  %v3358 = vunpack.c.l.b16 %v1971
  %v3359 = vunpack.c.h.b16 %v1971
  %v3360 = vunpack.c.l.b16 %v1972
  %v3361 = vunpack.c.l.b16 %v1973
  %v3362 = vunpack.c.h.b16 %v1973
  %v3363 = vunpack.c.l.b16 %v1974
  %v3364 = vunpack.c.l.b16 %v1975
  %v3365 = vunpack.c.h.b16 %v1975
  %v3366 = vunpack.c.l.b16 %v1976
  %v3367 = vunpack.c.l.b16 %v1977
  %v3368 = vunpack.c.h.b16 %v1977
  %v3369 = vunpack.c.l.b16 %v1978
  %v3370 = vunpack.c.l.b16 %v1979
  %v3371 = vunpack.c.h.b16 %v1979
  %v3372 = vunpack.c.l.b16 %v1980
  %v3373 = vunpack.c.l.b16 %v1981
  %v3374 = vunpack.c.h.b16 %v1981
  %v3375 = vunpack.c.l.b16 %v1982
  %v3376 = vunpack.c.l.b16 %v1983
  %v3377 = vunpack.c.h.b16 %v1983
  %v3378 = vunpack.c.l.b16 %v1984
  %v3379 = vunpack.c.l.b16 %v1985
  %v3380 = vunpack.c.h.b16 %v1985
  %v3381 = vunpack.c.l.b16 %v1986
  %v3382 = vunpack.c.l.b16 %v1987
  %v3383 = vunpack.c.h.b16 %v1987
  %v3384 = vunpack.c.l.b16 %v1988
  %v3385 = vunpack.c.l.b16 %v1989
  %v3386 = vunpack.c.h.b16 %v1989
  %v3387 = vunpack.c.l.b16 %v1990
  %v3388 = vunpack.c.l.b16 %v1991
  %v3389 = vunpack.c.h.b16 %v1991
  %v3390 = vunpack.c.l.b16 %v1992
  %v3391 = vunpack.c.l.b16 %v1993
  %v3392 = vunpack.c.h.b16 %v1993
  %v3393 = vunpack.c.l.b16 %v1994
  %v3394 = vunpack.c.l.b16 %v1995
  %v3395 = vunpack.c.h.b16 %v1995
  %v3396 = vunpack.c.l.b16 %v1996
  %v3397 = vunpack.c.l.b16 %v1997
  %v3398 = vunpack.c.h.b16 %v1997
  %v3399 = vunpack.c.l.b16 %v1998
  %v3400 = vunpack.c.l.b16 %v1999
  %v3401 = vunpack.c.h.b16 %v1999
  %v3402 = vunpack.c.l.b16 %v2000
  %v3403 = vunpack.c.l.b16 %v2001
  %v3404 = vunpack.c.h.b16 %v2001
  %v3405 = vunpack.c.l.b16 %v2002
  %v3406 = vunpack.c.l.b16 %v2003
  %v3407 = vunpack.c.h.b16 %v2003
  %v3408 = vunpack.c.l.b16 %v2004
  %v3409 = vunpack.c.l.b16 %v2005
  %v3410 = vunpack.c.h.b16 %v2005
  %v3411 = vunpack.c.l.b16 %v2006
  %v3412 = vunpack.c.l.b16 %v2007
  %v3413 = vunpack.c.h.b16 %v2007
  %v3414 = vunpack.c.l.b16 %v2008
  %v3415 = vunpack.c.l.b16 %v2009
  %v3416 = vunpack.c.h.b16 %v2009
  %v3417 = vunpack.c.l.b16 %v2010
  %v3418 = vunpack.c.l.b16 %v2011
  %v3419 = vunpack.c.h.b16 %v2011
  %v3420 = vunpack.c.l.b16 %v2012
  %v3421 = vunpack.c.l.b16 %v2013
  %v3422 = vunpack.c.h.b16 %v2013
  %v3423 = vunpack.c.l.b16 %v2014
  %v3424 = vunpack.c.l.b16 %v2015
  %v3425 = vunpack.c.h.b16 %v2015
  %v3426 = vunpack.c.l.b16 %v2016
  %v3427 = vunpack.c.l.b16 %v2017
  %v3428 = vunpack.c.h.b16 %v2017
  %v3429 = vunpack.c.l.b16 %v2018
  %v3430 = vunpack.c.l.b16 %v2019
  %v3431 = vunpack.c.h.b16 %v2019
  %v3432 = vunpack.c.l.b16 %v2020
  %v3433 = vunpack.c.l.b16 %v2021
  %v3434 = vunpack.c.h.b16 %v2021
  %v3435 = vunpack.c.l.b16 %v2022
  %v3436 = vunpack.c.l.b16 %v2023
  %v3437 = vunpack.c.h.b16 %v2023
  %v3438 = vunpack.c.l.b16 %v2024
  %v3439 = vunpack.c.l.b16 %v2025
  %v3440 = vunpack.c.h.b16 %v2025
  %v3441 = vunpack.c.l.b16 %v2026
  %v3442 = vunpack.c.l.b16 %v2027
  %v3443 = vunpack.c.h.b16 %v2027
  %v3444 = vunpack.c.l.b16 %v2028
  %v3445 = vunpack.c.l.b16 %v2029
  %v3446 = vunpack.c.h.b16 %v2029
  %v3447 = vunpack.c.l.b16 %v2030
  %v3448 = vunpack.c.l.b16 %v2031
  %v3449 = vunpack.c.h.b16 %v2031
  %v3450 = vunpack.c.l.b16 %v2032
  %v3451 = vunpack.c.l.b16 %v2033
  %v3452 = vunpack.c.h.b16 %v2033
  %v3453 = vunpack.c.l.b16 %v2034
  %v3454 = vunpack.c.l.b16 %v2035
  %v3455 = vunpack.c.h.b16 %v2035
  %v3456 = vunpack.c.l.b16 %v2036
  %v3457 = vunpack.c.l.b16 %v2037
  %v3458 = vunpack.c.h.b16 %v2037
  %v3459 = vunpack.c.l.b16 %v2038
  %v3460 = vunpack.c.l.b16 %v2039
  %v3461 = vunpack.c.h.b16 %v2039
  %v3462 = vunpack.c.l.b16 %v2040
  %v3463 = vunpack.c.l.b16 %v2041
  %v3464 = vunpack.c.h.b16 %v2041
  %v3465 = vunpack.c.l.b16 %v2042
  %v3466 = vunpack.c.l.b16 %v2043
  %v3467 = vunpack.c.h.b16 %v2043
  %v3468 = vunpack.c.l.b16 %v2044
  %v3469 = vunpack.c.l.b16 %v2045
  %v3470 = vunpack.c.h.b16 %v2045
  %v3471 = vunpack.c.l.b16 %v2046
  %v3472 = vunpack.c.l.b16 %v2047
  %v3473 = vunpack.c.h.b16 %v2047
  %v3474 = vunpack.c.l.b16 %v2048
  %v3475 = vunpack.c.l.b16 %v2049
  %v3476 = vunpack.c.h.b16 %v2049
  %v3477 = vunpack.c.l.b16 %v2050
  %v3478 = vunpack.c.l.b16 %v2051
  %v3479 = vunpack.c.h.b16 %v2051
  %v3480 = vunpack.c.l.b16 %v2052
  %v3481 = vunpack.c.l.b16 %v2053
  %v3482 = vunpack.c.h.b16 %v2053
  %v3483 = vunpack.c.l.b16 %v2054
  %v3484 = vunpack.c.l.b16 %v2055
  %v3485 = vunpack.c.h.b16 %v2055
  %v3486 = vunpack.c.l.b16 %v2056
  %v3487 = vunpack.c.l.b16 %v2057
  %v3488 = vunpack.c.h.b16 %v2057
  %v3489 = vunpack.c.l.b16 %v2058
  %v3490 = vunpack.c.l.b16 %v2059
  %v3491 = vunpack.c.h.b16 %v2059
  %v3492 = vunpack.c.l.b16 %v2060
  %v3493 = vunpack.c.l.b16 %v2061
  %v3494 = vunpack.c.h.b16 %v2061
  %v3495 = vunpack.c.l.b16 %v2062
  %v3496 = vunpack.c.l.b16 %v2063
  %v3497 = vunpack.c.h.b16 %v2063
  %v3498 = vunpack.c.l.b16 %v2064
  %v3499 = vunpack.c.l.b16 %v2065
  %v3500 = vunpack.c.h.b16 %v2065
  %v3501 = vunpack.c.l.b16 %v2066
  %v3502 = vunpack.c.l.b16 %v2067
  %v3503 = vunpack.c.h.b16 %v2067
  %v3504 = vunpack.c.l.b16 %v2068
  %v3505 = vunpack.c.l.b16 %v2069
  %v3506 = vunpack.c.h.b16 %v2069
  %v3507 = vunpack.c.l.b16 %v2070
  %v3508 = vunpack.c.l.b16 %v2071
  %v3509 = vunpack.c.h.b16 %v2071
  %v3510 = vunpack.c.l.b16 %v2072
  %v3511 = vunpack.c.l.b16 %v2073
  %v3512 = vunpack.c.h.b16 %v2073
  %v3513 = vunpack.c.l.b16 %v2074
  %v3514 = vunpack.c.l.b16 %v2075
  %v3515 = vunpack.c.h.b16 %v2075
  %v3516 = vunpack.c.l.b16 %v2076
  %v3517 = vunpack.c.l.b16 %v2077
  %v3518 = vunpack.c.h.b16 %v2077
  %v3519 = vunpack.c.l.b16 %v2078
  %v3520 = vunpack.c.l.b16 %v2079
  %v3521 = vunpack.c.h.b16 %v2079
  %v3522 = vunpack.c.l.b16 %v2080
  %v3523 = vunpack.c.l.b16 %v2081
  %v3524 = vunpack.c.h.b16 %v2081
  %v3525 = vunpack.c.l.b16 %v2082
  %v3526 = vunpack.c.l.b16 %v2083
  %v3527 = vunpack.c.h.b16 %v2083
  %v3528 = vunpack.c.l.b16 %v2084
  %v3529 = vunpack.c.l.b16 %v2085
  %v3530 = vunpack.c.h.b16 %v2085
  %v3531 = vunpack.c.l.b16 %v2086
  %v3532 = vunpack.c.l.b16 %v2087
  %v3533 = vunpack.c.h.b16 %v2087
  %v3534 = vunpack.c.l.b16 %v2088
  %v3535 = vunpack.c.l.b16 %v2089
  %v3536 = vunpack.c.h.b16 %v2089
  %v3537 = vunpack.c.l.b16 %v2090
  %v3538 = vunpack.c.l.b16 %v2091
  %v3539 = vunpack.c.h.b16 %v2091
  %v3540 = vunpack.c.l.b16 %v2092
  %v3541 = vunpack.c.l.b16 %v2093
  %v3542 = vunpack.c.h.b16 %v2093
  %v3543 = vunpack.c.l.b16 %v2094
  %v3544 = vunpack.c.l.b16 %v2095
  %v3545 = vunpack.c.h.b16 %v2095
  %v3546 = vunpack.c.l.b16 %v2096
  %v3547 = vunpack.c.l.b16 %v2097
  %v3548 = vunpack.c.h.b16 %v2097
  %v3549 = vunpack.c.l.b16 %v2098
  %v3550 = vunpack.c.l.b16 %v2099
  %v3551 = vunpack.c.h.b16 %v2099
  %v3552 = vunpack.c.l.b16 %v2100
  %v3553 = vunpack.c.l.b16 %v2101
  %v3554 = vunpack.c.h.b16 %v2101
  %v3555 = vunpack.c.l.b16 %v2102
  %v3556 = vunpack.c.l.b16 %v2103
  %v3557 = vunpack.c.h.b16 %v2103
  %v3558 = vunpack.c.l.b16 %v2104
  %v3559 = vunpack.c.l.b16 %v2105
  %v3560 = vunpack.c.h.b16 %v2105
  %v3561 = vunpack.c.l.b16 %v2106
  %v3562 = vunpack.c.l.b16 %v2107
  %v3563 = vunpack.c.h.b16 %v2107
  %v3564 = vunpack.c.l.b16 %v2108
  %v3565 = vunpack.c.l.b16 %v2109
  %v3566 = vunpack.c.h.b16 %v2109
  %v3567 = vunpack.c.l.b16 %v2110
  %v3568 = vunpack.c.l.b16 %v2111
  %v3569 = vunpack.c.h.b16 %v2111
  %v3570 = vunpack.c.l.b16 %v2112
  %v3571 = vunpack.c.l.b16 %v2113
  %v3572 = vunpack.c.h.b16 %v2113
  %v3573 = vunpack.c.l.b16 %v2114
  %v3574 = vunpack.c.l.b16 %v2115
  %v3575 = vunpack.c.h.b16 %v2115
  %v3576 = vunpack.c.l.b16 %v2116
  %v3577 = vunpack.c.l.b16 %v2117
  %v3578 = vunpack.c.h.b16 %v2117
  %v3579 = vunpack.c.l.b16 %v2118
  %v3580 = vunpack.c.l.b16 %v2119
  %v3581 = vunpack.c.h.b16 %v2119
  %v3582 = vunpack.c.l.b16 %v2120
  %v3583 = vunpack.c.l.b16 %v2121
  %v3584 = vunpack.c.h.b16 %v2121
  %v3585 = vunpack.c.l.b16 %v2122
  %v3586 = vunpack.c.l.b16 %v2123
  %v3587 = vunpack.c.h.b16 %v2123
  %v3588 = vunpack.c.l.b16 %v2124
  %v3589 = vunpack.c.l.b16 %v2125
  %v3590 = vunpack.c.h.b16 %v2125
  %v3591 = vunpack.c.l.b16 %v2126
  %v3592 = vunpack.c.l.b16 %v2127
  %v3593 = vunpack.c.h.b16 %v2127
  %v3594 = vunpack.c.l.b16 %v2128
  %v3595 = vunpack.c.l.b16 %v2129
  %v3596 = vunpack.c.h.b16 %v2129
  %v3597 = vunpack.c.l.b16 %v2130
  %v3598 = vunpack.c.l.b16 %v2131
  %v3599 = vunpack.c.h.b16 %v2131
  %v3600 = vunpack.c.l.b16 %v2132
  %v3601 = vunpack.c.l.b16 %v2133
  %v3602 = vunpack.c.h.b16 %v2133
  %v3603 = vunpack.c.l.b16 %v2134
  %v3604 = vunpack.c.l.b16 %v2135
  %v3605 = vunpack.c.h.b16 %v2135
  %v3606 = vunpack.c.l.b16 %v2136
  %v3607 = vunpack.c.l.b16 %v2137
  %v3608 = vunpack.c.h.b16 %v2137
  %v3609 = vunpack.c.l.b16 %v2138
  %v3610 = vunpack.c.l.b16 %v2139
  %v3611 = vunpack.c.h.b16 %v2139
  %v3612 = vunpack.c.l.b16 %v2140
  %v3613 = vunpack.c.l.b16 %v2141
  %v3614 = vunpack.c.h.b16 %v2141
  %v3615 = vunpack.c.l.b16 %v2142
  %v3616 = vunpack.c.l.b16 %v2143
  %v3617 = vunpack.c.h.b16 %v2143
  %v3618 = vunpack.c.l.b16 %v2144
  %v3619 = vunpack.c.l.b16 %v2145
  %v3620 = vunpack.c.h.b16 %v2145
  %v3621 = vunpack.c.l.b16 %v2146
  %v3622 = vunpack.c.l.b16 %v2147
  %v3623 = vunpack.c.h.b16 %v2147
  %v3624 = vunpack.c.l.b16 %v2148
  %v3625 = vunpack.c.l.b16 %v2149
  %v3626 = vunpack.c.h.b16 %v2149
  %v3627 = vunpack.c.l.b16 %v2150
  %v3628 = vunpack.c.l.b16 %v2151
  %v3629 = vunpack.c.h.b16 %v2151
  %v3630 = vunpack.c.l.b16 %v2152
  %v3631 = vunpack.c.l.b16 %v2153
  %v3632 = vunpack.c.h.b16 %v2153
  %v3633 = vunpack.c.l.b16 %v2154
  %v3634 = vunpack.c.l.b16 %v2155
  %v3635 = vunpack.c.h.b16 %v2155
  %v3636 = vunpack.c.l.b16 %v2156
  %v3637 = vunpack.c.l.b16 %v2157
  %v3638 = vunpack.c.h.b16 %v2157
  %v3639 = vunpack.c.l.b16 %v2158
  %v3640 = vunpack.c.l.b16 %v2159
  %v3641 = vunpack.c.h.b16 %v2159
  %v3642 = vunpack.c.l.b16 %v2160
  %v3643 = vunpack.c.l.b16 %v2161
  %v3644 = vunpack.c.h.b16 %v2161
  %v3645 = vunpack.c.l.b16 %v2162
  %v3646 = vunpack.c.l.b16 %v2163
  %v3647 = vunpack.c.h.b16 %v2163
  %v3648 = vunpack.c.l.b16 %v2164
  %v3649 = vunpack.c.l.b16 %v2165
  %v3650 = vunpack.c.h.b16 %v2165
  %v3651 = vunpack.c.l.b16 %v2166
  %v3652 = vunpack.c.l.b16 %v2167
  %v3653 = vunpack.c.h.b16 %v2167
  %v3654 = vunpack.c.l.b16 %v2168
  %v3655 = vunpack.c.l.b16 %v2169
  %v3656 = vunpack.c.h.b16 %v2169
  %v3657 = vunpack.c.l.b16 %v2170
  %v3658 = vunpack.c.l.b16 %v2171
  %v3659 = vunpack.c.h.b16 %v2171
  %v3660 = vunpack.c.l.b16 %v2172
  %v3661 = vunpack.c.l.b16 %v2173
  %v3662 = vunpack.c.h.b16 %v2173
  %v3663 = vunpack.c.l.b16 %v2174
  %v3664 = vunpack.c.l.b16 %v2175
  %v3665 = vunpack.c.h.b16 %v2175
  %v3666 = vunpack.c.l.b16 %v2176
  %v3667 = vunpack.c.l.b16 %v2177
  %v3668 = vunpack.c.h.b16 %v2177
  %v3669 = vunpack.c.l.b16 %v2178
  %v3670 = vunpack.c.l.b16 %v2179
  %v3671 = vunpack.c.h.b16 %v2179
  %v3672 = vunpack.c.l.b16 %v2180
  %v3673 = vunpack.c.l.b16 %v2181
  %v3674 = vunpack.c.h.b16 %v2181
  %v3675 = vunpack.c.l.b16 %v2182
  %v3676 = vunpack.c.l.b16 %v2183
  %v3677 = vunpack.c.h.b16 %v2183
  %v3678 = vunpack.c.l.b16 %v2184
  %v3679 = vunpack.c.l.b16 %v2185
  %v3680 = vunpack.c.h.b16 %v2185
  %v3681 = vunpack.c.l.b16 %v2186
  %v3682 = vunpack.c.l.b16 %v2187
  %v3683 = vunpack.c.h.b16 %v2187
  %v3684 = vunpack.c.l.b16 %v2188
  %v3685 = vunpack.c.l.b16 %v2189
  %v3686 = vunpack.c.h.b16 %v2189
  %v3687 = vunpack.c.l.b16 %v2190
  %v3688 = vunpack.c.l.b16 %v2191
  %v3689 = vunpack.c.h.b16 %v2191
  %v3690 = vunpack.c.l.b16 %v2192
  %v3691 = vunpack.c.l.b16 %v2193
  %v3692 = vunpack.c.h.b16 %v2193
  %v3693 = vunpack.c.l.b16 %v2194
  %v3694 = vunpack.c.l.b16 %v2195
  %v3695 = vunpack.c.h.b16 %v2195
  %v3696 = vunpack.c.l.b16 %v2196
  %v3697 = vunpack.c.l.b16 %v2197
  %v3698 = vunpack.c.h.b16 %v2197
  %v3699 = vunpack.c.l.b16 %v2198
  %v3700 = vunpack.c.l.b16 %v2199
  %v3701 = vunpack.c.h.b16 %v2199
  %v3702 = vunpack.c.l.b16 %v2200
  %v3703 = vunpack.c.l.b16 %v2201
  %v3704 = vunpack.c.h.b16 %v2201
  %v3705 = vunpack.c.l.b16 %v2202
  %v3706 = vunpack.c.l.b16 %v2203
  %v3707 = vunpack.c.h.b16 %v2203
  %v3708 = vunpack.c.l.b16 %v2204
  %v3709 = vunpack.c.l.b16 %v2205
  %v3710 = vunpack.c.h.b16 %v2205
  %v3711 = vunpack.c.l.b16 %v2206
  %v3712 = vunpack.c.l.b16 %v2207
  %v3713 = vunpack.c.h.b16 %v2207
  %v3714 = vunpack.c.l.b16 %v2208
  %v3715 = vunpack.c.l.b16 %v2209
  %v3716 = vunpack.c.h.b16 %v2209
  %v3717 = vunpack.c.l.b16 %v2210
  %v3718 = vunpack.c.l.b16 %v2211
  %v3719 = vunpack.c.h.b16 %v2211
  %v3720 = vunpack.c.l.b16 %v2212
  %v3721 = vunpack.c.l.b16 %v2213
  %v3722 = vunpack.c.h.b16 %v2213
  %v3723 = vunpack.c.l.b16 %v2214
  %v3724 = vunpack.c.l.b16 %v2215
  %v3725 = vunpack.c.h.b16 %v2215
  %v3726 = vunpack.c.l.b16 %v2216
  %v3727 = vunpack.c.l.b16 %v2217
  %v3728 = vunpack.c.h.b16 %v2217
  %v3729 = vunpack.c.l.b16 %v2218
  %v3730 = vunpack.c.l.b16 %v2219
  %v3731 = vunpack.c.h.b16 %v2219
  %v3732 = vunpack.c.l.b16 %v2220
  %v3733 = vunpack.c.l.b16 %v2221
  %v3734 = vunpack.c.h.b16 %v2221
  %v3735 = vunpack.c.l.b16 %v2222
  %v3736 = vunpack.c.l.b16 %v2223
  %v3737 = vunpack.c.h.b16 %v2223
  %v3738 = vunpack.c.l.b16 %v2224
  %v3739 = vunpack.c.l.b16 %v2225
  %v3740 = vunpack.c.h.b16 %v2225
  %v3741 = vunpack.c.l.b16 %v2226
  %v3742 = vunpack.c.l.b16 %v2227
  %v3743 = vunpack.c.h.b16 %v2227
  %v3744 = vunpack.c.l.b16 %v2228
  %v3745 = vunpack.c.l.b16 %v2229
  %v3746 = vunpack.c.h.b16 %v2229
  %v3747 = vunpack.c.l.b16 %v2230
  %v3748 = vunpack.c.l.b16 %v2231
  %v3749 = vunpack.c.h.b16 %v2231
  %v3750 = vunpack.c.l.b16 %v2232
  %v3751 = vunpack.c.l.b16 %v2233
  %v3752 = vunpack.c.h.b16 %v2233
  %v3753 = vunpack.c.l.b16 %v2234
  %v3754 = vunpack.c.l.b16 %v2235
  %v3755 = vunpack.c.h.b16 %v2235
  %v3756 = vunpack.c.l.b16 %v2236
  %v3757 = vunpack.c.l.b16 %v2237
  %v3758 = vunpack.c.h.b16 %v2237
  %v3759 = vunpack.c.l.b16 %v2238
  %v3760 = vunpack.c.l.b16 %v2239
  %v3761 = vunpack.c.h.b16 %v2239
  %v3762 = vunpack.c.l.b16 %v2240
  %v3763 = vunpack.c.l.b16 %v2241
  %v3764 = vunpack.c.h.b16 %v2241
  %v3765 = vunpack.c.l.b16 %v2242
  %v3766 = vunpack.c.l.b16 %v2243
  %v3767 = vunpack.c.h.b16 %v2243
  %v3768 = vunpack.c.l.b16 %v2244
  %v3769 = vunpack.c.l.b16 %v2245
  %v3770 = vunpack.c.h.b16 %v2245
  %v3771 = vunpack.c.l.b16 %v2246
  %v3772 = vunpack.c.l.b16 %v2247
  %v3773 = vunpack.c.h.b16 %v2247
  %v3774 = vunpack.c.l.b16 %v2248
  %v3775 = vunpack.c.l.b16 %v2249
  %v3776 = vunpack.c.h.b16 %v2249
  %v3777 = vunpack.c.l.b16 %v2250
  %v3778 = vunpack.c.l.b16 %v2251
  %v3779 = vunpack.c.h.b16 %v2251
  %v3780 = vunpack.c.l.b16 %v2252
  %v3781 = vunpack.c.l.b16 %v2253
  %v3782 = vunpack.c.h.b16 %v2253
  %v3783 = vunpack.c.l.b16 %v2254
  %v3784 = vunpack.c.l.b16 %v2255
  %v3785 = vunpack.c.h.b16 %v2255
  %v3786 = vunpack.c.l.b16 %v2256
  %v3787 = vunpack.c.l.b16 %v2257
  %v3788 = vunpack.c.h.b16 %v2257
  %v3789 = vunpack.c.l.b16 %v2258
  %v3790 = vunpack.c.l.b16 %v2259
  %v3791 = vunpack.c.h.b16 %v2259
  %v3792 = vunpack.c.l.b16 %v2260
  %v3793 = vunpack.c.l.b16 %v2261
  %v3794 = vunpack.c.h.b16 %v2261
  %v3795 = vunpack.c.l.b16 %v2262
  %v3796 = vunpack.c.l.b16 %v2263
  %v3797 = vunpack.c.h.b16 %v2263
  %v3798 = vunpack.c.l.b16 %v2264
  %v3799 = vunpack.c.l.b16 %v2265
  %v3800 = vunpack.c.h.b16 %v2265
  %v3801 = vunpack.c.l.b16 %v2266
  %v3802 = vunpack.c.l.b16 %v2267
  %v3803 = vunpack.c.h.b16 %v2267
  %v3804 = vunpack.c.l.b16 %v2268
  %v3805 = vunpack.c.l.b16 %v2269
  %v3806 = vunpack.c.h.b16 %v2269
  %v3807 = vunpack.c.l.b16 %v2270
  %v3808 = vunpack.c.l.b16 %v2271
  %v3809 = vunpack.c.h.b16 %v2271
  %v3810 = vunpack.c.l.b16 %v2272
  %v3811 = vunpack.c.l.b16 %v2273
  %v3812 = vunpack.c.h.b16 %v2273
  %v3813 = vunpack.c.l.b16 %v2274
  %v3814 = vunpack.c.l.b16 %v2275
  %v3815 = vunpack.c.h.b16 %v2275
  %v3816 = vunpack.c.l.b16 %v2276
  %v3817 = vunpack.c.l.b16 %v2277
  %v3818 = vunpack.c.h.b16 %v2277
  %v3819 = vunpack.c.l.b16 %v2278
  %v3820 = vunpack.c.l.b16 %v2279
  %v3821 = vunpack.c.h.b16 %v2279
  %v3822 = vunpack.c.l.b16 %v2280
  %v3823 = vunpack.c.l.b16 %v2281
  %v3824 = vunpack.c.h.b16 %v2281
  %v3825 = vunpack.c.l.b16 %v2282
  %v3826 = vunpack.c.l.b16 %v2283
  %v3827 = vunpack.c.h.b16 %v2283
  %v3828 = vunpack.c.l.b16 %v2284
  %v3829 = vunpack.c.l.b16 %v2285
  %v3830 = vunpack.c.h.b16 %v2285
  %v3831 = vunpack.c.l.b16 %v2286
  %v3832 = vunpack.c.l.b16 %v2287
  %v3833 = vunpack.c.h.b16 %v2287
  %v3834 = vunpack.c.l.b16 %v2288
  %v3835 = vunpack.c.l.b16 %v2289
  %v3836 = vunpack.c.h.b16 %v2289
  %v3837 = vunpack.c.l.b16 %v2290
  %v3838 = vunpack.c.l.b16 %v2291
  %v3839 = vunpack.c.h.b16 %v2291
  %v3840 = vunpack.c.l.b16 %v2292
  %v3841 = vunpack.c.l.b16 %v2293
  %v3842 = vunpack.c.h.b16 %v2293
  %v3843 = vunpack.c.l.b16 %v2294
  %v3844 = vunpack.c.l.b16 %v2295
  %v3845 = vunpack.c.h.b16 %v2295
  %v3846 = vunpack.c.l.b16 %v2296
  %v3847 = vunpack.c.l.b16 %v2297
  %v3848 = vunpack.c.h.b16 %v2297
  %v3849 = vunpack.c.l.b16 %v2298
  %v3850 = vunpack.c.l.b16 %v2299
  %v3851 = vunpack.c.h.b16 %v2299
  %v3852 = vunpack.c.l.b16 %v2300
  %v3853 = vunpack.c.l.b16 %v2301
  %v3854 = vunpack.c.h.b16 %v2301
  %v3855 = vunpack.c.l.b16 %v2302
  %v3856 = vunpack.c.l.b16 %v2303
  %v3857 = vunpack.c.h.b16 %v2303
  %v3858 = vunpack.c.l.b16 %v2304
  %v3859 = vunpack.c.l.b16 %v2305
  %v3860 = vunpack.c.h.b16 %v2305
  %v3861 = vunpack.c.l.b16 %v2306
  %v3862 = vunpack.c.l.b16 %v2307
  %v3863 = vunpack.c.h.b16 %v2307
  %v3864 = vunpack.c.l.b16 %v2308
  %v3865 = vunpack.c.l.b16 %v2309
  %v3866 = vunpack.c.h.b16 %v2309
  %v3867 = vunpack.c.l.b16 %v2310
  %v3868 = vunpack.c.l.b16 %v2311
  %v3869 = vunpack.c.h.b16 %v2311
  %v3870 = vunpack.c.l.b16 %v2312
  %v3871 = vunpack.c.l.b16 %v2313
  %v3872 = vunpack.c.h.b16 %v2313
  %v3873 = vunpack.c.l.b16 %v2314
  %v3874 = vunpack.c.l.b16 %v2315
  %v3875 = vunpack.c.h.b16 %v2315
  %v3876 = vunpack.c.l.b16 %v2316
  %v3877 = vpack.c.b16 %v2944, %v2941
  %v3878 = vpack.c.b16 %v2945, %v2942
  %v3879 = vpack.c.b16 %v2946, %v2943
  %v3880 = vpack.c.b16 %v2950, %v2947
  %v3881 = vpack.c.b16 %v2951, %v2948
  %v3882 = vpack.c.b16 %v2952, %v2949
  %v3883 = vpack.c.b16 %v2956, %v2953
  %v3884 = vpack.c.b16 %v2957, %v2954
  %v3885 = vpack.c.b16 %v2958, %v2955
  %v3886 = vpack.c.b16 %v2962, %v2959
  %v3887 = vpack.c.b16 %v2963, %v2960
  %v3888 = vpack.c.b16 %v2964, %v2961
  %v3889 = vpack.c.b16 %v2968, %v2965
  %v3890 = vpack.c.b16 %v2969, %v2966
  %v3891 = vpack.c.b16 %v2970, %v2967
  %v3892 = vpack.c.b16 %v2974, %v2971
  %v3893 = vpack.c.b16 %v2975, %v2972
  %v3894 = vpack.c.b16 %v2976, %v2973
  %v3895 = vpack.c.b16 %v2980, %v2977
  %v3896 = vpack.c.b16 %v2981, %v2978
  %v3897 = vpack.c.b16 %v2982, %v2979
  %v3898 = vpack.c.b16 %v2986, %v2983
  %v3899 = vpack.c.b16 %v2987, %v2984
  %v3900 = vpack.c.b16 %v2988, %v2985
  %v3901 = vpack.c.b16 %v2992, %v2989
  %v3902 = vpack.c.b16 %v2993, %v2990
  %v3903 = vpack.c.b16 %v2994, %v2991
  %v3904 = vpack.c.b16 %v2998, %v2995
  %v3905 = vpack.c.b16 %v2999, %v2996
  %v3906 = vpack.c.b16 %v3000, %v2997
  %v3907 = vpack.c.b16 %v3004, %v3001
  %v3908 = vpack.c.b16 %v3005, %v3002
  %v3909 = vpack.c.b16 %v3006, %v3003
  %v3910 = vpack.c.b16 %v3010, %v3007
  %v3911 = vpack.c.b16 %v3011, %v3008
  %v3912 = vpack.c.b16 %v3012, %v3009
  %v3913 = vpack.c.b16 %v3016, %v3013
  %v3914 = vpack.c.b16 %v3017, %v3014
  %v3915 = vpack.c.b16 %v3018, %v3015
  %v3916 = vpack.c.b16 %v3022, %v3019
  %v3917 = vpack.c.b16 %v3023, %v3020
  %v3918 = vpack.c.b16 %v3024, %v3021
  %v3919 = vpack.c.b16 %v3028, %v3025
  %v3920 = vpack.c.b16 %v3029, %v3026
  %v3921 = vpack.c.b16 %v3030, %v3027
  %v3922 = vpack.c.b16 %v3034, %v3031
  %v3923 = vpack.c.b16 %v3035, %v3032
  %v3924 = vpack.c.b16 %v3036, %v3033
  %v3925 = vpack.c.b16 %v3040, %v3037
  %v3926 = vpack.c.b16 %v3041, %v3038
  %v3927 = vpack.c.b16 %v3042, %v3039
  %v3928 = vpack.c.b16 %v3046, %v3043
  %v3929 = vpack.c.b16 %v3047, %v3044
  %v3930 = vpack.c.b16 %v3048, %v3045
  %v3931 = vpack.c.b16 %v3052, %v3049
  %v3932 = vpack.c.b16 %v3053, %v3050
  %v3933 = vpack.c.b16 %v3054, %v3051
  %v3934 = vpack.c.b16 %v3058, %v3055
  %v3935 = vpack.c.b16 %v3059, %v3056
  %v3936 = vpack.c.b16 %v3060, %v3057
  %v3937 = vpack.c.b16 %v3064, %v3061
  %v3938 = vpack.c.b16 %v3065, %v3062
  %v3939 = vpack.c.b16 %v3066, %v3063
  %v3940 = vpack.c.b16 %v3070, %v3067
  %v3941 = vpack.c.b16 %v3071, %v3068
  %v3942 = vpack.c.b16 %v3072, %v3069
  %v3943 = vpack.c.b16 %v3076, %v3073
  %v3944 = vpack.c.b16 %v3077, %v3074
  %v3945 = vpack.c.b16 %v3078, %v3075
  %v3946 = vpack.c.b16 %v3082, %v3079
  %v3947 = vpack.c.b16 %v3083, %v3080
  %v3948 = vpack.c.b16 %v3084, %v3081
  %v3949 = vpack.c.b16 %v3088, %v3085
  %v3950 = vpack.c.b16 %v3089, %v3086
  %v3951 = vpack.c.b16 %v3090, %v3087
  %v3952 = vpack.c.b16 %v3094, %v3091
  %v3953 = vpack.c.b16 %v3095, %v3092
  %v3954 = vpack.c.b16 %v3096, %v3093
  %v3955 = vpack.c.b16 %v3100, %v3097
  %v3956 = vpack.c.b16 %v3101, %v3098
  %v3957 = vpack.c.b16 %v3102, %v3099
  %v3958 = vpack.c.b16 %v3106, %v3103
  %v3959 = vpack.c.b16 %v3107, %v3104
  %v3960 = vpack.c.b16 %v3108, %v3105
  %v3961 = vpack.c.b16 %v3112, %v3109
  %v3962 = vpack.c.b16 %v3113, %v3110
  %v3963 = vpack.c.b16 %v3114, %v3111
  %v3964 = vpack.c.b16 %v3118, %v3115
  %v3965 = vpack.c.b16 %v3119, %v3116
  %v3966 = vpack.c.b16 %v3120, %v3117
  %v3967 = vpack.c.b16 %v3124, %v3121
  %v3968 = vpack.c.b16 %v3125, %v3122
  %v3969 = vpack.c.b16 %v3126, %v3123
  %v3970 = vpack.c.b16 %v3130, %v3127
  %v3971 = vpack.c.b16 %v3131, %v3128
  %v3972 = vpack.c.b16 %v3132, %v3129
  %v3973 = vpack.c.b16 %v3136, %v3133
  %v3974 = vpack.c.b16 %v3137, %v3134
  %v3975 = vpack.c.b16 %v3138, %v3135
  %v3976 = vpack.c.b16 %v3142, %v3139
  %v3977 = vpack.c.b16 %v3143, %v3140
  %v3978 = vpack.c.b16 %v3144, %v3141
  %v3979 = vpack.c.b16 %v3148, %v3145
  %v3980 = vpack.c.b16 %v3149, %v3146
  %v3981 = vpack.c.b16 %v3150, %v3147
  %v3982 = vpack.c.b16 %v3154, %v3151
  %v3983 = vpack.c.b16 %v3155, %v3152
  %v3984 = vpack.c.b16 %v3156, %v3153
  %v3985 = vpack.c.b16 %v3160, %v3157
  %v3986 = vpack.c.b16 %v3161, %v3158
  %v3987 = vpack.c.b16 %v3162, %v3159
  %v3988 = vpack.c.b16 %v3166, %v3163
  %v3989 = vpack.c.b16 %v3167, %v3164
  %v3990 = vpack.c.b16 %v3168, %v3165
  %v3991 = vpack.c.b16 %v3172, %v3169
  %v3992 = vpack.c.b16 %v3173, %v3170
  %v3993 = vpack.c.b16 %v3174, %v3171
  %v3994 = vpack.c.b16 %v3178, %v3175
  %v3995 = vpack.c.b16 %v3179, %v3176
  %v3996 = vpack.c.b16 %v3180, %v3177
  %v3997 = vpack.c.b16 %v3184, %v3181
  %v3998 = vpack.c.b16 %v3185, %v3182
  %v3999 = vpack.c.b16 %v3186, %v3183
  %v4000 = vpack.c.b16 %v3190, %v3187
  %v4001 = vpack.c.b16 %v3191, %v3188
  %v4002 = vpack.c.b16 %v3192, %v3189
  %v4003 = vpack.c.b16 %v3196, %v3193
  %v4004 = vpack.c.b16 %v3197, %v3194
  %v4005 = vpack.c.b16 %v3198, %v3195
  %v4006 = vpack.c.b16 %v3202, %v3199
  %v4007 = vpack.c.b16 %v3203, %v3200
  %v4008 = vpack.c.b16 %v3204, %v3201
  %v4009 = vpack.c.b16 %v3208, %v3205
  %v4010 = vpack.c.b16 %v3209, %v3206
  %v4011 = vpack.c.b16 %v3210, %v3207
  %v4012 = vpack.c.b16 %v3214, %v3211
  %v4013 = vpack.c.b16 %v3215, %v3212
  %v4014 = vpack.c.b16 %v3216, %v3213
  %v4015 = vpack.c.b16 %v3220, %v3217
  %v4016 = vpack.c.b16 %v3221, %v3218
  %v4017 = vpack.c.b16 %v3222, %v3219
  %v4018 = vpack.c.b16 %v3226, %v3223
  %v4019 = vpack.c.b16 %v3227, %v3224
  %v4020 = vpack.c.b16 %v3228, %v3225
  %v4021 = vpack.c.b16 %v3232, %v3229
  %v4022 = vpack.c.b16 %v3233, %v3230
  %v4023 = vpack.c.b16 %v3234, %v3231
  %v4024 = vpack.c.b16 %v3238, %v3235
  %v4025 = vpack.c.b16 %v3239, %v3236
  %v4026 = vpack.c.b16 %v3240, %v3237
  %v4027 = vpack.c.b16 %v3244, %v3241
  %v4028 = vpack.c.b16 %v3245, %v3242
  %v4029 = vpack.c.b16 %v3246, %v3243
  %v4030 = vpack.c.b16 %v3250, %v3247
  %v4031 = vpack.c.b16 %v3251, %v3248
  %v4032 = vpack.c.b16 %v3252, %v3249
  %v4033 = vpack.c.b16 %v3256, %v3253
  %v4034 = vpack.c.b16 %v3257, %v3254
  %v4035 = vpack.c.b16 %v3258, %v3255
  %v4036 = vpack.c.b16 %v3262, %v3259
  %v4037 = vpack.c.b16 %v3263, %v3260
  %v4038 = vpack.c.b16 %v3264, %v3261
  %v4039 = vpack.c.b16 %v3268, %v3265
  %v4040 = vpack.c.b16 %v3269, %v3266
  %v4041 = vpack.c.b16 %v3270, %v3267
  %v4042 = vpack.c.b16 %v3274, %v3271
  %v4043 = vpack.c.b16 %v3275, %v3272
  %v4044 = vpack.c.b16 %v3276, %v3273
  %v4045 = vpack.c.b16 %v3280, %v3277
  %v4046 = vpack.c.b16 %v3281, %v3278
  %v4047 = vpack.c.b16 %v3282, %v3279
  %v4048 = vpack.c.b16 %v3286, %v3283
  %v4049 = vpack.c.b16 %v3287, %v3284
  %v4050 = vpack.c.b16 %v3288, %v3285
  %v4051 = vpack.c.b16 %v3292, %v3289
  %v4052 = vpack.c.b16 %v3293, %v3290
  %v4053 = vpack.c.b16 %v3294, %v3291
  %v4054 = vpack.c.b16 %v3298, %v3295
  %v4055 = vpack.c.b16 %v3299, %v3296
  %v4056 = vpack.c.b16 %v3300, %v3297
  %v4057 = vpack.c.b16 %v3304, %v3301
  %v4058 = vpack.c.b16 %v3305, %v3302
  %v4059 = vpack.c.b16 %v3306, %v3303
  %v4060 = vpack.c.b16 %v3310, %v3307
  %v4061 = vpack.c.b16 %v3311, %v3308
  %v4062 = vpack.c.b16 %v3312, %v3309
  %v4063 = vpack.c.b16 %v3316, %v3313
  %v4064 = vpack.c.b16 %v3317, %v3314
  %v4065 = vpack.c.b16 %v3318, %v3315
  %v4066 = vpack.c.b16 %v3322, %v3319
  %v4067 = vpack.c.b16 %v3323, %v3320
  %v4068 = vpack.c.b16 %v3324, %v3321
  %v4069 = vpack.c.b16 %v3328, %v3325
  %v4070 = vpack.c.b16 %v3329, %v3326
  %v4071 = vpack.c.b16 %v3330, %v3327
  %v4072 = vpack.c.b16 %v3334, %v3331
  %v4073 = vpack.c.b16 %v3335, %v3332
  %v4074 = vpack.c.b16 %v3336, %v3333
  %v4075 = vpack.c.b16 %v3340, %v3337
  %v4076 = vpack.c.b16 %v3341, %v3338
  %v4077 = vpack.c.b16 %v3342, %v3339
  %v4078 = vpack.c.b16 %v3346, %v3343
  %v4079 = vpack.c.b16 %v3347, %v3344
  %v4080 = vpack.c.b16 %v3348, %v3345
  %v4081 = vpack.c.b16 %v3352, %v3349
  %v4082 = vpack.c.b16 %v3353, %v3350
  %v4083 = vpack.c.b16 %v3354, %v3351
  %v4084 = vpack.c.b16 %v3358, %v3355
  %v4085 = vpack.c.b16 %v3359, %v3356
  %v4086 = vpack.c.b16 %v3360, %v3357
  %v4087 = vpack.c.b16 %v3364, %v3361
  %v4088 = vpack.c.b16 %v3365, %v3362
  %v4089 = vpack.c.b16 %v3366, %v3363
  %v4090 = vpack.c.b16 %v3370, %v3367
  %v4091 = vpack.c.b16 %v3371, %v3368
  %v4092 = vpack.c.b16 %v3372, %v3369
  %v4093 = vpack.c.b16 %v3376, %v3373
  %v4094 = vpack.c.b16 %v3377, %v3374
  %v4095 = vpack.c.b16 %v3378, %v3375
  %v4096 = vpack.c.b16 %v3382, %v3379
  %v4097 = vpack.c.b16 %v3383, %v3380
  %v4098 = vpack.c.b16 %v3384, %v3381
  %v4099 = vpack.c.b16 %v3388, %v3385
  %v4100 = vpack.c.b16 %v3389, %v3386
  %v4101 = vpack.c.b16 %v3390, %v3387
  %v4102 = vpack.c.b16 %v3394, %v3391
  %v4103 = vpack.c.b16 %v3395, %v3392
  %v4104 = vpack.c.b16 %v3396, %v3393
  %v4105 = vpack.c.b16 %v3400, %v3397
  %v4106 = vpack.c.b16 %v3401, %v3398
  %v4107 = vpack.c.b16 %v3402, %v3399
  %v4108 = vpack.c.b16 %v3406, %v3403
  %v4109 = vpack.c.b16 %v3407, %v3404
  %v4110 = vpack.c.b16 %v3408, %v3405
  %v4111 = vpack.c.b16 %v3412, %v3409
  %v4112 = vpack.c.b16 %v3413, %v3410
  %v4113 = vpack.c.b16 %v3414, %v3411
  %v4114 = vpack.c.b16 %v3418, %v3415
  %v4115 = vpack.c.b16 %v3419, %v3416
  %v4116 = vpack.c.b16 %v3420, %v3417
  %v4117 = vpack.c.b16 %v3424, %v3421
  %v4118 = vpack.c.b16 %v3425, %v3422
  %v4119 = vpack.c.b16 %v3426, %v3423
  %v4120 = vpack.c.b16 %v3430, %v3427
  %v4121 = vpack.c.b16 %v3431, %v3428
  %v4122 = vpack.c.b16 %v3432, %v3429
  %v4123 = vpack.c.b16 %v3436, %v3433
  %v4124 = vpack.c.b16 %v3437, %v3434
  %v4125 = vpack.c.b16 %v3438, %v3435
  %v4126 = vpack.c.b16 %v3442, %v3439
  %v4127 = vpack.c.b16 %v3443, %v3440
  %v4128 = vpack.c.b16 %v3444, %v3441
  %v4129 = vpack.c.b16 %v3448, %v3445
  %v4130 = vpack.c.b16 %v3449, %v3446
  %v4131 = vpack.c.b16 %v3450, %v3447
  %v4132 = vpack.c.b16 %v3454, %v3451
  %v4133 = vpack.c.b16 %v3455, %v3452
  %v4134 = vpack.c.b16 %v3456, %v3453
  %v4135 = vpack.c.b16 %v3460, %v3457
  %v4136 = vpack.c.b16 %v3461, %v3458
  %v4137 = vpack.c.b16 %v3462, %v3459
  %v4138 = vpack.c.b16 %v3466, %v3463
  %v4139 = vpack.c.b16 %v3467, %v3464
  %v4140 = vpack.c.b16 %v3468, %v3465
  %v4141 = vpack.c.b16 %v3472, %v3469
  %v4142 = vpack.c.b16 %v3473, %v3470
  %v4143 = vpack.c.b16 %v3474, %v3471
  %v4144 = vpack.c.b16 %v3478, %v3475
  %v4145 = vpack.c.b16 %v3479, %v3476
  %v4146 = vpack.c.b16 %v3480, %v3477
  %v4147 = vpack.c.b16 %v3484, %v3481
  %v4148 = vpack.c.b16 %v3485, %v3482
  %v4149 = vpack.c.b16 %v3486, %v3483
  %v4150 = vpack.c.b16 %v3490, %v3487
  %v4151 = vpack.c.b16 %v3491, %v3488
  %v4152 = vpack.c.b16 %v3492, %v3489
  %v4153 = vpack.c.b16 %v3496, %v3493
  %v4154 = vpack.c.b16 %v3497, %v3494
  %v4155 = vpack.c.b16 %v3498, %v3495
  %v4156 = vpack.c.b16 %v3502, %v3499
  %v4157 = vpack.c.b16 %v3503, %v3500
  %v4158 = vpack.c.b16 %v3504, %v3501
  %v4159 = vpack.c.b16 %v3508, %v3505
  %v4160 = vpack.c.b16 %v3509, %v3506
  %v4161 = vpack.c.b16 %v3510, %v3507
  %v4162 = vpack.c.b16 %v3514, %v3511
  %v4163 = vpack.c.b16 %v3515, %v3512
  %v4164 = vpack.c.b16 %v3516, %v3513
  %v4165 = vpack.c.b16 %v3520, %v3517
  %v4166 = vpack.c.b16 %v3521, %v3518
  %v4167 = vpack.c.b16 %v3522, %v3519
  %v4168 = vpack.c.b16 %v3526, %v3523
  %v4169 = vpack.c.b16 %v3527, %v3524
  %v4170 = vpack.c.b16 %v3528, %v3525
  %v4171 = vpack.c.b16 %v3532, %v3529
  %v4172 = vpack.c.b16 %v3533, %v3530
  %v4173 = vpack.c.b16 %v3534, %v3531
  %v4174 = vpack.c.b16 %v3538, %v3535
  %v4175 = vpack.c.b16 %v3539, %v3536
  %v4176 = vpack.c.b16 %v3540, %v3537
  %v4177 = vpack.c.b16 %v3544, %v3541
  %v4178 = vpack.c.b16 %v3545, %v3542
  %v4179 = vpack.c.b16 %v3546, %v3543
  %v4180 = vpack.c.b16 %v3550, %v3547
  %v4181 = vpack.c.b16 %v3551, %v3548
  %v4182 = vpack.c.b16 %v3552, %v3549
  %v4183 = vpack.c.b16 %v3556, %v3553
  %v4184 = vpack.c.b16 %v3557, %v3554
  %v4185 = vpack.c.b16 %v3558, %v3555
  %v4186 = vpack.c.b16 %v3562, %v3559
  %v4187 = vpack.c.b16 %v3563, %v3560
  %v4188 = vpack.c.b16 %v3564, %v3561
  %v4189 = vpack.c.b16 %v3568, %v3565
  %v4190 = vpack.c.b16 %v3569, %v3566
  %v4191 = vpack.c.b16 %v3570, %v3567
  %v4192 = vpack.c.b16 %v3574, %v3571
  %v4193 = vpack.c.b16 %v3575, %v3572
  %v4194 = vpack.c.b16 %v3576, %v3573
  %v4195 = vpack.c.b16 %v3580, %v3577
  %v4196 = vpack.c.b16 %v3581, %v3578
  %v4197 = vpack.c.b16 %v3582, %v3579
  %v4198 = vpack.c.b16 %v3586, %v3583
  %v4199 = vpack.c.b16 %v3587, %v3584
  %v4200 = vpack.c.b16 %v3588, %v3585
  %v4201 = vpack.c.b16 %v3592, %v3589
  %v4202 = vpack.c.b16 %v3593, %v3590
  %v4203 = vpack.c.b16 %v3594, %v3591
  %v4204 = vpack.c.b16 %v3598, %v3595
  %v4205 = vpack.c.b16 %v3599, %v3596
  %v4206 = vpack.c.b16 %v3600, %v3597
  %v4207 = vpack.c.b16 %v3604, %v3601
  %v4208 = vpack.c.b16 %v3605, %v3602
  %v4209 = vpack.c.b16 %v3606, %v3603
  %v4210 = vpack.c.b16 %v3610, %v3607
  %v4211 = vpack.c.b16 %v3611, %v3608
  %v4212 = vpack.c.b16 %v3612, %v3609
  %v4213 = vpack.c.b16 %v3616, %v3613
  %v4214 = vpack.c.b16 %v3617, %v3614
  %v4215 = vpack.c.b16 %v3618, %v3615
  %v4216 = vpack.c.b16 %v3622, %v3619
  %v4217 = vpack.c.b16 %v3623, %v3620
  %v4218 = vpack.c.b16 %v3624, %v3621
  %v4219 = vpack.c.b16 %v3628, %v3625
  %v4220 = vpack.c.b16 %v3629, %v3626
  %v4221 = vpack.c.b16 %v3630, %v3627
  %v4222 = vpack.c.b16 %v3634, %v3631
  %v4223 = vpack.c.b16 %v3635, %v3632
  %v4224 = vpack.c.b16 %v3636, %v3633
  %v4225 = vpack.c.b16 %v3640, %v3637
  %v4226 = vpack.c.b16 %v3641, %v3638
  %v4227 = vpack.c.b16 %v3642, %v3639
  %v4228 = vpack.c.b16 %v3646, %v3643
  %v4229 = vpack.c.b16 %v3647, %v3644
  %v4230 = vpack.c.b16 %v3648, %v3645
  %v4231 = vpack.c.b16 %v3652, %v3649
  %v4232 = vpack.c.b16 %v3653, %v3650
  %v4233 = vpack.c.b16 %v3654, %v3651
  %v4234 = vpack.c.b16 %v3658, %v3655
  %v4235 = vpack.c.b16 %v3659, %v3656
  %v4236 = vpack.c.b16 %v3660, %v3657
  %v4237 = vpack.c.b16 %v3664, %v3661
  %v4238 = vpack.c.b16 %v3665, %v3662
  %v4239 = vpack.c.b16 %v3666, %v3663
  %v4240 = vpack.c.b16 %v3670, %v3667
  %v4241 = vpack.c.b16 %v3671, %v3668
  %v4242 = vpack.c.b16 %v3672, %v3669
  %v4243 = vpack.c.b16 %v3676, %v3673
  %v4244 = vpack.c.b16 %v3677, %v3674
  %v4245 = vpack.c.b16 %v3678, %v3675
  %v4246 = vpack.c.b16 %v3682, %v3679
  %v4247 = vpack.c.b16 %v3683, %v3680
  %v4248 = vpack.c.b16 %v3684, %v3681
  %v4249 = vpack.c.b16 %v3688, %v3685
  %v4250 = vpack.c.b16 %v3689, %v3686
  %v4251 = vpack.c.b16 %v3690, %v3687
  %v4252 = vpack.c.b16 %v3694, %v3691
  %v4253 = vpack.c.b16 %v3695, %v3692
  %v4254 = vpack.c.b16 %v3696, %v3693
  %v4255 = vpack.c.b16 %v3700, %v3697
  %v4256 = vpack.c.b16 %v3701, %v3698
  %v4257 = vpack.c.b16 %v3702, %v3699
  %v4258 = vpack.c.b16 %v3706, %v3703
  %v4259 = vpack.c.b16 %v3707, %v3704
  %v4260 = vpack.c.b16 %v3708, %v3705
  %v4261 = vpack.c.b16 %v3712, %v3709
  %v4262 = vpack.c.b16 %v3713, %v3710
  %v4263 = vpack.c.b16 %v3714, %v3711
  %v4264 = vpack.c.b16 %v3718, %v3715
  %v4265 = vpack.c.b16 %v3719, %v3716
  %v4266 = vpack.c.b16 %v3720, %v3717
  %v4267 = vpack.c.b16 %v3724, %v3721
  %v4268 = vpack.c.b16 %v3725, %v3722
  %v4269 = vpack.c.b16 %v3726, %v3723
  %v4270 = vpack.c.b16 %v3730, %v3727
  %v4271 = vpack.c.b16 %v3731, %v3728
  %v4272 = vpack.c.b16 %v3732, %v3729
  %v4273 = vpack.c.b16 %v3736, %v3733
  %v4274 = vpack.c.b16 %v3737, %v3734
  %v4275 = vpack.c.b16 %v3738, %v3735
  %v4276 = vpack.c.b16 %v3742, %v3739
  %v4277 = vpack.c.b16 %v3743, %v3740
  %v4278 = vpack.c.b16 %v3744, %v3741
  %v4279 = vpack.c.b16 %v3748, %v3745
  %v4280 = vpack.c.b16 %v3749, %v3746
  %v4281 = vpack.c.b16 %v3750, %v3747
  %v4282 = vpack.c.b16 %v3754, %v3751
  %v4283 = vpack.c.b16 %v3755, %v3752
  %v4284 = vpack.c.b16 %v3756, %v3753
  %v4285 = vpack.c.b16 %v3760, %v3757
  %v4286 = vpack.c.b16 %v3761, %v3758
  %v4287 = vpack.c.b16 %v3762, %v3759
  %v4288 = vpack.c.b16 %v3766, %v3763
  %v4289 = vpack.c.b16 %v3767, %v3764
  %v4290 = vpack.c.b16 %v3768, %v3765
  %v4291 = vpack.c.b16 %v3772, %v3769
  %v4292 = vpack.c.b16 %v3773, %v3770
  %v4293 = vpack.c.b16 %v3774, %v3771
  %v4294 = vpack.c.b16 %v3778, %v3775
  %v4295 = vpack.c.b16 %v3779, %v3776
  %v4296 = vpack.c.b16 %v3780, %v3777
  %v4297 = vpack.c.b16 %v3784, %v3781
  %v4298 = vpack.c.b16 %v3785, %v3782
  %v4299 = vpack.c.b16 %v3786, %v3783
  %v4300 = vpack.c.b16 %v3790, %v3787
  %v4301 = vpack.c.b16 %v3791, %v3788
  %v4302 = vpack.c.b16 %v3792, %v3789
  %v4303 = vpack.c.b16 %v3796, %v3793
  %v4304 = vpack.c.b16 %v3797, %v3794
  %v4305 = vpack.c.b16 %v3798, %v3795
  %v4306 = vpack.c.b16 %v3802, %v3799
  %v4307 = vpack.c.b16 %v3803, %v3800
  %v4308 = vpack.c.b16 %v3804, %v3801
  %v4309 = vpack.c.b16 %v3808, %v3805
  %v4310 = vpack.c.b16 %v3809, %v3806
  %v4311 = vpack.c.b16 %v3810, %v3807
  %v4312 = vpack.c.b16 %v3814, %v3811
  %v4313 = vpack.c.b16 %v3815, %v3812
  %v4314 = vpack.c.b16 %v3816, %v3813
  %v4315 = vpack.c.b16 %v3820, %v3817
  %v4316 = vpack.c.b16 %v3821, %v3818
  %v4317 = vpack.c.b16 %v3822, %v3819
  %v4318 = vpack.c.b16 %v3826, %v3823
  %v4319 = vpack.c.b16 %v3827, %v3824
  %v4320 = vpack.c.b16 %v3828, %v3825
  %v4321 = vpack.c.b16 %v3832, %v3829
  %v4322 = vpack.c.b16 %v3833, %v3830
  %v4323 = vpack.c.b16 %v3834, %v3831
  %v4324 = vpack.c.b16 %v3838, %v3835
  %v4325 = vpack.c.b16 %v3839, %v3836
  %v4326 = vpack.c.b16 %v3840, %v3837
  %v4327 = vpack.c.b16 %v3844, %v3841
  %v4328 = vpack.c.b16 %v3845, %v3842
  %v4329 = vpack.c.b16 %v3846, %v3843
  %v4330 = vpack.c.b16 %v3850, %v3847
  %v4331 = vpack.c.b16 %v3851, %v3848
  %v4332 = vpack.c.b16 %v3852, %v3849
  %v4333 = vpack.c.b16 %v3856, %v3853
  %v4334 = vpack.c.b16 %v3857, %v3854
  %v4335 = vpack.c.b16 %v3858, %v3855
  %v4336 = vpack.c.b16 %v3862, %v3859
  %v4337 = vpack.c.b16 %v3863, %v3860
  %v4338 = vpack.c.b16 %v3864, %v3861
  %v4339 = vpack.c.b16 %v3868, %v3865
  %v4340 = vpack.c.b16 %v3869, %v3866
  %v4341 = vpack.c.b16 %v3870, %v3867
  %v4342 = vpack.c.b16 %v3874, %v3871
  %v4343 = vpack.c.b16 %v3875, %v3872
  %v4344 = vpack.c.b16 %v3876, %v3873
  %v4814 = vsel %vm131, %v1597, 0
  %v4816 = vsel %vm131, %v1624, 0
  %4818 = vmatprep.subr.bf16.mxu0 %v3878
  %4819 = vmatpush1.bf16.msra.mxu0 %v3877
  %4820 = vmatprep.subr.bf16.mxu0 %v3881
  %4821 = vmatpush1.bf16.msra.mxu0 %v3880
  %4822 = vmatprep.subr.bf16.mxu0 %v3884
  %4823 = vmatpush1.bf16.msra.mxu0 %v3883
  %4824 = vmatprep.subr.bf16.mxu0 %v3887
  %4825 = vmatpush1.bf16.msra.mxu0 %v3886
  %4826 = vmatprep.subr.bf16.mxu0 %v3890
  %4827 = vmatpush1.bf16.msra.mxu0 %v3889
  %4828 = vmatprep.subr.bf16.mxu0 %v3893
  %4829 = vmatpush1.bf16.msra.mxu0 %v3892
  %4830 = vmatprep.subr.bf16.mxu0 %v3896
  %4831 = vmatpush1.bf16.msra.mxu0 %v3895
  %4832 = vmatprep.subr.bf16.mxu0 %v3899
  %4833 = vmatpush1.bf16.msra.mxu0 %v3898
  %4834 = vmatprep.subr.bf16.mxu0 %v3902
  %4835 = vmatpush1.bf16.msra.mxu0 %v3901
  %4836 = vmatprep.subr.bf16.mxu0 %v3905
  %4837 = vmatpush1.bf16.msra.mxu0 %v3904
  %4838 = vmatprep.subr.bf16.mxu0 %v3908
  %4839 = vmatpush1.bf16.msra.mxu0 %v3907
  %4840 = vmatprep.subr.bf16.mxu0 %v3911
  %4841 = vmatpush1.bf16.msra.mxu0 %v3910
  %4842 = vmatprep.subr.bf16.mxu0 %v3914
  %4843 = vmatpush1.bf16.msra.mxu0 %v3913
  %4844 = vmatprep.subr.bf16.mxu0 %v3917
  %4845 = vmatpush1.bf16.msra.mxu0 %v3916
  %4846 = vmatprep.subr.bf16.mxu0 %v3920
  %4847 = vmatpush1.bf16.msra.mxu0 %v3919
  %4848 = vmatprep.subr.bf16.mxu0 %v3923
  %4849 = vmatpush1.bf16.msra.mxu0 %v3922
  %4850 = vmatprep.mubr.bf16.mxu0 %v1514
  %4851 = vmatmul.mubr.bf16.gmra.mrb[0].mxu0 %v1513
  %v4852 = vpop.f32.mrb[0].mxu0
  %v4853 = vadd.f32 0.0, %v4852
  %v4854 = vpop.f32.mrb[0].mxu0
  %v4855 = vadd.f32 0.0, %v4854
  %v4856 = vpop.f32.mrb[0].mxu0
  %v4857 = vadd.f32 0.0, %v4856
  %v4858 = vpop.f32.mrb[0].mxu0
  %v4859 = vadd.f32 0.0, %v4858
  %4860 = vmatprep.mubr.bf16.mxu0 %v1521
  %4861 = vmatmul.mubr.bf16.gmra.mrb[0].mxu0 %v1520
  %v4862 = vpop.f32.mrb[0].mxu0
  %v4863 = vadd.f32 0.0, %v4862
  %v4864 = vpop.f32.mrb[0].mxu0
  %v4865 = vadd.f32 0.0, %v4864
  %v4866 = vpop.f32.mrb[0].mxu0
  %v4867 = vadd.f32 0.0, %v4866
  %v4868 = vpop.f32.mrb[0].mxu0
  %v4869 = vadd.f32 0.0, %v4868
  %4870 = vdwg.mxu0
  %4871 = vmatprep.subr.bf16.mxu0 %v3926
  %4872 = vmatpush1.bf16.msra.mxu0 %v3925
  %4873 = vmatprep.subr.bf16.mxu0 %v3929
  %4874 = vmatpush1.bf16.msra.mxu0 %v3928
  %4875 = vmatprep.subr.bf16.mxu0 %v3932
  %4876 = vmatpush1.bf16.msra.mxu0 %v3931
  %4877 = vmatprep.subr.bf16.mxu0 %v3935
  %4878 = vmatpush1.bf16.msra.mxu0 %v3934
  %4879 = vmatprep.subr.bf16.mxu0 %v3938
  %4880 = vmatpush1.bf16.msra.mxu0 %v3937
  %4881 = vmatprep.subr.bf16.mxu0 %v3941
  %4882 = vmatpush1.bf16.msra.mxu0 %v3940
  %4883 = vmatprep.subr.bf16.mxu0 %v3944
  %4884 = vmatpush1.bf16.msra.mxu0 %v3943
  %4885 = vmatprep.subr.bf16.mxu0 %v3947
  %4886 = vmatpush1.bf16.msra.mxu0 %v3946
  %4887 = vmatprep.subr.bf16.mxu0 %v3950
  %4888 = vmatpush1.bf16.msra.mxu0 %v3949
  %4889 = vmatprep.subr.bf16.mxu0 %v3953
  %4890 = vmatpush1.bf16.msra.mxu0 %v3952
  %4891 = vmatprep.subr.bf16.mxu0 %v3956
  %4892 = vmatpush1.bf16.msra.mxu0 %v3955
  %4893 = vmatprep.subr.bf16.mxu0 %v3959
  %4894 = vmatpush1.bf16.msra.mxu0 %v3958
  %4895 = vmatprep.subr.bf16.mxu0 %v3962
  %4896 = vmatpush1.bf16.msra.mxu0 %v3961
  %4897 = vmatprep.subr.bf16.mxu0 %v3965
  %4898 = vmatpush1.bf16.msra.mxu0 %v3964
  %4899 = vmatprep.subr.bf16.mxu0 %v3968
  %4900 = vmatpush1.bf16.msra.mxu0 %v3967
  %4901 = vmatprep.subr.bf16.mxu0 %v3971
  %4902 = vmatpush1.bf16.msra.mxu0 %v3970
  %4903 = vmatprep.mubr.bf16.mxu0 %v1516
  %4904 = vmatmul.mubr.bf16.gmra.mrb[0].mxu0 %v1515
  %v4905 = vpop.f32.mrb[0].mxu0
  %v4906 = vadd.f32 %v4853, %v4905
  %v4907 = vpop.f32.mrb[0].mxu0
  %v4908 = vadd.f32 %v4855, %v4907
  %v4909 = vpop.f32.mrb[0].mxu0
  %v4910 = vadd.f32 %v4857, %v4909
  %v4911 = vpop.f32.mrb[0].mxu0
  %v4912 = vadd.f32 %v4859, %v4911
  %4913 = vmatprep.mubr.bf16.mxu0 %v1523
  %4914 = vmatmul.mubr.bf16.gmra.mrb[0].mxu0 %v1522
  %v4915 = vpop.f32.mrb[0].mxu0
  %v4916 = vadd.f32 %v4863, %v4915
  %v4917 = vpop.f32.mrb[0].mxu0
  %v4918 = vadd.f32 %v4865, %v4917
  %v4919 = vpop.f32.mrb[0].mxu0
  %v4920 = vadd.f32 %v4867, %v4919
  %v4921 = vpop.f32.mrb[0].mxu0
  %v4922 = vadd.f32 %v4869, %v4921
  %4923 = vdwg.mxu0
  %4924 = vmatprep.subr.bf16.mxu0 %v3974
  %4925 = vmatpush1.bf16.msra.mxu0 %v3973
  %4926 = vmatprep.subr.bf16.mxu0 %v3977
  %4927 = vmatpush1.bf16.msra.mxu0 %v3976
  %4928 = vmatprep.subr.bf16.mxu0 %v3980
  %4929 = vmatpush1.bf16.msra.mxu0 %v3979
  %4930 = vmatprep.subr.bf16.mxu0 %v3983
  %4931 = vmatpush1.bf16.msra.mxu0 %v3982
  %4932 = vmatprep.subr.bf16.mxu0 %v3986
  %4933 = vmatpush1.bf16.msra.mxu0 %v3985
  %4934 = vmatprep.subr.bf16.mxu0 %v3989
  %4935 = vmatpush1.bf16.msra.mxu0 %v3988
  %4936 = vmatprep.subr.bf16.mxu0 %v3992
  %4937 = vmatpush1.bf16.msra.mxu0 %v3991
  %4938 = vmatprep.subr.bf16.mxu0 %v3995
  %4939 = vmatpush1.bf16.msra.mxu0 %v3994
  %4940 = vmatprep.subr.bf16.mxu0 %v3998
  %4941 = vmatpush1.bf16.msra.mxu0 %v3997
  %4942 = vmatprep.subr.bf16.mxu0 %v4001
  %4943 = vmatpush1.bf16.msra.mxu0 %v4000
  %4944 = vmatprep.subr.bf16.mxu0 %v4004
  %4945 = vmatpush1.bf16.msra.mxu0 %v4003
  %4946 = vmatprep.subr.bf16.mxu0 %v4007
  %4947 = vmatpush1.bf16.msra.mxu0 %v4006
  %4948 = vmatprep.subr.bf16.mxu0 %v4010
  %4949 = vmatpush1.bf16.msra.mxu0 %v4009
  %4950 = vmatprep.subr.bf16.mxu0 %v4013
  %4951 = vmatpush1.bf16.msra.mxu0 %v4012
  %4952 = vmatprep.subr.bf16.mxu0 %v4016
  %4953 = vmatpush1.bf16.msra.mxu0 %v4015
  %4954 = vmatprep.subr.bf16.mxu0 %v4019
  %4955 = vmatpush1.bf16.msra.mxu0 %v4018
  %4956 = vmatprep.mubr.bf16.mxu0 %v1518
  %4957 = vmatmul.mubr.bf16.gmra.mrb[0].mxu0 %v1517
  %v4958 = vpop.f32.mrb[0].mxu0
  %v4959 = vadd.f32 %v4906, %v4958
  %v4960 = vpop.f32.mrb[0].mxu0
  %v4961 = vadd.f32 %v4908, %v4960
  %v4962 = vpop.f32.mrb[0].mxu0
  %v4963 = vadd.f32 %v4910, %v4962
  %v4964 = vpop.f32.mrb[0].mxu0
  %v4965 = vadd.f32 %v4912, %v4964
  %4966 = vmatprep.mubr.bf16.mxu0 %v1525
  %4967 = vmatmul.mubr.bf16.gmra.mrb[0].mxu0 %v1524
  %v4968 = vpop.f32.mrb[0].mxu0
  %v4969 = vadd.f32 %v4916, %v4968
  %v4970 = vpop.f32.mrb[0].mxu0
  %v4971 = vadd.f32 %v4918, %v4970
  %v4972 = vpop.f32.mrb[0].mxu0
  %v4973 = vadd.f32 %v4920, %v4972
  %v4974 = vpop.f32.mrb[0].mxu0
  %v4975 = vadd.f32 %v4922, %v4974
  %4976 = vdwg.mxu0
  %4977 = vmatprep.subr.bf16.mxu0 %v4022
  %4978 = vmatpush1.bf16.msra.mxu0 %v4021
  %4979 = vmatprep.subr.bf16.mxu0 %v4025
  %4980 = vmatpush1.bf16.msra.mxu0 %v4024
  %4981 = vmatprep.subr.bf16.mxu0 %v4028
  %4982 = vmatpush1.bf16.msra.mxu0 %v4027
  %4983 = vmatprep.subr.bf16.mxu0 %v4031
  %4984 = vmatpush1.bf16.msra.mxu0 %v4030
  %4985 = vmatprep.subr.bf16.mxu0 %v4034
  %4986 = vmatpush1.bf16.msra.mxu0 %v4033
  %4987 = vmatprep.subr.bf16.mxu0 %v4037
  %4988 = vmatpush1.bf16.msra.mxu0 %v4036
  %4989 = vmatprep.subr.bf16.mxu0 %v4040
  %4990 = vmatpush1.bf16.msra.mxu0 %v4039
  %4991 = vmatprep.subr.bf16.mxu0 %v4043
  %4992 = vmatpush1.bf16.msra.mxu0 %v4042
  %4993 = vmatprep.subr.bf16.mxu0 %v4046
  %4994 = vmatpush1.bf16.msra.mxu0 %v4045
  %4995 = vmatprep.subr.bf16.mxu0 %v4049
  %4996 = vmatpush1.bf16.msra.mxu0 %v4048
  %4997 = vmatprep.subr.bf16.mxu0 %v4052
  %4998 = vmatpush1.bf16.msra.mxu0 %v4051
  %4999 = vmatprep.subr.bf16.mxu0 %v4055
  %5000 = vmatpush1.bf16.msra.mxu0 %v4054
  %5001 = vmatprep.subr.bf16.mxu0 %v4058
  %5002 = vmatpush1.bf16.msra.mxu0 %v4057
  %5003 = vmatprep.subr.bf16.mxu0 %v4061
  %5004 = vmatpush1.bf16.msra.mxu0 %v4060
  %5005 = vmatprep.subr.bf16.mxu0 %v4064
  %5006 = vmatpush1.bf16.msra.mxu0 %v4063
  %5007 = vmatprep.subr.bf16.mxu0 %v4067
  %5008 = vmatpush1.bf16.msra.mxu0 %v4066
  %5009 = vmatprep.mubr.bf16.mxu0 %v1661
  %5010 = vmatmul.mubr.bf16.gmra.mrb[0].mxu0 %v1687
  %v5011 = vpop.f32.mrb[0].mxu0
  %v5012 = vadd.f32 %v4959, %v5011
  %v5013 = vpop.f32.mrb[0].mxu0
  %v5014 = vadd.f32 %v4961, %v5013
  %v5015 = vpop.f32.mrb[0].mxu0
  %v5016 = vadd.f32 %v4963, %v5015
  %v5017 = vpop.f32.mrb[0].mxu0
  %v5018 = vadd.f32 %v4965, %v5017
  %5019 = vmatprep.mubr.bf16.mxu0 %v1667
  %5020 = vmatmul.mubr.bf16.gmra.mrb[0].mxu0 %v1691
  %v5021 = vpop.f32.mrb[0].mxu0
  %v5022 = vadd.f32 %v4969, %v5021
  %v5023 = vpop.f32.mrb[0].mxu0
  %v5024 = vadd.f32 %v4971, %v5023
  %v5025 = vpop.f32.mrb[0].mxu0
  %v5026 = vadd.f32 %v4973, %v5025
  %v5027 = vpop.f32.mrb[0].mxu0
  %v5028 = vadd.f32 %v4975, %v5027
  %5029 = vdwg.mxu0
  %5030 = vmatprep.subr.bf16.mxu0 %v4070
  %5031 = vmatpush1.bf16.msra.mxu0 %v4069
  %5032 = vmatprep.subr.bf16.mxu0 %v4073
  %5033 = vmatpush1.bf16.msra.mxu0 %v4072
  %5034 = vmatprep.subr.bf16.mxu0 %v4076
  %5035 = vmatpush1.bf16.msra.mxu0 %v4075
  %5036 = vmatprep.subr.bf16.mxu0 %v4079
  %5037 = vmatpush1.bf16.msra.mxu0 %v4078
  %5038 = vmatprep.subr.bf16.mxu0 %v4082
  %5039 = vmatpush1.bf16.msra.mxu0 %v4081
  %5040 = vmatprep.subr.bf16.mxu0 %v4085
  %5041 = vmatpush1.bf16.msra.mxu0 %v4084
  %5042 = vmatprep.subr.bf16.mxu0 %v4088
  %5043 = vmatpush1.bf16.msra.mxu0 %v4087
  %5044 = vmatprep.subr.bf16.mxu0 %v4091
  %5045 = vmatpush1.bf16.msra.mxu0 %v4090
  %5046 = vmatprep.subr.bf16.mxu0 %v4094
  %5047 = vmatpush1.bf16.msra.mxu0 %v4093
  %5048 = vmatprep.subr.bf16.mxu0 %v4097
  %5049 = vmatpush1.bf16.msra.mxu0 %v4096
  %5050 = vmatprep.subr.bf16.mxu0 %v4100
  %5051 = vmatpush1.bf16.msra.mxu0 %v4099
  %5052 = vmatprep.subr.bf16.mxu0 %v4103
  %5053 = vmatpush1.bf16.msra.mxu0 %v4102
  %5054 = vmatprep.subr.bf16.mxu0 %v4106
  %5055 = vmatpush1.bf16.msra.mxu0 %v4105
  %5056 = vmatprep.subr.bf16.mxu0 %v4109
  %5057 = vmatpush1.bf16.msra.mxu0 %v4108
  %5058 = vmatprep.subr.bf16.mxu0 %v4112
  %5059 = vmatpush1.bf16.msra.mxu0 %v4111
  %5060 = vmatprep.subr.bf16.mxu0 %v4115
  %5061 = vmatpush1.bf16.msra.mxu0 %v4114
  %5062 = vmatprep.mubr.bf16.mxu0 %v1663
  %5063 = vmatmul.mubr.bf16.gmra.mrb[0].mxu0 %v1662
  %v5064 = vpop.f32.mrb[0].mxu0
  %v5065 = vadd.f32 %v5012, %v5064
  %v5066 = vpop.f32.mrb[0].mxu0
  %v5067 = vadd.f32 %v5014, %v5066
  %v5068 = vpop.f32.mrb[0].mxu0
  %v5069 = vadd.f32 %v5016, %v5068
  %v5070 = vpop.f32.mrb[0].mxu0
  %v5071 = vadd.f32 %v5018, %v5070
  %5072 = vmatprep.mubr.bf16.mxu0 %v1669
  %5073 = vmatmul.mubr.bf16.gmra.mrb[0].mxu0 %v1668
  %v5074 = vpop.f32.mrb[0].mxu0
  %v5075 = vadd.f32 %v5022, %v5074
  %v5076 = vpop.f32.mrb[0].mxu0
  %v5077 = vadd.f32 %v5024, %v5076
  %v5078 = vpop.f32.mrb[0].mxu0
  %v5079 = vadd.f32 %v5026, %v5078
  %v5080 = vpop.f32.mrb[0].mxu0
  %v5081 = vadd.f32 %v5028, %v5080
  %5082 = vdwg.mxu0
  %5083 = vmatprep.subr.bf16.mxu0 %v4118
  %5084 = vmatpush1.bf16.msra.mxu0 %v4117
  %5085 = vmatprep.subr.bf16.mxu0 %v4121
  %5086 = vmatpush1.bf16.msra.mxu0 %v4120
  %5087 = vmatprep.subr.bf16.mxu0 %v4124
  %5088 = vmatpush1.bf16.msra.mxu0 %v4123
  %5089 = vmatprep.subr.bf16.mxu0 %v4127
  %5090 = vmatpush1.bf16.msra.mxu0 %v4126
  %5091 = vmatprep.subr.bf16.mxu0 %v4130
  %5092 = vmatpush1.bf16.msra.mxu0 %v4129
  %5093 = vmatprep.subr.bf16.mxu0 %v4133
  %5094 = vmatpush1.bf16.msra.mxu0 %v4132
  %5095 = vmatprep.subr.bf16.mxu0 %v4136
  %5096 = vmatpush1.bf16.msra.mxu0 %v4135
  %5097 = vmatprep.subr.bf16.mxu0 %v4139
  %5098 = vmatpush1.bf16.msra.mxu0 %v4138
  %5099 = vmatprep.subr.bf16.mxu0 %v4142
  %5100 = vmatpush1.bf16.msra.mxu0 %v4141
  %5101 = vmatprep.subr.bf16.mxu0 %v4145
  %5102 = vmatpush1.bf16.msra.mxu0 %v4144
  %5103 = vmatprep.subr.bf16.mxu0 %v4148
  %5104 = vmatpush1.bf16.msra.mxu0 %v4147
  %5105 = vmatprep.subr.bf16.mxu0 %v4151
  %5106 = vmatpush1.bf16.msra.mxu0 %v4150
  %5107 = vmatprep.subr.bf16.mxu0 %v4154
  %5108 = vmatpush1.bf16.msra.mxu0 %v4153
  %5109 = vmatprep.subr.bf16.mxu0 %v4157
  %5110 = vmatpush1.bf16.msra.mxu0 %v4156
  %5111 = vmatprep.subr.bf16.mxu0 %v4160
  %5112 = vmatpush1.bf16.msra.mxu0 %v4159
  %5113 = vmatprep.subr.bf16.mxu0 %v4163
  %5114 = vmatpush1.bf16.msra.mxu0 %v4162
  %5115 = vmatprep.mubr.bf16.mxu0 %v1665
  %5116 = vmatmul.mubr.bf16.gmra.mrb[0].mxu0 %v1664
  %v5117 = vpop.f32.mrb[0].mxu0
  %v5118 = vadd.f32 %v5065, %v5117
  %v5119 = vpop.f32.mrb[0].mxu0
  %v5120 = vadd.f32 %v5067, %v5119
  %v5121 = vpop.f32.mrb[0].mxu0
  %v5122 = vadd.f32 %v5069, %v5121
  %v5123 = vpop.f32.mrb[0].mxu0
  %v5124 = vadd.f32 %v5071, %v5123
  %5125 = vmatprep.mubr.bf16.mxu0 %v1671
  %5126 = vmatmul.mubr.bf16.gmra.mrb[0].mxu0 %v1670
  %v5127 = vpop.f32.mrb[0].mxu0
  %v5128 = vadd.f32 %v5075, %v5127
  %v5129 = vpop.f32.mrb[0].mxu0
  %v5130 = vadd.f32 %v5077, %v5129
  %v5131 = vpop.f32.mrb[0].mxu0
  %v5132 = vadd.f32 %v5079, %v5131
  %v5133 = vpop.f32.mrb[0].mxu0
  %v5134 = vadd.f32 %v5081, %v5133
  %5135 = vdwg.mxu0
  %5136 = vmatprep.subr.bf16.mxu0 %v4166
  %5137 = vmatpush1.bf16.msra.mxu0 %v4165
  %5138 = vmatprep.subr.bf16.mxu0 %v4169
  %5139 = vmatpush1.bf16.msra.mxu0 %v4168
  %5140 = vmatprep.subr.bf16.mxu0 %v4172
  %5141 = vmatpush1.bf16.msra.mxu0 %v4171
  %5142 = vmatprep.subr.bf16.mxu0 %v4175
  %5143 = vmatpush1.bf16.msra.mxu0 %v4174
  %5144 = vmatprep.subr.bf16.mxu0 %v4178
  %5145 = vmatpush1.bf16.msra.mxu0 %v4177
  %5146 = vmatprep.subr.bf16.mxu0 %v4181
  %5147 = vmatpush1.bf16.msra.mxu0 %v4180
  %5148 = vmatprep.subr.bf16.mxu0 %v4184
  %5149 = vmatpush1.bf16.msra.mxu0 %v4183
  %5150 = vmatprep.subr.bf16.mxu0 %v4187
  %5151 = vmatpush1.bf16.msra.mxu0 %v4186
  %5152 = vmatprep.subr.bf16.mxu0 %v4190
  %5153 = vmatpush1.bf16.msra.mxu0 %v4189
  %5154 = vmatprep.subr.bf16.mxu0 %v4193
  %5155 = vmatpush1.bf16.msra.mxu0 %v4192
  %5156 = vmatprep.subr.bf16.mxu0 %v4196
  %5157 = vmatpush1.bf16.msra.mxu0 %v4195
  %5158 = vmatprep.subr.bf16.mxu0 %v4199
  %5159 = vmatpush1.bf16.msra.mxu0 %v4198
  %5160 = vmatprep.subr.bf16.mxu0 %v4202
  %5161 = vmatpush1.bf16.msra.mxu0 %v4201
  %5162 = vmatprep.subr.bf16.mxu0 %v4205
  %5163 = vmatpush1.bf16.msra.mxu0 %v4204
  %5164 = vmatprep.subr.bf16.mxu0 %v4208
  %5165 = vmatpush1.bf16.msra.mxu0 %v4207
  %5166 = vmatprep.subr.bf16.mxu0 %v4211
  %5167 = vmatpush1.bf16.msra.mxu0 %v4210
  %5168 = vmatprep.mubr.bf16.mxu0 %v1579
  %5169 = vmatmul.mubr.bf16.gmra.mrb[0].mxu0 %v1666
  %v5170 = vpop.f32.mrb[0].mxu0
  %v5171 = vadd.f32 %v5118, %v5170
  %v5172 = vpop.f32.mrb[0].mxu0
  %v5173 = vadd.f32 %v5120, %v5172
  %v5174 = vpop.f32.mrb[0].mxu0
  %v5175 = vadd.f32 %v5122, %v5174
  %v5176 = vpop.f32.mrb[0].mxu0
  %v5177 = vadd.f32 %v5124, %v5176
  %5178 = vmatprep.mubr.bf16.mxu0 %v1606
  %5179 = vmatmul.mubr.bf16.gmra.mrb[0].mxu0 %v1672
  %v5180 = vpop.f32.mrb[0].mxu0
  %v5181 = vadd.f32 %v5128, %v5180
  %v5182 = vpop.f32.mrb[0].mxu0
  %v5183 = vadd.f32 %v5130, %v5182
  %v5184 = vpop.f32.mrb[0].mxu0
  %v5185 = vadd.f32 %v5132, %v5184
  %v5186 = vpop.f32.mrb[0].mxu0
  %v5187 = vadd.f32 %v5134, %v5186
  %5188 = vdwg.mxu0
  %5189 = vmatprep.subr.bf16.mxu0 %v4214
  %5190 = vmatpush1.bf16.msra.mxu0 %v4213
  %5191 = vmatprep.subr.bf16.mxu0 %v4217
  %5192 = vmatpush1.bf16.msra.mxu0 %v4216
  %5193 = vmatprep.subr.bf16.mxu0 %v4220
  %5194 = vmatpush1.bf16.msra.mxu0 %v4219
  %5195 = vmatprep.subr.bf16.mxu0 %v4223
  %5196 = vmatpush1.bf16.msra.mxu0 %v4222
  %5197 = vmatprep.subr.bf16.mxu0 %v4226
  %5198 = vmatpush1.bf16.msra.mxu0 %v4225
  %5199 = vmatprep.subr.bf16.mxu0 %v4229
  %5200 = vmatpush1.bf16.msra.mxu0 %v4228
  %5201 = vmatprep.subr.bf16.mxu0 %v4232
  %5202 = vmatpush1.bf16.msra.mxu0 %v4231
  %5203 = vmatprep.subr.bf16.mxu0 %v4235
  %5204 = vmatpush1.bf16.msra.mxu0 %v4234
  %5205 = vmatprep.subr.bf16.mxu0 %v4238
  %5206 = vmatpush1.bf16.msra.mxu0 %v4237
  %5207 = vmatprep.subr.bf16.mxu0 %v4241
  %5208 = vmatpush1.bf16.msra.mxu0 %v4240
  %5209 = vmatprep.subr.bf16.mxu0 %v4244
  %5210 = vmatpush1.bf16.msra.mxu0 %v4243
  %5211 = vmatprep.subr.bf16.mxu0 %v4247
  %5212 = vmatpush1.bf16.msra.mxu0 %v4246
  %5213 = vmatprep.subr.bf16.mxu0 %v4250
  %5214 = vmatpush1.bf16.msra.mxu0 %v4249
  %5215 = vmatprep.subr.bf16.mxu0 %v4253
  %5216 = vmatpush1.bf16.msra.mxu0 %v4252
  %5217 = vmatprep.subr.bf16.mxu0 %v4256
  %5218 = vmatpush1.bf16.msra.mxu0 %v4255
  %5219 = vmatprep.subr.bf16.mxu0 %v4259
  %5220 = vmatpush1.bf16.msra.mxu0 %v4258
  %5221 = vmatprep.mubr.bf16.mxu0 %v1585
  %5222 = vmatmul.mubr.bf16.gmra.mrb[0].mxu0 %v1582
  %v5223 = vpop.f32.mrb[0].mxu0
  %v5224 = vadd.f32 %v5171, %v5223
  %v5225 = vpop.f32.mrb[0].mxu0
  %v5226 = vadd.f32 %v5173, %v5225
  %v5227 = vpop.f32.mrb[0].mxu0
  %v5228 = vadd.f32 %v5175, %v5227
  %v5229 = vpop.f32.mrb[0].mxu0
  %v5230 = vadd.f32 %v5177, %v5229
  %5231 = vmatprep.mubr.bf16.mxu0 %v1612
  %5232 = vmatmul.mubr.bf16.gmra.mrb[0].mxu0 %v1609
  %v5233 = vpop.f32.mrb[0].mxu0
  %v5234 = vadd.f32 %v5181, %v5233
  %v5235 = vpop.f32.mrb[0].mxu0
  %v5236 = vadd.f32 %v5183, %v5235
  %v5237 = vpop.f32.mrb[0].mxu0
  %v5238 = vadd.f32 %v5185, %v5237
  %v5239 = vpop.f32.mrb[0].mxu0
  %v5240 = vadd.f32 %v5187, %v5239
  %5241 = vdwg.mxu0
  %5242 = vmatprep.subr.bf16.mxu0 %v4262
  %5243 = vmatpush1.bf16.msra.mxu0 %v4261
  %5244 = vmatprep.subr.bf16.mxu0 %v4265
  %5245 = vmatpush1.bf16.msra.mxu0 %v4264
  %5246 = vmatprep.subr.bf16.mxu0 %v4268
  %5247 = vmatpush1.bf16.msra.mxu0 %v4267
  %5248 = vmatprep.subr.bf16.mxu0 %v4271
  %5249 = vmatpush1.bf16.msra.mxu0 %v4270
  %5250 = vmatprep.subr.bf16.mxu0 %v4274
  %5251 = vmatpush1.bf16.msra.mxu0 %v4273
  %5252 = vmatprep.subr.bf16.mxu0 %v4277
  %5253 = vmatpush1.bf16.msra.mxu0 %v4276
  %5254 = vmatprep.subr.bf16.mxu0 %v4280
  %5255 = vmatpush1.bf16.msra.mxu0 %v4279
  %5256 = vmatprep.subr.bf16.mxu0 %v4283
  %5257 = vmatpush1.bf16.msra.mxu0 %v4282
  %5258 = vmatprep.subr.bf16.mxu0 %v4286
  %5259 = vmatpush1.bf16.msra.mxu0 %v4285
  %5260 = vmatprep.subr.bf16.mxu0 %v4289
  %5261 = vmatpush1.bf16.msra.mxu0 %v4288
  %5262 = vmatprep.subr.bf16.mxu0 %v4292
  %5263 = vmatpush1.bf16.msra.mxu0 %v4291
  %5264 = vmatprep.subr.bf16.mxu0 %v4295
  %5265 = vmatpush1.bf16.msra.mxu0 %v4294
  %5266 = vmatprep.subr.bf16.mxu0 %v4298
  %5267 = vmatpush1.bf16.msra.mxu0 %v4297
  %5268 = vmatprep.subr.bf16.mxu0 %v4301
  %5269 = vmatpush1.bf16.msra.mxu0 %v4300
  %5270 = vmatprep.subr.bf16.mxu0 %v4304
  %5271 = vmatpush1.bf16.msra.mxu0 %v4303
  %5272 = vmatprep.subr.bf16.mxu0 %v4307
  %5273 = vmatpush1.bf16.msra.mxu0 %v4306
  %5274 = vmatprep.mubr.bf16.mxu0 %v1591
  %5275 = vmatmul.mubr.bf16.gmra.mrb[0].mxu0 %v1588
  %v5276 = vpop.f32.mrb[0].mxu0
  %v5277 = vadd.f32 %v5224, %v5276
  %v5278 = vpop.f32.mrb[0].mxu0
  %v5279 = vadd.f32 %v5226, %v5278
  %v5280 = vpop.f32.mrb[0].mxu0
  %v5281 = vadd.f32 %v5228, %v5280
  %v5282 = vpop.f32.mrb[0].mxu0
  %v5283 = vadd.f32 %v5230, %v5282
  %5284 = vmatprep.mubr.bf16.mxu0 %v1618
  %5285 = vmatmul.mubr.bf16.gmra.mrb[0].mxu0 %v1615
  %v5286 = vpop.f32.mrb[0].mxu0
  %v5287 = vadd.f32 %v5234, %v5286
  %v5288 = vpop.f32.mrb[0].mxu0
  %v5289 = vadd.f32 %v5236, %v5288
  %v5290 = vpop.f32.mrb[0].mxu0
  %v5291 = vadd.f32 %v5238, %v5290
  %v5292 = vpop.f32.mrb[0].mxu0
  %v5293 = vadd.f32 %v5240, %v5292
  %5294 = vdwg.mxu0
  %5295 = vmatprep.subr.bf16.mxu0 %v4310
  %5296 = vmatpush1.bf16.msra.mxu0 %v4309
  %5297 = vmatprep.subr.bf16.mxu0 %v4313
  %5298 = vmatpush1.bf16.msra.mxu0 %v4312
  %5299 = vmatprep.subr.bf16.mxu0 %v4316
  %5300 = vmatpush1.bf16.msra.mxu0 %v4315
  %5301 = vmatprep.subr.bf16.mxu0 %v4319
  %5302 = vmatpush1.bf16.msra.mxu0 %v4318
  %5303 = vmatprep.subr.bf16.mxu0 %v4322
  %5304 = vmatpush1.bf16.msra.mxu0 %v4321
  %5305 = vmatprep.subr.bf16.mxu0 %v4325
  %5306 = vmatpush1.bf16.msra.mxu0 %v4324
  %5307 = vmatprep.subr.bf16.mxu0 %v4328
  %5308 = vmatpush1.bf16.msra.mxu0 %v4327
  %5309 = vmatprep.subr.bf16.mxu0 %v4331
  %5310 = vmatpush1.bf16.msra.mxu0 %v4330
  %5311 = vmatprep.subr.bf16.mxu0 %v4334
  %5312 = vmatpush1.bf16.msra.mxu0 %v4333
  %5313 = vmatprep.subr.bf16.mxu0 %v4337
  %5314 = vmatpush1.bf16.msra.mxu0 %v4336
  %5315 = vmatprep.subr.bf16.mxu0 %v4340
  %5316 = vmatpush1.bf16.msra.mxu0 %v4339
  %5317 = vmatprep.subr.bf16.mxu0 %v4343
  %5318 = vmatpush1.bf16.msra.mxu0 %v4342
  %5319 = vmatprep.subr.bf16.mxu0 0
  %5320 = vmatpush1.bf16.msra.mxu0 0
  %5321 = vmatprep.subr.bf16.mxu0 0
  %5322 = vmatpush1.bf16.msra.mxu0 0
  %5323 = vmatprep.subr.bf16.mxu0 0
  %5324 = vmatpush1.bf16.msra.mxu0 0
  %5325 = vmatprep.subr.bf16.mxu0 0
  %5326 = vmatpush1.bf16.msra.mxu0 0
  %5327 = vmatprep.mubr.bf16.mxu0 %v4814
  %5328 = vmatmul.mubr.bf16.gmra.mrb[0].mxu0 %v1594
  %v5329 = vpop.f32.mrb[0].mxu0
  %v5330 = vadd.f32 %v5277, %v5329
  %v5331 = vpop.f32.mrb[0].mxu0
  %v5332 = vadd.f32 %v5279, %v5331
  %v5333 = vpop.f32.mrb[0].mxu0
  %v5334 = vadd.f32 %v5281, %v5333
  %v5335 = vpop.f32.mrb[0].mxu0
  %v5336 = vadd.f32 %v5283, %v5335
  %5337 = vmatprep.mubr.bf16.mxu0 %v4816
  %5338 = vmatmul.mubr.bf16.gmra.mrb[0].mxu0 %v1621
  %v5339 = vpop.f32.mrb[0].mxu0
  %v5340 = vadd.f32 %v5287, %v5339
  %v5341 = vpop.f32.mrb[0].mxu0
  %v5342 = vadd.f32 %v5289, %v5341
  %v5343 = vpop.f32.mrb[0].mxu0
  %v5344 = vadd.f32 %v5291, %v5343
  %v5345 = vpop.f32.mrb[0].mxu0
  %v5346 = vadd.f32 %v5293, %v5345
  %5347 = vdwg.mxu0
  %5348 = vmatprep.subr.bf16.mxu0 0
  %5349 = vmatpush1.bf16.msra.mxu0 %v3879
  %5350 = vmatprep.subr.bf16.mxu0 0
  %5351 = vmatpush1.bf16.msra.mxu0 %v3882
  %5352 = vmatprep.subr.bf16.mxu0 0
  %5353 = vmatpush1.bf16.msra.mxu0 %v3885
  %5354 = vmatprep.subr.bf16.mxu0 0
  %5355 = vmatpush1.bf16.msra.mxu0 %v3888
  %5356 = vmatprep.subr.bf16.mxu0 0
  %5357 = vmatpush1.bf16.msra.mxu0 %v3891
  %5358 = vmatprep.subr.bf16.mxu0 0
  %5359 = vmatpush1.bf16.msra.mxu0 %v3894
  %5360 = vmatprep.subr.bf16.mxu0 0
  %5361 = vmatpush1.bf16.msra.mxu0 %v3897
  %5362 = vmatprep.subr.bf16.mxu0 0
  %5363 = vmatpush1.bf16.msra.mxu0 %v3900
  %5364 = vmatprep.subr.bf16.mxu0 0
  %5365 = vmatpush1.bf16.msra.mxu0 %v3903
  %5366 = vmatprep.subr.bf16.mxu0 0
  %5367 = vmatpush1.bf16.msra.mxu0 %v3906
  %5368 = vmatprep.subr.bf16.mxu0 0
  %5369 = vmatpush1.bf16.msra.mxu0 %v3909
  %5370 = vmatprep.subr.bf16.mxu0 0
  %5371 = vmatpush1.bf16.msra.mxu0 %v3912
  %5372 = vmatprep.subr.bf16.mxu0 0
  %5373 = vmatpush1.bf16.msra.mxu0 %v3915
  %5374 = vmatprep.subr.bf16.mxu0 0
  %5375 = vmatpush1.bf16.msra.mxu0 %v3918
  %5376 = vmatprep.subr.bf16.mxu0 0
  %5377 = vmatpush1.bf16.msra.mxu0 %v3921
  %5378 = vmatprep.subr.bf16.mxu0 0
  %5379 = vmatpush1.bf16.msra.mxu0 %v3924
  %5380 = vmatprep.mubr.bf16.mxu0 %v1514
  %5381 = vmatmul.mubr.bf16.gmra.mrb[0].mxu0 %v1513
  %v5382 = vpop.f32.mrb[0].mxu0
  %v5383 = vadd.f32 0.0, %v5382
  %v5384 = vpop.f32.mrb[0].mxu0
  %v5385 = vpop.f32.mrb[0].mxu0
  %v5386 = vadd.f32 0.0, %v5385
  %v5387 = vpop.f32.mrb[0].mxu0
  %5388 = vmatprep.mubr.bf16.mxu0 %v1521
  %5389 = vmatmul.mubr.bf16.gmra.mrb[0].mxu0 %v1520
  %v5390 = vpop.f32.mrb[0].mxu0
  %v5391 = vadd.f32 0.0, %v5390
  %v5392 = vpop.f32.mrb[0].mxu0
  %v5393 = vpop.f32.mrb[0].mxu0
  %v5394 = vadd.f32 0.0, %v5393
  %v5395 = vpop.f32.mrb[0].mxu0
  %5396 = vdwg.mxu0
  %5397 = vmatprep.subr.bf16.mxu0 0
  %5398 = vmatpush1.bf16.msra.mxu0 %v3927
  %5399 = vmatprep.subr.bf16.mxu0 0
  %5400 = vmatpush1.bf16.msra.mxu0 %v3930
  %5401 = vmatprep.subr.bf16.mxu0 0
  %5402 = vmatpush1.bf16.msra.mxu0 %v3933
  %5403 = vmatprep.subr.bf16.mxu0 0
  %5404 = vmatpush1.bf16.msra.mxu0 %v3936
  %5405 = vmatprep.subr.bf16.mxu0 0
  %5406 = vmatpush1.bf16.msra.mxu0 %v3939
  %5407 = vmatprep.subr.bf16.mxu0 0
  %5408 = vmatpush1.bf16.msra.mxu0 %v3942
  %5409 = vmatprep.subr.bf16.mxu0 0
  %5410 = vmatpush1.bf16.msra.mxu0 %v3945
  %5411 = vmatprep.subr.bf16.mxu0 0
  %5412 = vmatpush1.bf16.msra.mxu0 %v3948
  %5413 = vmatprep.subr.bf16.mxu0 0
  %5414 = vmatpush1.bf16.msra.mxu0 %v3951
  %5415 = vmatprep.subr.bf16.mxu0 0
  %5416 = vmatpush1.bf16.msra.mxu0 %v3954
  %5417 = vmatprep.subr.bf16.mxu0 0
  %5418 = vmatpush1.bf16.msra.mxu0 %v3957
  %5419 = vmatprep.subr.bf16.mxu0 0
  %5420 = vmatpush1.bf16.msra.mxu0 %v3960
  %5421 = vmatprep.subr.bf16.mxu0 0
  %5422 = vmatpush1.bf16.msra.mxu0 %v3963
  %5423 = vmatprep.subr.bf16.mxu0 0
  %5424 = vmatpush1.bf16.msra.mxu0 %v3966
  %5425 = vmatprep.subr.bf16.mxu0 0
  %5426 = vmatpush1.bf16.msra.mxu0 %v3969
  %5427 = vmatprep.subr.bf16.mxu0 0
  %5428 = vmatpush1.bf16.msra.mxu0 %v3972
  %5429 = vmatprep.mubr.bf16.mxu0 %v1516
  %5430 = vmatmul.mubr.bf16.gmra.mrb[0].mxu0 %v1515
  %v5431 = vpop.f32.mrb[0].mxu0
  %v5432 = vadd.f32 %v5383, %v5431
  %v5433 = vpop.f32.mrb[0].mxu0
  %v5434 = vpop.f32.mrb[0].mxu0
  %v5435 = vadd.f32 %v5386, %v5434
  %v5436 = vpop.f32.mrb[0].mxu0
  %5437 = vmatprep.mubr.bf16.mxu0 %v1523
  %5438 = vmatmul.mubr.bf16.gmra.mrb[0].mxu0 %v1522
  %v5439 = vpop.f32.mrb[0].mxu0
  %v5440 = vadd.f32 %v5391, %v5439
  %v5441 = vpop.f32.mrb[0].mxu0
  %v5442 = vpop.f32.mrb[0].mxu0
  %v5443 = vadd.f32 %v5394, %v5442
  %v5444 = vpop.f32.mrb[0].mxu0
  %5445 = vdwg.mxu0
  %5446 = vmatprep.subr.bf16.mxu0 0
  %5447 = vmatpush1.bf16.msra.mxu0 %v3975
  %5448 = vmatprep.subr.bf16.mxu0 0
  %5449 = vmatpush1.bf16.msra.mxu0 %v3978
  %5450 = vmatprep.subr.bf16.mxu0 0
  %5451 = vmatpush1.bf16.msra.mxu0 %v3981
  %5452 = vmatprep.subr.bf16.mxu0 0
  %5453 = vmatpush1.bf16.msra.mxu0 %v3984
  %5454 = vmatprep.subr.bf16.mxu0 0
  %5455 = vmatpush1.bf16.msra.mxu0 %v3987
  %5456 = vmatprep.subr.bf16.mxu0 0
  %5457 = vmatpush1.bf16.msra.mxu0 %v3990
  %5458 = vmatprep.subr.bf16.mxu0 0
  %5459 = vmatpush1.bf16.msra.mxu0 %v3993
  %5460 = vmatprep.subr.bf16.mxu0 0
  %5461 = vmatpush1.bf16.msra.mxu0 %v3996
  %5462 = vmatprep.subr.bf16.mxu0 0
  %5463 = vmatpush1.bf16.msra.mxu0 %v3999
  %5464 = vmatprep.subr.bf16.mxu0 0
  %5465 = vmatpush1.bf16.msra.mxu0 %v4002
  %5466 = vmatprep.subr.bf16.mxu0 0
  %5467 = vmatpush1.bf16.msra.mxu0 %v4005
  %5468 = vmatprep.subr.bf16.mxu0 0
  %5469 = vmatpush1.bf16.msra.mxu0 %v4008
  %5470 = vmatprep.subr.bf16.mxu0 0
  %5471 = vmatpush1.bf16.msra.mxu0 %v4011
  %5472 = vmatprep.subr.bf16.mxu0 0
  %5473 = vmatpush1.bf16.msra.mxu0 %v4014
  %5474 = vmatprep.subr.bf16.mxu0 0
  %5475 = vmatpush1.bf16.msra.mxu0 %v4017
  %5476 = vmatprep.subr.bf16.mxu0 0
  %5477 = vmatpush1.bf16.msra.mxu0 %v4020
  %5478 = vmatprep.mubr.bf16.mxu0 %v1518
  %5479 = vmatmul.mubr.bf16.gmra.mrb[0].mxu0 %v1517
  %v5480 = vpop.f32.mrb[0].mxu0
  %v5481 = vadd.f32 %v5432, %v5480
  %v5482 = vpop.f32.mrb[0].mxu0
  %v5483 = vpop.f32.mrb[0].mxu0
  %v5484 = vadd.f32 %v5435, %v5483
  %v5485 = vpop.f32.mrb[0].mxu0
  %5486 = vmatprep.mubr.bf16.mxu0 %v1525
  %5487 = vmatmul.mubr.bf16.gmra.mrb[0].mxu0 %v1524
  %v5488 = vpop.f32.mrb[0].mxu0
  %v5489 = vadd.f32 %v5440, %v5488
  %v5490 = vpop.f32.mrb[0].mxu0
  %v5491 = vpop.f32.mrb[0].mxu0
  %v5492 = vadd.f32 %v5443, %v5491
  %v5493 = vpop.f32.mrb[0].mxu0
  %5494 = vdwg.mxu0
  %5495 = vmatprep.subr.bf16.mxu0 0
  %5496 = vmatpush1.bf16.msra.mxu0 %v4023
  %5497 = vmatprep.subr.bf16.mxu0 0
  %5498 = vmatpush1.bf16.msra.mxu0 %v4026
  %5499 = vmatprep.subr.bf16.mxu0 0
  %5500 = vmatpush1.bf16.msra.mxu0 %v4029
  %5501 = vmatprep.subr.bf16.mxu0 0
  %5502 = vmatpush1.bf16.msra.mxu0 %v4032
  %5503 = vmatprep.subr.bf16.mxu0 0
  %5504 = vmatpush1.bf16.msra.mxu0 %v4035
  %5505 = vmatprep.subr.bf16.mxu0 0
  %5506 = vmatpush1.bf16.msra.mxu0 %v4038
  %5507 = vmatprep.subr.bf16.mxu0 0
  %5508 = vmatpush1.bf16.msra.mxu0 %v4041
  %5509 = vmatprep.subr.bf16.mxu0 0
  %5510 = vmatpush1.bf16.msra.mxu0 %v4044
  %5511 = vmatprep.subr.bf16.mxu0 0
  %5512 = vmatpush1.bf16.msra.mxu0 %v4047
  %5513 = vmatprep.subr.bf16.mxu0 0
  %5514 = vmatpush1.bf16.msra.mxu0 %v4050
  %5515 = vmatprep.subr.bf16.mxu0 0
  %5516 = vmatpush1.bf16.msra.mxu0 %v4053
  %5517 = vmatprep.subr.bf16.mxu0 0
  %5518 = vmatpush1.bf16.msra.mxu0 %v4056
  %5519 = vmatprep.subr.bf16.mxu0 0
  %5520 = vmatpush1.bf16.msra.mxu0 %v4059
  %5521 = vmatprep.subr.bf16.mxu0 0
  %5522 = vmatpush1.bf16.msra.mxu0 %v4062
  %5523 = vmatprep.subr.bf16.mxu0 0
  %5524 = vmatpush1.bf16.msra.mxu0 %v4065
  %5525 = vmatprep.subr.bf16.mxu0 0
  %5526 = vmatpush1.bf16.msra.mxu0 %v4068
  %5527 = vmatprep.mubr.bf16.mxu0 %v1661
  %5528 = vmatmul.mubr.bf16.gmra.mrb[0].mxu0 %v1687
  %v5529 = vpop.f32.mrb[0].mxu0
  %v5530 = vadd.f32 %v5481, %v5529
  %v5531 = vpop.f32.mrb[0].mxu0
  %v5532 = vpop.f32.mrb[0].mxu0
  %v5533 = vadd.f32 %v5484, %v5532
  %v5534 = vpop.f32.mrb[0].mxu0
  %5535 = vmatprep.mubr.bf16.mxu0 %v1667
  %5536 = vmatmul.mubr.bf16.gmra.mrb[0].mxu0 %v1691
  %v5537 = vpop.f32.mrb[0].mxu0
  %v5538 = vadd.f32 %v5489, %v5537
  %v5539 = vpop.f32.mrb[0].mxu0
  %v5540 = vpop.f32.mrb[0].mxu0
  %v5541 = vadd.f32 %v5492, %v5540
  %v5542 = vpop.f32.mrb[0].mxu0
  %5543 = vdwg.mxu0
  %5544 = vmatprep.subr.bf16.mxu0 0
  %5545 = vmatpush1.bf16.msra.mxu0 %v4071
  %5546 = vmatprep.subr.bf16.mxu0 0
  %5547 = vmatpush1.bf16.msra.mxu0 %v4074
  %5548 = vmatprep.subr.bf16.mxu0 0
  %5549 = vmatpush1.bf16.msra.mxu0 %v4077
  %5550 = vmatprep.subr.bf16.mxu0 0
  %5551 = vmatpush1.bf16.msra.mxu0 %v4080
  %5552 = vmatprep.subr.bf16.mxu0 0
  %5553 = vmatpush1.bf16.msra.mxu0 %v4083
  %5554 = vmatprep.subr.bf16.mxu0 0
  %5555 = vmatpush1.bf16.msra.mxu0 %v4086
  %5556 = vmatprep.subr.bf16.mxu0 0
  %5557 = vmatpush1.bf16.msra.mxu0 %v4089
  %5558 = vmatprep.subr.bf16.mxu0 0
  %5559 = vmatpush1.bf16.msra.mxu0 %v4092
  %5560 = vmatprep.subr.bf16.mxu0 0
  %5561 = vmatpush1.bf16.msra.mxu0 %v4095
  %5562 = vmatprep.subr.bf16.mxu0 0
  %5563 = vmatpush1.bf16.msra.mxu0 %v4098
  %5564 = vmatprep.subr.bf16.mxu0 0
  %5565 = vmatpush1.bf16.msra.mxu0 %v4101
  %5566 = vmatprep.subr.bf16.mxu0 0
  %5567 = vmatpush1.bf16.msra.mxu0 %v4104
  %5568 = vmatprep.subr.bf16.mxu0 0
  %5569 = vmatpush1.bf16.msra.mxu0 %v4107
  %5570 = vmatprep.subr.bf16.mxu0 0
  %5571 = vmatpush1.bf16.msra.mxu0 %v4110
  %5572 = vmatprep.subr.bf16.mxu0 0
  %5573 = vmatpush1.bf16.msra.mxu0 %v4113
  %5574 = vmatprep.subr.bf16.mxu0 0
  %5575 = vmatpush1.bf16.msra.mxu0 %v4116
  %5576 = vmatprep.mubr.bf16.mxu0 %v1663
  %5577 = vmatmul.mubr.bf16.gmra.mrb[0].mxu0 %v1662
  %v5578 = vpop.f32.mrb[0].mxu0
  %v5579 = vadd.f32 %v5530, %v5578
  %v5580 = vpop.f32.mrb[0].mxu0
  %v5581 = vpop.f32.mrb[0].mxu0
  %v5582 = vadd.f32 %v5533, %v5581
  %v5583 = vpop.f32.mrb[0].mxu0
  %5584 = vmatprep.mubr.bf16.mxu0 %v1669
  %5585 = vmatmul.mubr.bf16.gmra.mrb[0].mxu0 %v1668
  %v5586 = vpop.f32.mrb[0].mxu0
  %v5587 = vadd.f32 %v5538, %v5586
  %v5588 = vpop.f32.mrb[0].mxu0
  %v5589 = vpop.f32.mrb[0].mxu0
  %v5590 = vadd.f32 %v5541, %v5589
  %v5591 = vpop.f32.mrb[0].mxu0
  %5592 = vdwg.mxu0
  %5593 = vmatprep.subr.bf16.mxu0 0
  %5594 = vmatpush1.bf16.msra.mxu0 %v4119
  %5595 = vmatprep.subr.bf16.mxu0 0
  %5596 = vmatpush1.bf16.msra.mxu0 %v4122
  %5597 = vmatprep.subr.bf16.mxu0 0
  %5598 = vmatpush1.bf16.msra.mxu0 %v4125
  %5599 = vmatprep.subr.bf16.mxu0 0
  %5600 = vmatpush1.bf16.msra.mxu0 %v4128
  %5601 = vmatprep.subr.bf16.mxu0 0
  %5602 = vmatpush1.bf16.msra.mxu0 %v4131
  %5603 = vmatprep.subr.bf16.mxu0 0
  %5604 = vmatpush1.bf16.msra.mxu0 %v4134
  %5605 = vmatprep.subr.bf16.mxu0 0
  %5606 = vmatpush1.bf16.msra.mxu0 %v4137
  %5607 = vmatprep.subr.bf16.mxu0 0
  %5608 = vmatpush1.bf16.msra.mxu0 %v4140
  %5609 = vmatprep.subr.bf16.mxu0 0
  %5610 = vmatpush1.bf16.msra.mxu0 %v4143
  %5611 = vmatprep.subr.bf16.mxu0 0
  %5612 = vmatpush1.bf16.msra.mxu0 %v4146
  %5613 = vmatprep.subr.bf16.mxu0 0
  %5614 = vmatpush1.bf16.msra.mxu0 %v4149
  %5615 = vmatprep.subr.bf16.mxu0 0
  %5616 = vmatpush1.bf16.msra.mxu0 %v4152
  %5617 = vmatprep.subr.bf16.mxu0 0
  %5618 = vmatpush1.bf16.msra.mxu0 %v4155
  %5619 = vmatprep.subr.bf16.mxu0 0
  %5620 = vmatpush1.bf16.msra.mxu0 %v4158
  %5621 = vmatprep.subr.bf16.mxu0 0
  %5622 = vmatpush1.bf16.msra.mxu0 %v4161
  %5623 = vmatprep.subr.bf16.mxu0 0
  %5624 = vmatpush1.bf16.msra.mxu0 %v4164
  %5625 = vmatprep.mubr.bf16.mxu0 %v1665
  %5626 = vmatmul.mubr.bf16.gmra.mrb[0].mxu0 %v1664
  %v5627 = vpop.f32.mrb[0].mxu0
  %v5628 = vadd.f32 %v5579, %v5627
  %v5629 = vpop.f32.mrb[0].mxu0
  %v5630 = vpop.f32.mrb[0].mxu0
  %v5631 = vadd.f32 %v5582, %v5630
  %v5632 = vpop.f32.mrb[0].mxu0
  %5633 = vmatprep.mubr.bf16.mxu0 %v1671
  %5634 = vmatmul.mubr.bf16.gmra.mrb[0].mxu0 %v1670
  %v5635 = vpop.f32.mrb[0].mxu0
  %v5636 = vadd.f32 %v5587, %v5635
  %v5637 = vpop.f32.mrb[0].mxu0
  %v5638 = vpop.f32.mrb[0].mxu0
  %v5639 = vadd.f32 %v5590, %v5638
  %v5640 = vpop.f32.mrb[0].mxu0
  %5641 = vdwg.mxu0
  %5642 = vmatprep.subr.bf16.mxu0 0
  %5643 = vmatpush1.bf16.msra.mxu0 %v4167
  %5644 = vmatprep.subr.bf16.mxu0 0
  %5645 = vmatpush1.bf16.msra.mxu0 %v4170
  %5646 = vmatprep.subr.bf16.mxu0 0
  %5647 = vmatpush1.bf16.msra.mxu0 %v4173
  %5648 = vmatprep.subr.bf16.mxu0 0
  %5649 = vmatpush1.bf16.msra.mxu0 %v4176
  %5650 = vmatprep.subr.bf16.mxu0 0
  %5651 = vmatpush1.bf16.msra.mxu0 %v4179
  %5652 = vmatprep.subr.bf16.mxu0 0
  %5653 = vmatpush1.bf16.msra.mxu0 %v4182
  %5654 = vmatprep.subr.bf16.mxu0 0
  %5655 = vmatpush1.bf16.msra.mxu0 %v4185
  %5656 = vmatprep.subr.bf16.mxu0 0
  %5657 = vmatpush1.bf16.msra.mxu0 %v4188
  %5658 = vmatprep.subr.bf16.mxu0 0
  %5659 = vmatpush1.bf16.msra.mxu0 %v4191
  %5660 = vmatprep.subr.bf16.mxu0 0
  %5661 = vmatpush1.bf16.msra.mxu0 %v4194
  %5662 = vmatprep.subr.bf16.mxu0 0
  %5663 = vmatpush1.bf16.msra.mxu0 %v4197
  %5664 = vmatprep.subr.bf16.mxu0 0
  %5665 = vmatpush1.bf16.msra.mxu0 %v4200
  %5666 = vmatprep.subr.bf16.mxu0 0
  %5667 = vmatpush1.bf16.msra.mxu0 %v4203
  %5668 = vmatprep.subr.bf16.mxu0 0
  %5669 = vmatpush1.bf16.msra.mxu0 %v4206
  %5670 = vmatprep.subr.bf16.mxu0 0
  %5671 = vmatpush1.bf16.msra.mxu0 %v4209
  %5672 = vmatprep.subr.bf16.mxu0 0
  %5673 = vmatpush1.bf16.msra.mxu0 %v4212
  %5674 = vmatprep.mubr.bf16.mxu0 %v1579
  %5675 = vmatmul.mubr.bf16.gmra.mrb[0].mxu0 %v1666
  %v5676 = vpop.f32.mrb[0].mxu0
  %v5677 = vadd.f32 %v5628, %v5676
  %v5678 = vpop.f32.mrb[0].mxu0
  %v5679 = vpop.f32.mrb[0].mxu0
  %v5680 = vadd.f32 %v5631, %v5679
  %v5681 = vpop.f32.mrb[0].mxu0
  %5682 = vmatprep.mubr.bf16.mxu0 %v1606
  %5683 = vmatmul.mubr.bf16.gmra.mrb[0].mxu0 %v1672
  %v5684 = vpop.f32.mrb[0].mxu0
  %v5685 = vadd.f32 %v5636, %v5684
  %v5686 = vpop.f32.mrb[0].mxu0
  %v5687 = vpop.f32.mrb[0].mxu0
  %v5688 = vadd.f32 %v5639, %v5687
  %v5689 = vpop.f32.mrb[0].mxu0
  %5690 = vdwg.mxu0
  %5691 = vmatprep.subr.bf16.mxu0 0
  %5692 = vmatpush1.bf16.msra.mxu0 %v4215
  %5693 = vmatprep.subr.bf16.mxu0 0
  %5694 = vmatpush1.bf16.msra.mxu0 %v4218
  %5695 = vmatprep.subr.bf16.mxu0 0
  %5696 = vmatpush1.bf16.msra.mxu0 %v4221
  %5697 = vmatprep.subr.bf16.mxu0 0
  %5698 = vmatpush1.bf16.msra.mxu0 %v4224
  %5699 = vmatprep.subr.bf16.mxu0 0
  %5700 = vmatpush1.bf16.msra.mxu0 %v4227
  %5701 = vmatprep.subr.bf16.mxu0 0
  %5702 = vmatpush1.bf16.msra.mxu0 %v4230
  %5703 = vmatprep.subr.bf16.mxu0 0
  %5704 = vmatpush1.bf16.msra.mxu0 %v4233
  %5705 = vmatprep.subr.bf16.mxu0 0
  %5706 = vmatpush1.bf16.msra.mxu0 %v4236
  %5707 = vmatprep.subr.bf16.mxu0 0
  %5708 = vmatpush1.bf16.msra.mxu0 %v4239
  %5709 = vmatprep.subr.bf16.mxu0 0
  %5710 = vmatpush1.bf16.msra.mxu0 %v4242
  %5711 = vmatprep.subr.bf16.mxu0 0
  %5712 = vmatpush1.bf16.msra.mxu0 %v4245
  %5713 = vmatprep.subr.bf16.mxu0 0
  %5714 = vmatpush1.bf16.msra.mxu0 %v4248
  %5715 = vmatprep.subr.bf16.mxu0 0
  %5716 = vmatpush1.bf16.msra.mxu0 %v4251
  %5717 = vmatprep.subr.bf16.mxu0 0
  %5718 = vmatpush1.bf16.msra.mxu0 %v4254
  %5719 = vmatprep.subr.bf16.mxu0 0
  %5720 = vmatpush1.bf16.msra.mxu0 %v4257
  %5721 = vmatprep.subr.bf16.mxu0 0
  %5722 = vmatpush1.bf16.msra.mxu0 %v4260
  %5723 = vmatprep.mubr.bf16.mxu0 %v1585
  %5724 = vmatmul.mubr.bf16.gmra.mrb[0].mxu0 %v1582
  %v5725 = vpop.f32.mrb[0].mxu0
  %v5726 = vadd.f32 %v5677, %v5725
  %v5727 = vpop.f32.mrb[0].mxu0
  %v5728 = vpop.f32.mrb[0].mxu0
  %v5729 = vadd.f32 %v5680, %v5728
  %v5730 = vpop.f32.mrb[0].mxu0
  %5731 = vmatprep.mubr.bf16.mxu0 %v1612
  %5732 = vmatmul.mubr.bf16.gmra.mrb[0].mxu0 %v1609
  %v5733 = vpop.f32.mrb[0].mxu0
  %v5734 = vadd.f32 %v5685, %v5733
  %v5735 = vpop.f32.mrb[0].mxu0
  %v5736 = vpop.f32.mrb[0].mxu0
  %v5737 = vadd.f32 %v5688, %v5736
  %v5738 = vpop.f32.mrb[0].mxu0
  %5739 = vdwg.mxu0
  %5740 = vmatprep.subr.bf16.mxu0 0
  %5741 = vmatpush1.bf16.msra.mxu0 %v4263
  %5742 = vmatprep.subr.bf16.mxu0 0
  %5743 = vmatpush1.bf16.msra.mxu0 %v4266
  %5744 = vmatprep.subr.bf16.mxu0 0
  %5745 = vmatpush1.bf16.msra.mxu0 %v4269
  %5746 = vmatprep.subr.bf16.mxu0 0
  %5747 = vmatpush1.bf16.msra.mxu0 %v4272
  %5748 = vmatprep.subr.bf16.mxu0 0
  %5749 = vmatpush1.bf16.msra.mxu0 %v4275
  %5750 = vmatprep.subr.bf16.mxu0 0
  %5751 = vmatpush1.bf16.msra.mxu0 %v4278
  %5752 = vmatprep.subr.bf16.mxu0 0
  %5753 = vmatpush1.bf16.msra.mxu0 %v4281
  %5754 = vmatprep.subr.bf16.mxu0 0
  %5755 = vmatpush1.bf16.msra.mxu0 %v4284
  %5756 = vmatprep.subr.bf16.mxu0 0
  %5757 = vmatpush1.bf16.msra.mxu0 %v4287
  %5758 = vmatprep.subr.bf16.mxu0 0
  %5759 = vmatpush1.bf16.msra.mxu0 %v4290
  %5760 = vmatprep.subr.bf16.mxu0 0
  %5761 = vmatpush1.bf16.msra.mxu0 %v4293
  %5762 = vmatprep.subr.bf16.mxu0 0
  %5763 = vmatpush1.bf16.msra.mxu0 %v4296
  %5764 = vmatprep.subr.bf16.mxu0 0
  %5765 = vmatpush1.bf16.msra.mxu0 %v4299
  %5766 = vmatprep.subr.bf16.mxu0 0
  %5767 = vmatpush1.bf16.msra.mxu0 %v4302
  %5768 = vmatprep.subr.bf16.mxu0 0
  %5769 = vmatpush1.bf16.msra.mxu0 %v4305
  %5770 = vmatprep.subr.bf16.mxu0 0
  %5771 = vmatpush1.bf16.msra.mxu0 %v4308
  %5772 = vmatprep.mubr.bf16.mxu0 %v1591
  %5773 = vmatmul.mubr.bf16.gmra.mrb[0].mxu0 %v1588
  %v5774 = vpop.f32.mrb[0].mxu0
  %v5775 = vadd.f32 %v5726, %v5774
  %v5776 = vpop.f32.mrb[0].mxu0
  %v5777 = vpop.f32.mrb[0].mxu0
  %v5778 = vadd.f32 %v5729, %v5777
  %v5779 = vpop.f32.mrb[0].mxu0
  %5780 = vmatprep.mubr.bf16.mxu0 %v1618
  %5781 = vmatmul.mubr.bf16.gmra.mrb[0].mxu0 %v1615
  %v5782 = vpop.f32.mrb[0].mxu0
  %v5783 = vadd.f32 %v5734, %v5782
  %v5784 = vpop.f32.mrb[0].mxu0
  %v5785 = vpop.f32.mrb[0].mxu0
  %v5786 = vadd.f32 %v5737, %v5785
  %v5787 = vpop.f32.mrb[0].mxu0
  %5788 = vdwg.mxu0
  %5789 = vmatprep.subr.bf16.mxu0 0
  %5790 = vmatpush1.bf16.msra.mxu0 %v4311
  %5791 = vmatprep.subr.bf16.mxu0 0
  %5792 = vmatpush1.bf16.msra.mxu0 %v4314
  %5793 = vmatprep.subr.bf16.mxu0 0
  %5794 = vmatpush1.bf16.msra.mxu0 %v4317
  %5795 = vmatprep.subr.bf16.mxu0 0
  %5796 = vmatpush1.bf16.msra.mxu0 %v4320
  %5797 = vmatprep.subr.bf16.mxu0 0
  %5798 = vmatpush1.bf16.msra.mxu0 %v4323
  %5799 = vmatprep.subr.bf16.mxu0 0
  %5800 = vmatpush1.bf16.msra.mxu0 %v4326
  %5801 = vmatprep.subr.bf16.mxu0 0
  %5802 = vmatpush1.bf16.msra.mxu0 %v4329
  %5803 = vmatprep.subr.bf16.mxu0 0
  %5804 = vmatpush1.bf16.msra.mxu0 %v4332
  %5805 = vmatprep.subr.bf16.mxu0 0
  %5806 = vmatpush1.bf16.msra.mxu0 %v4335
  %5807 = vmatprep.subr.bf16.mxu0 0
  %5808 = vmatpush1.bf16.msra.mxu0 %v4338
  %5809 = vmatprep.subr.bf16.mxu0 0
  %5810 = vmatpush1.bf16.msra.mxu0 %v4341
  %5811 = vmatprep.subr.bf16.mxu0 0
  %5812 = vmatpush1.bf16.msra.mxu0 %v4344
  %5813 = vmatprep.subr.bf16.mxu0 0
  %5814 = vmatpush1.bf16.msra.mxu0 0
  %5815 = vmatprep.subr.bf16.mxu0 0
  %5816 = vmatpush1.bf16.msra.mxu0 0
  %5817 = vmatprep.subr.bf16.mxu0 0
  %5818 = vmatpush1.bf16.msra.mxu0 0
  %5819 = vmatprep.subr.bf16.mxu0 0
  %5820 = vmatpush1.bf16.msra.mxu0 0
  %5821 = vmatprep.mubr.bf16.mxu0 %v4814
  %5822 = vmatmul.mubr.bf16.gmra.mrb[0].mxu0 %v1594
  %v5823 = vpop.f32.mrb[0].mxu0
  %v5824 = vadd.f32 %v5775, %v5823
  %v5825 = vpop.f32.mrb[0].mxu0
  %v5826 = vpop.f32.mrb[0].mxu0
  %v5827 = vadd.f32 %v5778, %v5826
  %v5828 = vpop.f32.mrb[0].mxu0
  %5829 = vmatprep.mubr.bf16.mxu0 %v4816
  %5830 = vmatmul.mubr.bf16.gmra.mrb[0].mxu0 %v1621
  %v5831 = vpop.f32.mrb[0].mxu0
  %v5832 = vadd.f32 %v5783, %v5831
  %v5833 = vpop.f32.mrb[0].mxu0
  %v5834 = vpop.f32.mrb[0].mxu0
  %v5835 = vadd.f32 %v5786, %v5834
  %v5836 = vpop.f32.mrb[0].mxu0
  %5837 = vdwg.mxu0
  %vm5838 = vcmp.lt.s32.totalorder %v80, 10
  %vm5839 = vcmp.lt.s32.totalorder %v81, 10
  %vm5840 = vcmp.lt.s32.totalorder %v82, 10
  %vm5841 = vcmp.lt.s32.totalorder %v83, 10
  %vm5842 = vcmp.lt.s32.totalorder %v80, 0
  %v5843 = vsub.s32 0, %v80
  %v5844 = vsel %vm5842, %v5843, %v80
  %v5845 = vshrl.u32 %v5844, 1
  %v5846 = vand.u32 %v5844, 1
  %v5847 = vsub.s32 0, %v5846
  %v5848 = vsel %vm5842, %v5847, %v5846
  %vm5849 = vcmp.lt.s32.totalorder %v81, 0
  %v5850 = vsub.s32 0, %v81
  %v5851 = vsel %vm5849, %v5850, %v81
  %v5852 = vshrl.u32 %v5851, 1
  %v5853 = vand.u32 %v5851, 1
  %v5854 = vsub.s32 0, %v5853
  %v5855 = vsel %vm5849, %v5854, %v5853
  %vm5856 = vcmp.lt.s32.totalorder %v82, 0
  %v5857 = vsub.s32 0, %v82
  %v5858 = vsel %vm5856, %v5857, %v82
  %v5859 = vshrl.u32 %v5858, 1
  %v5860 = vand.u32 %v5858, 1
  %v5861 = vsub.s32 0, %v5860
  %v5862 = vsel %vm5856, %v5861, %v5860
  %vm5863 = vcmp.lt.s32.totalorder %v83, 0
  %v5864 = vsub.s32 0, %v83
  %v5865 = vsel %vm5863, %v5864, %v83
  %v5866 = vshrl.u32 %v5865, 1
  %v5867 = vand.u32 %v5865, 1
  %v5868 = vsub.s32 0, %v5867
  %v5869 = vsel %vm5863, %v5868, %v5867
  %vm5870 = vcmp.ne.s32.totalorder %v5848, 0
  %vm5871 = vcmp.ne.s32.totalorder %v5855, 0
  %vm5872 = vcmp.ne.s32.totalorder %v5862, 0
  %vm5873 = vcmp.ne.s32.totalorder %v5869, 0
  %vm5874 = vcmp.lt.s32.totalorder %v5848, 0
  %vm5875 = vcmp.lt.s32.totalorder %v5855, 0
  %vm5876 = vcmp.lt.s32.totalorder %v5862, 0
  %vm5877 = vcmp.lt.s32.totalorder %v5869, 0
  %vm5878 = vmand %vm5874, %vm5870
  %vm5879 = vmand %vm5875, %vm5871
  %vm5880 = vmand %vm5876, %vm5872
  %vm5881 = vmand %vm5877, %vm5873
  %v5882 = vadd.s32 %v5848, 2
  %v5883 = vadd.s32 %v5855, 2
  %v5884 = vadd.s32 %v5862, 2
  %v5885 = vadd.s32 %v5869, 2
  %v5886 = vsel %vm5878, %v5882, %v5848
  %v5887 = vsel %vm5879, %v5883, %v5855
  %v5888 = vsel %vm5880, %v5884, %v5862
  %v5889 = vsel %vm5881, %v5885, %v5869
  %vm5890 = vcmp.eq.s32.totalorder %v5886, 0
  %vm5891 = vcmp.eq.s32.totalorder %v5887, 0
  %vm5892 = vcmp.eq.s32.totalorder %v5888, 0
  %vm5893 = vcmp.eq.s32.totalorder %v5889, 0
  %vm5894 = vmand %vm5838, %vm5890
  %vm5895 = vmand %vm5839, %vm5891
  %vm5896 = vmand %vm5840, %vm5892
  %vm5897 = vmand %vm5841, %vm5893
  %v5898 = vsel %vm5894, 1, 0
  %v5899 = vsel %vm5895, 1, 0
  %v5900 = vsel %vm5896, 1, 0
  %v5901 = vsel %vm5897, 1, 0
  %vm5902 = vcmp.eq.s32.totalorder %v5898, 1
  %vm5903 = vcmp.eq.s32.totalorder %v5899, 1
  %vm5904 = vcmp.eq.s32.totalorder %v5900, 1
  %vm5905 = vcmp.eq.s32.totalorder %v5901, 1
  %v5906 = vsel %vm5902, %v5330, 0.0
  %v5907 = vsel %vm5902, %v5332, 0.0
  %v5908 = vsel %vm5902, %v5824, 0.0
  %v5909 = vsel %vm5903, %v5334, 0.0
  %v5910 = vsel %vm5903, %v5336, 0.0
  %v5911 = vsel %vm5903, %v5827, 0.0
  %v5912 = vsel %vm5904, %v5340, 0.0
  %v5913 = vsel %vm5904, %v5342, 0.0
  %v5914 = vsel %vm5904, %v5832, 0.0
  %v5915 = vsel %vm5905, %v5344, 0.0
  %v5916 = vsel %vm5905, %v5346, 0.0
  %v5917 = vsel %vm5905, %v5835, 0.0
  %v5918 = vadd.f32 %v5906, %v5909
  %v5919 = vadd.f32 %v5918, %v5912
  %v5920 = vadd.f32 %v5919, %v5915
  %v5921 = vrot.slane %v5920, 4
  %v5922 = vadd.f32 %v5920, %v5921
  %v5923 = vrot.slane %v5922, 2
  %v5924 = vadd.f32 %v5922, %v5923
  %v5925 = vrot.slane %v5924, 1
  %v5926 = vadd.f32 %v5924, %v5925
  %v5927 = vadd.f32 %v5907, %v5910
  %v5928 = vadd.f32 %v5927, %v5913
  %v5929 = vadd.f32 %v5928, %v5916
  %v5930 = vrot.slane %v5929, 4
  %v5931 = vadd.f32 %v5929, %v5930
  %v5932 = vrot.slane %v5931, 2
  %v5933 = vadd.f32 %v5931, %v5932
  %v5934 = vrot.slane %v5933, 1
  %v5935 = vadd.f32 %v5933, %v5934
  %v5936 = vsel %vm131, %v5908, 0.0
  %v5937 = vsel %vm131, %v5911, 0.0
  %v5938 = vadd.f32 %v5936, %v5937
  %v5939 = vsel %vm131, %v5914, 0.0
  %v5940 = vadd.f32 %v5938, %v5939
  %v5941 = vsel %vm131, %v5917, 0.0
  %v5942 = vadd.f32 %v5940, %v5941
  %v5943 = vrot.slane %v5942, 4
  %v5944 = vadd.f32 %v5942, %v5943
  %v5945 = vrot.slane %v5944, 2
  %v5946 = vadd.f32 %v5944, %v5945
  %v5947 = vrot.slane %v5946, 1
  %v5948 = vadd.f32 %v5946, %v5947
  %v5949 = vmul.f32 %v5906, %v5906
  %v5950 = vmul.f32 %v5907, %v5907
  %v5951 = vmul.f32 %v5908, %v5908
  %v5952 = vmul.f32 %v5909, %v5909
  %v5953 = vmul.f32 %v5910, %v5910
  %v5954 = vmul.f32 %v5911, %v5911
  %v5955 = vmul.f32 %v5912, %v5912
  %v5956 = vmul.f32 %v5913, %v5913
  %v5957 = vmul.f32 %v5914, %v5914
  %v5958 = vmul.f32 %v5915, %v5915
  %v5959 = vmul.f32 %v5916, %v5916
  %v5960 = vmul.f32 %v5917, %v5917
  %v5961 = vadd.f32 %v5949, %v5952
  %v5962 = vadd.f32 %v5961, %v5955
  %v5963 = vadd.f32 %v5962, %v5958
  %v5964 = vrot.slane %v5963, 4
  %v5965 = vadd.f32 %v5963, %v5964
  %v5966 = vrot.slane %v5965, 2
  %v5967 = vadd.f32 %v5965, %v5966
  %v5968 = vrot.slane %v5967, 1
  %v5969 = vadd.f32 %v5967, %v5968
  %v5970 = vadd.f32 %v5950, %v5953
  %v5971 = vadd.f32 %v5970, %v5956
  %v5972 = vadd.f32 %v5971, %v5959
  %v5973 = vrot.slane %v5972, 4
  %v5974 = vadd.f32 %v5972, %v5973
  %v5975 = vrot.slane %v5974, 2
  %v5976 = vadd.f32 %v5974, %v5975
  %v5977 = vrot.slane %v5976, 1
  %v5978 = vadd.f32 %v5976, %v5977
  %v5979 = vsel %vm131, %v5951, 0.0
  %v5980 = vsel %vm131, %v5954, 0.0
  %v5981 = vadd.f32 %v5979, %v5980
  %v5982 = vsel %vm131, %v5957, 0.0
  %v5983 = vadd.f32 %v5981, %v5982
  %v5984 = vsel %vm131, %v5960, 0.0
  %v5985 = vadd.f32 %v5983, %v5984
  %v5986 = vrot.slane %v5985, 4
  %v5987 = vadd.f32 %v5985, %v5986
  %v5988 = vrot.slane %v5987, 2
  %v5989 = vadd.f32 %v5987, %v5988
  %v5990 = vrot.slane %v5989, 1
  %v5991 = vadd.f32 %v5989, %v5990
  %v5992 = vsel %vm1073, %v5926, %v5969
  %v5993 = vsel %vm1073, %v5935, %v5978
  %v5994 = vsel %vm1073, %v5948, %v5991
  %v5995 = vsel %vm131, %v5994, 0.0
  %v5996 = vadd.f32 %v5992, %v5995
  %v5997 = vadd.f32 %v5993, 0.0
  %v5998 = vadd.f32 %v5996, %v5997
  %6000 = vrot.lane.b32.xlu0 %v5998, 64
  %v6001 = vpop.permute.xlu0 %6000
  %v6003 = vadd.f32 %v5998, %v6001
  %v6004 = vmul.f32 %v6003, 0.02
  %v6005 = vmul.f32 %v6004, %v6004
  %v6007 = vrot.slane %v6005, 7
  %v6009 = vsub.f32 %v6004, %v6007
  %v6010 = vmax.f32 %v6009, 0.0
  %v6011 = vadd.f32 %v6010, 1e-05
  %v6012 = vrsqrt.pop %v6011
  %v6013 = vmul.f32 %v29, %v6012
  %v6015 = vrot.slane %v6013, 1
  %v6017 = vmul.f32 %v6004, %v6015
  %v6019 = vrot.slane %v6017, 7
  %v6021 = vsub.f32 %v30, %v6019
  %v6022 = vsel %vm1073, %v6015, %v6021
  %6024 = vrot.lane.b32.xlu0 %v6022, 64
  %v6025 = vpop.permute.xlu0 %6024
  %v6027 = vsel %vm131, %v6022, %v6025
  %v6028 = vlaneseq
  %v6029 = vshrl.u32 %v6028, 7
  %v6030 = vsub.s32 0, %v6029
  %v6031 = vrot.slane %v6027, %v6030
  %v6032 = vlaneseq
  %v6033 = vshrl.u32 %v6032, 7
  %v6034 = vsub.s32 0, %v6033
  %v6035 = vrot.slane %v6022, %v6034
  %v6036 = vmul.f32 %v5330, %v6031
  %v6037 = vmul.f32 %v5332, %v6031
  %v6038 = vmul.f32 %v5824, %v6035
  %v6039 = vmul.f32 %v5334, %v6031
  %v6040 = vmul.f32 %v5336, %v6031
  %v6041 = vmul.f32 %v5827, %v6035
  %v6042 = vmul.f32 %v5340, %v6031
  %v6043 = vmul.f32 %v5342, %v6031
  %v6044 = vmul.f32 %v5832, %v6035
  %v6045 = vmul.f32 %v5344, %v6031
  %v6046 = vmul.f32 %v5346, %v6031
  %v6047 = vmul.f32 %v5835, %v6035
  %v6048 = vlaneseq
  %v6049 = vshrl.u32 %v6048, 7
  %v6050 = vsub.s32 1, %v6049
  %v6051 = vrot.slane %v6027, %v6050
  %v6052 = vlaneseq
  %v6053 = vshrl.u32 %v6052, 7
  %v6054 = vsub.s32 1, %v6053
  %v6055 = vrot.slane %v6022, %v6054
  %v6056 = vadd.f32 %v6036, %v6051
  %v6057 = vadd.f32 %v6037, %v6051
  %v6058 = vadd.f32 %v6038, %v6055
  %v6059 = vadd.f32 %v6039, %v6051
  %v6060 = vadd.f32 %v6040, %v6051
  %v6061 = vadd.f32 %v6041, %v6055
  %v6062 = vadd.f32 %v6042, %v6051
  %v6063 = vadd.f32 %v6043, %v6051
  %v6064 = vadd.f32 %v6044, %v6055
  %v6065 = vadd.f32 %v6045, %v6051
  %v6066 = vadd.f32 %v6046, %v6051
  %v6067 = vadd.f32 %v6047, %v6055
  %v6068 = vmax.f32 %v6056, 0.0
  %v6069 = vmax.f32 %v6057, 0.0
  %v6070 = vmax.f32 %v6058, 0.0
  %v6071 = vmax.f32 %v6059, 0.0
  %v6072 = vmax.f32 %v6060, 0.0
  %v6073 = vmax.f32 %v6061, 0.0
  %v6074 = vmax.f32 %v6062, 0.0
  %v6075 = vmax.f32 %v6063, 0.0
  %v6076 = vmax.f32 %v6064, 0.0
  %v6077 = vmax.f32 %v6065, 0.0
  %v6078 = vmax.f32 %v6066, 0.0
  %v6079 = vmax.f32 %v6067, 0.0
  %6092 = vrot.lane.b32.xlu0 %v6068, 64
  %v6093 = vpop.permute.xlu0 %6092
  %6094 = vrot.lane.b32.xlu0 %v6069, 64
  %v6095 = vpop.permute.xlu0 %6094
  %6096 = vrot.lane.b32.xlu0 %v6070, 64
  %v6097 = vpop.permute.xlu0 %6096
  %6098 = vrot.lane.b32.xlu0 %v6071, 64
  %v6099 = vpop.permute.xlu0 %6098
  %6100 = vrot.lane.b32.xlu0 %v6072, 64
  %v6101 = vpop.permute.xlu0 %6100
  %6102 = vrot.lane.b32.xlu0 %v6073, 64
  %v6103 = vpop.permute.xlu0 %6102
  %6104 = vrot.lane.b32.xlu0 %v6074, 64
  %v6105 = vpop.permute.xlu0 %6104
  %6106 = vrot.lane.b32.xlu0 %v6075, 64
  %v6107 = vpop.permute.xlu0 %6106
  %6108 = vrot.lane.b32.xlu0 %v6076, 64
  %v6109 = vpop.permute.xlu0 %6108
  %6110 = vrot.lane.b32.xlu0 %v6077, 64
  %v6111 = vpop.permute.xlu0 %6110
  %6112 = vrot.lane.b32.xlu0 %v6078, 64
  %v6113 = vpop.permute.xlu0 %6112
  %6114 = vrot.lane.b32.xlu0 %v6079, 64
  %v6115 = vpop.permute.xlu0 %6114
  %v6116 = vsel %vm131, %v6093, %v6095
  %v6117 = vsel %vm131, %v6095, %v6097
  %v6118 = vsel %vm131, %v6099, %v6101
  %v6119 = vsel %vm131, %v6101, %v6103
  %v6120 = vsel %vm131, %v6105, %v6107
  %v6121 = vsel %vm131, %v6107, %v6109
  %v6122 = vsel %vm131, %v6111, %v6113
  %v6123 = vsel %vm131, %v6113, %v6115
  %v6132 = vmax.f32 %v6068, %v6116
  %v6133 = vmax.f32 %v6069, %v6117
  %v6134 = vmax.f32 %v6071, %v6118
  %v6135 = vmax.f32 %v6072, %v6119
  %v6136 = vmax.f32 %v6074, %v6120
  %v6137 = vmax.f32 %v6075, %v6121
  %v6138 = vmax.f32 %v6077, %v6122
  %v6139 = vmax.f32 %v6078, %v6123
  %v6148 = vrot.slane %v6132, 2
  %v6149 = vrot.slane %v6134, 2
  %v6150 = vsel %vm1604, %v6148, %v6149
  %v6151 = vrot.slane %v6133, 2
  %v6152 = vrot.slane %v6135, 2
  %v6153 = vsel %vm1604, %v6151, %v6152
  %v6154 = vrot.slane %v6136, 2
  %v6155 = vsel %vm1604, %v6149, %v6154
  %v6156 = vrot.slane %v6137, 2
  %v6157 = vsel %vm1604, %v6152, %v6156
  %v6158 = vrot.slane %v6138, 2
  %v6159 = vsel %vm1604, %v6154, %v6158
  %v6160 = vrot.slane %v6139, 2
  %v6161 = vsel %vm1604, %v6156, %v6160
  %v6170 = vsel %vm1604, %v6158, 0.0
  %v6171 = vsel %vm1604, %v6160, 0.0
  %v6172 = vmax.f32 %v6132, %v6150
  %v6173 = vmax.f32 %v6133, %v6153
  %v6174 = vmax.f32 %v6134, %v6155
  %v6175 = vmax.f32 %v6135, %v6157
  %v6176 = vmax.f32 %v6136, %v6159
  %v6177 = vmax.f32 %v6137, %v6161
  %v6178 = vmax.f32 %v6138, %v6170
  %v6179 = vmax.f32 %v6139, %v6171
  %v6180 = vpack.c.bf16 %v6174, %v6172
  %v6181 = vpack.c.bf16 %v6175, %v6173
  %v6182 = vpack.c.bf16 %v6178, %v6176
  %v6183 = vpack.c.bf16 %v6179, %v6177
  %vm6188 = vcmask 1041408
  %v6189 = vrot.slane %v6180, 6
  %v6190 = vrot.slane %v6181, 6
  %v6191 = vrot.slane %v6182, 6
  %v6192 = vsel %vm6188, %v6189, %v6191
  %v6193 = vrot.slane %v6183, 6
  %v6194 = vsel %vm6188, %v6190, %v6193
  %vm6197 = vcmask 1041408
  %v6199 = vsel %vm6197, 0, %v6189
  %v6202 = vsel %vm6197, 0, %v6190
  %v6204 = vadd.s32 %v80, 4294967292
  %v6205 = vadd.s32 %v81, 4294967292
  %v6206 = vadd.s32 %v82, 4294967292
  %v6207 = vadd.s32 %v83, 4294967292
  %vm6208 = vcmp.ge.s32.totalorder %v6204, 0
  %vm6209 = vcmp.ge.s32.totalorder %v6205, 0
  %vm6210 = vcmp.ge.s32.totalorder %v6206, 0
  %vm6211 = vcmp.ge.s32.totalorder %v6207, 0
  %vm6212 = vcmp.lt.s32.totalorder %v6204, 8
  %vm6213 = vcmp.lt.s32.totalorder %v6205, 8
  %vm6214 = vcmp.lt.s32.totalorder %v6206, 8
  %vm6215 = vcmp.lt.s32.totalorder %v6207, 8
  %vm6216 = vmand %vm6208, %vm6212
  %vm6217 = vmand %vm6209, %vm6213
  %vm6218 = vmand %vm6210, %vm6214
  %vm6219 = vmand %vm6211, %vm6215
  %v6220 = vsel %vm6216, 1, 0
  %v6221 = vsel %vm6217, 1, 0
  %v6222 = vsel %vm6218, 1, 0
  %v6223 = vsel %vm6219, 1, 0
  %vm6224 = vcmp.eq.s32.totalorder %v6220, 1
  %vm6225 = vcmp.eq.s32.totalorder %v6221, 1
  %vm6226 = vcmp.eq.s32.totalorder %v6222, 1
  %vm6227 = vcmp.eq.s32.totalorder %v6223, 1
  %vm6228 = vmpackc.low %vm6224, %vm6224
  %vm6229 = vmpackc.low %vm6225, %vm6225
  %vm6230 = vmpackc.low %vm6226, %vm6226
  %vm6231 = vmpackc.low %vm6227, %vm6227
  %v6232 = vsel %vm6228, 65537, 0
  %v6233 = vsel %vm6229, 65537, 0
  %v6234 = vsel %vm6230, 65537, 0
  %v6235 = vsel %vm6231, 65537, 0
  %v6236 = vunpack.c.l.b16 %v6232
  %v6237 = vunpack.c.l.b16 %v6233
  %v6238 = vunpack.c.l.b16 %v6234
  %v6239 = vunpack.c.l.b16 %v6235
  %v6240 = vpack.c.b16 %v6237, %v6236
  %v6241 = vpack.c.b16 %v6239, %v6238
  %vm6242 = vcmp.ne.s16.totalorder %v6240, 0
  %vm6243 = vcmp.ne.s16.totalorder %v6241, 0
  %v6244 = vsel %vm6242, %v6199, 0
  %v6245 = vsel %vm6242, %v6202, 0
  %v6246 = vsel %vm6243, %v6192, 0
  %v6247 = vsel %vm6243, %v6194, 0
  %v6248 = vrot.slane %v6180, 2
  %v6249 = vrot.slane %v6182, 2
  %v6250 = vsel %vm1576, %v6248, %v6249
  %v6251 = vrot.slane %v6181, 2
  %v6252 = vrot.slane %v6183, 2
  %v6253 = vsel %vm1576, %v6251, %v6252
  %v6257 = vsel %vm1604, %v6249, 0
  %v6260 = vsel %vm1604, %v6252, 0
  %v6262 = vadd.s32 %v80, 4
  %v6263 = vadd.s32 %v81, 4
  %v6264 = vadd.s32 %v82, 4
  %v6265 = vadd.s32 %v83, 4
  %vm6266 = vcmp.ge.s32.totalorder %v6262, 0
  %vm6267 = vcmp.ge.s32.totalorder %v6263, 0
  %vm6268 = vcmp.ge.s32.totalorder %v6264, 0
  %vm6269 = vcmp.ge.s32.totalorder %v6265, 0
  %vm6270 = vcmp.lt.s32.totalorder %v6262, 8
  %vm6271 = vcmp.lt.s32.totalorder %v6263, 8
  %vm6272 = vcmp.lt.s32.totalorder %v6264, 8
  %vm6273 = vcmp.lt.s32.totalorder %v6265, 8
  %vm6274 = vmand %vm6266, %vm6270
  %vm6275 = vmand %vm6267, %vm6271
  %vm6276 = vmand %vm6268, %vm6272
  %vm6277 = vmand %vm6269, %vm6273
  %v6278 = vsel %vm6274, 1, 0
  %v6279 = vsel %vm6275, 1, 0
  %v6280 = vsel %vm6276, 1, 0
  %v6281 = vsel %vm6277, 1, 0
  %vm6282 = vcmp.eq.s32.totalorder %v6278, 1
  %vm6283 = vcmp.eq.s32.totalorder %v6279, 1
  %vm6284 = vcmp.eq.s32.totalorder %v6280, 1
  %vm6285 = vcmp.eq.s32.totalorder %v6281, 1
  %vm6286 = vmpackc.low %vm6282, %vm6282
  %vm6287 = vmpackc.low %vm6283, %vm6283
  %vm6288 = vmpackc.low %vm6284, %vm6284
  %vm6289 = vmpackc.low %vm6285, %vm6285
  %v6290 = vsel %vm6286, 65537, 0
  %v6291 = vsel %vm6287, 65537, 0
  %v6292 = vsel %vm6288, 65537, 0
  %v6293 = vsel %vm6289, 65537, 0
  %v6294 = vunpack.c.l.b16 %v6290
  %v6295 = vunpack.c.l.b16 %v6291
  %v6296 = vunpack.c.l.b16 %v6292
  %v6297 = vunpack.c.l.b16 %v6293
  %v6298 = vpack.c.b16 %v6295, %v6294
  %v6299 = vpack.c.b16 %v6297, %v6296
  %vm6300 = vcmp.ne.s16.totalorder %v6298, 0
  %vm6301 = vcmp.ne.s16.totalorder %v6299, 0
  %v6302 = vsel %vm6300, %v6250, 0
  %v6303 = vsel %vm6300, %v6253, 0
  %v6304 = vsel %vm6301, %v6257, 0
  %v6305 = vsel %vm6301, %v6260, 0
  %v6306 = vld [vmem:[%s3] sm:$0xf]
  %v6307 = vld [vmem:[%s3 + $0x4] sm:$0xf]
  %v6308 = vld [vmem:[%s3 + $0x8] sm:$0xf]
  %v6309 = vld [vmem:[%s3 + $0xc] sm:$0xf]
  %v6310 = vld [vmem:[%s3 + $0x10] sm:$0xf]
  %v6311 = vld [vmem:[%s3 + $0x14] sm:$0xf]
  %v6312 = vld [vmem:[%s3 + $0x18] sm:$0xf]
  %v6313 = vld [vmem:[%s3 + $0x1c] sm:$0xf]
  %v6314 = vld [vmem:[%s3 + $0x20] sm:$0xf]
  %v6315 = vld [vmem:[%s3 + $0x24] sm:$0xf]
  %v6316 = vld [vmem:[%s3 + $0x28] sm:$0xf]
  %v6317 = vld [vmem:[%s3 + $0x2c] sm:$0xf]
  %v6318 = vld [vmem:[%s3 + $0x30] sm:$0xf]
  %v6319 = vld [vmem:[%s3 + $0x34] sm:$0xf]
  %v6320 = vld [vmem:[%s3 + $0x38] sm:$0xf]
  %v6321 = vld [vmem:[%s3 + $0x3c] sm:$0xf]
  %v6322 = vld [vmem:[%s3 + $0x40] sm:$0xf]
  %v6323 = vld [vmem:[%s3 + $0x44] sm:$0xf]
  %v6324 = vld [vmem:[%s3 + $0x48] sm:$0xf]
  %v6325 = vld [vmem:[%s3 + $0x4c] sm:$0xf]
  %v6326 = vld [vmem:[%s3 + $0x50] sm:$0xf]
  %v6327 = vld [vmem:[%s3 + $0x54] sm:$0xf]
  %v6328 = vld [vmem:[%s3 + $0x58] sm:$0xf]
  %v6329 = vld [vmem:[%s3 + $0x5c] sm:$0xf]
  %v6330 = vld [vmem:[%s3 + $0x60] sm:$0xf]
  %v6331 = vld [vmem:[%s3 + $0x64] sm:$0xf]
  %v6332 = vld [vmem:[%s3 + $0x68] sm:$0xf]
  %v6333 = vld [vmem:[%s3 + $0x6c] sm:$0xf]
  %v6334 = vld [vmem:[%s3 + $0x70] sm:$0xf]
  %v6335 = vld [vmem:[%s3 + $0x74] sm:$0xf]
  %v6336 = vld [vmem:[%s3 + $0x78] sm:$0xf]
  %v6337 = vld [vmem:[%s3 + $0x7c] sm:$0xf]
  %v6338 = vld [vmem:[%s3 + $0x80] sm:$0xf]
  %v6339 = vld [vmem:[%s3 + $0x84] sm:$0xf]
  %v6340 = vld [vmem:[%s3 + $0x88] sm:$0xf]
  %v6341 = vld [vmem:[%s3 + $0x8c] sm:$0xf]
  %v6342 = vld [vmem:[%s3 + $0x90] sm:$0xf]
  %v6343 = vld [vmem:[%s3 + $0x94] sm:$0xf]
  %v6344 = vld [vmem:[%s3 + $0x98] sm:$0xf]
  %v6345 = vld [vmem:[%s3 + $0x9c] sm:$0xf]
  %v6346 = vld [vmem:[%s3 + $0xa0] sm:$0xf]
  %v6347 = vld [vmem:[%s3 + $0xa4] sm:$0xf]
  %v6348 = vld [vmem:[%s3 + $0xa8] sm:$0xf]
  %v6349 = vld [vmem:[%s3 + $0xac] sm:$0xf]
  %v6350 = vld [vmem:[%s3 + $0xb0] sm:$0xf]
  %v6351 = vld [vmem:[%s3 + $0xb4] sm:$0xf]
  %v6352 = vld [vmem:[%s3 + $0xb8] sm:$0xf]
  %v6353 = vld [vmem:[%s3 + $0xbc] sm:$0xf]
  %v6354 = vld [vmem:[%s3 + $0xc0] sm:$0xf]
  %v6355 = vld [vmem:[%s3 + $0xc4] sm:$0xf]
  %v6356 = vld [vmem:[%s3 + $0xc8] sm:$0xf]
  %v6357 = vld [vmem:[%s3 + $0xcc] sm:$0xf]
  %v6358 = vld [vmem:[%s3 + $0xd0] sm:$0xf]
  %v6359 = vld [vmem:[%s3 + $0xd4] sm:$0xf]
  %v6360 = vld [vmem:[%s3 + $0xd8] sm:$0xf]
  %v6361 = vld [vmem:[%s3 + $0xdc] sm:$0xf]
  %v6362 = vld [vmem:[%s3 + $0xe0] sm:$0xf]
  %v6363 = vld [vmem:[%s3 + $0xe4] sm:$0xf]
  %v6364 = vld [vmem:[%s3 + $0xe8] sm:$0xf]
  %v6365 = vld [vmem:[%s3 + $0xec] sm:$0xf]
  %v6366 = vld [vmem:[%s3 + $0xf0] sm:$0xf]
  %v6367 = vld [vmem:[%s3 + $0xf4] sm:$0xf]
  %v6368 = vld [vmem:[%s3 + $0xf8] sm:$0xf]
  %v6369 = vld [vmem:[%s3 + $0xfc] sm:$0xf]
  %v6370 = vld [vmem:[%s3 + $0x100] sm:$0xf]
  %v6371 = vld [vmem:[%s3 + $0x104] sm:$0xf]
  %v6372 = vld [vmem:[%s3 + $0x108] sm:$0xf]
  %v6373 = vld [vmem:[%s3 + $0x10c] sm:$0xf]
  %v6374 = vld [vmem:[%s3 + $0x110] sm:$0xf]
  %v6375 = vld [vmem:[%s3 + $0x114] sm:$0xf]
  %v6376 = vld [vmem:[%s3 + $0x118] sm:$0xf]
  %v6377 = vld [vmem:[%s3 + $0x11c] sm:$0xf]
  %v6378 = vld [vmem:[%s3 + $0x120] sm:$0xf]
  %v6379 = vld [vmem:[%s3 + $0x124] sm:$0xf]
  %v6380 = vld [vmem:[%s3 + $0x128] sm:$0xf]
  %v6381 = vld [vmem:[%s3 + $0x12c] sm:$0xf]
  %v6382 = vld [vmem:[%s3 + $0x130] sm:$0xf]
  %v6383 = vld [vmem:[%s3 + $0x134] sm:$0xf]
  %v6384 = vld [vmem:[%s3 + $0x138] sm:$0xf]
  %v6385 = vld [vmem:[%s3 + $0x13c] sm:$0xf]
  %v6386 = vld [vmem:[%s3 + $0x140] sm:$0xf]
  %v6387 = vld [vmem:[%s3 + $0x144] sm:$0xf]
  %v6388 = vld [vmem:[%s3 + $0x148] sm:$0xf]
  %v6389 = vld [vmem:[%s3 + $0x14c] sm:$0xf]
  %v6390 = vld [vmem:[%s3 + $0x150] sm:$0xf]
  %v6391 = vld [vmem:[%s3 + $0x154] sm:$0xf]
  %v6392 = vld [vmem:[%s3 + $0x158] sm:$0xf]
  %v6393 = vld [vmem:[%s3 + $0x15c] sm:$0xf]
  %v6394 = vld [vmem:[%s3 + $0x160] sm:$0xf]
  %v6395 = vld [vmem:[%s3 + $0x164] sm:$0xf]
  %v6396 = vld [vmem:[%s3 + $0x168] sm:$0xf]
  %v6397 = vld [vmem:[%s3 + $0x16c] sm:$0xf]
  %v6398 = vld [vmem:[%s3 + $0x170] sm:$0xf]
  %v6399 = vld [vmem:[%s3 + $0x174] sm:$0xf]
  %v6400 = vld [vmem:[%s3 + $0x178] sm:$0xf]
  %v6401 = vld [vmem:[%s3 + $0x17c] sm:$0xf]
  %v6498 = vunpack.c.l.b16 %v6306
  %v6499 = vunpack.c.l.b16 %v6307
  %v6500 = vunpack.c.l.b16 %v6308
  %v6501 = vunpack.c.l.b16 %v6309
  %v6502 = vunpack.c.l.b16 %v6310
  %v6503 = vunpack.c.l.b16 %v6311
  %v6504 = vunpack.c.l.b16 %v6312
  %v6505 = vunpack.c.l.b16 %v6313
  %v6506 = vunpack.c.l.b16 %v6314
  %v6507 = vunpack.c.l.b16 %v6315
  %v6508 = vunpack.c.l.b16 %v6316
  %v6509 = vunpack.c.l.b16 %v6317
  %v6510 = vunpack.c.l.b16 %v6318
  %v6511 = vunpack.c.l.b16 %v6319
  %v6512 = vunpack.c.l.b16 %v6320
  %v6513 = vunpack.c.l.b16 %v6321
  %v6514 = vunpack.c.l.b16 %v6322
  %v6515 = vunpack.c.l.b16 %v6323
  %v6516 = vunpack.c.l.b16 %v6324
  %v6517 = vunpack.c.l.b16 %v6325
  %v6518 = vunpack.c.l.b16 %v6326
  %v6519 = vunpack.c.l.b16 %v6327
  %v6520 = vunpack.c.l.b16 %v6328
  %v6521 = vunpack.c.l.b16 %v6329
  %v6522 = vunpack.c.l.b16 %v6330
  %v6523 = vunpack.c.l.b16 %v6331
  %v6524 = vunpack.c.l.b16 %v6332
  %v6525 = vunpack.c.l.b16 %v6333
  %v6526 = vunpack.c.l.b16 %v6334
  %v6527 = vunpack.c.l.b16 %v6335
  %v6528 = vunpack.c.l.b16 %v6336
  %v6529 = vunpack.c.l.b16 %v6337
  %v6530 = vunpack.c.l.b16 %v6338
  %v6531 = vunpack.c.l.b16 %v6339
  %v6532 = vunpack.c.l.b16 %v6340
  %v6533 = vunpack.c.l.b16 %v6341
  %v6534 = vunpack.c.l.b16 %v6342
  %v6535 = vunpack.c.l.b16 %v6343
  %v6536 = vunpack.c.l.b16 %v6344
  %v6537 = vunpack.c.l.b16 %v6345
  %v6538 = vunpack.c.l.b16 %v6346
  %v6539 = vunpack.c.l.b16 %v6347
  %v6540 = vunpack.c.l.b16 %v6348
  %v6541 = vunpack.c.l.b16 %v6349
  %v6542 = vunpack.c.l.b16 %v6350
  %v6543 = vunpack.c.l.b16 %v6351
  %v6544 = vunpack.c.l.b16 %v6352
  %v6545 = vunpack.c.l.b16 %v6353
  %v6546 = vunpack.c.l.b16 %v6354
  %v6547 = vunpack.c.l.b16 %v6355
  %v6548 = vunpack.c.l.b16 %v6356
  %v6549 = vunpack.c.l.b16 %v6357
  %v6550 = vunpack.c.l.b16 %v6358
  %v6551 = vunpack.c.l.b16 %v6359
  %v6552 = vunpack.c.l.b16 %v6360
  %v6553 = vunpack.c.l.b16 %v6361
  %v6554 = vunpack.c.l.b16 %v6362
  %v6555 = vunpack.c.l.b16 %v6363
  %v6556 = vunpack.c.l.b16 %v6364
  %v6557 = vunpack.c.l.b16 %v6365
  %v6558 = vunpack.c.l.b16 %v6366
  %v6559 = vunpack.c.l.b16 %v6367
  %v6560 = vunpack.c.l.b16 %v6368
  %v6561 = vunpack.c.l.b16 %v6369
  %v6562 = vunpack.c.l.b16 %v6370
  %v6563 = vunpack.c.l.b16 %v6371
  %v6564 = vunpack.c.l.b16 %v6372
  %v6565 = vunpack.c.l.b16 %v6373
  %v6566 = vunpack.c.l.b16 %v6374
  %v6567 = vunpack.c.l.b16 %v6375
  %v6568 = vunpack.c.l.b16 %v6376
  %v6569 = vunpack.c.l.b16 %v6377
  %v6570 = vunpack.c.l.b16 %v6378
  %v6571 = vunpack.c.l.b16 %v6379
  %v6572 = vunpack.c.l.b16 %v6380
  %v6573 = vunpack.c.l.b16 %v6381
  %v6574 = vunpack.c.l.b16 %v6382
  %v6575 = vunpack.c.l.b16 %v6383
  %v6576 = vunpack.c.l.b16 %v6384
  %v6577 = vunpack.c.l.b16 %v6385
  %v6578 = vunpack.c.l.b16 %v6386
  %v6579 = vunpack.c.l.b16 %v6387
  %v6580 = vunpack.c.l.b16 %v6388
  %v6581 = vunpack.c.l.b16 %v6389
  %v6582 = vunpack.c.l.b16 %v6390
  %v6583 = vunpack.c.l.b16 %v6391
  %v6584 = vunpack.c.l.b16 %v6392
  %v6585 = vunpack.c.l.b16 %v6393
  %v6586 = vunpack.c.l.b16 %v6394
  %v6587 = vunpack.c.l.b16 %v6395
  %v6588 = vunpack.c.l.b16 %v6396
  %v6589 = vunpack.c.l.b16 %v6397
  %v6590 = vunpack.c.l.b16 %v6398
  %v6591 = vunpack.c.l.b16 %v6399
  %v6592 = vunpack.c.l.b16 %v6400
  %v6593 = vunpack.c.l.b16 %v6401
  %v6594 = vpack.c.b16 %v6499, %v6498
  %v6595 = vpack.c.b16 %v6501, %v6500
  %v6596 = vpack.c.b16 %v6503, %v6502
  %v6597 = vpack.c.b16 %v6505, %v6504
  %v6598 = vpack.c.b16 %v6507, %v6506
  %v6599 = vpack.c.b16 %v6509, %v6508
  %v6600 = vpack.c.b16 %v6511, %v6510
  %v6601 = vpack.c.b16 %v6513, %v6512
  %v6602 = vpack.c.b16 %v6515, %v6514
  %v6603 = vpack.c.b16 %v6517, %v6516
  %v6604 = vpack.c.b16 %v6519, %v6518
  %v6605 = vpack.c.b16 %v6521, %v6520
  %v6606 = vpack.c.b16 %v6523, %v6522
  %v6607 = vpack.c.b16 %v6525, %v6524
  %v6608 = vpack.c.b16 %v6527, %v6526
  %v6609 = vpack.c.b16 %v6529, %v6528
  %v6610 = vpack.c.b16 %v6531, %v6530
  %v6611 = vpack.c.b16 %v6533, %v6532
  %v6612 = vpack.c.b16 %v6535, %v6534
  %v6613 = vpack.c.b16 %v6537, %v6536
  %v6614 = vpack.c.b16 %v6539, %v6538
  %v6615 = vpack.c.b16 %v6541, %v6540
  %v6616 = vpack.c.b16 %v6543, %v6542
  %v6617 = vpack.c.b16 %v6545, %v6544
  %v6618 = vpack.c.b16 %v6547, %v6546
  %v6619 = vpack.c.b16 %v6549, %v6548
  %v6620 = vpack.c.b16 %v6551, %v6550
  %v6621 = vpack.c.b16 %v6553, %v6552
  %v6622 = vpack.c.b16 %v6555, %v6554
  %v6623 = vpack.c.b16 %v6557, %v6556
  %v6624 = vpack.c.b16 %v6559, %v6558
  %v6625 = vpack.c.b16 %v6561, %v6560
  %v6626 = vpack.c.b16 %v6563, %v6562
  %v6627 = vpack.c.b16 %v6565, %v6564
  %v6628 = vpack.c.b16 %v6567, %v6566
  %v6629 = vpack.c.b16 %v6569, %v6568
  %v6630 = vpack.c.b16 %v6571, %v6570
  %v6631 = vpack.c.b16 %v6573, %v6572
  %v6632 = vpack.c.b16 %v6575, %v6574
  %v6633 = vpack.c.b16 %v6577, %v6576
  %v6634 = vpack.c.b16 %v6579, %v6578
  %v6635 = vpack.c.b16 %v6581, %v6580
  %v6636 = vpack.c.b16 %v6583, %v6582
  %v6637 = vpack.c.b16 %v6585, %v6584
  %v6638 = vpack.c.b16 %v6587, %v6586
  %v6639 = vpack.c.b16 %v6589, %v6588
  %v6640 = vpack.c.b16 %v6591, %v6590
  %v6641 = vpack.c.b16 %v6593, %v6592
  %6690 = vmatprep.subr.bf16.mxu0 0
  %6691 = vmatpush1.bf16.msra.mxu0 %v6594
  %6692 = vmatprep.subr.bf16.mxu0 0
  %6693 = vmatpush1.bf16.msra.mxu0 %v6595
  %6694 = vmatprep.subr.bf16.mxu0 0
  %6695 = vmatpush1.bf16.msra.mxu0 %v6596
  %6696 = vmatprep.subr.bf16.mxu0 0
  %6697 = vmatpush1.bf16.msra.mxu0 %v6597
  %6698 = vmatprep.subr.bf16.mxu0 0
  %6699 = vmatpush1.bf16.msra.mxu0 %v6598
  %6700 = vmatprep.subr.bf16.mxu0 0
  %6701 = vmatpush1.bf16.msra.mxu0 %v6599
  %6702 = vmatprep.subr.bf16.mxu0 0
  %6703 = vmatpush1.bf16.msra.mxu0 %v6600
  %6704 = vmatprep.subr.bf16.mxu0 0
  %6705 = vmatpush1.bf16.msra.mxu0 %v6601
  %6706 = vmatprep.subr.bf16.mxu0 0
  %6707 = vmatpush1.bf16.msra.mxu0 %v6602
  %6708 = vmatprep.subr.bf16.mxu0 0
  %6709 = vmatpush1.bf16.msra.mxu0 %v6603
  %6710 = vmatprep.subr.bf16.mxu0 0
  %6711 = vmatpush1.bf16.msra.mxu0 %v6604
  %6712 = vmatprep.subr.bf16.mxu0 0
  %6713 = vmatpush1.bf16.msra.mxu0 %v6605
  %6714 = vmatprep.subr.bf16.mxu0 0
  %6715 = vmatpush1.bf16.msra.mxu0 %v6606
  %6716 = vmatprep.subr.bf16.mxu0 0
  %6717 = vmatpush1.bf16.msra.mxu0 %v6607
  %6718 = vmatprep.subr.bf16.mxu0 0
  %6719 = vmatpush1.bf16.msra.mxu0 %v6608
  %6720 = vmatprep.subr.bf16.mxu0 0
  %6721 = vmatpush1.bf16.msra.mxu0 %v6609
  %6722 = vmatprep.mubr.bf16.mxu0 %v6245
  %6723 = vmatmul.mubr.bf16.gmra.mrb[0].mxu0 %v6244
  %v6724 = vpop.f32.mrb[0].mxu0
  %v6725 = vadd.f32 0.0, %v6724
  %v6726 = vpop.f32.mrb[0].mxu0
  %v6727 = vpop.f32.mrb[0].mxu0
  %v6728 = vadd.f32 0.0, %v6727
  %v6729 = vpop.f32.mrb[0].mxu0
  %6730 = vmatprep.mubr.bf16.mxu0 %v6247
  %6731 = vmatmul.mubr.bf16.gmra.mrb[0].mxu0 %v6246
  %v6732 = vpop.f32.mrb[0].mxu0
  %v6733 = vadd.f32 0.0, %v6732
  %v6734 = vpop.f32.mrb[0].mxu0
  %v6735 = vpop.f32.mrb[0].mxu0
  %v6736 = vadd.f32 0.0, %v6735
  %v6737 = vpop.f32.mrb[0].mxu0
  %6738 = vdwg.mxu0
  %6739 = vmatprep.subr.bf16.mxu0 0
  %6740 = vmatpush1.bf16.msra.mxu0 %v6610
  %6741 = vmatprep.subr.bf16.mxu0 0
  %6742 = vmatpush1.bf16.msra.mxu0 %v6611
  %6743 = vmatprep.subr.bf16.mxu0 0
  %6744 = vmatpush1.bf16.msra.mxu0 %v6612
  %6745 = vmatprep.subr.bf16.mxu0 0
  %6746 = vmatpush1.bf16.msra.mxu0 %v6613
  %6747 = vmatprep.subr.bf16.mxu0 0
  %6748 = vmatpush1.bf16.msra.mxu0 %v6614
  %6749 = vmatprep.subr.bf16.mxu0 0
  %6750 = vmatpush1.bf16.msra.mxu0 %v6615
  %6751 = vmatprep.subr.bf16.mxu0 0
  %6752 = vmatpush1.bf16.msra.mxu0 %v6616
  %6753 = vmatprep.subr.bf16.mxu0 0
  %6754 = vmatpush1.bf16.msra.mxu0 %v6617
  %6755 = vmatprep.subr.bf16.mxu0 0
  %6756 = vmatpush1.bf16.msra.mxu0 %v6618
  %6757 = vmatprep.subr.bf16.mxu0 0
  %6758 = vmatpush1.bf16.msra.mxu0 %v6619
  %6759 = vmatprep.subr.bf16.mxu0 0
  %6760 = vmatpush1.bf16.msra.mxu0 %v6620
  %6761 = vmatprep.subr.bf16.mxu0 0
  %6762 = vmatpush1.bf16.msra.mxu0 %v6621
  %6763 = vmatprep.subr.bf16.mxu0 0
  %6764 = vmatpush1.bf16.msra.mxu0 %v6622
  %6765 = vmatprep.subr.bf16.mxu0 0
  %6766 = vmatpush1.bf16.msra.mxu0 %v6623
  %6767 = vmatprep.subr.bf16.mxu0 0
  %6768 = vmatpush1.bf16.msra.mxu0 %v6624
  %6769 = vmatprep.subr.bf16.mxu0 0
  %6770 = vmatpush1.bf16.msra.mxu0 %v6625
  %6771 = vmatprep.mubr.bf16.mxu0 %v6181
  %6772 = vmatmul.mubr.bf16.gmra.mrb[0].mxu0 %v6180
  %v6773 = vpop.f32.mrb[0].mxu0
  %v6774 = vadd.f32 %v6725, %v6773
  %v6775 = vpop.f32.mrb[0].mxu0
  %v6776 = vpop.f32.mrb[0].mxu0
  %v6777 = vadd.f32 %v6728, %v6776
  %v6778 = vpop.f32.mrb[0].mxu0
  %6779 = vmatprep.mubr.bf16.mxu0 %v6183
  %6780 = vmatmul.mubr.bf16.gmra.mrb[0].mxu0 %v6182
  %v6781 = vpop.f32.mrb[0].mxu0
  %v6782 = vadd.f32 %v6733, %v6781
  %v6783 = vpop.f32.mrb[0].mxu0
  %v6784 = vpop.f32.mrb[0].mxu0
  %v6785 = vadd.f32 %v6736, %v6784
  %v6786 = vpop.f32.mrb[0].mxu0
  %6787 = vdwg.mxu0
  %6788 = vmatprep.subr.bf16.mxu0 0
  %6789 = vmatpush1.bf16.msra.mxu0 %v6626
  %6790 = vmatprep.subr.bf16.mxu0 0
  %6791 = vmatpush1.bf16.msra.mxu0 %v6627
  %6792 = vmatprep.subr.bf16.mxu0 0
  %6793 = vmatpush1.bf16.msra.mxu0 %v6628
  %6794 = vmatprep.subr.bf16.mxu0 0
  %6795 = vmatpush1.bf16.msra.mxu0 %v6629
  %6796 = vmatprep.subr.bf16.mxu0 0
  %6797 = vmatpush1.bf16.msra.mxu0 %v6630
  %6798 = vmatprep.subr.bf16.mxu0 0
  %6799 = vmatpush1.bf16.msra.mxu0 %v6631
  %6800 = vmatprep.subr.bf16.mxu0 0
  %6801 = vmatpush1.bf16.msra.mxu0 %v6632
  %6802 = vmatprep.subr.bf16.mxu0 0
  %6803 = vmatpush1.bf16.msra.mxu0 %v6633
  %6804 = vmatprep.subr.bf16.mxu0 0
  %6805 = vmatpush1.bf16.msra.mxu0 %v6634
  %6806 = vmatprep.subr.bf16.mxu0 0
  %6807 = vmatpush1.bf16.msra.mxu0 %v6635
  %6808 = vmatprep.subr.bf16.mxu0 0
  %6809 = vmatpush1.bf16.msra.mxu0 %v6636
  %6810 = vmatprep.subr.bf16.mxu0 0
  %6811 = vmatpush1.bf16.msra.mxu0 %v6637
  %6812 = vmatprep.subr.bf16.mxu0 0
  %6813 = vmatpush1.bf16.msra.mxu0 %v6638
  %6814 = vmatprep.subr.bf16.mxu0 0
  %6815 = vmatpush1.bf16.msra.mxu0 %v6639
  %6816 = vmatprep.subr.bf16.mxu0 0
  %6817 = vmatpush1.bf16.msra.mxu0 %v6640
  %6818 = vmatprep.subr.bf16.mxu0 0
  %6819 = vmatpush1.bf16.msra.mxu0 %v6641
  %6820 = vmatprep.mubr.bf16.mxu0 %v6303
  %6821 = vmatmul.mubr.bf16.gmra.mrb[0].mxu0 %v6302
  %v6822 = vpop.f32.mrb[0].mxu0
  %v6823 = vadd.f32 %v6774, %v6822
  %v6824 = vpop.f32.mrb[0].mxu0
  %v6825 = vpop.f32.mrb[0].mxu0
  %v6826 = vadd.f32 %v6777, %v6825
  %v6827 = vpop.f32.mrb[0].mxu0
  %6828 = vmatprep.mubr.bf16.mxu0 %v6305
  %6829 = vmatmul.mubr.bf16.gmra.mrb[0].mxu0 %v6304
  %v6830 = vpop.f32.mrb[0].mxu0
  %v6831 = vadd.f32 %v6782, %v6830
  %v6832 = vpop.f32.mrb[0].mxu0
  %v6833 = vpop.f32.mrb[0].mxu0
  %v6834 = vadd.f32 %v6785, %v6833
  %v6835 = vpop.f32.mrb[0].mxu0
  %6836 = vdwg.mxu0
  %vm6837 = vcmp.lt.s32.totalorder %v80, 8
  %vm6838 = vcmp.lt.s32.totalorder %v81, 8
  %vm6839 = vcmp.lt.s32.totalorder %v82, 8
  %vm6840 = vcmp.lt.s32.totalorder %v83, 8
  %vm6841 = vcmp.lt.s32.totalorder %v80, 0
  %v6842 = vsub.s32 0, %v80
  %v6843 = vsel %vm6841, %v6842, %v80
  %v6844 = vshrl.u32 %v6843, 2
  %v6845 = vand.u32 %v6843, 3
  %v6846 = vsub.s32 0, %v6845
  %v6847 = vsel %vm6841, %v6846, %v6845
  %vm6848 = vcmp.lt.s32.totalorder %v81, 0
  %v6849 = vsub.s32 0, %v81
  %v6850 = vsel %vm6848, %v6849, %v81
  %v6851 = vshrl.u32 %v6850, 2
  %v6852 = vand.u32 %v6850, 3
  %v6853 = vsub.s32 0, %v6852
  %v6854 = vsel %vm6848, %v6853, %v6852
  %vm6855 = vcmp.lt.s32.totalorder %v82, 0
  %v6856 = vsub.s32 0, %v82
  %v6857 = vsel %vm6855, %v6856, %v82
  %v6858 = vshrl.u32 %v6857, 2
  %v6859 = vand.u32 %v6857, 3
  %v6860 = vsub.s32 0, %v6859
  %v6861 = vsel %vm6855, %v6860, %v6859
  %vm6862 = vcmp.lt.s32.totalorder %v83, 0
  %v6863 = vsub.s32 0, %v83
  %v6864 = vsel %vm6862, %v6863, %v83
  %v6865 = vshrl.u32 %v6864, 2
  %v6866 = vand.u32 %v6864, 3
  %v6867 = vsub.s32 0, %v6866
  %v6868 = vsel %vm6862, %v6867, %v6866
  %vm6869 = vcmp.ne.s32.totalorder %v6847, 0
  %vm6870 = vcmp.ne.s32.totalorder %v6854, 0
  %vm6871 = vcmp.ne.s32.totalorder %v6861, 0
  %vm6872 = vcmp.ne.s32.totalorder %v6868, 0
  %vm6873 = vcmp.lt.s32.totalorder %v6847, 0
  %vm6874 = vcmp.lt.s32.totalorder %v6854, 0
  %vm6875 = vcmp.lt.s32.totalorder %v6861, 0
  %vm6876 = vcmp.lt.s32.totalorder %v6868, 0
  %vm6877 = vmand %vm6873, %vm6869
  %vm6878 = vmand %vm6874, %vm6870
  %vm6879 = vmand %vm6875, %vm6871
  %vm6880 = vmand %vm6876, %vm6872
  %v6881 = vadd.s32 %v6847, 4
  %v6882 = vadd.s32 %v6854, 4
  %v6883 = vadd.s32 %v6861, 4
  %v6884 = vadd.s32 %v6868, 4
  %v6885 = vsel %vm6877, %v6881, %v6847
  %v6886 = vsel %vm6878, %v6882, %v6854
  %v6887 = vsel %vm6879, %v6883, %v6861
  %v6888 = vsel %vm6880, %v6884, %v6868
  %vm6889 = vcmp.eq.s32.totalorder %v6885, 0
  %vm6890 = vcmp.eq.s32.totalorder %v6886, 0
  %vm6891 = vcmp.eq.s32.totalorder %v6887, 0
  %vm6892 = vcmp.eq.s32.totalorder %v6888, 0
  %vm6893 = vmand %vm6837, %vm6889
  %vm6894 = vmand %vm6838, %vm6890
  %vm6895 = vmand %vm6839, %vm6891
  %vm6896 = vmand %vm6840, %vm6892
  %v6897 = vsel %vm6893, 1, 0
  %v6898 = vsel %vm6894, 1, 0
  %v6899 = vsel %vm6895, 1, 0
  %v6900 = vsel %vm6896, 1, 0
  %vm6901 = vcmp.eq.s32.totalorder %v6897, 1
  %vm6902 = vcmp.eq.s32.totalorder %v6898, 1
  %vm6903 = vcmp.eq.s32.totalorder %v6899, 1
  %vm6904 = vcmp.eq.s32.totalorder %v6900, 1
  %v6905 = vsel %vm6901, %v6823, 0.0
  %v6906 = vsel %vm6902, %v6826, 0.0
  %v6907 = vsel %vm6903, %v6831, 0.0
  %v6908 = vsel %vm6904, %v6834, 0.0
  %v6909 = vadd.f32 %v6905, %v6906
  %v6910 = vadd.f32 %v6909, %v6907
  %v6911 = vadd.f32 %v6910, %v6908
  %v6912 = vrot.slane %v6911, 4
  %v6913 = vadd.f32 %v6911, %v6912
  %v6914 = vrot.slane %v6913, 2
  %v6915 = vadd.f32 %v6913, %v6914
  %v6916 = vrot.slane %v6915, 1
  %v6917 = vadd.f32 %v6915, %v6916
  %v6918 = vmul.f32 %v6905, %v6905
  %v6919 = vmul.f32 %v6906, %v6906
  %v6920 = vmul.f32 %v6907, %v6907
  %v6921 = vmul.f32 %v6908, %v6908
  %v6922 = vadd.f32 %v6918, %v6919
  %v6923 = vadd.f32 %v6922, %v6920
  %v6924 = vadd.f32 %v6923, %v6921
  %v6925 = vrot.slane %v6924, 4
  %v6926 = vadd.f32 %v6924, %v6925
  %v6927 = vrot.slane %v6926, 2
  %v6928 = vadd.f32 %v6926, %v6927
  %v6929 = vrot.slane %v6928, 1
  %v6930 = vadd.f32 %v6928, %v6929
  %v6931 = vsel %vm1073, %v6917, %v6930
  %6933 = vrot.lane.b32.xlu0 %v6931, 64
  %v6934 = vpop.permute.xlu0 %6933
  %v6936 = vadd.f32 %v6931, %v6934
  %v6937 = vmul.f32 %v6936, 0.125
  %v6938 = vmul.f32 %v6937, %v6937
  %v6940 = vrot.slane %v6938, 7
  %v6942 = vsub.f32 %v6937, %v6940
  %v6943 = vmax.f32 %v6942, 0.0
  %v6944 = vadd.f32 %v6943, 1e-05
  %v6945 = vrsqrt.pop %v6944
  %v6947 = vrot.slane %v6945, 7
  %v6949 = vmul.f32 %v29, %v6947
  %v6951 = vrot.slane %v6949, 2
  %v6953 = vmul.f32 %v6937, %v6951
  %v6955 = vrot.slane %v6953, 6
  %v6957 = vsub.f32 %v30, %v6955
  %v6959 = vrot.slane %v6957, 1
  %v6961 = vsel %vm1073, %v6951, %v6959
  %6963 = vrot.lane.b32.xlu0 %v6961, 64
  %v6964 = vpop.permute.xlu0 %6963
  %v6966 = vsel %vm131, %v6961, %v6964
  %v6967 = vlaneseq
  %v6968 = vshrl.u32 %v6967, 7
  %v6969 = vsub.s32 0, %v6968
  %v6970 = vrot.slane %v6966, %v6969
  %v6971 = vmul.f32 %v6823, %v6970
  %v6972 = vmul.f32 %v6826, %v6970
  %v6973 = vmul.f32 %v6831, %v6970
  %v6974 = vmul.f32 %v6834, %v6970
  %v6975 = vlaneseq
  %v6976 = vshrl.u32 %v6975, 7
  %v6977 = vsub.s32 1, %v6976
  %v6978 = vrot.slane %v6966, %v6977
  %v6979 = vadd.f32 %v6971, %v6978
  %v6980 = vadd.f32 %v6972, %v6978
  %v6981 = vadd.f32 %v6973, %v6978
  %v6982 = vadd.f32 %v6974, %v6978
  %v6983 = vmax.f32 %v6979, 0.0
  %v6984 = vmax.f32 %v6980, 0.0
  %v6985 = vmax.f32 %v6981, 0.0
  %v6986 = vmax.f32 %v6982, 0.0
  %v6987 = vpack.c.bf16 %v6984, %v6983
  %v6988 = vpack.c.bf16 %v6986, %v6985
  %v6991 = vrot.slane %v6987, 6
  %v6992 = vrot.slane %v6988, 6
  %v6993 = vsel %vm6188, %v6991, %v6992
  %v6996 = vsel %vm6197, 0, %v6991
  %v6998 = vsel %vm6242, %v6996, 0
  %v6999 = vsel %vm6243, %v6993, 0
  %v7000 = vrot.slane %v6987, 2
  %v7001 = vrot.slane %v6988, 2
  %v7002 = vsel %vm1576, %v7000, %v7001
  %v7005 = vsel %vm1604, %v7001, 0
  %v7007 = vsel %vm6300, %v7002, 0
  %v7008 = vsel %vm6301, %v7005, 0
  %v7009 = vld [vmem:[%s4] sm:$0xf]
  %v7010 = vld [vmem:[%s4 + $0x4] sm:$0xf]
  %v7011 = vld [vmem:[%s4 + $0x8] sm:$0xf]
  %v7012 = vld [vmem:[%s4 + $0xc] sm:$0xf]
  %v7013 = vld [vmem:[%s4 + $0x10] sm:$0xf]
  %v7014 = vld [vmem:[%s4 + $0x14] sm:$0xf]
  %v7015 = vld [vmem:[%s4 + $0x18] sm:$0xf]
  %v7016 = vld [vmem:[%s4 + $0x1c] sm:$0xf]
  %v7017 = vld [vmem:[%s4 + $0x20] sm:$0xf]
  %v7018 = vld [vmem:[%s4 + $0x24] sm:$0xf]
  %v7019 = vld [vmem:[%s4 + $0x28] sm:$0xf]
  %v7020 = vld [vmem:[%s4 + $0x2c] sm:$0xf]
  %v7021 = vld [vmem:[%s4 + $0x30] sm:$0xf]
  %v7022 = vld [vmem:[%s4 + $0x34] sm:$0xf]
  %v7023 = vld [vmem:[%s4 + $0x38] sm:$0xf]
  %v7024 = vld [vmem:[%s4 + $0x3c] sm:$0xf]
  %v7025 = vld [vmem:[%s4 + $0x40] sm:$0xf]
  %v7026 = vld [vmem:[%s4 + $0x44] sm:$0xf]
  %v7027 = vld [vmem:[%s4 + $0x48] sm:$0xf]
  %v7028 = vld [vmem:[%s4 + $0x4c] sm:$0xf]
  %v7029 = vld [vmem:[%s4 + $0x50] sm:$0xf]
  %v7030 = vld [vmem:[%s4 + $0x54] sm:$0xf]
  %v7031 = vld [vmem:[%s4 + $0x58] sm:$0xf]
  %v7032 = vld [vmem:[%s4 + $0x5c] sm:$0xf]
  %v7033 = vld [vmem:[%s4 + $0x60] sm:$0xf]
  %v7034 = vld [vmem:[%s4 + $0x64] sm:$0xf]
  %v7035 = vld [vmem:[%s4 + $0x68] sm:$0xf]
  %v7036 = vld [vmem:[%s4 + $0x6c] sm:$0xf]
  %v7037 = vld [vmem:[%s4 + $0x70] sm:$0xf]
  %v7038 = vld [vmem:[%s4 + $0x74] sm:$0xf]
  %v7039 = vld [vmem:[%s4 + $0x78] sm:$0xf]
  %v7040 = vld [vmem:[%s4 + $0x7c] sm:$0xf]
  %v7041 = vld [vmem:[%s4 + $0x80] sm:$0xf]
  %v7042 = vld [vmem:[%s4 + $0x84] sm:$0xf]
  %v7043 = vld [vmem:[%s4 + $0x88] sm:$0xf]
  %v7044 = vld [vmem:[%s4 + $0x8c] sm:$0xf]
  %v7045 = vld [vmem:[%s4 + $0x90] sm:$0xf]
  %v7046 = vld [vmem:[%s4 + $0x94] sm:$0xf]
  %v7047 = vld [vmem:[%s4 + $0x98] sm:$0xf]
  %v7048 = vld [vmem:[%s4 + $0x9c] sm:$0xf]
  %v7049 = vld [vmem:[%s4 + $0xa0] sm:$0xf]
  %v7050 = vld [vmem:[%s4 + $0xa4] sm:$0xf]
  %v7051 = vld [vmem:[%s4 + $0xa8] sm:$0xf]
  %v7052 = vld [vmem:[%s4 + $0xac] sm:$0xf]
  %v7053 = vld [vmem:[%s4 + $0xb0] sm:$0xf]
  %v7054 = vld [vmem:[%s4 + $0xb4] sm:$0xf]
  %v7055 = vld [vmem:[%s4 + $0xb8] sm:$0xf]
  %v7056 = vld [vmem:[%s4 + $0xbc] sm:$0xf]
  %v7105 = vunpack.c.l.b16 %v7009
  %v7106 = vunpack.c.l.b16 %v7010
  %v7107 = vunpack.c.l.b16 %v7011
  %v7108 = vunpack.c.l.b16 %v7012
  %v7109 = vunpack.c.l.b16 %v7013
  %v7110 = vunpack.c.l.b16 %v7014
  %v7111 = vunpack.c.l.b16 %v7015
  %v7112 = vunpack.c.l.b16 %v7016
  %v7113 = vunpack.c.l.b16 %v7017
  %v7114 = vunpack.c.l.b16 %v7018
  %v7115 = vunpack.c.l.b16 %v7019
  %v7116 = vunpack.c.l.b16 %v7020
  %v7117 = vunpack.c.l.b16 %v7021
  %v7118 = vunpack.c.l.b16 %v7022
  %v7119 = vunpack.c.l.b16 %v7023
  %v7120 = vunpack.c.l.b16 %v7024
  %v7121 = vunpack.c.l.b16 %v7025
  %v7122 = vunpack.c.l.b16 %v7026
  %v7123 = vunpack.c.l.b16 %v7027
  %v7124 = vunpack.c.l.b16 %v7028
  %v7125 = vunpack.c.l.b16 %v7029
  %v7126 = vunpack.c.l.b16 %v7030
  %v7127 = vunpack.c.l.b16 %v7031
  %v7128 = vunpack.c.l.b16 %v7032
  %v7129 = vunpack.c.l.b16 %v7033
  %v7130 = vunpack.c.l.b16 %v7034
  %v7131 = vunpack.c.l.b16 %v7035
  %v7132 = vunpack.c.l.b16 %v7036
  %v7133 = vunpack.c.l.b16 %v7037
  %v7134 = vunpack.c.l.b16 %v7038
  %v7135 = vunpack.c.l.b16 %v7039
  %v7136 = vunpack.c.l.b16 %v7040
  %v7137 = vunpack.c.l.b16 %v7041
  %v7138 = vunpack.c.l.b16 %v7042
  %v7139 = vunpack.c.l.b16 %v7043
  %v7140 = vunpack.c.l.b16 %v7044
  %v7141 = vunpack.c.l.b16 %v7045
  %v7142 = vunpack.c.l.b16 %v7046
  %v7143 = vunpack.c.l.b16 %v7047
  %v7144 = vunpack.c.l.b16 %v7048
  %v7145 = vunpack.c.l.b16 %v7049
  %v7146 = vunpack.c.l.b16 %v7050
  %v7147 = vunpack.c.l.b16 %v7051
  %v7148 = vunpack.c.l.b16 %v7052
  %v7149 = vunpack.c.l.b16 %v7053
  %v7150 = vunpack.c.l.b16 %v7054
  %v7151 = vunpack.c.l.b16 %v7055
  %v7152 = vunpack.c.l.b16 %v7056
  %v7153 = vpack.c.b16 %v7106, %v7105
  %v7154 = vpack.c.b16 %v7108, %v7107
  %v7155 = vpack.c.b16 %v7110, %v7109
  %v7156 = vpack.c.b16 %v7112, %v7111
  %v7157 = vpack.c.b16 %v7114, %v7113
  %v7158 = vpack.c.b16 %v7116, %v7115
  %v7159 = vpack.c.b16 %v7118, %v7117
  %v7160 = vpack.c.b16 %v7120, %v7119
  %v7161 = vpack.c.b16 %v7122, %v7121
  %v7162 = vpack.c.b16 %v7124, %v7123
  %v7163 = vpack.c.b16 %v7126, %v7125
  %v7164 = vpack.c.b16 %v7128, %v7127
  %v7165 = vpack.c.b16 %v7130, %v7129
  %v7166 = vpack.c.b16 %v7132, %v7131
  %v7167 = vpack.c.b16 %v7134, %v7133
  %v7168 = vpack.c.b16 %v7136, %v7135
  %v7169 = vpack.c.b16 %v7138, %v7137
  %v7170 = vpack.c.b16 %v7140, %v7139
  %v7171 = vpack.c.b16 %v7142, %v7141
  %v7172 = vpack.c.b16 %v7144, %v7143
  %v7173 = vpack.c.b16 %v7146, %v7145
  %v7174 = vpack.c.b16 %v7148, %v7147
  %v7175 = vpack.c.b16 %v7150, %v7149
  %v7176 = vpack.c.b16 %v7152, %v7151
  %7201 = vmatprep.subr.bf16.mxu0 0
  %7202 = vmatpush1.bf16.msra.mxu0 %v7153
  %7203 = vmatprep.subr.bf16.mxu0 0
  %7204 = vmatpush1.bf16.msra.mxu0 %v7154
  %7205 = vmatprep.subr.bf16.mxu0 0
  %7206 = vmatpush1.bf16.msra.mxu0 %v7155
  %7207 = vmatprep.subr.bf16.mxu0 0
  %7208 = vmatpush1.bf16.msra.mxu0 %v7156
  %7209 = vmatprep.subr.bf16.mxu0 0
  %7210 = vmatpush1.bf16.msra.mxu0 %v7157
  %7211 = vmatprep.subr.bf16.mxu0 0
  %7212 = vmatpush1.bf16.msra.mxu0 %v7158
  %7213 = vmatprep.subr.bf16.mxu0 0
  %7214 = vmatpush1.bf16.msra.mxu0 %v7159
  %7215 = vmatprep.subr.bf16.mxu0 0
  %7216 = vmatpush1.bf16.msra.mxu0 %v7160
  %7217 = vmatprep.subr.bf16.mxu0 0
  %7218 = vmatpush1.bf16.msra.mxu0 %v7161
  %7219 = vmatprep.subr.bf16.mxu0 0
  %7220 = vmatpush1.bf16.msra.mxu0 %v7162
  %7221 = vmatprep.subr.bf16.mxu0 0
  %7222 = vmatpush1.bf16.msra.mxu0 %v7163
  %7223 = vmatprep.subr.bf16.mxu0 0
  %7224 = vmatpush1.bf16.msra.mxu0 %v7164
  %7225 = vmatprep.subr.bf16.mxu0 0
  %7226 = vmatpush1.bf16.msra.mxu0 %v7165
  %7227 = vmatprep.subr.bf16.mxu0 0
  %7228 = vmatpush1.bf16.msra.mxu0 %v7166
  %7229 = vmatprep.subr.bf16.mxu0 0
  %7230 = vmatpush1.bf16.msra.mxu0 %v7167
  %7231 = vmatprep.subr.bf16.mxu0 0
  %7232 = vmatpush1.bf16.msra.mxu0 %v7168
  %7233 = vmatprep.mubr.bf16.mxu0 %v6987
  %7234 = vmatmul.mubr.bf16.gmra.mrb[0].mxu0 %v6998
  %v7235 = vpop.f32.mrb[0].mxu0
  %v7236 = vadd.f32 0.0, %v7235
  %v7237 = vpop.f32.mrb[0].mxu0
  %v7238 = vpop.f32.mrb[0].mxu0
  %v7239 = vadd.f32 0.0, %v7238
  %v7240 = vpop.f32.mrb[0].mxu0
  %7241 = vmatprep.mubr.bf16.mxu0 %v6988
  %7242 = vmatmul.mubr.bf16.gmra.mrb[0].mxu0 %v6999
  %v7243 = vpop.f32.mrb[0].mxu0
  %v7244 = vadd.f32 0.0, %v7243
  %v7245 = vpop.f32.mrb[0].mxu0
  %v7246 = vpop.f32.mrb[0].mxu0
  %v7247 = vadd.f32 0.0, %v7246
  %v7248 = vpop.f32.mrb[0].mxu0
  %7249 = vdwg.mxu0
  %7250 = vmatprep.subr.bf16.mxu0 0
  %7251 = vmatpush1.bf16.msra.mxu0 %v7169
  %7252 = vmatprep.subr.bf16.mxu0 0
  %7253 = vmatpush1.bf16.msra.mxu0 %v7170
  %7254 = vmatprep.subr.bf16.mxu0 0
  %7255 = vmatpush1.bf16.msra.mxu0 %v7171
  %7256 = vmatprep.subr.bf16.mxu0 0
  %7257 = vmatpush1.bf16.msra.mxu0 %v7172
  %7258 = vmatprep.subr.bf16.mxu0 0
  %7259 = vmatpush1.bf16.msra.mxu0 %v7173
  %7260 = vmatprep.subr.bf16.mxu0 0
  %7261 = vmatpush1.bf16.msra.mxu0 %v7174
  %7262 = vmatprep.subr.bf16.mxu0 0
  %7263 = vmatpush1.bf16.msra.mxu0 %v7175
  %7264 = vmatprep.subr.bf16.mxu0 0
  %7265 = vmatpush1.bf16.msra.mxu0 %v7176
  %7266 = vmatprep.subr.bf16.mxu0 0
  %7267 = vmatpush1.bf16.msra.mxu0 0
  %7268 = vmatprep.subr.bf16.mxu0 0
  %7269 = vmatpush1.bf16.msra.mxu0 0
  %7270 = vmatprep.subr.bf16.mxu0 0
  %7271 = vmatpush1.bf16.msra.mxu0 0
  %7272 = vmatprep.subr.bf16.mxu0 0
  %7273 = vmatpush1.bf16.msra.mxu0 0
  %7274 = vmatprep.subr.bf16.mxu0 0
  %7275 = vmatpush1.bf16.msra.mxu0 0
  %7276 = vmatprep.subr.bf16.mxu0 0
  %7277 = vmatpush1.bf16.msra.mxu0 0
  %7278 = vmatprep.subr.bf16.mxu0 0
  %7279 = vmatpush1.bf16.msra.mxu0 0
  %7280 = vmatprep.subr.bf16.mxu0 0
  %7281 = vmatpush1.bf16.msra.mxu0 0
  %7282 = vmatprep.mubr.bf16.mxu0 0
  %7283 = vmatmul.mubr.bf16.gmra.mrb[0].mxu0 %v7007
  %v7284 = vpop.f32.mrb[0].mxu0
  %v7285 = vadd.f32 %v7236, %v7284
  %v7286 = vpop.f32.mrb[0].mxu0
  %v7287 = vpop.f32.mrb[0].mxu0
  %v7288 = vadd.f32 %v7239, %v7287
  %v7289 = vpop.f32.mrb[0].mxu0
  %7290 = vmatprep.mubr.bf16.mxu0 0
  %7291 = vmatmul.mubr.bf16.gmra.mrb[0].mxu0 %v7008
  %v7292 = vpop.f32.mrb[0].mxu0
  %v7293 = vadd.f32 %v7244, %v7292
  %v7294 = vpop.f32.mrb[0].mxu0
  %v7295 = vpop.f32.mrb[0].mxu0
  %v7296 = vadd.f32 %v7247, %v7295
  %v7297 = vpop.f32.mrb[0].mxu0
  %7298 = vdwg.mxu0
  %v7299 = vsel %vm6901, %v7285, 0.0
  %v7300 = vsel %vm6902, %v7288, 0.0
  %v7301 = vsel %vm6903, %v7293, 0.0
  %v7302 = vsel %vm6904, %v7296, 0.0
  %v7303 = vadd.f32 %v7299, %v7300
  %v7304 = vadd.f32 %v7303, %v7301
  %v7305 = vadd.f32 %v7304, %v7302
  %v7306 = vrot.slane %v7305, 4
  %v7307 = vadd.f32 %v7305, %v7306
  %v7308 = vrot.slane %v7307, 2
  %v7309 = vadd.f32 %v7307, %v7308
  %v7310 = vrot.slane %v7309, 1
  %v7311 = vadd.f32 %v7309, %v7310
  %v7312 = vmul.f32 %v7299, %v7299
  %v7313 = vmul.f32 %v7300, %v7300
  %v7314 = vmul.f32 %v7301, %v7301
  %v7315 = vmul.f32 %v7302, %v7302
  %v7316 = vadd.f32 %v7312, %v7313
  %v7317 = vadd.f32 %v7316, %v7314
  %v7318 = vadd.f32 %v7317, %v7315
  %v7319 = vrot.slane %v7318, 4
  %v7320 = vadd.f32 %v7318, %v7319
  %v7321 = vrot.slane %v7320, 2
  %v7322 = vadd.f32 %v7320, %v7321
  %v7323 = vrot.slane %v7322, 1
  %v7324 = vadd.f32 %v7322, %v7323
  %v7325 = vsel %vm1073, %v7311, %v7324
  %7327 = vrot.lane.b32.xlu0 %v7325, 64
  %v7328 = vpop.permute.xlu0 %7327
  %v7330 = vadd.f32 %v7325, %v7328
  %v7331 = vmul.f32 %v7330, 0.125
  %v7332 = vmul.f32 %v7331, %v7331
  %v7334 = vrot.slane %v7332, 7
  %v7336 = vsub.f32 %v7331, %v7334
  %v7337 = vmax.f32 %v7336, 0.0
  %v7338 = vadd.f32 %v7337, 1e-05
  %v7339 = vrsqrt.pop %v7338
  %v7341 = vrot.slane %v7339, 6
  %v7343 = vmul.f32 %v29, %v7341
  %v7345 = vrot.slane %v7343, 3
  %v7347 = vmul.f32 %v7331, %v7345
  %v7349 = vrot.slane %v7347, 5
  %v7351 = vsub.f32 %v30, %v7349
  %v7353 = vrot.slane %v7351, 2
  %v7355 = vsel %vm1073, %v7345, %v7353
  %7357 = vrot.lane.b32.xlu0 %v7355, 64
  %v7358 = vpop.permute.xlu0 %7357
  %v7360 = vsel %vm131, %v7355, %v7358
  %v7361 = vlaneseq
  %v7362 = vshrl.u32 %v7361, 7
  %v7363 = vsub.s32 0, %v7362
  %v7364 = vrot.slane %v7360, %v7363
  %v7365 = vmul.f32 %v7285, %v7364
  %v7366 = vmul.f32 %v7288, %v7364
  %v7367 = vmul.f32 %v7293, %v7364
  %v7368 = vmul.f32 %v7296, %v7364
  %v7369 = vlaneseq
  %v7370 = vshrl.u32 %v7369, 7
  %v7371 = vsub.s32 1, %v7370
  %v7372 = vrot.slane %v7360, %v7371
  %v7373 = vadd.f32 %v7365, %v7372
  %v7374 = vadd.f32 %v7366, %v7372
  %v7375 = vadd.f32 %v7367, %v7372
  %v7376 = vadd.f32 %v7368, %v7372
  %v7377 = vmax.f32 %v7373, 0.0
  %v7378 = vmax.f32 %v7374, 0.0
  %v7379 = vmax.f32 %v7375, 0.0
  %v7380 = vmax.f32 %v7376, 0.0
  %7381 = vst [vmem:[%s7] sm:$0xff] %v7377
  %7382 = vst [vmem:[%s7 + $0x8] sm:$0xff] %v7378
  %7383 = vst [vmem:[%s7 + $0x10] sm:$0xff] %v7379
  %7384 = vst [vmem:[%s7 + $0x18] sm:$0xff] %v7380
  // Predicated region
  $region30: #{emb_cnn_forward.1} parent=0 // pred_check
    _
  $region31: #{emb_cnn_forward.1} parent=0 // pred_check_branch
    %7386 = sbr.rel (0) target = $region33
  $region32: #{emb_cnn_forward.1} parent=0 // pred_region
    _
  $region33: #{emb_cnn_forward.1} parent=0 // pred_fallthru
    _
  // Predicated region
  $region34: #{emb_cnn_forward.1} parent=0 // pred_check
    _
  $region35: #{emb_cnn_forward.1} parent=0 // pred_check_branch
    %7388 = sbr.rel (0) target = $region37
  $region36: #{emb_cnn_forward.1} parent=0 // pred_region
    _
  $region37: #{emb_cnn_forward.1} parent=0 // pred_fallthru
    _

</llo_original>
